<compile_context>
chip_gen: v7x
topology: tpu7x:2x2x1
jax: 0.10.0
libtpu: 0.0.40
codegen_flags: <defaults>
</compile_context>

<pallas_src>
import numpy as np

import jax
import jax.numpy as jnp
from jax.experimental import pallas as pl
from jax.experimental.pallas import tpu as pltpu


# ----------------------------------------------------------------------------
# Network structure (matches the PyTorch ResidualNet9)
# ----------------------------------------------------------------------------
def block_configs(channels):
    C = channels
    return [
        (C,     2 * C, "down"),
        (2 * C, 2 * C, "none"),
        (2 * C, 2 * C, "none"),
        (2 * C, 4 * C, "down"),
        (4 * C, 4 * C, "none"),
        (4 * C, 4 * C, "none"),
        (4 * C, 8 * C, "down"),
        (8 * C, 8 * C, "none"),
        (8 * C, 8 * C, "none"),
    ]


def _init_conv(key, kh, kw, cin, cout, bias=True):
    # PyTorch-style uniform(-1/sqrt(fan_in), +1/sqrt(fan_in)) init, deterministic.
    fan_in = cin * kh * kw
    bound = 1.0 / (fan_in ** 0.5)
    k_w, k_b = jax.random.split(key)
    w = jax.random.uniform(k_w, (kh, kw, cin, cout), jnp.float32, -bound, bound)
    b = (jax.random.uniform(k_b, (cout,), jnp.float32, -bound, bound)
         if bias else None)
    return w, b


def init_params(key, in_channels, channels):
    cfgs = block_configs(channels)
    keys = jax.random.split(key, 1 + 3 * len(cfgs))
    stem_w, stem_b = _init_conv(keys[0], 3, 3, in_channels, channels, bias=True)
    blocks = []
    for i, (cin, cout, _resample) in enumerate(cfgs):
        k1, k2, k3 = keys[1 + 3 * i], keys[2 + 3 * i], keys[3 + 3 * i]
        c1_w, _ = _init_conv(k1, 3, 3, cin, cin, bias=False)     # conv1 (no bias)
        c2_w, c2_b = _init_conv(k2, 3, 3, cin, cout, bias=True)  # conv2 (3x3)
        sc_w, sc_b = _init_conv(k3, 1, 1, cin, cout, bias=True)  # shortcut (1x1)
        blocks.append(dict(conv1_w=c1_w, conv2_w=c2_w, conv2_b=c2_b,
                           sc_w=sc_w, sc_b=sc_b))
    return dict(stem_w=stem_w, stem_b=stem_b, blocks=blocks)


# ----------------------------------------------------------------------------
# Host-side weight transforms (numpy, done once).
# Activation layout inside the kernel: (H, W*C) with channels fastest on lanes.
# ----------------------------------------------------------------------------
def _band_weight(w, Wd, pad):
    """(KH,KW,Cin,Cout) -> (KH, Wd*Cin, Wd*Cout): width taps + width zero
    padding folded into a block-banded matrix (one band matrix per kh)."""
    w = np.asarray(w, np.float32)
    KH, KW, Cin, Cout = w.shape
    B = np.zeros((KH, Wd * Cin, Wd * Cout), np.float32)
    for kh in range(KH):
        for wp in range(Wd):
            for kw in range(KW):
                q = wp + kw - pad
                if 0 <= q < Wd:
                    B[kh, q * Cin:(q + 1) * Cin,
                      wp * Cout:(wp + 1) * Cout] = w[kh, kw]
    return B


def _row_pool_mat(Hc):
    R = np.zeros((Hc // 2, Hc), np.float32)
    for h in range(Hc // 2):
        R[h, 2 * h] = 0.5
        R[h, 2 * h + 1] = 0.5
    return R


def _col_pool_mat(Wd, C):
    P = np.zeros((Wd * C, (Wd // 2) * C), np.float32)
    eye = 0.5 * np.eye(C, dtype=np.float32)
    for wp in range(Wd // 2):
        for dw in range(2):
            P[(2 * wp + dw) * C:(2 * wp + dw + 1) * C,
              wp * C:(wp + 1) * C] = eye
    return P


def _bias_plane(b, Wd):
    return np.tile(np.asarray(b, np.float32), Wd)[None, :]   # (1, Wd*Cout)


class _WeightStore:
    """Groups small constant arrays by (shape, dtype) and stacks each group into
    one kernel input, so the pallas_call has ~12 operands instead of ~60."""

    def __init__(self):
        self._groups = {}
        self._order = []

    def add(self, arr, dtype):
        arr = np.asarray(arr, np.float32)
        key = (arr.shape, dtype)
        if key not in self._groups:
            self._groups[key] = []
            self._order.append(key)
        idx = len(self._groups[key])
        self._groups[key].append(arr)
        return (key, idx)

    def finalize(self):
        arrays, pos = [], {}
        for i, key in enumerate(self._order):
            shape, dtype = key
            arrays.append(jnp.asarray(np.stack(self._groups[key], 0), dtype))
            pos[key] = i
        return arrays, pos


def _const_index_map(nd):
    def imap(n):
        return (0,) * nd
    return imap


# ----------------------------------------------------------------------------
# Fused whole-network forward (one pallas_call, grid over the batch)
# ----------------------------------------------------------------------------
def build_forward(params, in_channels, channels, H, W):
    assert H % 8 == 0 and W % 8 == 0, "three 2x2 avg-pools require /8 spatial"
    cfgs = block_configs(channels)

    store = _WeightStore()
    scratch_shapes = []
    scratch_key = {}

    def pad_scratch(Hc, Wc, Cin):
        # Padded-activation scratch: 8 zero rows on top (keeps the interior
        # store sublane-aligned), 1 zero halo row below; zero width-padding is
        # folded into the banded weights so the lane dim stays Wc*Cin.
        key = (Hc + 9, Wc * Cin)
        if key not in scratch_key:
            scratch_key[key] = len(scratch_shapes)
            scratch_shapes.append(pltpu.VMEM(key, jnp.float32))
        return scratch_key[key]

    # ---- stem ----
    stem = dict(
        H=H,
        w=store.add(_band_weight(params["stem_w"], W, 1), jnp.bfloat16),
        b=store.add(_bias_plane(params["stem_b"], W), jnp.float32),
        pad=pad_scratch(H, W, in_channels),
    )

    # ---- residual blocks ----
    blocks_plan = []
    Hc, Wc = H, W
    for blk_p, (cin, cout, resample) in zip(params["blocks"], cfgs):
        down = (resample == "down")
        b = dict(
            H=Hc, down=down,
            w1=store.add(_band_weight(blk_p["conv1_w"], Wc, 1), jnp.bfloat16),
            pad1=pad_scratch(Hc, Wc, cin),
            w2=store.add(_band_weight(blk_p["conv2_w"], Wc, 1), jnp.bfloat16),
            b2=store.add(_bias_plane(blk_p["conv2_b"], Wc), jnp.float32),
            pad2=pad_scratch(Hc, Wc, cin),
        )
        if down:
            b["Rp"] = store.add(_row_pool_mat(Hc), jnp.bfloat16)
            b["Ph"] = store.add(_col_pool_mat(Wc, cout), jnp.bfloat16)
            b["Px"] = store.add(_col_pool_mat(Wc, cin), jnp.bfloat16)
            b["wsc"] = store.add(_band_weight(blk_p["sc_w"], Wc // 2, 0),
                                 jnp.bfloat16)
            b["bsc"] = store.add(_bias_plane(blk_p["sc_b"], Wc // 2),
                                 jnp.float32)
        else:
            b["wsc"] = store.add(_band_weight(blk_p["sc_w"], Wc, 0),
                                 jnp.bfloat16)
            b["bsc"] = store.add(_bias_plane(blk_p["sc_b"], Wc), jnp.float32)
        blocks_plan.append(b)
        if down:
            Hc, Wc = Hc // 2, Wc // 2

    Hf, Wf, Cf = Hc, Wc, 8 * channels
    weight_arrays, pos = store.finalize()
    n_w = len(weight_arrays)

    # ---- the fused kernel (one batch element per grid step) ----
    def kernel(*refs):
        x_ref = refs[0]
        w_refs = refs[1:1 + n_w]
        o_ref = refs[1 + n_w]
        scratch = refs[2 + n_w:]

        def _w(handle):
            key, idx = handle
            return w_refs[pos[key]], idx

        # Zero the padded-activation scratches: halo rows stay zero, interiors
        # are fully overwritten before every use.
        for s in scratch:
            s[...] = jnp.zeros(s.shape, jnp.float32)

        def elu(v):  # ELU(alpha=1), applied exactly once per tensor
            return jnp.where(v > 0, v, jnp.exp(jnp.minimum(v, 0.0)) - 1.0)

        def conv3x3(act, Hc, w_handle, b_handle, pad_idx):
            # act: (Hc, Wc*Cin) f32 ; banded weight: (3, Wc*Cin, Wc*Cout) bf16
            pad_ref = scratch[pad_idx]
            pad_ref[pl.ds(8, Hc), :] = act          # interior (halo rows stay 0)
            wref, wi = _w(w_handle)
            parts = []
            for kh in range(3):
                slab = pad_ref[pl.ds(7 + kh, Hc), :].astype(jnp.bfloat16)
                parts.append(jnp.dot(slab, wref[wi, kh],
                                     preferred_element_type=jnp.float32))
            out = parts[0] + parts[1] + parts[2]
            if b_handle is not None:
                bref, bi = _w(b_handle)
                out = out + bref[bi]
            return out

        def conv1x1(act, w_handle, b_handle):
            wref, wi = _w(w_handle)
            bref, bi = _w(b_handle)
            out = jnp.dot(act.astype(jnp.bfloat16), wref[wi, 0],
                          preferred_element_type=jnp.float32)
            return out + bref[bi]

        def avg_pool2(act, r_handle, p_handle):
            rref, ri = _w(r_handle)
            pref, pi = _w(p_handle)
            t = jnp.dot(rref[ri], act.astype(jnp.bfloat16),
                        preferred_element_type=jnp.float32)
            return jnp.dot(t.astype(jnp.bfloat16), pref[pi],
                           preferred_element_type=jnp.float32)

        act = x_ref[0]                                  # (H, W*in_channels) f32
        act = conv3x3(act, stem["H"], stem["w"], stem["b"], stem["pad"])

        for blk in blocks_plan:
            x_in = act
            h = conv3x3(elu(x_in), blk["H"], blk["w1"], None, blk["pad1"])
            h = conv3x3(elu(h), blk["H"], blk["w2"], blk["b2"], blk["pad2"])
            if blk["down"]:
                h = avg_pool2(h, blk["Rp"], blk["Ph"])
                sc = avg_pool2(x_in, blk["Rp"], blk["Px"])
                sc = conv1x1(sc, blk["wsc"], blk["bsc"])
            else:
                sc = conv1x1(x_in, blk["wsc"], blk["bsc"])
            act = h + sc

        o_ref[0] = act.astype(o_ref.dtype)

    in_specs = [pl.BlockSpec((1, H, W * in_channels), lambda n: (n, 0, 0))]
    in_specs += [pl.BlockSpec(w.shape, _const_index_map(w.ndim))
                 for w in weight_arrays]
    out_spec = pl.BlockSpec((1, Hf, Wf * Cf), lambda n: (n, 0, 0))
    weights_t = tuple(weight_arrays)

    def forward(x_nchw):
        N = x_nchw.shape[0]
        # NCHW -> (N, H, W*Cin), channels fastest on the lane dim.
        x = jnp.transpose(x_nchw.astype(jnp.float32), (0, 2, 3, 1))
        x = x.reshape(N, H, W * in_channels)
        out = pl.pallas_call(
            kernel,
            out_shape=jax.ShapeDtypeStruct((N, Hf, Wf * Cf), jnp.float32),
            grid=(N,),
            in_specs=in_specs,
            out_specs=out_spec,
            scratch_shapes=scratch_shapes,
            compiler_params=pltpu.CompilerParams(
                dimension_semantics=("parallel",)),
        )(x, *weights_t)
        # back to NCHW then flatten(1), exactly like PyTorch
        out = out.reshape(N, Hf, Wf, Cf)
        out = jnp.transpose(out, (0, 3, 1, 2))
        return out.reshape(N, -1)

    return forward


# ----------------------------------------------------------------------------
# Plain-JAX reference (XLA convs) used only for the self-check in __main__.
# ----------------------------------------------------------------------------
def _elu_ref(x):
    return jnp.where(x > 0, x, jnp.exp(jnp.minimum(x, 0.0)) - 1.0)


def _conv_ref(x, w, b):
    out = jax.lax.conv_general_dilated(
        x, w, window_strides=(1, 1), padding="SAME",
        dimension_numbers=("NHWC", "HWIO", "NHWC"))
    return out if b is None else out + b


def _pool_ref(x):
    N, Hc, Wc, C = x.shape
    return x.reshape(N, Hc // 2, 2, Wc // 2, 2, C).mean(axis=(2, 4))


def reference_forward(x_nchw, params, channels):
    cfgs = block_configs(channels)
    x = jnp.transpose(x_nchw, (0, 2, 3, 1)).astype(jnp.float32)
    x = _conv_ref(x, params["stem_w"], params["stem_b"])
    for blk, (_cin, _cout, resample) in zip(params["blocks"], cfgs):
        h = _conv_ref(_elu_ref(x), blk["conv1_w"], None)
        h = _conv_ref(_elu_ref(h), blk["conv2_w"], blk["conv2_b"])
        if resample == "down":
            h = _pool_ref(h)
            sc = _conv_ref(_pool_ref(x), blk["sc_w"], blk["sc_b"])
        else:
            sc = _conv_ref(x, blk["sc_w"], blk["sc_b"])
        x = h + sc
    x = jnp.transpose(x, (0, 3, 1, 2))
    return x.reshape(x.shape[0], -1)


# ----------------------------------------------------------------------------
if __name__ == "__main__":
    key = jax.random.PRNGKey(0)
    in_channels, channels = 4, 4
    N, H, W = 2, 16, 16

    pkey, xkey = jax.random.split(key)
    params = init_params(pkey, in_channels, channels)
    x = jax.random.normal(xkey, (N, in_channels, H, W), dtype=jnp.float32)

    fwd = jax.jit(build_forward(params, in_channels, channels, H, W))
    out = fwd(x)
    jax.block_until_ready(out)

    expected = (N, 8 * channels * (H // 8) * (W // 8))
    assert out.shape == expected, (out.shape, expected)
    assert bool(jnp.all(jnp.isfinite(out)))

    # Cross-check against the plain-JAX reference (loose tolerance: the kernel
    # uses bf16 MXU inputs with f32 accumulation across ~20 conv layers).
    ref = reference_forward(x, params, channels)
    err = float(jnp.max(jnp.abs(out - ref)) / (jnp.max(jnp.abs(ref)) + 1e-6))
    assert err < 0.2, err

    print("KERNEL_OK")
</pallas_src>

<mosaic_0001>
module attributes {stable_mosaic.version = 11 : i64} {
  func.func @kernel(%arg0: i32, %arg1: memref<1x16x64xf32, #tpu.memory_space<vmem>>, %arg2: memref<16x3x64x64xbf16, #tpu.memory_space<vmem>>, %arg3: memref<16x1x64xf32, #tpu.memory_space<vmem>>, %arg4: memref<3x3x64x128xbf16, #tpu.memory_space<vmem>>, %arg5: memref<3x1x128xf32, #tpu.memory_space<vmem>>, %arg6: memref<1x8x16xbf16, #tpu.memory_space<vmem>>, %arg7: memref<3x128x64xbf16, #tpu.memory_space<vmem>>, %arg8: memref<3x64x32xbf16, #tpu.memory_space<vmem>>, %arg9: memref<3x1x32x64xbf16, #tpu.memory_space<vmem>>, %arg10: memref<6x1x64x64xbf16, #tpu.memory_space<vmem>>, %arg11: memref<1x4x8xbf16, #tpu.memory_space<vmem>>, %arg12: memref<1x2x4xbf16, #tpu.memory_space<vmem>>, %arg13: memref<1x2x64xf32, #tpu.memory_space<vmem>>, %arg14: memref<25x64xf32, #tpu.memory_space<vmem>>, %arg15: memref<17x64xf32, #tpu.memory_space<vmem>>, %arg16: memref<13x64xf32, #tpu.memory_space<vmem>>, %arg17: memref<11x64xf32, #tpu.memory_space<vmem>>) attributes {dimension_semantics = [#tpu.dimension_semantics<parallel>], iteration_bounds = array<i64: 2>, scalar_prefetch = 0 : i64, scratch_operands = 4 : i64, tpu.core_type = #tpu.core_type<tc>, window_params = [{transform_indices = @transform_0, window_bounds = array<i64: 1, 16, 64>}, {pipeline_mode = #tpu.pipeline_mode<synchronous>, transform_indices = @transform_1, window_bounds = array<i64: 16, 3, 64, 64>}, {pipeline_mode = #tpu.pipeline_mode<synchronous>, transform_indices = @transform_2, window_bounds = array<i64: 16, 1, 64>}, {pipeline_mode = #tpu.pipeline_mode<synchronous>, transform_indices = @transform_3, window_bounds = array<i64: 3, 3, 64, 128>}, {pipeline_mode = #tpu.pipeline_mode<synchronous>, transform_indices = @transform_4, window_bounds = array<i64: 3, 1, 128>}, {pipeline_mode = #tpu.pipeline_mode<synchronous>, transform_indices = @transform_5, window_bounds = array<i64: 1, 8, 16>}, {pipeline_mode = #tpu.pipeline_mode<synchronous>, transform_indices = @transform_6, window_bounds = array<i64: 3, 128, 64>}, {pipeline_mode = #tpu.pipeline_mode<synchronous>, transform_indices = @transform_7, window_bounds = array<i64: 3, 64, 32>}, {pipeline_mode = #tpu.pipeline_mode<synchronous>, transform_indices = @transform_8, window_bounds = array<i64: 3, 1, 32, 64>}, {pipeline_mode = #tpu.pipeline_mode<synchronous>, transform_indices = @transform_9, window_bounds = array<i64: 6, 1, 64, 64>}, {pipeline_mode = #tpu.pipeline_mode<synchronous>, transform_indices = @transform_10, window_bounds = array<i64: 1, 4, 8>}, {pipeline_mode = #tpu.pipeline_mode<synchronous>, transform_indices = @transform_11, window_bounds = array<i64: 1, 2, 4>}, {transform_indices = @transform_12, window_bounds = array<i64: 1, 2, 64>}]} {
    %cst = arith.constant 0.000000e+00 : f32
    %0 = vector.broadcast %cst : f32 to vector<25x64xf32>
    %c0 = arith.constant 0 : index
    %c0_0 = arith.constant 0 : index
    %1 = vector.load %arg14[%c0, %c0_0] : memref<25x64xf32, #tpu.memory_space<vmem>>, vector<25x64xf32>
    tpu.vector_store %arg14[%c0, %c0_0], %0 {strides = array<i32>} : memref<25x64xf32, #tpu.memory_space<vmem>>, vector<25x64xf32>,
    %cst_1 = arith.constant 0.000000e+00 : f32
    %2 = vector.broadcast %cst_1 : f32 to vector<17x64xf32>
    %c0_2 = arith.constant 0 : index
    %c0_3 = arith.constant 0 : index
    %3 = vector.load %arg15[%c0_2, %c0_3] : memref<17x64xf32, #tpu.memory_space<vmem>>, vector<17x64xf32>
    tpu.vector_store %arg15[%c0_2, %c0_3], %2 {strides = array<i32>} : memref<17x64xf32, #tpu.memory_space<vmem>>, vector<17x64xf32>,
    %cst_4 = arith.constant 0.000000e+00 : f32
    %4 = vector.broadcast %cst_4 : f32 to vector<13x64xf32>
    %c0_5 = arith.constant 0 : index
    %c0_6 = arith.constant 0 : index
    %5 = vector.load %arg16[%c0_5, %c0_6] : memref<13x64xf32, #tpu.memory_space<vmem>>, vector<13x64xf32>
    tpu.vector_store %arg16[%c0_5, %c0_6], %4 {strides = array<i32>} : memref<13x64xf32, #tpu.memory_space<vmem>>, vector<13x64xf32>,
    %cst_7 = arith.constant 0.000000e+00 : f32
    %6 = vector.broadcast %cst_7 : f32 to vector<11x64xf32>
    %c0_8 = arith.constant 0 : index
    %c0_9 = arith.constant 0 : index
    %7 = vector.load %arg17[%c0_8, %c0_9] : memref<11x64xf32, #tpu.memory_space<vmem>>, vector<11x64xf32>
    tpu.vector_store %arg17[%c0_8, %c0_9], %6 {strides = array<i32>} : memref<11x64xf32, #tpu.memory_space<vmem>>, vector<11x64xf32>,
    %c0_10 = arith.constant 0 : index
    %c0_11 = arith.constant 0 : index
    %c0_12 = arith.constant 0 : index
    %8 = vector.load %arg1[%c0_10, %c0_11, %c0_12] : memref<1x16x64xf32, #tpu.memory_space<vmem>>, vector<1x16x64xf32>
    %9 = vector.shape_cast %8 : vector<1x16x64xf32> to vector<16x64xf32>
    %c8 = arith.constant 8 : index
    %c0_13 = arith.constant 0 : index
    %10 = vector.load %arg14[%c8, %c0_13] : memref<25x64xf32, #tpu.memory_space<vmem>>, vector<16x64xf32>
    tpu.vector_store %arg14[%c8, %c0_13], %9 {strides = array<i32>} : memref<25x64xf32, #tpu.memory_space<vmem>>, vector<16x64xf32>,
    %c7 = arith.constant 7 : index
    %c0_14 = arith.constant 0 : index
    %11 = vector.load %arg14[%c7, %c0_14] : memref<25x64xf32, #tpu.memory_space<vmem>>, vector<16x64xf32>
    %12 = arith.truncf %11 : vector<16x64xf32> to vector<16x64xbf16>
    %c0_15 = arith.constant 0 : index
    %c0_16 = arith.constant 0 : index
    %c0_17 = arith.constant 0 : index
    %c0_18 = arith.constant 0 : index
    %13 = vector.load %arg2[%c0_15, %c0_16, %c0_17, %c0_18] : memref<16x3x64x64xbf16, #tpu.memory_space<vmem>>, vector<1x1x64x64xbf16>
    %14 = vector.shape_cast %13 : vector<1x1x64x64xbf16> to vector<64x64xbf16>
    %cst_19 = arith.constant dense<0.000000e+00> : vector<16x64xf32>
    %15 = tpu.matmul %12, %14, %cst_19 {dimension_numbers = #tpu.dot_dimension_numbers<[1], [0], [0], [1], [0, 0, 1, 1], [], []>} : vector<16x64xbf16>, vector<64x64xbf16>, vector<16x64xf32> -> vector<16x64xf32>
    %c8_20 = arith.constant 8 : index
    %c0_21 = arith.constant 0 : index
    %16 = vector.load %arg14[%c8_20, %c0_21] : memref<25x64xf32, #tpu.memory_space<vmem>>, vector<16x64xf32>
    %17 = arith.truncf %16 : vector<16x64xf32> to vector<16x64xbf16>
    %c0_22 = arith.constant 0 : index
    %c1 = arith.constant 1 : index
    %c0_23 = arith.constant 0 : index
    %c0_24 = arith.constant 0 : index
    %18 = vector.load %arg2[%c0_22, %c1, %c0_23, %c0_24] : memref<16x3x64x64xbf16, #tpu.memory_space<vmem>>, vector<1x1x64x64xbf16>
    %19 = vector.shape_cast %18 : vector<1x1x64x64xbf16> to vector<64x64xbf16>
    %cst_25 = arith.constant dense<0.000000e+00> : vector<16x64xf32>
    %20 = tpu.matmul %17, %19, %cst_25 {dimension_numbers = #tpu.dot_dimension_numbers<[1], [0], [0], [1], [0, 0, 1, 1], [], []>} : vector<16x64xbf16>, vector<64x64xbf16>, vector<16x64xf32> -> vector<16x64xf32>
    %c9 = arith.constant 9 : index
    %c0_26 = arith.constant 0 : index
    %21 = vector.load %arg14[%c9, %c0_26] : memref<25x64xf32, #tpu.memory_space<vmem>>, vector<16x64xf32>
    %22 = arith.truncf %21 : vector<16x64xf32> to vector<16x64xbf16>
    %c0_27 = arith.constant 0 : index
    %c2 = arith.constant 2 : index
    %c0_28 = arith.constant 0 : index
    %c0_29 = arith.constant 0 : index
    %23 = vector.load %arg2[%c0_27, %c2, %c0_28, %c0_29] : memref<16x3x64x64xbf16, #tpu.memory_space<vmem>>, vector<1x1x64x64xbf16>
    %24 = vector.shape_cast %23 : vector<1x1x64x64xbf16> to vector<64x64xbf16>
    %cst_30 = arith.constant dense<0.000000e+00> : vector<16x64xf32>
    %25 = tpu.matmul %22, %24, %cst_30 {dimension_numbers = #tpu.dot_dimension_numbers<[1], [0], [0], [1], [0, 0, 1, 1], [], []>} : vector<16x64xbf16>, vector<64x64xbf16>, vector<16x64xf32> -> vector<16x64xf32>
    %26 = arith.addf %15, %20 : vector<16x64xf32>
    %27 = arith.addf %26, %25 : vector<16x64xf32>
    %c0_31 = arith.constant 0 : index
    %c0_32 = arith.constant 0 : index
    %c0_33 = arith.constant 0 : index
    %28 = vector.load %arg3[%c0_31, %c0_32, %c0_33] : memref<16x1x64xf32, #tpu.memory_space<vmem>>, vector<1x1x64xf32>
    %29 = vector.shape_cast %28 : vector<1x1x64xf32> to vector<1x64xf32>
    %30 = vector.broadcast %29 : vector<1x64xf32> to vector<16x64xf32>
    %31 = arith.addf %27, %30 : vector<16x64xf32>
    %cst_34 = arith.constant 0.000000e+00 : f32
    %32 = vector.broadcast %cst_34 : f32 to vector<16x64xf32>
    %33 = arith.cmpf ogt, %31, %32 : vector<16x64xf32>
    %cst_35 = arith.constant 0.000000e+00 : f32
    %34 = vector.broadcast %cst_35 : f32 to vector<16x64xf32>
    %35 = arith.minimumf %31, %34 : vector<16x64xf32>
    %36 = math.exp %35 : vector<16x64xf32>
    %cst_36 = arith.constant 1.000000e+00 : f32
    %37 = vector.broadcast %cst_36 : f32 to vector<16x64xf32>
    %38 = arith.subf %36, %37 : vector<16x64xf32>
    %39 = arith.select %33, %31, %38 : vector<16x64xi1>, vector<16x64xf32>
    %c8_37 = arith.constant 8 : index
    %c0_38 = arith.constant 0 : index
    %40 = vector.load %arg14[%c8_37, %c0_38] : memref<25x64xf32, #tpu.memory_space<vmem>>, vector<16x64xf32>
    tpu.vector_store %arg14[%c8_37, %c0_38], %39 {strides = array<i32>} : memref<25x64xf32, #tpu.memory_space<vmem>>, vector<16x64xf32>,
    %c7_39 = arith.constant 7 : index
    %c0_40 = arith.constant 0 : index
    %41 = vector.load %arg14[%c7_39, %c0_40] : memref<25x64xf32, #tpu.memory_space<vmem>>, vector<16x64xf32>
    %42 = arith.truncf %41 : vector<16x64xf32> to vector<16x64xbf16>
    %c1_41 = arith.constant 1 : index
    %c0_42 = arith.constant 0 : index
    %c0_43 = arith.constant 0 : index
    %c0_44 = arith.constant 0 : index
    %43 = vector.load %arg2[%c1_41, %c0_42, %c0_43, %c0_44] : memref<16x3x64x64xbf16, #tpu.memory_space<vmem>>, vector<1x1x64x64xbf16>
    %44 = vector.shape_cast %43 : vector<1x1x64x64xbf16> to vector<64x64xbf16>
    %cst_45 = arith.constant dense<0.000000e+00> : vector<16x64xf32>
    %45 = tpu.matmul %42, %44, %cst_45 {dimension_numbers = #tpu.dot_dimension_numbers<[1], [0], [0], [1], [0, 0, 1, 1], [], []>} : vector<16x64xbf16>, vector<64x64xbf16>, vector<16x64xf32> -> vector<16x64xf32>
    %c8_46 = arith.constant 8 : index
    %c0_47 = arith.constant 0 : index
    %46 = vector.load %arg14[%c8_46, %c0_47] : memref<25x64xf32, #tpu.memory_space<vmem>>, vector<16x64xf32>
    %47 = arith.truncf %46 : vector<16x64xf32> to vector<16x64xbf16>
    %c1_48 = arith.constant 1 : index
    %c1_49 = arith.constant 1 : index
    %c0_50 = arith.constant 0 : index
    %c0_51 = arith.constant 0 : index
    %48 = vector.load %arg2[%c1_48, %c1_49, %c0_50, %c0_51] : memref<16x3x64x64xbf16, #tpu.memory_space<vmem>>, vector<1x1x64x64xbf16>
    %49 = vector.shape_cast %48 : vector<1x1x64x64xbf16> to vector<64x64xbf16>
    %cst_52 = arith.constant dense<0.000000e+00> : vector<16x64xf32>
    %50 = tpu.matmul %47, %49, %cst_52 {dimension_numbers = #tpu.dot_dimension_numbers<[1], [0], [0], [1], [0, 0, 1, 1], [], []>} : vector<16x64xbf16>, vector<64x64xbf16>, vector<16x64xf32> -> vector<16x64xf32>
    %c9_53 = arith.constant 9 : index
    %c0_54 = arith.constant 0 : index
    %51 = vector.load %arg14[%c9_53, %c0_54] : memref<25x64xf32, #tpu.memory_space<vmem>>, vector<16x64xf32>
    %52 = arith.truncf %51 : vector<16x64xf32> to vector<16x64xbf16>
    %c1_55 = arith.constant 1 : index
    %c2_56 = arith.constant 2 : index
    %c0_57 = arith.constant 0 : index
    %c0_58 = arith.constant 0 : index
    %53 = vector.load %arg2[%c1_55, %c2_56, %c0_57, %c0_58] : memref<16x3x64x64xbf16, #tpu.memory_space<vmem>>, vector<1x1x64x64xbf16>
    %54 = vector.shape_cast %53 : vector<1x1x64x64xbf16> to vector<64x64xbf16>
    %cst_59 = arith.constant dense<0.000000e+00> : vector<16x64xf32>
    %55 = tpu.matmul %52, %54, %cst_59 {dimension_numbers = #tpu.dot_dimension_numbers<[1], [0], [0], [1], [0, 0, 1, 1], [], []>} : vector<16x64xbf16>, vector<64x64xbf16>, vector<16x64xf32> -> vector<16x64xf32>
    %56 = arith.addf %45, %50 : vector<16x64xf32>
    %57 = arith.addf %56, %55 : vector<16x64xf32>
    %cst_60 = arith.constant 0.000000e+00 : f32
    %58 = vector.broadcast %cst_60 : f32 to vector<16x64xf32>
    %59 = arith.cmpf ogt, %57, %58 : vector<16x64xf32>
    %cst_61 = arith.constant 0.000000e+00 : f32
    %60 = vector.broadcast %cst_61 : f32 to vector<16x64xf32>
    %61 = arith.minimumf %57, %60 : vector<16x64xf32>
    %62 = math.exp %61 : vector<16x64xf32>
    %cst_62 = arith.constant 1.000000e+00 : f32
    %63 = vector.broadcast %cst_62 : f32 to vector<16x64xf32>
    %64 = arith.subf %62, %63 : vector<16x64xf32>
    %65 = arith.select %59, %57, %64 : vector<16x64xi1>, vector<16x64xf32>
    %c8_63 = arith.constant 8 : index
    %c0_64 = arith.constant 0 : index
    %66 = vector.load %arg14[%c8_63, %c0_64] : memref<25x64xf32, #tpu.memory_space<vmem>>, vector<16x64xf32>
    tpu.vector_store %arg14[%c8_63, %c0_64], %65 {strides = array<i32>} : memref<25x64xf32, #tpu.memory_space<vmem>>, vector<16x64xf32>,
    %c7_65 = arith.constant 7 : index
    %c0_66 = arith.constant 0 : index
    %67 = vector.load %arg14[%c7_65, %c0_66] : memref<25x64xf32, #tpu.memory_space<vmem>>, vector<16x64xf32>
    %68 = arith.truncf %67 : vector<16x64xf32> to vector<16x64xbf16>
    %c0_67 = arith.constant 0 : index
    %c0_68 = arith.constant 0 : index
    %c0_69 = arith.constant 0 : index
    %c0_70 = arith.constant 0 : index
    %69 = vector.load %arg4[%c0_67, %c0_68, %c0_69, %c0_70] : memref<3x3x64x128xbf16, #tpu.memory_space<vmem>>, vector<1x1x64x128xbf16>
    %70 = vector.shape_cast %69 : vector<1x1x64x128xbf16> to vector<64x128xbf16>
    %cst_71 = arith.constant dense<0.000000e+00> : vector<16x128xf32>
    %71 = tpu.matmul %68, %70, %cst_71 {dimension_numbers = #tpu.dot_dimension_numbers<[1], [0], [0], [1], [0, 0, 1, 1], [], []>} : vector<16x64xbf16>, vector<64x128xbf16>, vector<16x128xf32> -> vector<16x128xf32>
    %c8_72 = arith.constant 8 : index
    %c0_73 = arith.constant 0 : index
    %72 = vector.load %arg14[%c8_72, %c0_73] : memref<25x64xf32, #tpu.memory_space<vmem>>, vector<16x64xf32>
    %73 = arith.truncf %72 : vector<16x64xf32> to vector<16x64xbf16>
    %c0_74 = arith.constant 0 : index
    %c1_75 = arith.constant 1 : index
    %c0_76 = arith.constant 0 : index
    %c0_77 = arith.constant 0 : index
    %74 = vector.load %arg4[%c0_74, %c1_75, %c0_76, %c0_77] : memref<3x3x64x128xbf16, #tpu.memory_space<vmem>>, vector<1x1x64x128xbf16>
    %75 = vector.shape_cast %74 : vector<1x1x64x128xbf16> to vector<64x128xbf16>
    %cst_78 = arith.constant dense<0.000000e+00> : vector<16x128xf32>
    %76 = tpu.matmul %73, %75, %cst_78 {dimension_numbers = #tpu.dot_dimension_numbers<[1], [0], [0], [1], [0, 0, 1, 1], [], []>} : vector<16x64xbf16>, vector<64x128xbf16>, vector<16x128xf32> -> vector<16x128xf32>
    %c9_79 = arith.constant 9 : index
    %c0_80 = arith.constant 0 : index
    %77 = vector.load %arg14[%c9_79, %c0_80] : memref<25x64xf32, #tpu.memory_space<vmem>>, vector<16x64xf32>
    %78 = arith.truncf %77 : vector<16x64xf32> to vector<16x64xbf16>
    %c0_81 = arith.constant 0 : index
    %c2_82 = arith.constant 2 : index
    %c0_83 = arith.constant 0 : index
    %c0_84 = arith.constant 0 : index
    %79 = vector.load %arg4[%c0_81, %c2_82, %c0_83, %c0_84] : memref<3x3x64x128xbf16, #tpu.memory_space<vmem>>, vector<1x1x64x128xbf16>
    %80 = vector.shape_cast %79 : vector<1x1x64x128xbf16> to vector<64x128xbf16>
    %cst_85 = arith.constant dense<0.000000e+00> : vector<16x128xf32>
    %81 = tpu.matmul %78, %80, %cst_85 {dimension_numbers = #tpu.dot_dimension_numbers<[1], [0], [0], [1], [0, 0, 1, 1], [], []>} : vector<16x64xbf16>, vector<64x128xbf16>, vector<16x128xf32> -> vector<16x128xf32>
    %82 = arith.addf %71, %76 : vector<16x128xf32>
    %83 = arith.addf %82, %81 : vector<16x128xf32>
    %c0_86 = arith.constant 0 : index
    %c0_87 = arith.constant 0 : index
    %c0_88 = arith.constant 0 : index
    %84 = vector.load %arg5[%c0_86, %c0_87, %c0_88] : memref<3x1x128xf32, #tpu.memory_space<vmem>>, vector<1x1x128xf32>
    %85 = vector.shape_cast %84 : vector<1x1x128xf32> to vector<1x128xf32>
    %86 = vector.broadcast %85 : vector<1x128xf32> to vector<16x128xf32>
    %87 = arith.addf %83, %86 : vector<16x128xf32>
    %c0_89 = arith.constant 0 : index
    %c0_90 = arith.constant 0 : index
    %c0_91 = arith.constant 0 : index
    %88 = vector.load %arg6[%c0_89, %c0_90, %c0_91] : memref<1x8x16xbf16, #tpu.memory_space<vmem>>, vector<1x8x16xbf16>
    %89 = vector.shape_cast %88 : vector<1x8x16xbf16> to vector<8x16xbf16>
    %90 = arith.truncf %87 : vector<16x128xf32> to vector<16x128xbf16>
    %cst_92 = arith.constant dense<0.000000e+00> : vector<8x128xf32>
    %91 = tpu.matmul %89, %90, %cst_92 {dimension_numbers = #tpu.dot_dimension_numbers<[1], [0], [0], [1], [0, 0, 1, 1], [], []>} : vector<8x16xbf16>, vector<16x128xbf16>, vector<8x128xf32> -> vector<8x128xf32>
    %92 = arith.truncf %91 : vector<8x128xf32> to vector<8x128xbf16>
    %c0_93 = arith.constant 0 : index
    %c0_94 = arith.constant 0 : index
    %c0_95 = arith.constant 0 : index
    %93 = vector.load %arg7[%c0_93, %c0_94, %c0_95] : memref<3x128x64xbf16, #tpu.memory_space<vmem>>, vector<1x128x64xbf16>
    %94 = vector.shape_cast %93 : vector<1x128x64xbf16> to vector<128x64xbf16>
    %cst_96 = arith.constant dense<0.000000e+00> : vector<8x64xf32>
    %95 = tpu.matmul %92, %94, %cst_96 {dimension_numbers = #tpu.dot_dimension_numbers<[1], [0], [0], [1], [0, 0, 1, 1], [], []>} : vector<8x128xbf16>, vector<128x64xbf16>, vector<8x64xf32> -> vector<8x64xf32>
    %c0_97 = arith.constant 0 : index
    %c0_98 = arith.constant 0 : index
    %c0_99 = arith.constant 0 : index
    %96 = vector.load %arg6[%c0_97, %c0_98, %c0_99] : memref<1x8x16xbf16, #tpu.memory_space<vmem>>, vector<1x8x16xbf16>
    %97 = vector.shape_cast %96 : vector<1x8x16xbf16> to vector<8x16xbf16>
    %98 = arith.truncf %31 : vector<16x64xf32> to vector<16x64xbf16>
    %cst_100 = arith.constant dense<0.000000e+00> : vector<8x64xf32>
    %99 = tpu.matmul %97, %98, %cst_100 {dimension_numbers = #tpu.dot_dimension_numbers<[1], [0], [0], [1], [0, 0, 1, 1], [], []>} : vector<8x16xbf16>, vector<16x64xbf16>, vector<8x64xf32> -> vector<8x64xf32>
    %100 = arith.truncf %99 : vector<8x64xf32> to vector<8x64xbf16>
    %c0_101 = arith.constant 0 : index
    %c0_102 = arith.constant 0 : index
    %c0_103 = arith.constant 0 : index
    %101 = vector.load %arg8[%c0_101, %c0_102, %c0_103] : memref<3x64x32xbf16, #tpu.memory_space<vmem>>, vector<1x64x32xbf16>
    %102 = vector.shape_cast %101 : vector<1x64x32xbf16> to vector<64x32xbf16>
    %cst_104 = arith.constant dense<0.000000e+00> : vector<8x32xf32>
    %103 = tpu.matmul %100, %102, %cst_104 {dimension_numbers = #tpu.dot_dimension_numbers<[1], [0], [0], [1], [0, 0, 1, 1], [], []>} : vector<8x64xbf16>, vector<64x32xbf16>, vector<8x32xf32> -> vector<8x32xf32>
    %104 = arith.truncf %103 : vector<8x32xf32> to vector<8x32xbf16>
    %c0_105 = arith.constant 0 : index
    %c0_106 = arith.constant 0 : index
    %c0_107 = arith.constant 0 : index
    %c0_108 = arith.constant 0 : index
    %105 = vector.load %arg9[%c0_105, %c0_106, %c0_107, %c0_108] : memref<3x1x32x64xbf16, #tpu.memory_space<vmem>>, vector<1x1x32x64xbf16>
    %106 = vector.shape_cast %105 : vector<1x1x32x64xbf16> to vector<32x64xbf16>
    %cst_109 = arith.constant dense<0.000000e+00> : vector<8x64xf32>
    %107 = tpu.matmul %104, %106, %cst_109 {dimension_numbers = #tpu.dot_dimension_numbers<[1], [0], [0], [1], [0, 0, 1, 1], [], []>} : vector<8x32xbf16>, vector<32x64xbf16>, vector<8x64xf32> -> vector<8x64xf32>
    %c1_110 = arith.constant 1 : index
    %c0_111 = arith.constant 0 : index
    %c0_112 = arith.constant 0 : index
    %108 = vector.load %arg3[%c1_110, %c0_111, %c0_112] : memref<16x1x64xf32, #tpu.memory_space<vmem>>, vector<1x1x64xf32>
    %109 = vector.shape_cast %108 : vector<1x1x64xf32> to vector<1x64xf32>
    %110 = vector.broadcast %109 : vector<1x64xf32> to vector<8x64xf32>
    %111 = arith.addf %107, %110 : vector<8x64xf32>
    %112 = arith.addf %95, %111 : vector<8x64xf32>
    %cst_113 = arith.constant 0.000000e+00 : f32
    %113 = vector.broadcast %cst_113 : f32 to vector<8x64xf32>
    %114 = arith.cmpf ogt, %112, %113 : vector<8x64xf32>
    %cst_114 = arith.constant 0.000000e+00 : f32
    %115 = vector.broadcast %cst_114 : f32 to vector<8x64xf32>
    %116 = arith.minimumf %112, %115 : vector<8x64xf32>
    %117 = math.exp %116 : vector<8x64xf32>
    %cst_115 = arith.constant 1.000000e+00 : f32
    %118 = vector.broadcast %cst_115 : f32 to vector<8x64xf32>
    %119 = arith.subf %117, %118 : vector<8x64xf32>
    %120 = arith.select %114, %112, %119 : vector<8x64xi1>, vector<8x64xf32>
    %c8_116 = arith.constant 8 : index
    %c0_117 = arith.constant 0 : index
    %121 = vector.load %arg15[%c8_116, %c0_117] : memref<17x64xf32, #tpu.memory_space<vmem>>, vector<8x64xf32>
    tpu.vector_store %arg15[%c8_116, %c0_117], %120 {strides = array<i32>} : memref<17x64xf32, #tpu.memory_space<vmem>>, vector<8x64xf32>,
    %c7_118 = arith.constant 7 : index
    %c0_119 = arith.constant 0 : index
    %122 = vector.load %arg15[%c7_118, %c0_119] : memref<17x64xf32, #tpu.memory_space<vmem>>, vector<8x64xf32>
    %123 = arith.truncf %122 : vector<8x64xf32> to vector<8x64xbf16>
    %c2_120 = arith.constant 2 : index
    %c0_121 = arith.constant 0 : index
    %c0_122 = arith.constant 0 : index
    %c0_123 = arith.constant 0 : index
    %124 = vector.load %arg2[%c2_120, %c0_121, %c0_122, %c0_123] : memref<16x3x64x64xbf16, #tpu.memory_space<vmem>>, vector<1x1x64x64xbf16>
    %125 = vector.shape_cast %124 : vector<1x1x64x64xbf16> to vector<64x64xbf16>
    %cst_124 = arith.constant dense<0.000000e+00> : vector<8x64xf32>
    %126 = tpu.matmul %123, %125, %cst_124 {dimension_numbers = #tpu.dot_dimension_numbers<[1], [0], [0], [1], [0, 0, 1, 1], [], []>} : vector<8x64xbf16>, vector<64x64xbf16>, vector<8x64xf32> -> vector<8x64xf32>
    %c8_125 = arith.constant 8 : index
    %c0_126 = arith.constant 0 : index
    %127 = vector.load %arg15[%c8_125, %c0_126] : memref<17x64xf32, #tpu.memory_space<vmem>>, vector<8x64xf32>
    %128 = arith.truncf %127 : vector<8x64xf32> to vector<8x64xbf16>
    %c2_127 = arith.constant 2 : index
    %c1_128 = arith.constant 1 : index
    %c0_129 = arith.constant 0 : index
    %c0_130 = arith.constant 0 : index
    %129 = vector.load %arg2[%c2_127, %c1_128, %c0_129, %c0_130] : memref<16x3x64x64xbf16, #tpu.memory_space<vmem>>, vector<1x1x64x64xbf16>
    %130 = vector.shape_cast %129 : vector<1x1x64x64xbf16> to vector<64x64xbf16>
    %cst_131 = arith.constant dense<0.000000e+00> : vector<8x64xf32>
    %131 = tpu.matmul %128, %130, %cst_131 {dimension_numbers = #tpu.dot_dimension_numbers<[1], [0], [0], [1], [0, 0, 1, 1], [], []>} : vector<8x64xbf16>, vector<64x64xbf16>, vector<8x64xf32> -> vector<8x64xf32>
    %c9_132 = arith.constant 9 : index
    %c0_133 = arith.constant 0 : index
    %132 = vector.load %arg15[%c9_132, %c0_133] : memref<17x64xf32, #tpu.memory_space<vmem>>, vector<8x64xf32>
    %133 = arith.truncf %132 : vector<8x64xf32> to vector<8x64xbf16>
    %c2_134 = arith.constant 2 : index
    %c2_135 = arith.constant 2 : index
    %c0_136 = arith.constant 0 : index
    %c0_137 = arith.constant 0 : index
    %134 = vector.load %arg2[%c2_134, %c2_135, %c0_136, %c0_137] : memref<16x3x64x64xbf16, #tpu.memory_space<vmem>>, vector<1x1x64x64xbf16>
    %135 = vector.shape_cast %134 : vector<1x1x64x64xbf16> to vector<64x64xbf16>
    %cst_138 = arith.constant dense<0.000000e+00> : vector<8x64xf32>
    %136 = tpu.matmul %133, %135, %cst_138 {dimension_numbers = #tpu.dot_dimension_numbers<[1], [0], [0], [1], [0, 0, 1, 1], [], []>} : vector<8x64xbf16>, vector<64x64xbf16>, vector<8x64xf32> -> vector<8x64xf32>
    %137 = arith.addf %126, %131 : vector<8x64xf32>
    %138 = arith.addf %137, %136 : vector<8x64xf32>
    %cst_139 = arith.constant 0.000000e+00 : f32
    %139 = vector.broadcast %cst_139 : f32 to vector<8x64xf32>
    %140 = arith.cmpf ogt, %138, %139 : vector<8x64xf32>
    %cst_140 = arith.constant 0.000000e+00 : f32
    %141 = vector.broadcast %cst_140 : f32 to vector<8x64xf32>
    %142 = arith.minimumf %138, %141 : vector<8x64xf32>
    %143 = math.exp %142 : vector<8x64xf32>
    %cst_141 = arith.constant 1.000000e+00 : f32
    %144 = vector.broadcast %cst_141 : f32 to vector<8x64xf32>
    %145 = arith.subf %143, %144 : vector<8x64xf32>
    %146 = arith.select %140, %138, %145 : vector<8x64xi1>, vector<8x64xf32>
    %c8_142 = arith.constant 8 : index
    %c0_143 = arith.constant 0 : index
    %147 = vector.load %arg15[%c8_142, %c0_143] : memref<17x64xf32, #tpu.memory_space<vmem>>, vector<8x64xf32>
    tpu.vector_store %arg15[%c8_142, %c0_143], %146 {strides = array<i32>} : memref<17x64xf32, #tpu.memory_space<vmem>>, vector<8x64xf32>,
    %c7_144 = arith.constant 7 : index
    %c0_145 = arith.constant 0 : index
    %148 = vector.load %arg15[%c7_144, %c0_145] : memref<17x64xf32, #tpu.memory_space<vmem>>, vector<8x64xf32>
    %149 = arith.truncf %148 : vector<8x64xf32> to vector<8x64xbf16>
    %c3 = arith.constant 3 : index
    %c0_146 = arith.constant 0 : index
    %c0_147 = arith.constant 0 : index
    %c0_148 = arith.constant 0 : index
    %150 = vector.load %arg2[%c3, %c0_146, %c0_147, %c0_148] : memref<16x3x64x64xbf16, #tpu.memory_space<vmem>>, vector<1x1x64x64xbf16>
    %151 = vector.shape_cast %150 : vector<1x1x64x64xbf16> to vector<64x64xbf16>
    %cst_149 = arith.constant dense<0.000000e+00> : vector<8x64xf32>
    %152 = tpu.matmul %149, %151, %cst_149 {dimension_numbers = #tpu.dot_dimension_numbers<[1], [0], [0], [1], [0, 0, 1, 1], [], []>} : vector<8x64xbf16>, vector<64x64xbf16>, vector<8x64xf32> -> vector<8x64xf32>
    %c8_150 = arith.constant 8 : index
    %c0_151 = arith.constant 0 : index
    %153 = vector.load %arg15[%c8_150, %c0_151] : memref<17x64xf32, #tpu.memory_space<vmem>>, vector<8x64xf32>
    %154 = arith.truncf %153 : vector<8x64xf32> to vector<8x64xbf16>
    %c3_152 = arith.constant 3 : index
    %c1_153 = arith.constant 1 : index
    %c0_154 = arith.constant 0 : index
    %c0_155 = arith.constant 0 : index
    %155 = vector.load %arg2[%c3_152, %c1_153, %c0_154, %c0_155] : memref<16x3x64x64xbf16, #tpu.memory_space<vmem>>, vector<1x1x64x64xbf16>
    %156 = vector.shape_cast %155 : vector<1x1x64x64xbf16> to vector<64x64xbf16>
    %cst_156 = arith.constant dense<0.000000e+00> : vector<8x64xf32>
    %157 = tpu.matmul %154, %156, %cst_156 {dimension_numbers = #tpu.dot_dimension_numbers<[1], [0], [0], [1], [0, 0, 1, 1], [], []>} : vector<8x64xbf16>, vector<64x64xbf16>, vector<8x64xf32> -> vector<8x64xf32>
    %c9_157 = arith.constant 9 : index
    %c0_158 = arith.constant 0 : index
    %158 = vector.load %arg15[%c9_157, %c0_158] : memref<17x64xf32, #tpu.memory_space<vmem>>, vector<8x64xf32>
    %159 = arith.truncf %158 : vector<8x64xf32> to vector<8x64xbf16>
    %c3_159 = arith.constant 3 : index
    %c2_160 = arith.constant 2 : index
    %c0_161 = arith.constant 0 : index
    %c0_162 = arith.constant 0 : index
    %160 = vector.load %arg2[%c3_159, %c2_160, %c0_161, %c0_162] : memref<16x3x64x64xbf16, #tpu.memory_space<vmem>>, vector<1x1x64x64xbf16>
    %161 = vector.shape_cast %160 : vector<1x1x64x64xbf16> to vector<64x64xbf16>
    %cst_163 = arith.constant dense<0.000000e+00> : vector<8x64xf32>
    %162 = tpu.matmul %159, %161, %cst_163 {dimension_numbers = #tpu.dot_dimension_numbers<[1], [0], [0], [1], [0, 0, 1, 1], [], []>} : vector<8x64xbf16>, vector<64x64xbf16>, vector<8x64xf32> -> vector<8x64xf32>
    %163 = arith.addf %152, %157 : vector<8x64xf32>
    %164 = arith.addf %163, %162 : vector<8x64xf32>
    %c2_164 = arith.constant 2 : index
    %c0_165 = arith.constant 0 : index
    %c0_166 = arith.constant 0 : index
    %165 = vector.load %arg3[%c2_164, %c0_165, %c0_166] : memref<16x1x64xf32, #tpu.memory_space<vmem>>, vector<1x1x64xf32>
    %166 = vector.shape_cast %165 : vector<1x1x64xf32> to vector<1x64xf32>
    %167 = vector.broadcast %166 : vector<1x64xf32> to vector<8x64xf32>
    %168 = arith.addf %164, %167 : vector<8x64xf32>
    %169 = arith.truncf %112 : vector<8x64xf32> to vector<8x64xbf16>
    %c0_167 = arith.constant 0 : index
    %c0_168 = arith.constant 0 : index
    %c0_169 = arith.constant 0 : index
    %c0_170 = arith.constant 0 : index
    %170 = vector.load %arg10[%c0_167, %c0_168, %c0_169, %c0_170] : memref<6x1x64x64xbf16, #tpu.memory_space<vmem>>, vector<1x1x64x64xbf16>
    %171 = vector.shape_cast %170 : vector<1x1x64x64xbf16> to vector<64x64xbf16>
    %cst_171 = arith.constant dense<0.000000e+00> : vector<8x64xf32>
    %172 = tpu.matmul %169, %171, %cst_171 {dimension_numbers = #tpu.dot_dimension_numbers<[1], [0], [0], [1], [0, 0, 1, 1], [], []>} : vector<8x64xbf16>, vector<64x64xbf16>, vector<8x64xf32> -> vector<8x64xf32>
    %c3_172 = arith.constant 3 : index
    %c0_173 = arith.constant 0 : index
    %c0_174 = arith.constant 0 : index
    %173 = vector.load %arg3[%c3_172, %c0_173, %c0_174] : memref<16x1x64xf32, #tpu.memory_space<vmem>>, vector<1x1x64xf32>
    %174 = vector.shape_cast %173 : vector<1x1x64xf32> to vector<1x64xf32>
    %175 = vector.broadcast %174 : vector<1x64xf32> to vector<8x64xf32>
    %176 = arith.addf %172, %175 : vector<8x64xf32>
    %177 = arith.addf %168, %176 : vector<8x64xf32>
    %cst_175 = arith.constant 0.000000e+00 : f32
    %178 = vector.broadcast %cst_175 : f32 to vector<8x64xf32>
    %179 = arith.cmpf ogt, %177, %178 : vector<8x64xf32>
    %cst_176 = arith.constant 0.000000e+00 : f32
    %180 = vector.broadcast %cst_176 : f32 to vector<8x64xf32>
    %181 = arith.minimumf %177, %180 : vector<8x64xf32>
    %182 = math.exp %181 : vector<8x64xf32>
    %cst_177 = arith.constant 1.000000e+00 : f32
    %183 = vector.broadcast %cst_177 : f32 to vector<8x64xf32>
    %184 = arith.subf %182, %183 : vector<8x64xf32>
    %185 = arith.select %179, %177, %184 : vector<8x64xi1>, vector<8x64xf32>
    %c8_178 = arith.constant 8 : index
    %c0_179 = arith.constant 0 : index
    %186 = vector.load %arg15[%c8_178, %c0_179] : memref<17x64xf32, #tpu.memory_space<vmem>>, vector<8x64xf32>
    tpu.vector_store %arg15[%c8_178, %c0_179], %185 {strides = array<i32>} : memref<17x64xf32, #tpu.memory_space<vmem>>, vector<8x64xf32>,
    %c7_180 = arith.constant 7 : index
    %c0_181 = arith.constant 0 : index
    %187 = vector.load %arg15[%c7_180, %c0_181] : memref<17x64xf32, #tpu.memory_space<vmem>>, vector<8x64xf32>
    %188 = arith.truncf %187 : vector<8x64xf32> to vector<8x64xbf16>
    %c4 = arith.constant 4 : index
    %c0_182 = arith.constant 0 : index
    %c0_183 = arith.constant 0 : index
    %c0_184 = arith.constant 0 : index
    %189 = vector.load %arg2[%c4, %c0_182, %c0_183, %c0_184] : memref<16x3x64x64xbf16, #tpu.memory_space<vmem>>, vector<1x1x64x64xbf16>
    %190 = vector.shape_cast %189 : vector<1x1x64x64xbf16> to vector<64x64xbf16>
    %cst_185 = arith.constant dense<0.000000e+00> : vector<8x64xf32>
    %191 = tpu.matmul %188, %190, %cst_185 {dimension_numbers = #tpu.dot_dimension_numbers<[1], [0], [0], [1], [0, 0, 1, 1], [], []>} : vector<8x64xbf16>, vector<64x64xbf16>, vector<8x64xf32> -> vector<8x64xf32>
    %c8_186 = arith.constant 8 : index
    %c0_187 = arith.constant 0 : index
    %192 = vector.load %arg15[%c8_186, %c0_187] : memref<17x64xf32, #tpu.memory_space<vmem>>, vector<8x64xf32>
    %193 = arith.truncf %192 : vector<8x64xf32> to vector<8x64xbf16>
    %c4_188 = arith.constant 4 : index
    %c1_189 = arith.constant 1 : index
    %c0_190 = arith.constant 0 : index
    %c0_191 = arith.constant 0 : index
    %194 = vector.load %arg2[%c4_188, %c1_189, %c0_190, %c0_191] : memref<16x3x64x64xbf16, #tpu.memory_space<vmem>>, vector<1x1x64x64xbf16>
    %195 = vector.shape_cast %194 : vector<1x1x64x64xbf16> to vector<64x64xbf16>
    %cst_192 = arith.constant dense<0.000000e+00> : vector<8x64xf32>
    %196 = tpu.matmul %193, %195, %cst_192 {dimension_numbers = #tpu.dot_dimension_numbers<[1], [0], [0], [1], [0, 0, 1, 1], [], []>} : vector<8x64xbf16>, vector<64x64xbf16>, vector<8x64xf32> -> vector<8x64xf32>
    %c9_193 = arith.constant 9 : index
    %c0_194 = arith.constant 0 : index
    %197 = vector.load %arg15[%c9_193, %c0_194] : memref<17x64xf32, #tpu.memory_space<vmem>>, vector<8x64xf32>
    %198 = arith.truncf %197 : vector<8x64xf32> to vector<8x64xbf16>
    %c4_195 = arith.constant 4 : index
    %c2_196 = arith.constant 2 : index
    %c0_197 = arith.constant 0 : index
    %c0_198 = arith.constant 0 : index
    %199 = vector.load %arg2[%c4_195, %c2_196, %c0_197, %c0_198] : memref<16x3x64x64xbf16, #tpu.memory_space<vmem>>, vector<1x1x64x64xbf16>
    %200 = vector.shape_cast %199 : vector<1x1x64x64xbf16> to vector<64x64xbf16>
    %cst_199 = arith.constant dense<0.000000e+00> : vector<8x64xf32>
    %201 = tpu.matmul %198, %200, %cst_199 {dimension_numbers = #tpu.dot_dimension_numbers<[1], [0], [0], [1], [0, 0, 1, 1], [], []>} : vector<8x64xbf16>, vector<64x64xbf16>, vector<8x64xf32> -> vector<8x64xf32>
    %202 = arith.addf %191, %196 : vector<8x64xf32>
    %203 = arith.addf %202, %201 : vector<8x64xf32>
    %cst_200 = arith.constant 0.000000e+00 : f32
    %204 = vector.broadcast %cst_200 : f32 to vector<8x64xf32>
    %205 = arith.cmpf ogt, %203, %204 : vector<8x64xf32>
    %cst_201 = arith.constant 0.000000e+00 : f32
    %206 = vector.broadcast %cst_201 : f32 to vector<8x64xf32>
    %207 = arith.minimumf %203, %206 : vector<8x64xf32>
    %208 = math.exp %207 : vector<8x64xf32>
    %cst_202 = arith.constant 1.000000e+00 : f32
    %209 = vector.broadcast %cst_202 : f32 to vector<8x64xf32>
    %210 = arith.subf %208, %209 : vector<8x64xf32>
    %211 = arith.select %205, %203, %210 : vector<8x64xi1>, vector<8x64xf32>
    %c8_203 = arith.constant 8 : index
    %c0_204 = arith.constant 0 : index
    %212 = vector.load %arg15[%c8_203, %c0_204] : memref<17x64xf32, #tpu.memory_space<vmem>>, vector<8x64xf32>
    tpu.vector_store %arg15[%c8_203, %c0_204], %211 {strides = array<i32>} : memref<17x64xf32, #tpu.memory_space<vmem>>, vector<8x64xf32>,
    %c7_205 = arith.constant 7 : index
    %c0_206 = arith.constant 0 : index
    %213 = vector.load %arg15[%c7_205, %c0_206] : memref<17x64xf32, #tpu.memory_space<vmem>>, vector<8x64xf32>
    %214 = arith.truncf %213 : vector<8x64xf32> to vector<8x64xbf16>
    %c5 = arith.constant 5 : index
    %c0_207 = arith.constant 0 : index
    %c0_208 = arith.constant 0 : index
    %c0_209 = arith.constant 0 : index
    %215 = vector.load %arg2[%c5, %c0_207, %c0_208, %c0_209] : memref<16x3x64x64xbf16, #tpu.memory_space<vmem>>, vector<1x1x64x64xbf16>
    %216 = vector.shape_cast %215 : vector<1x1x64x64xbf16> to vector<64x64xbf16>
    %cst_210 = arith.constant dense<0.000000e+00> : vector<8x64xf32>
    %217 = tpu.matmul %214, %216, %cst_210 {dimension_numbers = #tpu.dot_dimension_numbers<[1], [0], [0], [1], [0, 0, 1, 1], [], []>} : vector<8x64xbf16>, vector<64x64xbf16>, vector<8x64xf32> -> vector<8x64xf32>
    %c8_211 = arith.constant 8 : index
    %c0_212 = arith.constant 0 : index
    %218 = vector.load %arg15[%c8_211, %c0_212] : memref<17x64xf32, #tpu.memory_space<vmem>>, vector<8x64xf32>
    %219 = arith.truncf %218 : vector<8x64xf32> to vector<8x64xbf16>
    %c5_213 = arith.constant 5 : index
    %c1_214 = arith.constant 1 : index
    %c0_215 = arith.constant 0 : index
    %c0_216 = arith.constant 0 : index
    %220 = vector.load %arg2[%c5_213, %c1_214, %c0_215, %c0_216] : memref<16x3x64x64xbf16, #tpu.memory_space<vmem>>, vector<1x1x64x64xbf16>
    %221 = vector.shape_cast %220 : vector<1x1x64x64xbf16> to vector<64x64xbf16>
    %cst_217 = arith.constant dense<0.000000e+00> : vector<8x64xf32>
    %222 = tpu.matmul %219, %221, %cst_217 {dimension_numbers = #tpu.dot_dimension_numbers<[1], [0], [0], [1], [0, 0, 1, 1], [], []>} : vector<8x64xbf16>, vector<64x64xbf16>, vector<8x64xf32> -> vector<8x64xf32>
    %c9_218 = arith.constant 9 : index
    %c0_219 = arith.constant 0 : index
    %223 = vector.load %arg15[%c9_218, %c0_219] : memref<17x64xf32, #tpu.memory_space<vmem>>, vector<8x64xf32>
    %224 = arith.truncf %223 : vector<8x64xf32> to vector<8x64xbf16>
    %c5_220 = arith.constant 5 : index
    %c2_221 = arith.constant 2 : index
    %c0_222 = arith.constant 0 : index
    %c0_223 = arith.constant 0 : index
    %225 = vector.load %arg2[%c5_220, %c2_221, %c0_222, %c0_223] : memref<16x3x64x64xbf16, #tpu.memory_space<vmem>>, vector<1x1x64x64xbf16>
    %226 = vector.shape_cast %225 : vector<1x1x64x64xbf16> to vector<64x64xbf16>
    %cst_224 = arith.constant dense<0.000000e+00> : vector<8x64xf32>
    %227 = tpu.matmul %224, %226, %cst_224 {dimension_numbers = #tpu.dot_dimension_numbers<[1], [0], [0], [1], [0, 0, 1, 1], [], []>} : vector<8x64xbf16>, vector<64x64xbf16>, vector<8x64xf32> -> vector<8x64xf32>
    %228 = arith.addf %217, %222 : vector<8x64xf32>
    %229 = arith.addf %228, %227 : vector<8x64xf32>
    %c4_225 = arith.constant 4 : index
    %c0_226 = arith.constant 0 : index
    %c0_227 = arith.constant 0 : index
    %230 = vector.load %arg3[%c4_225, %c0_226, %c0_227] : memref<16x1x64xf32, #tpu.memory_space<vmem>>, vector<1x1x64xf32>
    %231 = vector.shape_cast %230 : vector<1x1x64xf32> to vector<1x64xf32>
    %232 = vector.broadcast %231 : vector<1x64xf32> to vector<8x64xf32>
    %233 = arith.addf %229, %232 : vector<8x64xf32>
    %234 = arith.truncf %177 : vector<8x64xf32> to vector<8x64xbf16>
    %c1_228 = arith.constant 1 : index
    %c0_229 = arith.constant 0 : index
    %c0_230 = arith.constant 0 : index
    %c0_231 = arith.constant 0 : index
    %235 = vector.load %arg10[%c1_228, %c0_229, %c0_230, %c0_231] : memref<6x1x64x64xbf16, #tpu.memory_space<vmem>>, vector<1x1x64x64xbf16>
    %236 = vector.shape_cast %235 : vector<1x1x64x64xbf16> to vector<64x64xbf16>
    %cst_232 = arith.constant dense<0.000000e+00> : vector<8x64xf32>
    %237 = tpu.matmul %234, %236, %cst_232 {dimension_numbers = #tpu.dot_dimension_numbers<[1], [0], [0], [1], [0, 0, 1, 1], [], []>} : vector<8x64xbf16>, vector<64x64xbf16>, vector<8x64xf32> -> vector<8x64xf32>
    %c5_233 = arith.constant 5 : index
    %c0_234 = arith.constant 0 : index
    %c0_235 = arith.constant 0 : index
    %238 = vector.load %arg3[%c5_233, %c0_234, %c0_235] : memref<16x1x64xf32, #tpu.memory_space<vmem>>, vector<1x1x64xf32>
    %239 = vector.shape_cast %238 : vector<1x1x64xf32> to vector<1x64xf32>
    %240 = vector.broadcast %239 : vector<1x64xf32> to vector<8x64xf32>
    %241 = arith.addf %237, %240 : vector<8x64xf32>
    %242 = arith.addf %233, %241 : vector<8x64xf32>
    %cst_236 = arith.constant 0.000000e+00 : f32
    %243 = vector.broadcast %cst_236 : f32 to vector<8x64xf32>
    %244 = arith.cmpf ogt, %242, %243 : vector<8x64xf32>
    %cst_237 = arith.constant 0.000000e+00 : f32
    %245 = vector.broadcast %cst_237 : f32 to vector<8x64xf32>
    %246 = arith.minimumf %242, %245 : vector<8x64xf32>
    %247 = math.exp %246 : vector<8x64xf32>
    %cst_238 = arith.constant 1.000000e+00 : f32
    %248 = vector.broadcast %cst_238 : f32 to vector<8x64xf32>
    %249 = arith.subf %247, %248 : vector<8x64xf32>
    %250 = arith.select %244, %242, %249 : vector<8x64xi1>, vector<8x64xf32>
    %c8_239 = arith.constant 8 : index
    %c0_240 = arith.constant 0 : index
    %251 = vector.load %arg15[%c8_239, %c0_240] : memref<17x64xf32, #tpu.memory_space<vmem>>, vector<8x64xf32>
    tpu.vector_store %arg15[%c8_239, %c0_240], %250 {strides = array<i32>} : memref<17x64xf32, #tpu.memory_space<vmem>>, vector<8x64xf32>,
    %c7_241 = arith.constant 7 : index
    %c0_242 = arith.constant 0 : index
    %252 = vector.load %arg15[%c7_241, %c0_242] : memref<17x64xf32, #tpu.memory_space<vmem>>, vector<8x64xf32>
    %253 = arith.truncf %252 : vector<8x64xf32> to vector<8x64xbf16>
    %c6 = arith.constant 6 : index
    %c0_243 = arith.constant 0 : index
    %c0_244 = arith.constant 0 : index
    %c0_245 = arith.constant 0 : index
    %254 = vector.load %arg2[%c6, %c0_243, %c0_244, %c0_245] : memref<16x3x64x64xbf16, #tpu.memory_space<vmem>>, vector<1x1x64x64xbf16>
    %255 = vector.shape_cast %254 : vector<1x1x64x64xbf16> to vector<64x64xbf16>
    %cst_246 = arith.constant dense<0.000000e+00> : vector<8x64xf32>
    %256 = tpu.matmul %253, %255, %cst_246 {dimension_numbers = #tpu.dot_dimension_numbers<[1], [0], [0], [1], [0, 0, 1, 1], [], []>} : vector<8x64xbf16>, vector<64x64xbf16>, vector<8x64xf32> -> vector<8x64xf32>
    %c8_247 = arith.constant 8 : index
    %c0_248 = arith.constant 0 : index
    %257 = vector.load %arg15[%c8_247, %c0_248] : memref<17x64xf32, #tpu.memory_space<vmem>>, vector<8x64xf32>
    %258 = arith.truncf %257 : vector<8x64xf32> to vector<8x64xbf16>
    %c6_249 = arith.constant 6 : index
    %c1_250 = arith.constant 1 : index
    %c0_251 = arith.constant 0 : index
    %c0_252 = arith.constant 0 : index
    %259 = vector.load %arg2[%c6_249, %c1_250, %c0_251, %c0_252] : memref<16x3x64x64xbf16, #tpu.memory_space<vmem>>, vector<1x1x64x64xbf16>
    %260 = vector.shape_cast %259 : vector<1x1x64x64xbf16> to vector<64x64xbf16>
    %cst_253 = arith.constant dense<0.000000e+00> : vector<8x64xf32>
    %261 = tpu.matmul %258, %260, %cst_253 {dimension_numbers = #tpu.dot_dimension_numbers<[1], [0], [0], [1], [0, 0, 1, 1], [], []>} : vector<8x64xbf16>, vector<64x64xbf16>, vector<8x64xf32> -> vector<8x64xf32>
    %c9_254 = arith.constant 9 : index
    %c0_255 = arith.constant 0 : index
    %262 = vector.load %arg15[%c9_254, %c0_255] : memref<17x64xf32, #tpu.memory_space<vmem>>, vector<8x64xf32>
    %263 = arith.truncf %262 : vector<8x64xf32> to vector<8x64xbf16>
    %c6_256 = arith.constant 6 : index
    %c2_257 = arith.constant 2 : index
    %c0_258 = arith.constant 0 : index
    %c0_259 = arith.constant 0 : index
    %264 = vector.load %arg2[%c6_256, %c2_257, %c0_258, %c0_259] : memref<16x3x64x64xbf16, #tpu.memory_space<vmem>>, vector<1x1x64x64xbf16>
    %265 = vector.shape_cast %264 : vector<1x1x64x64xbf16> to vector<64x64xbf16>
    %cst_260 = arith.constant dense<0.000000e+00> : vector<8x64xf32>
    %266 = tpu.matmul %263, %265, %cst_260 {dimension_numbers = #tpu.dot_dimension_numbers<[1], [0], [0], [1], [0, 0, 1, 1], [], []>} : vector<8x64xbf16>, vector<64x64xbf16>, vector<8x64xf32> -> vector<8x64xf32>
    %267 = arith.addf %256, %261 : vector<8x64xf32>
    %268 = arith.addf %267, %266 : vector<8x64xf32>
    %cst_261 = arith.constant 0.000000e+00 : f32
    %269 = vector.broadcast %cst_261 : f32 to vector<8x64xf32>
    %270 = arith.cmpf ogt, %268, %269 : vector<8x64xf32>
    %cst_262 = arith.constant 0.000000e+00 : f32
    %271 = vector.broadcast %cst_262 : f32 to vector<8x64xf32>
    %272 = arith.minimumf %268, %271 : vector<8x64xf32>
    %273 = math.exp %272 : vector<8x64xf32>
    %cst_263 = arith.constant 1.000000e+00 : f32
    %274 = vector.broadcast %cst_263 : f32 to vector<8x64xf32>
    %275 = arith.subf %273, %274 : vector<8x64xf32>
    %276 = arith.select %270, %268, %275 : vector<8x64xi1>, vector<8x64xf32>
    %c8_264 = arith.constant 8 : index
    %c0_265 = arith.constant 0 : index
    %277 = vector.load %arg15[%c8_264, %c0_265] : memref<17x64xf32, #tpu.memory_space<vmem>>, vector<8x64xf32>
    tpu.vector_store %arg15[%c8_264, %c0_265], %276 {strides = array<i32>} : memref<17x64xf32, #tpu.memory_space<vmem>>, vector<8x64xf32>,
    %c7_266 = arith.constant 7 : index
    %c0_267 = arith.constant 0 : index
    %278 = vector.load %arg15[%c7_266, %c0_267] : memref<17x64xf32, #tpu.memory_space<vmem>>, vector<8x64xf32>
    %279 = arith.truncf %278 : vector<8x64xf32> to vector<8x64xbf16>
    %c1_268 = arith.constant 1 : index
    %c0_269 = arith.constant 0 : index
    %c0_270 = arith.constant 0 : index
    %c0_271 = arith.constant 0 : index
    %280 = vector.load %arg4[%c1_268, %c0_269, %c0_270, %c0_271] : memref<3x3x64x128xbf16, #tpu.memory_space<vmem>>, vector<1x1x64x128xbf16>
    %281 = vector.shape_cast %280 : vector<1x1x64x128xbf16> to vector<64x128xbf16>
    %cst_272 = arith.constant dense<0.000000e+00> : vector<8x128xf32>
    %282 = tpu.matmul %279, %281, %cst_272 {dimension_numbers = #tpu.dot_dimension_numbers<[1], [0], [0], [1], [0, 0, 1, 1], [], []>} : vector<8x64xbf16>, vector<64x128xbf16>, vector<8x128xf32> -> vector<8x128xf32>
    %c8_273 = arith.constant 8 : index
    %c0_274 = arith.constant 0 : index
    %283 = vector.load %arg15[%c8_273, %c0_274] : memref<17x64xf32, #tpu.memory_space<vmem>>, vector<8x64xf32>
    %284 = arith.truncf %283 : vector<8x64xf32> to vector<8x64xbf16>
    %c1_275 = arith.constant 1 : index
    %c1_276 = arith.constant 1 : index
    %c0_277 = arith.constant 0 : index
    %c0_278 = arith.constant 0 : index
    %285 = vector.load %arg4[%c1_275, %c1_276, %c0_277, %c0_278] : memref<3x3x64x128xbf16, #tpu.memory_space<vmem>>, vector<1x1x64x128xbf16>
    %286 = vector.shape_cast %285 : vector<1x1x64x128xbf16> to vector<64x128xbf16>
    %cst_279 = arith.constant dense<0.000000e+00> : vector<8x128xf32>
    %287 = tpu.matmul %284, %286, %cst_279 {dimension_numbers = #tpu.dot_dimension_numbers<[1], [0], [0], [1], [0, 0, 1, 1], [], []>} : vector<8x64xbf16>, vector<64x128xbf16>, vector<8x128xf32> -> vector<8x128xf32>
    %c9_280 = arith.constant 9 : index
    %c0_281 = arith.constant 0 : index
    %288 = vector.load %arg15[%c9_280, %c0_281] : memref<17x64xf32, #tpu.memory_space<vmem>>, vector<8x64xf32>
    %289 = arith.truncf %288 : vector<8x64xf32> to vector<8x64xbf16>
    %c1_282 = arith.constant 1 : index
    %c2_283 = arith.constant 2 : index
    %c0_284 = arith.constant 0 : index
    %c0_285 = arith.constant 0 : index
    %290 = vector.load %arg4[%c1_282, %c2_283, %c0_284, %c0_285] : memref<3x3x64x128xbf16, #tpu.memory_space<vmem>>, vector<1x1x64x128xbf16>
    %291 = vector.shape_cast %290 : vector<1x1x64x128xbf16> to vector<64x128xbf16>
    %cst_286 = arith.constant dense<0.000000e+00> : vector<8x128xf32>
    %292 = tpu.matmul %289, %291, %cst_286 {dimension_numbers = #tpu.dot_dimension_numbers<[1], [0], [0], [1], [0, 0, 1, 1], [], []>} : vector<8x64xbf16>, vector<64x128xbf16>, vector<8x128xf32> -> vector<8x128xf32>
    %293 = arith.addf %282, %287 : vector<8x128xf32>
    %294 = arith.addf %293, %292 : vector<8x128xf32>
    %c1_287 = arith.constant 1 : index
    %c0_288 = arith.constant 0 : index
    %c0_289 = arith.constant 0 : index
    %295 = vector.load %arg5[%c1_287, %c0_288, %c0_289] : memref<3x1x128xf32, #tpu.memory_space<vmem>>, vector<1x1x128xf32>
    %296 = vector.shape_cast %295 : vector<1x1x128xf32> to vector<1x128xf32>
    %297 = vector.broadcast %296 : vector<1x128xf32> to vector<8x128xf32>
    %298 = arith.addf %294, %297 : vector<8x128xf32>
    %c0_290 = arith.constant 0 : index
    %c0_291 = arith.constant 0 : index
    %c0_292 = arith.constant 0 : index
    %299 = vector.load %arg11[%c0_290, %c0_291, %c0_292] : memref<1x4x8xbf16, #tpu.memory_space<vmem>>, vector<1x4x8xbf16>
    %300 = vector.shape_cast %299 : vector<1x4x8xbf16> to vector<4x8xbf16>
    %301 = arith.truncf %298 : vector<8x128xf32> to vector<8x128xbf16>
    %cst_293 = arith.constant dense<0.000000e+00> : vector<4x128xf32>
    %302 = tpu.matmul %300, %301, %cst_293 {dimension_numbers = #tpu.dot_dimension_numbers<[1], [0], [0], [1], [0, 0, 1, 1], [], []>} : vector<4x8xbf16>, vector<8x128xbf16>, vector<4x128xf32> -> vector<4x128xf32>
    %303 = arith.truncf %302 : vector<4x128xf32> to vector<4x128xbf16>
    %c1_294 = arith.constant 1 : index
    %c0_295 = arith.constant 0 : index
    %c0_296 = arith.constant 0 : index
    %304 = vector.load %arg7[%c1_294, %c0_295, %c0_296] : memref<3x128x64xbf16, #tpu.memory_space<vmem>>, vector<1x128x64xbf16>
    %305 = vector.shape_cast %304 : vector<1x128x64xbf16> to vector<128x64xbf16>
    %cst_297 = arith.constant dense<0.000000e+00> : vector<4x64xf32>
    %306 = tpu.matmul %303, %305, %cst_297 {dimension_numbers = #tpu.dot_dimension_numbers<[1], [0], [0], [1], [0, 0, 1, 1], [], []>} : vector<4x128xbf16>, vector<128x64xbf16>, vector<4x64xf32> -> vector<4x64xf32>
    %c0_298 = arith.constant 0 : index
    %c0_299 = arith.constant 0 : index
    %c0_300 = arith.constant 0 : index
    %307 = vector.load %arg11[%c0_298, %c0_299, %c0_300] : memref<1x4x8xbf16, #tpu.memory_space<vmem>>, vector<1x4x8xbf16>
    %308 = vector.shape_cast %307 : vector<1x4x8xbf16> to vector<4x8xbf16>
    %309 = arith.truncf %242 : vector<8x64xf32> to vector<8x64xbf16>
    %cst_301 = arith.constant dense<0.000000e+00> : vector<4x64xf32>
    %310 = tpu.matmul %308, %309, %cst_301 {dimension_numbers = #tpu.dot_dimension_numbers<[1], [0], [0], [1], [0, 0, 1, 1], [], []>} : vector<4x8xbf16>, vector<8x64xbf16>, vector<4x64xf32> -> vector<4x64xf32>
    %311 = arith.truncf %310 : vector<4x64xf32> to vector<4x64xbf16>
    %c1_302 = arith.constant 1 : index
    %c0_303 = arith.constant 0 : index
    %c0_304 = arith.constant 0 : index
    %312 = vector.load %arg8[%c1_302, %c0_303, %c0_304] : memref<3x64x32xbf16, #tpu.memory_space<vmem>>, vector<1x64x32xbf16>
    %313 = vector.shape_cast %312 : vector<1x64x32xbf16> to vector<64x32xbf16>
    %cst_305 = arith.constant dense<0.000000e+00> : vector<4x32xf32>
    %314 = tpu.matmul %311, %313, %cst_305 {dimension_numbers = #tpu.dot_dimension_numbers<[1], [0], [0], [1], [0, 0, 1, 1], [], []>} : vector<4x64xbf16>, vector<64x32xbf16>, vector<4x32xf32> -> vector<4x32xf32>
    %315 = arith.truncf %314 : vector<4x32xf32> to vector<4x32xbf16>
    %c1_306 = arith.constant 1 : index
    %c0_307 = arith.constant 0 : index
    %c0_308 = arith.constant 0 : index
    %c0_309 = arith.constant 0 : index
    %316 = vector.load %arg9[%c1_306, %c0_307, %c0_308, %c0_309] : memref<3x1x32x64xbf16, #tpu.memory_space<vmem>>, vector<1x1x32x64xbf16>
    %317 = vector.shape_cast %316 : vector<1x1x32x64xbf16> to vector<32x64xbf16>
    %cst_310 = arith.constant dense<0.000000e+00> : vector<4x64xf32>
    %318 = tpu.matmul %315, %317, %cst_310 {dimension_numbers = #tpu.dot_dimension_numbers<[1], [0], [0], [1], [0, 0, 1, 1], [], []>} : vector<4x32xbf16>, vector<32x64xbf16>, vector<4x64xf32> -> vector<4x64xf32>
    %c6_311 = arith.constant 6 : index
    %c0_312 = arith.constant 0 : index
    %c0_313 = arith.constant 0 : index
    %319 = vector.load %arg3[%c6_311, %c0_312, %c0_313] : memref<16x1x64xf32, #tpu.memory_space<vmem>>, vector<1x1x64xf32>
    %320 = vector.shape_cast %319 : vector<1x1x64xf32> to vector<1x64xf32>
    %321 = vector.broadcast %320 : vector<1x64xf32> to vector<4x64xf32>
    %322 = arith.addf %318, %321 : vector<4x64xf32>
    %323 = arith.addf %306, %322 : vector<4x64xf32>
    %cst_314 = arith.constant 0.000000e+00 : f32
    %324 = vector.broadcast %cst_314 : f32 to vector<4x64xf32>
    %325 = arith.cmpf ogt, %323, %324 : vector<4x64xf32>
    %cst_315 = arith.constant 0.000000e+00 : f32
    %326 = vector.broadcast %cst_315 : f32 to vector<4x64xf32>
    %327 = arith.minimumf %323, %326 : vector<4x64xf32>
    %328 = math.exp %327 : vector<4x64xf32>
    %cst_316 = arith.constant 1.000000e+00 : f32
    %329 = vector.broadcast %cst_316 : f32 to vector<4x64xf32>
    %330 = arith.subf %328, %329 : vector<4x64xf32>
    %331 = arith.select %325, %323, %330 : vector<4x64xi1>, vector<4x64xf32>
    %c8_317 = arith.constant 8 : index
    %c0_318 = arith.constant 0 : index
    %332 = vector.load %arg16[%c8_317, %c0_318] : memref<13x64xf32, #tpu.memory_space<vmem>>, vector<4x64xf32>
    tpu.vector_store %arg16[%c8_317, %c0_318], %331 {strides = array<i32>} : memref<13x64xf32, #tpu.memory_space<vmem>>, vector<4x64xf32>,
    %c7_319 = arith.constant 7 : index
    %c0_320 = arith.constant 0 : index
    %333 = vector.load %arg16[%c7_319, %c0_320] : memref<13x64xf32, #tpu.memory_space<vmem>>, vector<4x64xf32>
    %334 = arith.truncf %333 : vector<4x64xf32> to vector<4x64xbf16>
    %c7_321 = arith.constant 7 : index
    %c0_322 = arith.constant 0 : index
    %c0_323 = arith.constant 0 : index
    %c0_324 = arith.constant 0 : index
    %335 = vector.load %arg2[%c7_321, %c0_322, %c0_323, %c0_324] : memref<16x3x64x64xbf16, #tpu.memory_space<vmem>>, vector<1x1x64x64xbf16>
    %336 = vector.shape_cast %335 : vector<1x1x64x64xbf16> to vector<64x64xbf16>
    %cst_325 = arith.constant dense<0.000000e+00> : vector<4x64xf32>
    %337 = tpu.matmul %334, %336, %cst_325 {dimension_numbers = #tpu.dot_dimension_numbers<[1], [0], [0], [1], [0, 0, 1, 1], [], []>} : vector<4x64xbf16>, vector<64x64xbf16>, vector<4x64xf32> -> vector<4x64xf32>
    %c8_326 = arith.constant 8 : index
    %c0_327 = arith.constant 0 : index
    %338 = vector.load %arg16[%c8_326, %c0_327] : memref<13x64xf32, #tpu.memory_space<vmem>>, vector<4x64xf32>
    %339 = arith.truncf %338 : vector<4x64xf32> to vector<4x64xbf16>
    %c7_328 = arith.constant 7 : index
    %c1_329 = arith.constant 1 : index
    %c0_330 = arith.constant 0 : index
    %c0_331 = arith.constant 0 : index
    %340 = vector.load %arg2[%c7_328, %c1_329, %c0_330, %c0_331] : memref<16x3x64x64xbf16, #tpu.memory_space<vmem>>, vector<1x1x64x64xbf16>
    %341 = vector.shape_cast %340 : vector<1x1x64x64xbf16> to vector<64x64xbf16>
    %cst_332 = arith.constant dense<0.000000e+00> : vector<4x64xf32>
    %342 = tpu.matmul %339, %341, %cst_332 {dimension_numbers = #tpu.dot_dimension_numbers<[1], [0], [0], [1], [0, 0, 1, 1], [], []>} : vector<4x64xbf16>, vector<64x64xbf16>, vector<4x64xf32> -> vector<4x64xf32>
    %c9_333 = arith.constant 9 : index
    %c0_334 = arith.constant 0 : index
    %343 = vector.load %arg16[%c9_333, %c0_334] : memref<13x64xf32, #tpu.memory_space<vmem>>, vector<4x64xf32>
    %344 = arith.truncf %343 : vector<4x64xf32> to vector<4x64xbf16>
    %c7_335 = arith.constant 7 : index
    %c2_336 = arith.constant 2 : index
    %c0_337 = arith.constant 0 : index
    %c0_338 = arith.constant 0 : index
    %345 = vector.load %arg2[%c7_335, %c2_336, %c0_337, %c0_338] : memref<16x3x64x64xbf16, #tpu.memory_space<vmem>>, vector<1x1x64x64xbf16>
    %346 = vector.shape_cast %345 : vector<1x1x64x64xbf16> to vector<64x64xbf16>
    %cst_339 = arith.constant dense<0.000000e+00> : vector<4x64xf32>
    %347 = tpu.matmul %344, %346, %cst_339 {dimension_numbers = #tpu.dot_dimension_numbers<[1], [0], [0], [1], [0, 0, 1, 1], [], []>} : vector<4x64xbf16>, vector<64x64xbf16>, vector<4x64xf32> -> vector<4x64xf32>
    %348 = arith.addf %337, %342 : vector<4x64xf32>
    %349 = arith.addf %348, %347 : vector<4x64xf32>
    %cst_340 = arith.constant 0.000000e+00 : f32
    %350 = vector.broadcast %cst_340 : f32 to vector<4x64xf32>
    %351 = arith.cmpf ogt, %349, %350 : vector<4x64xf32>
    %cst_341 = arith.constant 0.000000e+00 : f32
    %352 = vector.broadcast %cst_341 : f32 to vector<4x64xf32>
    %353 = arith.minimumf %349, %352 : vector<4x64xf32>
    %354 = math.exp %353 : vector<4x64xf32>
    %cst_342 = arith.constant 1.000000e+00 : f32
    %355 = vector.broadcast %cst_342 : f32 to vector<4x64xf32>
    %356 = arith.subf %354, %355 : vector<4x64xf32>
    %357 = arith.select %351, %349, %356 : vector<4x64xi1>, vector<4x64xf32>
    %c8_343 = arith.constant 8 : index
    %c0_344 = arith.constant 0 : index
    %358 = vector.load %arg16[%c8_343, %c0_344] : memref<13x64xf32, #tpu.memory_space<vmem>>, vector<4x64xf32>
    tpu.vector_store %arg16[%c8_343, %c0_344], %357 {strides = array<i32>} : memref<13x64xf32, #tpu.memory_space<vmem>>, vector<4x64xf32>,
    %c7_345 = arith.constant 7 : index
    %c0_346 = arith.constant 0 : index
    %359 = vector.load %arg16[%c7_345, %c0_346] : memref<13x64xf32, #tpu.memory_space<vmem>>, vector<4x64xf32>
    %360 = arith.truncf %359 : vector<4x64xf32> to vector<4x64xbf16>
    %c8_347 = arith.constant 8 : index
    %c0_348 = arith.constant 0 : index
    %c0_349 = arith.constant 0 : index
    %c0_350 = arith.constant 0 : index
    %361 = vector.load %arg2[%c8_347, %c0_348, %c0_349, %c0_350] : memref<16x3x64x64xbf16, #tpu.memory_space<vmem>>, vector<1x1x64x64xbf16>
    %362 = vector.shape_cast %361 : vector<1x1x64x64xbf16> to vector<64x64xbf16>
    %cst_351 = arith.constant dense<0.000000e+00> : vector<4x64xf32>
    %363 = tpu.matmul %360, %362, %cst_351 {dimension_numbers = #tpu.dot_dimension_numbers<[1], [0], [0], [1], [0, 0, 1, 1], [], []>} : vector<4x64xbf16>, vector<64x64xbf16>, vector<4x64xf32> -> vector<4x64xf32>
    %c8_352 = arith.constant 8 : index
    %c0_353 = arith.constant 0 : index
    %364 = vector.load %arg16[%c8_352, %c0_353] : memref<13x64xf32, #tpu.memory_space<vmem>>, vector<4x64xf32>
    %365 = arith.truncf %364 : vector<4x64xf32> to vector<4x64xbf16>
    %c8_354 = arith.constant 8 : index
    %c1_355 = arith.constant 1 : index
    %c0_356 = arith.constant 0 : index
    %c0_357 = arith.constant 0 : index
    %366 = vector.load %arg2[%c8_354, %c1_355, %c0_356, %c0_357] : memref<16x3x64x64xbf16, #tpu.memory_space<vmem>>, vector<1x1x64x64xbf16>
    %367 = vector.shape_cast %366 : vector<1x1x64x64xbf16> to vector<64x64xbf16>
    %cst_358 = arith.constant dense<0.000000e+00> : vector<4x64xf32>
    %368 = tpu.matmul %365, %367, %cst_358 {dimension_numbers = #tpu.dot_dimension_numbers<[1], [0], [0], [1], [0, 0, 1, 1], [], []>} : vector<4x64xbf16>, vector<64x64xbf16>, vector<4x64xf32> -> vector<4x64xf32>
    %c9_359 = arith.constant 9 : index
    %c0_360 = arith.constant 0 : index
    %369 = vector.load %arg16[%c9_359, %c0_360] : memref<13x64xf32, #tpu.memory_space<vmem>>, vector<4x64xf32>
    %370 = arith.truncf %369 : vector<4x64xf32> to vector<4x64xbf16>
    %c8_361 = arith.constant 8 : index
    %c2_362 = arith.constant 2 : index
    %c0_363 = arith.constant 0 : index
    %c0_364 = arith.constant 0 : index
    %371 = vector.load %arg2[%c8_361, %c2_362, %c0_363, %c0_364] : memref<16x3x64x64xbf16, #tpu.memory_space<vmem>>, vector<1x1x64x64xbf16>
    %372 = vector.shape_cast %371 : vector<1x1x64x64xbf16> to vector<64x64xbf16>
    %cst_365 = arith.constant dense<0.000000e+00> : vector<4x64xf32>
    %373 = tpu.matmul %370, %372, %cst_365 {dimension_numbers = #tpu.dot_dimension_numbers<[1], [0], [0], [1], [0, 0, 1, 1], [], []>} : vector<4x64xbf16>, vector<64x64xbf16>, vector<4x64xf32> -> vector<4x64xf32>
    %374 = arith.addf %363, %368 : vector<4x64xf32>
    %375 = arith.addf %374, %373 : vector<4x64xf32>
    %c7_366 = arith.constant 7 : index
    %c0_367 = arith.constant 0 : index
    %c0_368 = arith.constant 0 : index
    %376 = vector.load %arg3[%c7_366, %c0_367, %c0_368] : memref<16x1x64xf32, #tpu.memory_space<vmem>>, vector<1x1x64xf32>
    %377 = vector.shape_cast %376 : vector<1x1x64xf32> to vector<1x64xf32>
    %378 = vector.broadcast %377 : vector<1x64xf32> to vector<4x64xf32>
    %379 = arith.addf %375, %378 : vector<4x64xf32>
    %380 = arith.truncf %323 : vector<4x64xf32> to vector<4x64xbf16>
    %c2_369 = arith.constant 2 : index
    %c0_370 = arith.constant 0 : index
    %c0_371 = arith.constant 0 : index
    %c0_372 = arith.constant 0 : index
    %381 = vector.load %arg10[%c2_369, %c0_370, %c0_371, %c0_372] : memref<6x1x64x64xbf16, #tpu.memory_space<vmem>>, vector<1x1x64x64xbf16>
    %382 = vector.shape_cast %381 : vector<1x1x64x64xbf16> to vector<64x64xbf16>
    %cst_373 = arith.constant dense<0.000000e+00> : vector<4x64xf32>
    %383 = tpu.matmul %380, %382, %cst_373 {dimension_numbers = #tpu.dot_dimension_numbers<[1], [0], [0], [1], [0, 0, 1, 1], [], []>} : vector<4x64xbf16>, vector<64x64xbf16>, vector<4x64xf32> -> vector<4x64xf32>
    %c8_374 = arith.constant 8 : index
    %c0_375 = arith.constant 0 : index
    %c0_376 = arith.constant 0 : index
    %384 = vector.load %arg3[%c8_374, %c0_375, %c0_376] : memref<16x1x64xf32, #tpu.memory_space<vmem>>, vector<1x1x64xf32>
    %385 = vector.shape_cast %384 : vector<1x1x64xf32> to vector<1x64xf32>
    %386 = vector.broadcast %385 : vector<1x64xf32> to vector<4x64xf32>
    %387 = arith.addf %383, %386 : vector<4x64xf32>
    %388 = arith.addf %379, %387 : vector<4x64xf32>
    %cst_377 = arith.constant 0.000000e+00 : f32
    %389 = vector.broadcast %cst_377 : f32 to vector<4x64xf32>
    %390 = arith.cmpf ogt, %388, %389 : vector<4x64xf32>
    %cst_378 = arith.constant 0.000000e+00 : f32
    %391 = vector.broadcast %cst_378 : f32 to vector<4x64xf32>
    %392 = arith.minimumf %388, %391 : vector<4x64xf32>
    %393 = math.exp %392 : vector<4x64xf32>
    %cst_379 = arith.constant 1.000000e+00 : f32
    %394 = vector.broadcast %cst_379 : f32 to vector<4x64xf32>
    %395 = arith.subf %393, %394 : vector<4x64xf32>
    %396 = arith.select %390, %388, %395 : vector<4x64xi1>, vector<4x64xf32>
    %c8_380 = arith.constant 8 : index
    %c0_381 = arith.constant 0 : index
    %397 = vector.load %arg16[%c8_380, %c0_381] : memref<13x64xf32, #tpu.memory_space<vmem>>, vector<4x64xf32>
    tpu.vector_store %arg16[%c8_380, %c0_381], %396 {strides = array<i32>} : memref<13x64xf32, #tpu.memory_space<vmem>>, vector<4x64xf32>,
    %c7_382 = arith.constant 7 : index
    %c0_383 = arith.constant 0 : index
    %398 = vector.load %arg16[%c7_382, %c0_383] : memref<13x64xf32, #tpu.memory_space<vmem>>, vector<4x64xf32>
    %399 = arith.truncf %398 : vector<4x64xf32> to vector<4x64xbf16>
    %c9_384 = arith.constant 9 : index
    %c0_385 = arith.constant 0 : index
    %c0_386 = arith.constant 0 : index
    %c0_387 = arith.constant 0 : index
    %400 = vector.load %arg2[%c9_384, %c0_385, %c0_386, %c0_387] : memref<16x3x64x64xbf16, #tpu.memory_space<vmem>>, vector<1x1x64x64xbf16>
    %401 = vector.shape_cast %400 : vector<1x1x64x64xbf16> to vector<64x64xbf16>
    %cst_388 = arith.constant dense<0.000000e+00> : vector<4x64xf32>
    %402 = tpu.matmul %399, %401, %cst_388 {dimension_numbers = #tpu.dot_dimension_numbers<[1], [0], [0], [1], [0, 0, 1, 1], [], []>} : vector<4x64xbf16>, vector<64x64xbf16>, vector<4x64xf32> -> vector<4x64xf32>
    %c8_389 = arith.constant 8 : index
    %c0_390 = arith.constant 0 : index
    %403 = vector.load %arg16[%c8_389, %c0_390] : memref<13x64xf32, #tpu.memory_space<vmem>>, vector<4x64xf32>
    %404 = arith.truncf %403 : vector<4x64xf32> to vector<4x64xbf16>
    %c9_391 = arith.constant 9 : index
    %c1_392 = arith.constant 1 : index
    %c0_393 = arith.constant 0 : index
    %c0_394 = arith.constant 0 : index
    %405 = vector.load %arg2[%c9_391, %c1_392, %c0_393, %c0_394] : memref<16x3x64x64xbf16, #tpu.memory_space<vmem>>, vector<1x1x64x64xbf16>
    %406 = vector.shape_cast %405 : vector<1x1x64x64xbf16> to vector<64x64xbf16>
    %cst_395 = arith.constant dense<0.000000e+00> : vector<4x64xf32>
    %407 = tpu.matmul %404, %406, %cst_395 {dimension_numbers = #tpu.dot_dimension_numbers<[1], [0], [0], [1], [0, 0, 1, 1], [], []>} : vector<4x64xbf16>, vector<64x64xbf16>, vector<4x64xf32> -> vector<4x64xf32>
    %c9_396 = arith.constant 9 : index
    %c0_397 = arith.constant 0 : index
    %408 = vector.load %arg16[%c9_396, %c0_397] : memref<13x64xf32, #tpu.memory_space<vmem>>, vector<4x64xf32>
    %409 = arith.truncf %408 : vector<4x64xf32> to vector<4x64xbf16>
    %c9_398 = arith.constant 9 : index
    %c2_399 = arith.constant 2 : index
    %c0_400 = arith.constant 0 : index
    %c0_401 = arith.constant 0 : index
    %410 = vector.load %arg2[%c9_398, %c2_399, %c0_400, %c0_401] : memref<16x3x64x64xbf16, #tpu.memory_space<vmem>>, vector<1x1x64x64xbf16>
    %411 = vector.shape_cast %410 : vector<1x1x64x64xbf16> to vector<64x64xbf16>
    %cst_402 = arith.constant dense<0.000000e+00> : vector<4x64xf32>
    %412 = tpu.matmul %409, %411, %cst_402 {dimension_numbers = #tpu.dot_dimension_numbers<[1], [0], [0], [1], [0, 0, 1, 1], [], []>} : vector<4x64xbf16>, vector<64x64xbf16>, vector<4x64xf32> -> vector<4x64xf32>
    %413 = arith.addf %402, %407 : vector<4x64xf32>
    %414 = arith.addf %413, %412 : vector<4x64xf32>
    %cst_403 = arith.constant 0.000000e+00 : f32
    %415 = vector.broadcast %cst_403 : f32 to vector<4x64xf32>
    %416 = arith.cmpf ogt, %414, %415 : vector<4x64xf32>
    %cst_404 = arith.constant 0.000000e+00 : f32
    %417 = vector.broadcast %cst_404 : f32 to vector<4x64xf32>
    %418 = arith.minimumf %414, %417 : vector<4x64xf32>
    %419 = math.exp %418 : vector<4x64xf32>
    %cst_405 = arith.constant 1.000000e+00 : f32
    %420 = vector.broadcast %cst_405 : f32 to vector<4x64xf32>
    %421 = arith.subf %419, %420 : vector<4x64xf32>
    %422 = arith.select %416, %414, %421 : vector<4x64xi1>, vector<4x64xf32>
    %c8_406 = arith.constant 8 : index
    %c0_407 = arith.constant 0 : index
    %423 = vector.load %arg16[%c8_406, %c0_407] : memref<13x64xf32, #tpu.memory_space<vmem>>, vector<4x64xf32>
    tpu.vector_store %arg16[%c8_406, %c0_407], %422 {strides = array<i32>} : memref<13x64xf32, #tpu.memory_space<vmem>>, vector<4x64xf32>,
    %c7_408 = arith.constant 7 : index
    %c0_409 = arith.constant 0 : index
    %424 = vector.load %arg16[%c7_408, %c0_409] : memref<13x64xf32, #tpu.memory_space<vmem>>, vector<4x64xf32>
    %425 = arith.truncf %424 : vector<4x64xf32> to vector<4x64xbf16>
    %c10 = arith.constant 10 : index
    %c0_410 = arith.constant 0 : index
    %c0_411 = arith.constant 0 : index
    %c0_412 = arith.constant 0 : index
    %426 = vector.load %arg2[%c10, %c0_410, %c0_411, %c0_412] : memref<16x3x64x64xbf16, #tpu.memory_space<vmem>>, vector<1x1x64x64xbf16>
    %427 = vector.shape_cast %426 : vector<1x1x64x64xbf16> to vector<64x64xbf16>
    %cst_413 = arith.constant dense<0.000000e+00> : vector<4x64xf32>
    %428 = tpu.matmul %425, %427, %cst_413 {dimension_numbers = #tpu.dot_dimension_numbers<[1], [0], [0], [1], [0, 0, 1, 1], [], []>} : vector<4x64xbf16>, vector<64x64xbf16>, vector<4x64xf32> -> vector<4x64xf32>
    %c8_414 = arith.constant 8 : index
    %c0_415 = arith.constant 0 : index
    %429 = vector.load %arg16[%c8_414, %c0_415] : memref<13x64xf32, #tpu.memory_space<vmem>>, vector<4x64xf32>
    %430 = arith.truncf %429 : vector<4x64xf32> to vector<4x64xbf16>
    %c10_416 = arith.constant 10 : index
    %c1_417 = arith.constant 1 : index
    %c0_418 = arith.constant 0 : index
    %c0_419 = arith.constant 0 : index
    %431 = vector.load %arg2[%c10_416, %c1_417, %c0_418, %c0_419] : memref<16x3x64x64xbf16, #tpu.memory_space<vmem>>, vector<1x1x64x64xbf16>
    %432 = vector.shape_cast %431 : vector<1x1x64x64xbf16> to vector<64x64xbf16>
    %cst_420 = arith.constant dense<0.000000e+00> : vector<4x64xf32>
    %433 = tpu.matmul %430, %432, %cst_420 {dimension_numbers = #tpu.dot_dimension_numbers<[1], [0], [0], [1], [0, 0, 1, 1], [], []>} : vector<4x64xbf16>, vector<64x64xbf16>, vector<4x64xf32> -> vector<4x64xf32>
    %c9_421 = arith.constant 9 : index
    %c0_422 = arith.constant 0 : index
    %434 = vector.load %arg16[%c9_421, %c0_422] : memref<13x64xf32, #tpu.memory_space<vmem>>, vector<4x64xf32>
    %435 = arith.truncf %434 : vector<4x64xf32> to vector<4x64xbf16>
    %c10_423 = arith.constant 10 : index
    %c2_424 = arith.constant 2 : index
    %c0_425 = arith.constant 0 : index
    %c0_426 = arith.constant 0 : index
    %436 = vector.load %arg2[%c10_423, %c2_424, %c0_425, %c0_426] : memref<16x3x64x64xbf16, #tpu.memory_space<vmem>>, vector<1x1x64x64xbf16>
    %437 = vector.shape_cast %436 : vector<1x1x64x64xbf16> to vector<64x64xbf16>
    %cst_427 = arith.constant dense<0.000000e+00> : vector<4x64xf32>
    %438 = tpu.matmul %435, %437, %cst_427 {dimension_numbers = #tpu.dot_dimension_numbers<[1], [0], [0], [1], [0, 0, 1, 1], [], []>} : vector<4x64xbf16>, vector<64x64xbf16>, vector<4x64xf32> -> vector<4x64xf32>
    %439 = arith.addf %428, %433 : vector<4x64xf32>
    %440 = arith.addf %439, %438 : vector<4x64xf32>
    %c9_428 = arith.constant 9 : index
    %c0_429 = arith.constant 0 : index
    %c0_430 = arith.constant 0 : index
    %441 = vector.load %arg3[%c9_428, %c0_429, %c0_430] : memref<16x1x64xf32, #tpu.memory_space<vmem>>, vector<1x1x64xf32>
    %442 = vector.shape_cast %441 : vector<1x1x64xf32> to vector<1x64xf32>
    %443 = vector.broadcast %442 : vector<1x64xf32> to vector<4x64xf32>
    %444 = arith.addf %440, %443 : vector<4x64xf32>
    %445 = arith.truncf %388 : vector<4x64xf32> to vector<4x64xbf16>
    %c3_431 = arith.constant 3 : index
    %c0_432 = arith.constant 0 : index
    %c0_433 = arith.constant 0 : index
    %c0_434 = arith.constant 0 : index
    %446 = vector.load %arg10[%c3_431, %c0_432, %c0_433, %c0_434] : memref<6x1x64x64xbf16, #tpu.memory_space<vmem>>, vector<1x1x64x64xbf16>
    %447 = vector.shape_cast %446 : vector<1x1x64x64xbf16> to vector<64x64xbf16>
    %cst_435 = arith.constant dense<0.000000e+00> : vector<4x64xf32>
    %448 = tpu.matmul %445, %447, %cst_435 {dimension_numbers = #tpu.dot_dimension_numbers<[1], [0], [0], [1], [0, 0, 1, 1], [], []>} : vector<4x64xbf16>, vector<64x64xbf16>, vector<4x64xf32> -> vector<4x64xf32>
    %c10_436 = arith.constant 10 : index
    %c0_437 = arith.constant 0 : index
    %c0_438 = arith.constant 0 : index
    %449 = vector.load %arg3[%c10_436, %c0_437, %c0_438] : memref<16x1x64xf32, #tpu.memory_space<vmem>>, vector<1x1x64xf32>
    %450 = vector.shape_cast %449 : vector<1x1x64xf32> to vector<1x64xf32>
    %451 = vector.broadcast %450 : vector<1x64xf32> to vector<4x64xf32>
    %452 = arith.addf %448, %451 : vector<4x64xf32>
    %453 = arith.addf %444, %452 : vector<4x64xf32>
    %cst_439 = arith.constant 0.000000e+00 : f32
    %454 = vector.broadcast %cst_439 : f32 to vector<4x64xf32>
    %455 = arith.cmpf ogt, %453, %454 : vector<4x64xf32>
    %cst_440 = arith.constant 0.000000e+00 : f32
    %456 = vector.broadcast %cst_440 : f32 to vector<4x64xf32>
    %457 = arith.minimumf %453, %456 : vector<4x64xf32>
    %458 = math.exp %457 : vector<4x64xf32>
    %cst_441 = arith.constant 1.000000e+00 : f32
    %459 = vector.broadcast %cst_441 : f32 to vector<4x64xf32>
    %460 = arith.subf %458, %459 : vector<4x64xf32>
    %461 = arith.select %455, %453, %460 : vector<4x64xi1>, vector<4x64xf32>
    %c8_442 = arith.constant 8 : index
    %c0_443 = arith.constant 0 : index
    %462 = vector.load %arg16[%c8_442, %c0_443] : memref<13x64xf32, #tpu.memory_space<vmem>>, vector<4x64xf32>
    tpu.vector_store %arg16[%c8_442, %c0_443], %461 {strides = array<i32>} : memref<13x64xf32, #tpu.memory_space<vmem>>, vector<4x64xf32>,
    %c7_444 = arith.constant 7 : index
    %c0_445 = arith.constant 0 : index
    %463 = vector.load %arg16[%c7_444, %c0_445] : memref<13x64xf32, #tpu.memory_space<vmem>>, vector<4x64xf32>
    %464 = arith.truncf %463 : vector<4x64xf32> to vector<4x64xbf16>
    %c11 = arith.constant 11 : index
    %c0_446 = arith.constant 0 : index
    %c0_447 = arith.constant 0 : index
    %c0_448 = arith.constant 0 : index
    %465 = vector.load %arg2[%c11, %c0_446, %c0_447, %c0_448] : memref<16x3x64x64xbf16, #tpu.memory_space<vmem>>, vector<1x1x64x64xbf16>
    %466 = vector.shape_cast %465 : vector<1x1x64x64xbf16> to vector<64x64xbf16>
    %cst_449 = arith.constant dense<0.000000e+00> : vector<4x64xf32>
    %467 = tpu.matmul %464, %466, %cst_449 {dimension_numbers = #tpu.dot_dimension_numbers<[1], [0], [0], [1], [0, 0, 1, 1], [], []>} : vector<4x64xbf16>, vector<64x64xbf16>, vector<4x64xf32> -> vector<4x64xf32>
    %c8_450 = arith.constant 8 : index
    %c0_451 = arith.constant 0 : index
    %468 = vector.load %arg16[%c8_450, %c0_451] : memref<13x64xf32, #tpu.memory_space<vmem>>, vector<4x64xf32>
    %469 = arith.truncf %468 : vector<4x64xf32> to vector<4x64xbf16>
    %c11_452 = arith.constant 11 : index
    %c1_453 = arith.constant 1 : index
    %c0_454 = arith.constant 0 : index
    %c0_455 = arith.constant 0 : index
    %470 = vector.load %arg2[%c11_452, %c1_453, %c0_454, %c0_455] : memref<16x3x64x64xbf16, #tpu.memory_space<vmem>>, vector<1x1x64x64xbf16>
    %471 = vector.shape_cast %470 : vector<1x1x64x64xbf16> to vector<64x64xbf16>
    %cst_456 = arith.constant dense<0.000000e+00> : vector<4x64xf32>
    %472 = tpu.matmul %469, %471, %cst_456 {dimension_numbers = #tpu.dot_dimension_numbers<[1], [0], [0], [1], [0, 0, 1, 1], [], []>} : vector<4x64xbf16>, vector<64x64xbf16>, vector<4x64xf32> -> vector<4x64xf32>
    %c9_457 = arith.constant 9 : index
    %c0_458 = arith.constant 0 : index
    %473 = vector.load %arg16[%c9_457, %c0_458] : memref<13x64xf32, #tpu.memory_space<vmem>>, vector<4x64xf32>
    %474 = arith.truncf %473 : vector<4x64xf32> to vector<4x64xbf16>
    %c11_459 = arith.constant 11 : index
    %c2_460 = arith.constant 2 : index
    %c0_461 = arith.constant 0 : index
    %c0_462 = arith.constant 0 : index
    %475 = vector.load %arg2[%c11_459, %c2_460, %c0_461, %c0_462] : memref<16x3x64x64xbf16, #tpu.memory_space<vmem>>, vector<1x1x64x64xbf16>
    %476 = vector.shape_cast %475 : vector<1x1x64x64xbf16> to vector<64x64xbf16>
    %cst_463 = arith.constant dense<0.000000e+00> : vector<4x64xf32>
    %477 = tpu.matmul %474, %476, %cst_463 {dimension_numbers = #tpu.dot_dimension_numbers<[1], [0], [0], [1], [0, 0, 1, 1], [], []>} : vector<4x64xbf16>, vector<64x64xbf16>, vector<4x64xf32> -> vector<4x64xf32>
    %478 = arith.addf %467, %472 : vector<4x64xf32>
    %479 = arith.addf %478, %477 : vector<4x64xf32>
    %cst_464 = arith.constant 0.000000e+00 : f32
    %480 = vector.broadcast %cst_464 : f32 to vector<4x64xf32>
    %481 = arith.cmpf ogt, %479, %480 : vector<4x64xf32>
    %cst_465 = arith.constant 0.000000e+00 : f32
    %482 = vector.broadcast %cst_465 : f32 to vector<4x64xf32>
    %483 = arith.minimumf %479, %482 : vector<4x64xf32>
    %484 = math.exp %483 : vector<4x64xf32>
    %cst_466 = arith.constant 1.000000e+00 : f32
    %485 = vector.broadcast %cst_466 : f32 to vector<4x64xf32>
    %486 = arith.subf %484, %485 : vector<4x64xf32>
    %487 = arith.select %481, %479, %486 : vector<4x64xi1>, vector<4x64xf32>
    %c8_467 = arith.constant 8 : index
    %c0_468 = arith.constant 0 : index
    %488 = vector.load %arg16[%c8_467, %c0_468] : memref<13x64xf32, #tpu.memory_space<vmem>>, vector<4x64xf32>
    tpu.vector_store %arg16[%c8_467, %c0_468], %487 {strides = array<i32>} : memref<13x64xf32, #tpu.memory_space<vmem>>, vector<4x64xf32>,
    %c7_469 = arith.constant 7 : index
    %c0_470 = arith.constant 0 : index
    %489 = vector.load %arg16[%c7_469, %c0_470] : memref<13x64xf32, #tpu.memory_space<vmem>>, vector<4x64xf32>
    %490 = arith.truncf %489 : vector<4x64xf32> to vector<4x64xbf16>
    %c2_471 = arith.constant 2 : index
    %c0_472 = arith.constant 0 : index
    %c0_473 = arith.constant 0 : index
    %c0_474 = arith.constant 0 : index
    %491 = vector.load %arg4[%c2_471, %c0_472, %c0_473, %c0_474] : memref<3x3x64x128xbf16, #tpu.memory_space<vmem>>, vector<1x1x64x128xbf16>
    %492 = vector.shape_cast %491 : vector<1x1x64x128xbf16> to vector<64x128xbf16>
    %cst_475 = arith.constant dense<0.000000e+00> : vector<4x128xf32>
    %493 = tpu.matmul %490, %492, %cst_475 {dimension_numbers = #tpu.dot_dimension_numbers<[1], [0], [0], [1], [0, 0, 1, 1], [], []>} : vector<4x64xbf16>, vector<64x128xbf16>, vector<4x128xf32> -> vector<4x128xf32>
    %c8_476 = arith.constant 8 : index
    %c0_477 = arith.constant 0 : index
    %494 = vector.load %arg16[%c8_476, %c0_477] : memref<13x64xf32, #tpu.memory_space<vmem>>, vector<4x64xf32>
    %495 = arith.truncf %494 : vector<4x64xf32> to vector<4x64xbf16>
    %c2_478 = arith.constant 2 : index
    %c1_479 = arith.constant 1 : index
    %c0_480 = arith.constant 0 : index
    %c0_481 = arith.constant 0 : index
    %496 = vector.load %arg4[%c2_478, %c1_479, %c0_480, %c0_481] : memref<3x3x64x128xbf16, #tpu.memory_space<vmem>>, vector<1x1x64x128xbf16>
    %497 = vector.shape_cast %496 : vector<1x1x64x128xbf16> to vector<64x128xbf16>
    %cst_482 = arith.constant dense<0.000000e+00> : vector<4x128xf32>
    %498 = tpu.matmul %495, %497, %cst_482 {dimension_numbers = #tpu.dot_dimension_numbers<[1], [0], [0], [1], [0, 0, 1, 1], [], []>} : vector<4x64xbf16>, vector<64x128xbf16>, vector<4x128xf32> -> vector<4x128xf32>
    %c9_483 = arith.constant 9 : index
    %c0_484 = arith.constant 0 : index
    %499 = vector.load %arg16[%c9_483, %c0_484] : memref<13x64xf32, #tpu.memory_space<vmem>>, vector<4x64xf32>
    %500 = arith.truncf %499 : vector<4x64xf32> to vector<4x64xbf16>
    %c2_485 = arith.constant 2 : index
    %c2_486 = arith.constant 2 : index
    %c0_487 = arith.constant 0 : index
    %c0_488 = arith.constant 0 : index
    %501 = vector.load %arg4[%c2_485, %c2_486, %c0_487, %c0_488] : memref<3x3x64x128xbf16, #tpu.memory_space<vmem>>, vector<1x1x64x128xbf16>
    %502 = vector.shape_cast %501 : vector<1x1x64x128xbf16> to vector<64x128xbf16>
    %cst_489 = arith.constant dense<0.000000e+00> : vector<4x128xf32>
    %503 = tpu.matmul %500, %502, %cst_489 {dimension_numbers = #tpu.dot_dimension_numbers<[1], [0], [0], [1], [0, 0, 1, 1], [], []>} : vector<4x64xbf16>, vector<64x128xbf16>, vector<4x128xf32> -> vector<4x128xf32>
    %504 = arith.addf %493, %498 : vector<4x128xf32>
    %505 = arith.addf %504, %503 : vector<4x128xf32>
    %c2_490 = arith.constant 2 : index
    %c0_491 = arith.constant 0 : index
    %c0_492 = arith.constant 0 : index
    %506 = vector.load %arg5[%c2_490, %c0_491, %c0_492] : memref<3x1x128xf32, #tpu.memory_space<vmem>>, vector<1x1x128xf32>
    %507 = vector.shape_cast %506 : vector<1x1x128xf32> to vector<1x128xf32>
    %508 = vector.broadcast %507 : vector<1x128xf32> to vector<4x128xf32>
    %509 = arith.addf %505, %508 : vector<4x128xf32>
    %c0_493 = arith.constant 0 : index
    %c0_494 = arith.constant 0 : index
    %c0_495 = arith.constant 0 : index
    %510 = vector.load %arg12[%c0_493, %c0_494, %c0_495] : memref<1x2x4xbf16, #tpu.memory_space<vmem>>, vector<1x2x4xbf16>
    %511 = vector.shape_cast %510 : vector<1x2x4xbf16> to vector<2x4xbf16>
    %512 = arith.truncf %509 : vector<4x128xf32> to vector<4x128xbf16>
    %cst_496 = arith.constant dense<0.000000e+00> : vector<2x128xf32>
    %513 = tpu.matmul %511, %512, %cst_496 {dimension_numbers = #tpu.dot_dimension_numbers<[1], [0], [0], [1], [0, 0, 1, 1], [], []>} : vector<2x4xbf16>, vector<4x128xbf16>, vector<2x128xf32> -> vector<2x128xf32>
    %514 = arith.truncf %513 : vector<2x128xf32> to vector<2x128xbf16>
    %c2_497 = arith.constant 2 : index
    %c0_498 = arith.constant 0 : index
    %c0_499 = arith.constant 0 : index
    %515 = vector.load %arg7[%c2_497, %c0_498, %c0_499] : memref<3x128x64xbf16, #tpu.memory_space<vmem>>, vector<1x128x64xbf16>
    %516 = vector.shape_cast %515 : vector<1x128x64xbf16> to vector<128x64xbf16>
    %cst_500 = arith.constant dense<0.000000e+00> : vector<2x64xf32>
    %517 = tpu.matmul %514, %516, %cst_500 {dimension_numbers = #tpu.dot_dimension_numbers<[1], [0], [0], [1], [0, 0, 1, 1], [], []>} : vector<2x128xbf16>, vector<128x64xbf16>, vector<2x64xf32> -> vector<2x64xf32>
    %c0_501 = arith.constant 0 : index
    %c0_502 = arith.constant 0 : index
    %c0_503 = arith.constant 0 : index
    %518 = vector.load %arg12[%c0_501, %c0_502, %c0_503] : memref<1x2x4xbf16, #tpu.memory_space<vmem>>, vector<1x2x4xbf16>
    %519 = vector.shape_cast %518 : vector<1x2x4xbf16> to vector<2x4xbf16>
    %520 = arith.truncf %453 : vector<4x64xf32> to vector<4x64xbf16>
    %cst_504 = arith.constant dense<0.000000e+00> : vector<2x64xf32>
    %521 = tpu.matmul %519, %520, %cst_504 {dimension_numbers = #tpu.dot_dimension_numbers<[1], [0], [0], [1], [0, 0, 1, 1], [], []>} : vector<2x4xbf16>, vector<4x64xbf16>, vector<2x64xf32> -> vector<2x64xf32>
    %522 = arith.truncf %521 : vector<2x64xf32> to vector<2x64xbf16>
    %c2_505 = arith.constant 2 : index
    %c0_506 = arith.constant 0 : index
    %c0_507 = arith.constant 0 : index
    %523 = vector.load %arg8[%c2_505, %c0_506, %c0_507] : memref<3x64x32xbf16, #tpu.memory_space<vmem>>, vector<1x64x32xbf16>
    %524 = vector.shape_cast %523 : vector<1x64x32xbf16> to vector<64x32xbf16>
    %cst_508 = arith.constant dense<0.000000e+00> : vector<2x32xf32>
    %525 = tpu.matmul %522, %524, %cst_508 {dimension_numbers = #tpu.dot_dimension_numbers<[1], [0], [0], [1], [0, 0, 1, 1], [], []>} : vector<2x64xbf16>, vector<64x32xbf16>, vector<2x32xf32> -> vector<2x32xf32>
    %526 = arith.truncf %525 : vector<2x32xf32> to vector<2x32xbf16>
    %c2_509 = arith.constant 2 : index
    %c0_510 = arith.constant 0 : index
    %c0_511 = arith.constant 0 : index
    %c0_512 = arith.constant 0 : index
    %527 = vector.load %arg9[%c2_509, %c0_510, %c0_511, %c0_512] : memref<3x1x32x64xbf16, #tpu.memory_space<vmem>>, vector<1x1x32x64xbf16>
    %528 = vector.shape_cast %527 : vector<1x1x32x64xbf16> to vector<32x64xbf16>
    %cst_513 = arith.constant dense<0.000000e+00> : vector<2x64xf32>
    %529 = tpu.matmul %526, %528, %cst_513 {dimension_numbers = #tpu.dot_dimension_numbers<[1], [0], [0], [1], [0, 0, 1, 1], [], []>} : vector<2x32xbf16>, vector<32x64xbf16>, vector<2x64xf32> -> vector<2x64xf32>
    %c11_514 = arith.constant 11 : index
    %c0_515 = arith.constant 0 : index
    %c0_516 = arith.constant 0 : index
    %530 = vector.load %arg3[%c11_514, %c0_515, %c0_516] : memref<16x1x64xf32, #tpu.memory_space<vmem>>, vector<1x1x64xf32>
    %531 = vector.shape_cast %530 : vector<1x1x64xf32> to vector<1x64xf32>
    %532 = vector.broadcast %531 : vector<1x64xf32> to vector<2x64xf32>
    %533 = arith.addf %529, %532 : vector<2x64xf32>
    %534 = arith.addf %517, %533 : vector<2x64xf32>
    %cst_517 = arith.constant 0.000000e+00 : f32
    %535 = vector.broadcast %cst_517 : f32 to vector<2x64xf32>
    %536 = arith.cmpf ogt, %534, %535 : vector<2x64xf32>
    %cst_518 = arith.constant 0.000000e+00 : f32
    %537 = vector.broadcast %cst_518 : f32 to vector<2x64xf32>
    %538 = arith.minimumf %534, %537 : vector<2x64xf32>
    %539 = math.exp %538 : vector<2x64xf32>
    %cst_519 = arith.constant 1.000000e+00 : f32
    %540 = vector.broadcast %cst_519 : f32 to vector<2x64xf32>
    %541 = arith.subf %539, %540 : vector<2x64xf32>
    %542 = arith.select %536, %534, %541 : vector<2x64xi1>, vector<2x64xf32>
    %c8_520 = arith.constant 8 : index
    %c0_521 = arith.constant 0 : index
    %543 = vector.load %arg17[%c8_520, %c0_521] : memref<11x64xf32, #tpu.memory_space<vmem>>, vector<2x64xf32>
    tpu.vector_store %arg17[%c8_520, %c0_521], %542 {strides = array<i32>} : memref<11x64xf32, #tpu.memory_space<vmem>>, vector<2x64xf32>,
    %c7_522 = arith.constant 7 : index
    %c0_523 = arith.constant 0 : index
    %544 = vector.load %arg17[%c7_522, %c0_523] : memref<11x64xf32, #tpu.memory_space<vmem>>, vector<2x64xf32>
    %545 = arith.truncf %544 : vector<2x64xf32> to vector<2x64xbf16>
    %c12 = arith.constant 12 : index
    %c0_524 = arith.constant 0 : index
    %c0_525 = arith.constant 0 : index
    %c0_526 = arith.constant 0 : index
    %546 = vector.load %arg2[%c12, %c0_524, %c0_525, %c0_526] : memref<16x3x64x64xbf16, #tpu.memory_space<vmem>>, vector<1x1x64x64xbf16>
    %547 = vector.shape_cast %546 : vector<1x1x64x64xbf16> to vector<64x64xbf16>
    %cst_527 = arith.constant dense<0.000000e+00> : vector<2x64xf32>
    %548 = tpu.matmul %545, %547, %cst_527 {dimension_numbers = #tpu.dot_dimension_numbers<[1], [0], [0], [1], [0, 0, 1, 1], [], []>} : vector<2x64xbf16>, vector<64x64xbf16>, vector<2x64xf32> -> vector<2x64xf32>
    %c8_528 = arith.constant 8 : index
    %c0_529 = arith.constant 0 : index
    %549 = vector.load %arg17[%c8_528, %c0_529] : memref<11x64xf32, #tpu.memory_space<vmem>>, vector<2x64xf32>
    %550 = arith.truncf %549 : vector<2x64xf32> to vector<2x64xbf16>
    %c12_530 = arith.constant 12 : index
    %c1_531 = arith.constant 1 : index
    %c0_532 = arith.constant 0 : index
    %c0_533 = arith.constant 0 : index
    %551 = vector.load %arg2[%c12_530, %c1_531, %c0_532, %c0_533] : memref<16x3x64x64xbf16, #tpu.memory_space<vmem>>, vector<1x1x64x64xbf16>
    %552 = vector.shape_cast %551 : vector<1x1x64x64xbf16> to vector<64x64xbf16>
    %cst_534 = arith.constant dense<0.000000e+00> : vector<2x64xf32>
    %553 = tpu.matmul %550, %552, %cst_534 {dimension_numbers = #tpu.dot_dimension_numbers<[1], [0], [0], [1], [0, 0, 1, 1], [], []>} : vector<2x64xbf16>, vector<64x64xbf16>, vector<2x64xf32> -> vector<2x64xf32>
    %c9_535 = arith.constant 9 : index
    %c0_536 = arith.constant 0 : index
    %554 = vector.load %arg17[%c9_535, %c0_536] : memref<11x64xf32, #tpu.memory_space<vmem>>, vector<2x64xf32>
    %555 = arith.truncf %554 : vector<2x64xf32> to vector<2x64xbf16>
    %c12_537 = arith.constant 12 : index
    %c2_538 = arith.constant 2 : index
    %c0_539 = arith.constant 0 : index
    %c0_540 = arith.constant 0 : index
    %556 = vector.load %arg2[%c12_537, %c2_538, %c0_539, %c0_540] : memref<16x3x64x64xbf16, #tpu.memory_space<vmem>>, vector<1x1x64x64xbf16>
    %557 = vector.shape_cast %556 : vector<1x1x64x64xbf16> to vector<64x64xbf16>
    %cst_541 = arith.constant dense<0.000000e+00> : vector<2x64xf32>
    %558 = tpu.matmul %555, %557, %cst_541 {dimension_numbers = #tpu.dot_dimension_numbers<[1], [0], [0], [1], [0, 0, 1, 1], [], []>} : vector<2x64xbf16>, vector<64x64xbf16>, vector<2x64xf32> -> vector<2x64xf32>
    %559 = arith.addf %548, %553 : vector<2x64xf32>
    %560 = arith.addf %559, %558 : vector<2x64xf32>
    %cst_542 = arith.constant 0.000000e+00 : f32
    %561 = vector.broadcast %cst_542 : f32 to vector<2x64xf32>
    %562 = arith.cmpf ogt, %560, %561 : vector<2x64xf32>
    %cst_543 = arith.constant 0.000000e+00 : f32
    %563 = vector.broadcast %cst_543 : f32 to vector<2x64xf32>
    %564 = arith.minimumf %560, %563 : vector<2x64xf32>
    %565 = math.exp %564 : vector<2x64xf32>
    %cst_544 = arith.constant 1.000000e+00 : f32
    %566 = vector.broadcast %cst_544 : f32 to vector<2x64xf32>
    %567 = arith.subf %565, %566 : vector<2x64xf32>
    %568 = arith.select %562, %560, %567 : vector<2x64xi1>, vector<2x64xf32>
    %c8_545 = arith.constant 8 : index
    %c0_546 = arith.constant 0 : index
    %569 = vector.load %arg17[%c8_545, %c0_546] : memref<11x64xf32, #tpu.memory_space<vmem>>, vector<2x64xf32>
    tpu.vector_store %arg17[%c8_545, %c0_546], %568 {strides = array<i32>} : memref<11x64xf32, #tpu.memory_space<vmem>>, vector<2x64xf32>,
    %c7_547 = arith.constant 7 : index
    %c0_548 = arith.constant 0 : index
    %570 = vector.load %arg17[%c7_547, %c0_548] : memref<11x64xf32, #tpu.memory_space<vmem>>, vector<2x64xf32>
    %571 = arith.truncf %570 : vector<2x64xf32> to vector<2x64xbf16>
    %c13 = arith.constant 13 : index
    %c0_549 = arith.constant 0 : index
    %c0_550 = arith.constant 0 : index
    %c0_551 = arith.constant 0 : index
    %572 = vector.load %arg2[%c13, %c0_549, %c0_550, %c0_551] : memref<16x3x64x64xbf16, #tpu.memory_space<vmem>>, vector<1x1x64x64xbf16>
    %573 = vector.shape_cast %572 : vector<1x1x64x64xbf16> to vector<64x64xbf16>
    %cst_552 = arith.constant dense<0.000000e+00> : vector<2x64xf32>
    %574 = tpu.matmul %571, %573, %cst_552 {dimension_numbers = #tpu.dot_dimension_numbers<[1], [0], [0], [1], [0, 0, 1, 1], [], []>} : vector<2x64xbf16>, vector<64x64xbf16>, vector<2x64xf32> -> vector<2x64xf32>
    %c8_553 = arith.constant 8 : index
    %c0_554 = arith.constant 0 : index
    %575 = vector.load %arg17[%c8_553, %c0_554] : memref<11x64xf32, #tpu.memory_space<vmem>>, vector<2x64xf32>
    %576 = arith.truncf %575 : vector<2x64xf32> to vector<2x64xbf16>
    %c13_555 = arith.constant 13 : index
    %c1_556 = arith.constant 1 : index
    %c0_557 = arith.constant 0 : index
    %c0_558 = arith.constant 0 : index
    %577 = vector.load %arg2[%c13_555, %c1_556, %c0_557, %c0_558] : memref<16x3x64x64xbf16, #tpu.memory_space<vmem>>, vector<1x1x64x64xbf16>
    %578 = vector.shape_cast %577 : vector<1x1x64x64xbf16> to vector<64x64xbf16>
    %cst_559 = arith.constant dense<0.000000e+00> : vector<2x64xf32>
    %579 = tpu.matmul %576, %578, %cst_559 {dimension_numbers = #tpu.dot_dimension_numbers<[1], [0], [0], [1], [0, 0, 1, 1], [], []>} : vector<2x64xbf16>, vector<64x64xbf16>, vector<2x64xf32> -> vector<2x64xf32>
    %c9_560 = arith.constant 9 : index
    %c0_561 = arith.constant 0 : index
    %580 = vector.load %arg17[%c9_560, %c0_561] : memref<11x64xf32, #tpu.memory_space<vmem>>, vector<2x64xf32>
    %581 = arith.truncf %580 : vector<2x64xf32> to vector<2x64xbf16>
    %c13_562 = arith.constant 13 : index
    %c2_563 = arith.constant 2 : index
    %c0_564 = arith.constant 0 : index
    %c0_565 = arith.constant 0 : index
    %582 = vector.load %arg2[%c13_562, %c2_563, %c0_564, %c0_565] : memref<16x3x64x64xbf16, #tpu.memory_space<vmem>>, vector<1x1x64x64xbf16>
    %583 = vector.shape_cast %582 : vector<1x1x64x64xbf16> to vector<64x64xbf16>
    %cst_566 = arith.constant dense<0.000000e+00> : vector<2x64xf32>
    %584 = tpu.matmul %581, %583, %cst_566 {dimension_numbers = #tpu.dot_dimension_numbers<[1], [0], [0], [1], [0, 0, 1, 1], [], []>} : vector<2x64xbf16>, vector<64x64xbf16>, vector<2x64xf32> -> vector<2x64xf32>
    %585 = arith.addf %574, %579 : vector<2x64xf32>
    %586 = arith.addf %585, %584 : vector<2x64xf32>
    %c12_567 = arith.constant 12 : index
    %c0_568 = arith.constant 0 : index
    %c0_569 = arith.constant 0 : index
    %587 = vector.load %arg3[%c12_567, %c0_568, %c0_569] : memref<16x1x64xf32, #tpu.memory_space<vmem>>, vector<1x1x64xf32>
    %588 = vector.shape_cast %587 : vector<1x1x64xf32> to vector<1x64xf32>
    %589 = vector.broadcast %588 : vector<1x64xf32> to vector<2x64xf32>
    %590 = arith.addf %586, %589 : vector<2x64xf32>
    %591 = arith.truncf %534 : vector<2x64xf32> to vector<2x64xbf16>
    %c4_570 = arith.constant 4 : index
    %c0_571 = arith.constant 0 : index
    %c0_572 = arith.constant 0 : index
    %c0_573 = arith.constant 0 : index
    %592 = vector.load %arg10[%c4_570, %c0_571, %c0_572, %c0_573] : memref<6x1x64x64xbf16, #tpu.memory_space<vmem>>, vector<1x1x64x64xbf16>
    %593 = vector.shape_cast %592 : vector<1x1x64x64xbf16> to vector<64x64xbf16>
    %cst_574 = arith.constant dense<0.000000e+00> : vector<2x64xf32>
    %594 = tpu.matmul %591, %593, %cst_574 {dimension_numbers = #tpu.dot_dimension_numbers<[1], [0], [0], [1], [0, 0, 1, 1], [], []>} : vector<2x64xbf16>, vector<64x64xbf16>, vector<2x64xf32> -> vector<2x64xf32>
    %c13_575 = arith.constant 13 : index
    %c0_576 = arith.constant 0 : index
    %c0_577 = arith.constant 0 : index
    %595 = vector.load %arg3[%c13_575, %c0_576, %c0_577] : memref<16x1x64xf32, #tpu.memory_space<vmem>>, vector<1x1x64xf32>
    %596 = vector.shape_cast %595 : vector<1x1x64xf32> to vector<1x64xf32>
    %597 = vector.broadcast %596 : vector<1x64xf32> to vector<2x64xf32>
    %598 = arith.addf %594, %597 : vector<2x64xf32>
    %599 = arith.addf %590, %598 : vector<2x64xf32>
    %cst_578 = arith.constant 0.000000e+00 : f32
    %600 = vector.broadcast %cst_578 : f32 to vector<2x64xf32>
    %601 = arith.cmpf ogt, %599, %600 : vector<2x64xf32>
    %cst_579 = arith.constant 0.000000e+00 : f32
    %602 = vector.broadcast %cst_579 : f32 to vector<2x64xf32>
    %603 = arith.minimumf %599, %602 : vector<2x64xf32>
    %604 = math.exp %603 : vector<2x64xf32>
    %cst_580 = arith.constant 1.000000e+00 : f32
    %605 = vector.broadcast %cst_580 : f32 to vector<2x64xf32>
    %606 = arith.subf %604, %605 : vector<2x64xf32>
    %607 = arith.select %601, %599, %606 : vector<2x64xi1>, vector<2x64xf32>
    %c8_581 = arith.constant 8 : index
    %c0_582 = arith.constant 0 : index
    %608 = vector.load %arg17[%c8_581, %c0_582] : memref<11x64xf32, #tpu.memory_space<vmem>>, vector<2x64xf32>
    tpu.vector_store %arg17[%c8_581, %c0_582], %607 {strides = array<i32>} : memref<11x64xf32, #tpu.memory_space<vmem>>, vector<2x64xf32>,
    %c7_583 = arith.constant 7 : index
    %c0_584 = arith.constant 0 : index
    %609 = vector.load %arg17[%c7_583, %c0_584] : memref<11x64xf32, #tpu.memory_space<vmem>>, vector<2x64xf32>
    %610 = arith.truncf %609 : vector<2x64xf32> to vector<2x64xbf16>
    %c14 = arith.constant 14 : index
    %c0_585 = arith.constant 0 : index
    %c0_586 = arith.constant 0 : index
    %c0_587 = arith.constant 0 : index
    %611 = vector.load %arg2[%c14, %c0_585, %c0_586, %c0_587] : memref<16x3x64x64xbf16, #tpu.memory_space<vmem>>, vector<1x1x64x64xbf16>
    %612 = vector.shape_cast %611 : vector<1x1x64x64xbf16> to vector<64x64xbf16>
    %cst_588 = arith.constant dense<0.000000e+00> : vector<2x64xf32>
    %613 = tpu.matmul %610, %612, %cst_588 {dimension_numbers = #tpu.dot_dimension_numbers<[1], [0], [0], [1], [0, 0, 1, 1], [], []>} : vector<2x64xbf16>, vector<64x64xbf16>, vector<2x64xf32> -> vector<2x64xf32>
    %c8_589 = arith.constant 8 : index
    %c0_590 = arith.constant 0 : index
    %614 = vector.load %arg17[%c8_589, %c0_590] : memref<11x64xf32, #tpu.memory_space<vmem>>, vector<2x64xf32>
    %615 = arith.truncf %614 : vector<2x64xf32> to vector<2x64xbf16>
    %c14_591 = arith.constant 14 : index
    %c1_592 = arith.constant 1 : index
    %c0_593 = arith.constant 0 : index
    %c0_594 = arith.constant 0 : index
    %616 = vector.load %arg2[%c14_591, %c1_592, %c0_593, %c0_594] : memref<16x3x64x64xbf16, #tpu.memory_space<vmem>>, vector<1x1x64x64xbf16>
    %617 = vector.shape_cast %616 : vector<1x1x64x64xbf16> to vector<64x64xbf16>
    %cst_595 = arith.constant dense<0.000000e+00> : vector<2x64xf32>
    %618 = tpu.matmul %615, %617, %cst_595 {dimension_numbers = #tpu.dot_dimension_numbers<[1], [0], [0], [1], [0, 0, 1, 1], [], []>} : vector<2x64xbf16>, vector<64x64xbf16>, vector<2x64xf32> -> vector<2x64xf32>
    %c9_596 = arith.constant 9 : index
    %c0_597 = arith.constant 0 : index
    %619 = vector.load %arg17[%c9_596, %c0_597] : memref<11x64xf32, #tpu.memory_space<vmem>>, vector<2x64xf32>
    %620 = arith.truncf %619 : vector<2x64xf32> to vector<2x64xbf16>
    %c14_598 = arith.constant 14 : index
    %c2_599 = arith.constant 2 : index
    %c0_600 = arith.constant 0 : index
    %c0_601 = arith.constant 0 : index
    %621 = vector.load %arg2[%c14_598, %c2_599, %c0_600, %c0_601] : memref<16x3x64x64xbf16, #tpu.memory_space<vmem>>, vector<1x1x64x64xbf16>
    %622 = vector.shape_cast %621 : vector<1x1x64x64xbf16> to vector<64x64xbf16>
    %cst_602 = arith.constant dense<0.000000e+00> : vector<2x64xf32>
    %623 = tpu.matmul %620, %622, %cst_602 {dimension_numbers = #tpu.dot_dimension_numbers<[1], [0], [0], [1], [0, 0, 1, 1], [], []>} : vector<2x64xbf16>, vector<64x64xbf16>, vector<2x64xf32> -> vector<2x64xf32>
    %624 = arith.addf %613, %618 : vector<2x64xf32>
    %625 = arith.addf %624, %623 : vector<2x64xf32>
    %cst_603 = arith.constant 0.000000e+00 : f32
    %626 = vector.broadcast %cst_603 : f32 to vector<2x64xf32>
    %627 = arith.cmpf ogt, %625, %626 : vector<2x64xf32>
    %cst_604 = arith.constant 0.000000e+00 : f32
    %628 = vector.broadcast %cst_604 : f32 to vector<2x64xf32>
    %629 = arith.minimumf %625, %628 : vector<2x64xf32>
    %630 = math.exp %629 : vector<2x64xf32>
    %cst_605 = arith.constant 1.000000e+00 : f32
    %631 = vector.broadcast %cst_605 : f32 to vector<2x64xf32>
    %632 = arith.subf %630, %631 : vector<2x64xf32>
    %633 = arith.select %627, %625, %632 : vector<2x64xi1>, vector<2x64xf32>
    %c8_606 = arith.constant 8 : index
    %c0_607 = arith.constant 0 : index
    %634 = vector.load %arg17[%c8_606, %c0_607] : memref<11x64xf32, #tpu.memory_space<vmem>>, vector<2x64xf32>
    tpu.vector_store %arg17[%c8_606, %c0_607], %633 {strides = array<i32>} : memref<11x64xf32, #tpu.memory_space<vmem>>, vector<2x64xf32>,
    %c7_608 = arith.constant 7 : index
    %c0_609 = arith.constant 0 : index
    %635 = vector.load %arg17[%c7_608, %c0_609] : memref<11x64xf32, #tpu.memory_space<vmem>>, vector<2x64xf32>
    %636 = arith.truncf %635 : vector<2x64xf32> to vector<2x64xbf16>
    %c15 = arith.constant 15 : index
    %c0_610 = arith.constant 0 : index
    %c0_611 = arith.constant 0 : index
    %c0_612 = arith.constant 0 : index
    %637 = vector.load %arg2[%c15, %c0_610, %c0_611, %c0_612] : memref<16x3x64x64xbf16, #tpu.memory_space<vmem>>, vector<1x1x64x64xbf16>
    %638 = vector.shape_cast %637 : vector<1x1x64x64xbf16> to vector<64x64xbf16>
    %cst_613 = arith.constant dense<0.000000e+00> : vector<2x64xf32>
    %639 = tpu.matmul %636, %638, %cst_613 {dimension_numbers = #tpu.dot_dimension_numbers<[1], [0], [0], [1], [0, 0, 1, 1], [], []>} : vector<2x64xbf16>, vector<64x64xbf16>, vector<2x64xf32> -> vector<2x64xf32>
    %c8_614 = arith.constant 8 : index
    %c0_615 = arith.constant 0 : index
    %640 = vector.load %arg17[%c8_614, %c0_615] : memref<11x64xf32, #tpu.memory_space<vmem>>, vector<2x64xf32>
    %641 = arith.truncf %640 : vector<2x64xf32> to vector<2x64xbf16>
    %c15_616 = arith.constant 15 : index
    %c1_617 = arith.constant 1 : index
    %c0_618 = arith.constant 0 : index
    %c0_619 = arith.constant 0 : index
    %642 = vector.load %arg2[%c15_616, %c1_617, %c0_618, %c0_619] : memref<16x3x64x64xbf16, #tpu.memory_space<vmem>>, vector<1x1x64x64xbf16>
    %643 = vector.shape_cast %642 : vector<1x1x64x64xbf16> to vector<64x64xbf16>
    %cst_620 = arith.constant dense<0.000000e+00> : vector<2x64xf32>
    %644 = tpu.matmul %641, %643, %cst_620 {dimension_numbers = #tpu.dot_dimension_numbers<[1], [0], [0], [1], [0, 0, 1, 1], [], []>} : vector<2x64xbf16>, vector<64x64xbf16>, vector<2x64xf32> -> vector<2x64xf32>
    %c9_621 = arith.constant 9 : index
    %c0_622 = arith.constant 0 : index
    %645 = vector.load %arg17[%c9_621, %c0_622] : memref<11x64xf32, #tpu.memory_space<vmem>>, vector<2x64xf32>
    %646 = arith.truncf %645 : vector<2x64xf32> to vector<2x64xbf16>
    %c15_623 = arith.constant 15 : index
    %c2_624 = arith.constant 2 : index
    %c0_625 = arith.constant 0 : index
    %c0_626 = arith.constant 0 : index
    %647 = vector.load %arg2[%c15_623, %c2_624, %c0_625, %c0_626] : memref<16x3x64x64xbf16, #tpu.memory_space<vmem>>, vector<1x1x64x64xbf16>
    %648 = vector.shape_cast %647 : vector<1x1x64x64xbf16> to vector<64x64xbf16>
    %cst_627 = arith.constant dense<0.000000e+00> : vector<2x64xf32>
    %649 = tpu.matmul %646, %648, %cst_627 {dimension_numbers = #tpu.dot_dimension_numbers<[1], [0], [0], [1], [0, 0, 1, 1], [], []>} : vector<2x64xbf16>, vector<64x64xbf16>, vector<2x64xf32> -> vector<2x64xf32>
    %650 = arith.addf %639, %644 : vector<2x64xf32>
    %651 = arith.addf %650, %649 : vector<2x64xf32>
    %c14_628 = arith.constant 14 : index
    %c0_629 = arith.constant 0 : index
    %c0_630 = arith.constant 0 : index
    %652 = vector.load %arg3[%c14_628, %c0_629, %c0_630] : memref<16x1x64xf32, #tpu.memory_space<vmem>>, vector<1x1x64xf32>
    %653 = vector.shape_cast %652 : vector<1x1x64xf32> to vector<1x64xf32>
    %654 = vector.broadcast %653 : vector<1x64xf32> to vector<2x64xf32>
    %655 = arith.addf %651, %654 : vector<2x64xf32>
    %656 = arith.truncf %599 : vector<2x64xf32> to vector<2x64xbf16>
    %c5_631 = arith.constant 5 : index
    %c0_632 = arith.constant 0 : index
    %c0_633 = arith.constant 0 : index
    %c0_634 = arith.constant 0 : index
    %657 = vector.load %arg10[%c5_631, %c0_632, %c0_633, %c0_634] : memref<6x1x64x64xbf16, #tpu.memory_space<vmem>>, vector<1x1x64x64xbf16>
    %658 = vector.shape_cast %657 : vector<1x1x64x64xbf16> to vector<64x64xbf16>
    %cst_635 = arith.constant dense<0.000000e+00> : vector<2x64xf32>
    %659 = tpu.matmul %656, %658, %cst_635 {dimension_numbers = #tpu.dot_dimension_numbers<[1], [0], [0], [1], [0, 0, 1, 1], [], []>} : vector<2x64xbf16>, vector<64x64xbf16>, vector<2x64xf32> -> vector<2x64xf32>
    %c15_636 = arith.constant 15 : index
    %c0_637 = arith.constant 0 : index
    %c0_638 = arith.constant 0 : index
    %660 = vector.load %arg3[%c15_636, %c0_637, %c0_638] : memref<16x1x64xf32, #tpu.memory_space<vmem>>, vector<1x1x64xf32>
    %661 = vector.shape_cast %660 : vector<1x1x64xf32> to vector<1x64xf32>
    %662 = vector.broadcast %661 : vector<1x64xf32> to vector<2x64xf32>
    %663 = arith.addf %659, %662 : vector<2x64xf32>
    %664 = arith.addf %655, %663 : vector<2x64xf32>
    %c0_639 = arith.constant 0 : index
    %c0_640 = arith.constant 0 : index
    %c0_641 = arith.constant 0 : index
    %665 = vector.load %arg13[%c0_639, %c0_640, %c0_641] : memref<1x2x64xf32, #tpu.memory_space<vmem>>, vector<1x2x64xf32>
    %666 = vector.shape_cast %665 : vector<1x2x64xf32> to vector<2x64xf32>
    %667 = vector.shape_cast %664 : vector<2x64xf32> to vector<1x2x64xf32>
    tpu.vector_store %arg13[%c0_639, %c0_640, %c0_641], %667 {strides = array<i32>} : memref<1x2x64xf32, #tpu.memory_space<vmem>>, vector<1x2x64xf32>,
    return
  }
  func.func @transform_0(%arg0: i32) -> (i32, i32, i32) {
    %c0_i32 = arith.constant 0 : i32
    %c0_i32_0 = arith.constant 0 : i32
    %c0_i32_1 = arith.constant 0 : i32
    return %arg0, %c0_i32, %c0_i32_0 : i32, i32, i32
  }
  func.func @transform_1(%arg0: i32) -> (i32, i32, i32, i32) {
    %c0_i32 = arith.constant 0 : i32
    %c0_i32_0 = arith.constant 0 : i32
    %c0_i32_1 = arith.constant 0 : i32
    %c0_i32_2 = arith.constant 0 : i32
    %c0_i32_3 = arith.constant 0 : i32
    return %c0_i32, %c0_i32_0, %c0_i32_1, %c0_i32_2 : i32, i32, i32, i32
  }
  func.func @transform_2(%arg0: i32) -> (i32, i32, i32) {
    %c0_i32 = arith.constant 0 : i32
    %c0_i32_0 = arith.constant 0 : i32
    %c0_i32_1 = arith.constant 0 : i32
    %c0_i32_2 = arith.constant 0 : i32
    return %c0_i32, %c0_i32_0, %c0_i32_1 : i32, i32, i32
  }
  func.func @transform_3(%arg0: i32) -> (i32, i32, i32, i32) {
    %c0_i32 = arith.constant 0 : i32
    %c0_i32_0 = arith.constant 0 : i32
    %c0_i32_1 = arith.constant 0 : i32
    %c0_i32_2 = arith.constant 0 : i32
    %c0_i32_3 = arith.constant 0 : i32
    return %c0_i32, %c0_i32_0, %c0_i32_1, %c0_i32_2 : i32, i32, i32, i32
  }
  func.func @transform_4(%arg0: i32) -> (i32, i32, i32) {
    %c0_i32 = arith.constant 0 : i32
    %c0_i32_0 = arith.constant 0 : i32
    %c0_i32_1 = arith.constant 0 : i32
    %c0_i32_2 = arith.constant 0 : i32
    return %c0_i32, %c0_i32_0, %c0_i32_1 : i32, i32, i32
  }
  func.func @transform_5(%arg0: i32) -> (i32, i32, i32) {
    %c0_i32 = arith.constant 0 : i32
    %c0_i32_0 = arith.constant 0 : i32
    %c0_i32_1 = arith.constant 0 : i32
    %c0_i32_2 = arith.constant 0 : i32
    return %c0_i32, %c0_i32_0, %c0_i32_1 : i32, i32, i32
  }
  func.func @transform_6(%arg0: i32) -> (i32, i32, i32) {
    %c0_i32 = arith.constant 0 : i32
    %c0_i32_0 = arith.constant 0 : i32
    %c0_i32_1 = arith.constant 0 : i32
    %c0_i32_2 = arith.constant 0 : i32
    return %c0_i32, %c0_i32_0, %c0_i32_1 : i32, i32, i32
  }
  func.func @transform_7(%arg0: i32) -> (i32, i32, i32) {
    %c0_i32 = arith.constant 0 : i32
    %c0_i32_0 = arith.constant 0 : i32
    %c0_i32_1 = arith.constant 0 : i32
    %c0_i32_2 = arith.constant 0 : i32
    return %c0_i32, %c0_i32_0, %c0_i32_1 : i32, i32, i32
  }
  func.func @transform_8(%arg0: i32) -> (i32, i32, i32, i32) {
    %c0_i32 = arith.constant 0 : i32
    %c0_i32_0 = arith.constant 0 : i32
    %c0_i32_1 = arith.constant 0 : i32
    %c0_i32_2 = arith.constant 0 : i32
    %c0_i32_3 = arith.constant 0 : i32
    return %c0_i32, %c0_i32_0, %c0_i32_1, %c0_i32_2 : i32, i32, i32, i32
  }
  func.func @transform_9(%arg0: i32) -> (i32, i32, i32, i32) {
    %c0_i32 = arith.constant 0 : i32
    %c0_i32_0 = arith.constant 0 : i32
    %c0_i32_1 = arith.constant 0 : i32
    %c0_i32_2 = arith.constant 0 : i32
    %c0_i32_3 = arith.constant 0 : i32
    return %c0_i32, %c0_i32_0, %c0_i32_1, %c0_i32_2 : i32, i32, i32, i32
  }
  func.func @transform_10(%arg0: i32) -> (i32, i32, i32) {
    %c0_i32 = arith.constant 0 : i32
    %c0_i32_0 = arith.constant 0 : i32
    %c0_i32_1 = arith.constant 0 : i32
    %c0_i32_2 = arith.constant 0 : i32
    return %c0_i32, %c0_i32_0, %c0_i32_1 : i32, i32, i32
  }
  func.func @transform_11(%arg0: i32) -> (i32, i32, i32) {
    %c0_i32 = arith.constant 0 : i32
    %c0_i32_0 = arith.constant 0 : i32
    %c0_i32_1 = arith.constant 0 : i32
    %c0_i32_2 = arith.constant 0 : i32
    return %c0_i32, %c0_i32_0, %c0_i32_1 : i32, i32, i32
  }
  func.func @transform_12(%arg0: i32) -> (i32, i32, i32) {
    %c0_i32 = arith.constant 0 : i32
    %c0_i32_0 = arith.constant 0 : i32
    %c0_i32_1 = arith.constant 0 : i32
    return %arg0, %c0_i32, %c0_i32_0 : i32, i32, i32
  }
}

</mosaic_0001>

<llo_original>
// kernel: forward.1
$region0: #{forward.1}
  #allocation0 [shape = 'u32[]', space=smem, size = 0x4, offset = 0x4, fixed_abs, tag = 'smem constant byte address 0x4 - core index']
  #allocation1 [shape = 'u32[144,128]{1,0:T(1,128)}', space=vmem, size = 0x12000, scoped, tag = 'internal scratch']
  #allocation2 [shape = 'f32[25,64]{1,0:T(8,128)}', space=vmem, size = 0x4000, scoped, tag = 'scratch operand']
  #allocation3 [shape = 'f32[17,64]{1,0:T(8,128)}', space=vmem, size = 0x3000, scoped, tag = 'scratch operand']
  #allocation4 [shape = 'f32[13,64]{1,0:T(8,128)}', space=vmem, size = 0x2000, scoped, tag = 'scratch operand']
  #allocation5 [shape = 'f32[11,64]{1,0:T(8,128)}', space=vmem, size = 0x2000, scoped, tag = 'scratch operand']
  %s0 = inlined_call_operand.vmem [shape: f32[2,16,64], index: 0, kind: input, shape index: {}]
  %s1 = inlined_call_operand.hbm [shape: bf16[16,3,64,64], index: 1, kind: input, shape index: {}]
  %s2 = inlined_call_operand.hbm [shape: f32[16,1,64], index: 2, kind: input, shape index: {}]
  %s3 = inlined_call_operand.vmem [shape: bf16[3,3,64,128], index: 3, kind: input, shape index: {}]
  %s4 = inlined_call_operand.hbm [shape: f32[3,1,128], index: 4, kind: input, shape index: {}]
  %s5 = inlined_call_operand.hbm [shape: bf16[1,8,16], index: 5, kind: input, shape index: {}]
  %s6 = inlined_call_operand.hbm [shape: bf16[3,128,64], index: 6, kind: input, shape index: {}]
  %s7 = inlined_call_operand.hbm [shape: bf16[3,64,32], index: 7, kind: input, shape index: {}]
  %s8 = inlined_call_operand.hbm [shape: bf16[3,1,32,64], index: 8, kind: input, shape index: {}]
  %s9 = inlined_call_operand.vmem [shape: bf16[6,1,64,64], index: 9, kind: input, shape index: {}]
  %s10 = inlined_call_operand.hbm [shape: bf16[1,4,8], index: 10, kind: input, shape index: {}]
  %s11 = inlined_call_operand.hbm [shape: bf16[1,2,4], index: 11, kind: input, shape index: {}]
  %s12 = inlined_call_operand.vmem [shape: f32[2,2,64], index: 12, kind: output, shape index: {}]
  %s13 = sld [smem:[#allocation0]]
  $region117: #{forward.1} parent=0
    _
  %s15 = ssub.s32 1, %s13
  %s16 = scalar_select 0, %s15, %s13
  $region1: #{forward.1} parent=0
    #allocation6 [shape = 'u8[786432]{0}', space=vmem, size = 0xc0000, scoped, tag = 'input window, operand 1, single buffered']
    #allocation7 [shape = 's32[2]{0}', space=sflag, size = 0x8, scoped, tag = 'scoped memory for forward.1']
    #allocation8 [shape = 'u8[8192]{0}', space=vmem, size = 0x2000, scoped, tag = 'input window, operand 2, single buffered']
    #allocation9 [shape = 's32[1]{0}', space=sflag, size = 0x4, scoped, tag = 'scoped memory for forward.1']
    #allocation10 [shape = 'u8[1536]{0}', space=vmem, size = 0x800, scoped, tag = 'input window, operand 4, single buffered']
    #allocation11 [shape = 'u8[2048]{0}', space=vmem, size = 0x800, scoped, tag = 'input window, operand 5, single buffered']
    #allocation12 [shape = 's32[1]{0}', space=sflag, size = 0x4, scoped, tag = 'scoped memory for forward.1']
    #allocation13 [shape = 'u8[98304]{0}', space=vmem, size = 0x18000, scoped, tag = 'input window, operand 6, single buffered']
    #allocation14 [shape = 'u8[49152]{0}', space=vmem, size = 0xc000, scoped, tag = 'input window, operand 7, single buffered']
    #allocation15 [shape = 's32[1]{0}', space=sflag, size = 0x4, scoped, tag = 'scoped memory for forward.1']
    #allocation16 [shape = 'u8[24576]{0}', space=vmem, size = 0x6000, scoped, tag = 'input window, operand 8, single buffered']
    #allocation17 [shape = 'u8[1024]{0}', space=vmem, size = 0x400, scoped, tag = 'input window, operand 10, single buffered']
    #allocation18 [shape = 's32[1]{0}', space=sflag, size = 0x4, scoped, tag = 'scoped memory for forward.1']
    #allocation19 [shape = 'u8[512]{0}', space=vmem, size = 0x400, scoped, tag = 'input window, operand 11, single buffered']
    %17 = vsyncpa [#allocation7], 0
    %18 = vsyncpa [#allocation9], 0
    %19 = vsyncpa [#allocation12], 0
    %20 = vsyncpa [#allocation15], 0
    %21 = vsyncpa [#allocation18], 0
    loop: start=0, step=1, limit=4
    $region2: #{forward.1} parent=1 // loop_pre_header
      _
    $region3: #{forward.1} parent=1 // loop_header
      %s23 = sphi 0, %s27
      %p24 = scmp.ge.s32.totalorder %s23, 4
      %s33 = sphi 0, %s35
      %s36 = sphi 0, %s33
      %s37 = sphi 0, %s36
      %s53 = sphi 0, %s37
      %s57 = sphi 0, %s57
      %s59 = sphi 0, %s57
      %s60 = sphi 0, %s59
      %s74 = sphi 0, %s60
      %s78 = sphi 0, %s78
      %s80 = sphi 0, %s78
      %s81 = sphi 0, %s80
      %s95 = sphi 0, %s81
      %s99 = sphi 0, %s99
      %s101 = sphi 0, %s99
      %s102 = sphi 0, %s101
      %s116 = sphi 0, %s102
      %s120 = sphi 0, %s120
      %s122 = sphi 0, %s120
      %s123 = sphi 0, %s122
      %s137 = sphi 0, %s123
      %s141 = sphi 0, %s141
      %s143 = sphi 0, %s141
      %s144 = sphi 0, %s143
      %s158 = sphi 0, %s144
      %s162 = sphi 0, %s162
      %s164 = sphi 0, %s162
      %s165 = sphi 0, %s164
      %s179 = sphi 0, %s165
      %s183 = sphi 0, %s183
      %s185 = sphi 0, %s183
      %s186 = sphi 0, %s185
      %s200 = sphi 0, %s186
      %s204 = sphi 0, %s204
      %s206 = sphi 0, %s204
      %s207 = sphi 0, %s206
      %s221 = sphi 0, %s207
      %s225 = sphi 0, %s225
      %s227 = sphi 0, %s225
      %s228 = sphi 0, %s227
      %s242 = sphi 0, %s228
      %s246 = sphi 0, %s246
      %s248 = sphi 0, %s246
      %s249 = sphi 0, %s248
      %s263 = sphi 0, %s249
      %s267 = sphi 0, %s267
      %s269 = sphi 0, %s267
      %s270 = sphi 0, %s269
      %s284 = sphi 0, %s270
      %s290 = sphi 0, %s292
      %s293 = sphi 0, %s290
      %s294 = sphi 0, %s293
      %s310 = sphi 0, %s294
    $region4: #{forward.1} parent=1 // loop_header_branch
      %26 = sbr.rel (%p24) target = $region8
    $region5: #{forward.1} parent=1 // loop_body
      %s28 = ssub.s32 %s23, 1
      %s29 = ssub.s32 %s23, 2
      %s30 = sadd.s32 %s23, 1
      %s31 = ssub.s32 %s23, %s30
      %p32 = scmp.eq.s32.totalorder %s31, 0
      %s34 = sadd.s32 %s33, 1
      %s35 = scalar_select %p32, %s33, %s34
      %p38 = pneg %p32
      %p39 = scmp.eq.s32.totalorder %s23, 1
      %p40 = por %p38, %p39
      %p41 = scmp.ne.s32.totalorder %s33, %s36
      %p42 = scmp.eq.s32.totalorder %s23, 0
      %p43 = por %p41, %p42
      %p44 = scmp.ne.s32.totalorder %s33, %s36
      %p45 = scmp.eq.s32.totalorder %s28, 1
      %p46 = por %p44, %p45
      %p47 = scmp.ne.s32.totalorder %s36, %s37
      %p48 = scmp.eq.s32.totalorder %s28, 0
      %p49 = por %p47, %p48
      %p50 = scmp.ne.s32.totalorder %s36, %s37
      %p51 = scmp.eq.s32.totalorder %s29, 1
      %p52 = por %p50, %p51
      %p54 = scmp.ne.s32.totalorder %s37, %s53
      %p55 = scmp.eq.s32.totalorder %s29, 0
      %p56 = por %p54, %p55
      %s58 = sadd.s32 %s57, 1
      %p61 = scmp.eq.s32.totalorder %s23, 1
      %p62 = scmp.ne.s32.totalorder %s57, %s59
      %p63 = scmp.eq.s32.totalorder %s23, 0
      %p64 = por %p62, %p63
      %p65 = scmp.ne.s32.totalorder %s57, %s59
      %p66 = scmp.eq.s32.totalorder %s28, 1
      %p67 = por %p65, %p66
      %p68 = scmp.ne.s32.totalorder %s59, %s60
      %p69 = scmp.eq.s32.totalorder %s28, 0
      %p70 = por %p68, %p69
      %p71 = scmp.ne.s32.totalorder %s59, %s60
      %p72 = scmp.eq.s32.totalorder %s29, 1
      %p73 = por %p71, %p72
      %p75 = scmp.ne.s32.totalorder %s60, %s74
      %p76 = scmp.eq.s32.totalorder %s29, 0
      %p77 = por %p75, %p76
      %s79 = sadd.s32 %s78, 1
      %p82 = scmp.eq.s32.totalorder %s23, 1
      %p83 = scmp.ne.s32.totalorder %s78, %s80
      %p84 = scmp.eq.s32.totalorder %s23, 0
      %p85 = por %p83, %p84
      %p86 = scmp.ne.s32.totalorder %s78, %s80
      %p87 = scmp.eq.s32.totalorder %s28, 1
      %p88 = por %p86, %p87
      %p89 = scmp.ne.s32.totalorder %s80, %s81
      %p90 = scmp.eq.s32.totalorder %s28, 0
      %p91 = por %p89, %p90
      %p92 = scmp.ne.s32.totalorder %s80, %s81
      %p93 = scmp.eq.s32.totalorder %s29, 1
      %p94 = por %p92, %p93
      %p96 = scmp.ne.s32.totalorder %s81, %s95
      %p97 = scmp.eq.s32.totalorder %s29, 0
      %p98 = por %p96, %p97
      %s100 = sadd.s32 %s99, 1
      %p103 = scmp.eq.s32.totalorder %s23, 1
      %p104 = scmp.ne.s32.totalorder %s99, %s101
      %p105 = scmp.eq.s32.totalorder %s23, 0
      %p106 = por %p104, %p105
      %p107 = scmp.ne.s32.totalorder %s99, %s101
      %p108 = scmp.eq.s32.totalorder %s28, 1
      %p109 = por %p107, %p108
      %p110 = scmp.ne.s32.totalorder %s101, %s102
      %p111 = scmp.eq.s32.totalorder %s28, 0
      %p112 = por %p110, %p111
      %p113 = scmp.ne.s32.totalorder %s101, %s102
      %p114 = scmp.eq.s32.totalorder %s29, 1
      %p115 = por %p113, %p114
      %p117 = scmp.ne.s32.totalorder %s102, %s116
      %p118 = scmp.eq.s32.totalorder %s29, 0
      %p119 = por %p117, %p118
      %s121 = sadd.s32 %s120, 1
      %p124 = scmp.eq.s32.totalorder %s23, 1
      %p125 = scmp.ne.s32.totalorder %s120, %s122
      %p126 = scmp.eq.s32.totalorder %s23, 0
      %p127 = por %p125, %p126
      %p128 = scmp.ne.s32.totalorder %s120, %s122
      %p129 = scmp.eq.s32.totalorder %s28, 1
      %p130 = por %p128, %p129
      %p131 = scmp.ne.s32.totalorder %s122, %s123
      %p132 = scmp.eq.s32.totalorder %s28, 0
      %p133 = por %p131, %p132
      %p134 = scmp.ne.s32.totalorder %s122, %s123
      %p135 = scmp.eq.s32.totalorder %s29, 1
      %p136 = por %p134, %p135
      %p138 = scmp.ne.s32.totalorder %s123, %s137
      %p139 = scmp.eq.s32.totalorder %s29, 0
      %p140 = por %p138, %p139
      %s142 = sadd.s32 %s141, 1
      %p145 = scmp.eq.s32.totalorder %s23, 1
      %p146 = scmp.ne.s32.totalorder %s141, %s143
      %p147 = scmp.eq.s32.totalorder %s23, 0
      %p148 = por %p146, %p147
      %p149 = scmp.ne.s32.totalorder %s141, %s143
      %p150 = scmp.eq.s32.totalorder %s28, 1
      %p151 = por %p149, %p150
      %p152 = scmp.ne.s32.totalorder %s143, %s144
      %p153 = scmp.eq.s32.totalorder %s28, 0
      %p154 = por %p152, %p153
      %p155 = scmp.ne.s32.totalorder %s143, %s144
      %p156 = scmp.eq.s32.totalorder %s29, 1
      %p157 = por %p155, %p156
      %p159 = scmp.ne.s32.totalorder %s144, %s158
      %p160 = scmp.eq.s32.totalorder %s29, 0
      %p161 = por %p159, %p160
      %s163 = sadd.s32 %s162, 1
      %p166 = scmp.eq.s32.totalorder %s23, 1
      %p167 = scmp.ne.s32.totalorder %s162, %s164
      %p168 = scmp.eq.s32.totalorder %s23, 0
      %p169 = por %p167, %p168
      %p170 = scmp.ne.s32.totalorder %s162, %s164
      %p171 = scmp.eq.s32.totalorder %s28, 1
      %p172 = por %p170, %p171
      %p173 = scmp.ne.s32.totalorder %s164, %s165
      %p174 = scmp.eq.s32.totalorder %s28, 0
      %p175 = por %p173, %p174
      %p176 = scmp.ne.s32.totalorder %s164, %s165
      %p177 = scmp.eq.s32.totalorder %s29, 1
      %p178 = por %p176, %p177
      %p180 = scmp.ne.s32.totalorder %s165, %s179
      %p181 = scmp.eq.s32.totalorder %s29, 0
      %p182 = por %p180, %p181
      %s184 = sadd.s32 %s183, 1
      %p187 = scmp.eq.s32.totalorder %s23, 1
      %p188 = scmp.ne.s32.totalorder %s183, %s185
      %p189 = scmp.eq.s32.totalorder %s23, 0
      %p190 = por %p188, %p189
      %p191 = scmp.ne.s32.totalorder %s183, %s185
      %p192 = scmp.eq.s32.totalorder %s28, 1
      %p193 = por %p191, %p192
      %p194 = scmp.ne.s32.totalorder %s185, %s186
      %p195 = scmp.eq.s32.totalorder %s28, 0
      %p196 = por %p194, %p195
      %p197 = scmp.ne.s32.totalorder %s185, %s186
      %p198 = scmp.eq.s32.totalorder %s29, 1
      %p199 = por %p197, %p198
      %p201 = scmp.ne.s32.totalorder %s186, %s200
      %p202 = scmp.eq.s32.totalorder %s29, 0
      %p203 = por %p201, %p202
      %s205 = sadd.s32 %s204, 1
      %p208 = scmp.eq.s32.totalorder %s23, 1
      %p209 = scmp.ne.s32.totalorder %s204, %s206
      %p210 = scmp.eq.s32.totalorder %s23, 0
      %p211 = por %p209, %p210
      %p212 = scmp.ne.s32.totalorder %s204, %s206
      %p213 = scmp.eq.s32.totalorder %s28, 1
      %p214 = por %p212, %p213
      %p215 = scmp.ne.s32.totalorder %s206, %s207
      %p216 = scmp.eq.s32.totalorder %s28, 0
      %p217 = por %p215, %p216
      %p218 = scmp.ne.s32.totalorder %s206, %s207
      %p219 = scmp.eq.s32.totalorder %s29, 1
      %p220 = por %p218, %p219
      %p222 = scmp.ne.s32.totalorder %s207, %s221
      %p223 = scmp.eq.s32.totalorder %s29, 0
      %p224 = por %p222, %p223
      %s226 = sadd.s32 %s225, 1
      %p229 = scmp.eq.s32.totalorder %s23, 1
      %p230 = scmp.ne.s32.totalorder %s225, %s227
      %p231 = scmp.eq.s32.totalorder %s23, 0
      %p232 = por %p230, %p231
      %p233 = scmp.ne.s32.totalorder %s225, %s227
      %p234 = scmp.eq.s32.totalorder %s28, 1
      %p235 = por %p233, %p234
      %p236 = scmp.ne.s32.totalorder %s227, %s228
      %p237 = scmp.eq.s32.totalorder %s28, 0
      %p238 = por %p236, %p237
      %p239 = scmp.ne.s32.totalorder %s227, %s228
      %p240 = scmp.eq.s32.totalorder %s29, 1
      %p241 = por %p239, %p240
      %p243 = scmp.ne.s32.totalorder %s228, %s242
      %p244 = scmp.eq.s32.totalorder %s29, 0
      %p245 = por %p243, %p244
      %s247 = sadd.s32 %s246, 1
      %p250 = scmp.eq.s32.totalorder %s23, 1
      %p251 = scmp.ne.s32.totalorder %s246, %s248
      %p252 = scmp.eq.s32.totalorder %s23, 0
      %p253 = por %p251, %p252
      %p254 = scmp.ne.s32.totalorder %s246, %s248
      %p255 = scmp.eq.s32.totalorder %s28, 1
      %p256 = por %p254, %p255
      %p257 = scmp.ne.s32.totalorder %s248, %s249
      %p258 = scmp.eq.s32.totalorder %s28, 0
      %p259 = por %p257, %p258
      %p260 = scmp.ne.s32.totalorder %s248, %s249
      %p261 = scmp.eq.s32.totalorder %s29, 1
      %p262 = por %p260, %p261
      %p264 = scmp.ne.s32.totalorder %s249, %s263
      %p265 = scmp.eq.s32.totalorder %s29, 0
      %p266 = por %p264, %p265
      %s268 = sadd.s32 %s267, 1
      %p271 = scmp.eq.s32.totalorder %s23, 1
      %p272 = scmp.ne.s32.totalorder %s267, %s269
      %p273 = scmp.eq.s32.totalorder %s23, 0
      %p274 = por %p272, %p273
      %p275 = scmp.ne.s32.totalorder %s267, %s269
      %p276 = scmp.eq.s32.totalorder %s28, 1
      %p277 = por %p275, %p276
      %p278 = scmp.ne.s32.totalorder %s269, %s270
      %p279 = scmp.eq.s32.totalorder %s28, 0
      %p280 = por %p278, %p279
      %p281 = scmp.ne.s32.totalorder %s269, %s270
      %p282 = scmp.eq.s32.totalorder %s29, 1
      %p283 = por %p281, %p282
      %p285 = scmp.ne.s32.totalorder %s270, %s284
      %p286 = scmp.eq.s32.totalorder %s29, 0
      %p287 = por %p285, %p286
      %s288 = ssub.s32 %s23, %s30
      %p289 = scmp.eq.s32.totalorder %s288, 0
      %s291 = sadd.s32 %s290, 1
      %s292 = scalar_select %p289, %s290, %s291
      %p295 = pneg %p289
      %p296 = scmp.eq.s32.totalorder %s23, 1
      %p297 = por %p295, %p296
      %p298 = scmp.ne.s32.totalorder %s290, %s293
      %p299 = scmp.eq.s32.totalorder %s23, 0
      %p300 = por %p298, %p299
      %p301 = scmp.ne.s32.totalorder %s290, %s293
      %p302 = scmp.eq.s32.totalorder %s28, 1
      %p303 = por %p301, %p302
      %p304 = scmp.ne.s32.totalorder %s293, %s294
      %p305 = scmp.eq.s32.totalorder %s28, 0
      %p306 = por %p304, %p305
      %p307 = scmp.ne.s32.totalorder %s293, %s294
      %p308 = scmp.eq.s32.totalorder %s29, 1
      %p309 = por %p307, %p308
      %p311 = scmp.ne.s32.totalorder %s294, %s310
      %p312 = scmp.eq.s32.totalorder %s29, 0
      %p313 = por %p311, %p312
      %p314 = scmp.le.s32.totalorder 1, %s23
      %p315 = scmp.lt.s32.totalorder %s23, 3
      %p316 = pnand %p314, %p315
      %p317 = pneg %p316
      // Predicated region
      $region9: #{forward.1} parent=5 // pred_check
        _
      $region10: #{forward.1} parent=5 // pred_check_branch
        %319 = sbr.rel (%p316) target = $region12
      $region11: #{forward.1} parent=5 // pred_region
        %s320 = ssub.s32 %s23, 1
        // Predicated region
        $region13: #{forward.1} parent=11 // pred_check
          %p321 = pneg %p70
        $region14: #{forward.1} parent=11 // pred_check_branch
          %323 = sbr.rel (%p321) target = $region16
        $region15: #{forward.1} parent=11 // pred_region
          %s325 = ssub.s32 24576, 24576
          %326 = vsyncadd [#allocation7], %s325
          %s327 = sshll.u32 [#allocation6], 4
          %s328 = int_to_ptr.vmem [resolvable:$true] %s327
          %333 = dma.hbm_to_vmem [thread:$0]  %s1, 24576, %s328, [#allocation7], 64, 64, 4
        $region16: #{forward.1} parent=11 // pred_fallthru
          _
        // Predicated region
        $region17: #{forward.1} parent=11 // pred_check
          %p334 = pneg %p91
        $region18: #{forward.1} parent=11 // pred_check_branch
          %336 = sbr.rel (%p334) target = $region20
        $region19: #{forward.1} parent=11 // pred_region
          %s338 = ssub.s32 256, 256
          %339 = vsyncadd [#allocation9], %s338
          %s340 = sshll.u32 [#allocation8], 4
          %s341 = int_to_ptr.vmem [resolvable:$true] %s340
          %346 = dma.hbm_to_vmem [thread:$0]  %s2, 256, %s341, [#allocation9], 16, 16, 1
        $region20: #{forward.1} parent=11 // pred_fallthru
          _
        // Predicated region
        $region21: #{forward.1} parent=11 // pred_check
          %p347 = pneg %p112
        $region22: #{forward.1} parent=11 // pred_check_branch
          %349 = sbr.rel (%p347) target = $region24
        $region23: #{forward.1} parent=11 // pred_region
          _
        $region24: #{forward.1} parent=11 // pred_fallthru
          _
        // Predicated region
        $region25: #{forward.1} parent=11 // pred_check
          %p350 = pneg %p133
        $region26: #{forward.1} parent=11 // pred_check_branch
          %352 = sbr.rel (%p350) target = $region28
        $region27: #{forward.1} parent=11 // pred_region
          %s354 = ssub.s32 48, 48
          %355 = vsyncadd [#allocation9], %s354
          %s356 = sshll.u32 [#allocation10], 4
          %s357 = int_to_ptr.vmem [resolvable:$true] %s356
          %362 = dma.hbm_to_vmem [thread:$0]  %s4, 48, %s357, [#allocation9], 16, 16, 1
        $region28: #{forward.1} parent=11 // pred_fallthru
          _
        // Predicated region
        $region29: #{forward.1} parent=11 // pred_check
          %p363 = pneg %p154
        $region30: #{forward.1} parent=11 // pred_check_branch
          %365 = sbr.rel (%p363) target = $region32
        $region31: #{forward.1} parent=11 // pred_region
          %s367 = ssub.s32 64, 64
          %368 = vsyncadd [#allocation12], %s367
          %s370 = sshll.u32 [#allocation11], 4
          %s371 = int_to_ptr.vmem [resolvable:$true] %s370
          %373 = dma.hbm_to_vmem [thread:$0]  %s5, 64, %s371, [#allocation12]
        $region32: #{forward.1} parent=11 // pred_fallthru
          _
        // Predicated region
        $region33: #{forward.1} parent=11 // pred_check
          %p374 = pneg %p175
        $region34: #{forward.1} parent=11 // pred_check_branch
          %376 = sbr.rel (%p374) target = $region36
        $region35: #{forward.1} parent=11 // pred_region
          %s378 = ssub.s32 3072, 3072
          %379 = vsyncadd [#allocation12], %s378
          %s380 = sshll.u32 [#allocation13], 4
          %s381 = int_to_ptr.vmem [resolvable:$true] %s380
          %386 = dma.hbm_to_vmem [thread:$0]  %s6, 3072, %s381, [#allocation12], 64, 64, 4
        $region36: #{forward.1} parent=11 // pred_fallthru
          _
        // Predicated region
        $region37: #{forward.1} parent=11 // pred_check
          %p387 = pneg %p196
        $region38: #{forward.1} parent=11 // pred_check_branch
          %389 = sbr.rel (%p387) target = $region40
        $region39: #{forward.1} parent=11 // pred_region
          %s391 = ssub.s32 1536, 1536
          %392 = vsyncadd [#allocation15], %s391
          %s393 = sshll.u32 [#allocation14], 4
          %s394 = int_to_ptr.vmem [resolvable:$true] %s393
          %399 = dma.hbm_to_vmem [thread:$0]  %s7, 1536, %s394, [#allocation15], 64, 64, 4
        $region40: #{forward.1} parent=11 // pred_fallthru
          _
        // Predicated region
        $region41: #{forward.1} parent=11 // pred_check
          %p400 = pneg %p217
        $region42: #{forward.1} parent=11 // pred_check_branch
          %402 = sbr.rel (%p400) target = $region44
        $region43: #{forward.1} parent=11 // pred_region
          %s404 = ssub.s32 768, 768
          %405 = vsyncadd [#allocation15], %s404
          %s406 = sshll.u32 [#allocation16], 4
          %s407 = int_to_ptr.vmem [resolvable:$true] %s406
          %412 = dma.hbm_to_vmem [thread:$0]  %s8, 768, %s407, [#allocation15], 64, 64, 4
        $region44: #{forward.1} parent=11 // pred_fallthru
          _
        // Predicated region
        $region45: #{forward.1} parent=11 // pred_check
          %p413 = pneg %p238
        $region46: #{forward.1} parent=11 // pred_check_branch
          %415 = sbr.rel (%p413) target = $region48
        $region47: #{forward.1} parent=11 // pred_region
          _
        $region48: #{forward.1} parent=11 // pred_fallthru
          _
        // Predicated region
        $region49: #{forward.1} parent=11 // pred_check
          %p416 = pneg %p259
        $region50: #{forward.1} parent=11 // pred_check_branch
          %418 = sbr.rel (%p416) target = $region52
        $region51: #{forward.1} parent=11 // pred_region
          %s420 = ssub.s32 32, 32
          %421 = vsyncadd [#allocation18], %s420
          %s423 = sshll.u32 [#allocation17], 4
          %s424 = int_to_ptr.vmem [resolvable:$true] %s423
          %426 = dma.hbm_to_vmem [thread:$0]  %s10, 32, %s424, [#allocation18]
        $region52: #{forward.1} parent=11 // pred_fallthru
          _
        // Predicated region
        $region53: #{forward.1} parent=11 // pred_check
          %p427 = pneg %p280
        $region54: #{forward.1} parent=11 // pred_check_branch
          %429 = sbr.rel (%p427) target = $region56
        $region55: #{forward.1} parent=11 // pred_region
          %s431 = ssub.s32 16, 16
          %432 = vsyncadd [#allocation18], %s431
          %s434 = sshll.u32 [#allocation19], 4
          %s435 = int_to_ptr.vmem [resolvable:$true] %s434
          %437 = dma.hbm_to_vmem [thread:$0]  %s11, 16, %s435, [#allocation18]
        $region56: #{forward.1} parent=11 // pred_fallthru
          _
      $region12: #{forward.1} parent=5 // pred_fallthru
        _
      %p438 = scmp.lt.s32.totalorder %s23, 2
      // Predicated region
      $region57: #{forward.1} parent=5 // pred_check
        %p439 = pneg %p438
      $region58: #{forward.1} parent=5 // pred_check_branch
        %441 = sbr.rel (%p439) target = $region60
      $region59: #{forward.1} parent=5 // pred_region
        // Predicated region
        $region61: #{forward.1} parent=59 // pred_check
          %p442 = pneg %p43
        $region62: #{forward.1} parent=59 // pred_check_branch
          %444 = sbr.rel (%p442) target = $region64
        $region63: #{forward.1} parent=59 // pred_region
          %p445 = scmp.lt.s32.totalorder %s23, 1
          %s446 = scalar_select %p445, %s23, 1
          %s447 = smul.addr %s446, 2
          %s448 = smul.addr %s447, 8
          %s449 = scalar_lea.vmem %s0, %s448
        $region64: #{forward.1} parent=59 // pred_fallthru
          _
      $region60: #{forward.1} parent=5 // pred_fallthru
        _
      %p450 = scmp.le.s32.totalorder 1, %s23
      %p451 = scmp.lt.s32.totalorder %s23, 3
      %p452 = pnand %p450, %p451
      %p453 = pneg %p452
      // Predicated region
      $region65: #{forward.1} parent=5 // pred_check
        _
      $region66: #{forward.1} parent=5 // pred_check_branch
        %455 = sbr.rel (%p452) target = $region68
      $region67: #{forward.1} parent=5 // pred_region
        %s456 = ssub.s32 %s23, 1
        // Predicated region
        $region69: #{forward.1} parent=67 // pred_check
          %p457 = pneg %p70
        $region70: #{forward.1} parent=67 // pred_check_branch
          %459 = sbr.rel (%p457) target = $region72
        $region71: #{forward.1} parent=67 // pred_region
          %460 = dma.done [#allocation7], 24576
        $region72: #{forward.1} parent=67 // pred_fallthru
          _
        // Predicated region
        $region73: #{forward.1} parent=67 // pred_check
          %p461 = pneg %p91
        $region74: #{forward.1} parent=67 // pred_check_branch
          %463 = sbr.rel (%p461) target = $region76
        $region75: #{forward.1} parent=67 // pred_region
          %464 = dma.done [#allocation9], 256
        $region76: #{forward.1} parent=67 // pred_fallthru
          _
        // Predicated region
        $region77: #{forward.1} parent=67 // pred_check
          %p465 = pneg %p133
        $region78: #{forward.1} parent=67 // pred_check_branch
          %467 = sbr.rel (%p465) target = $region80
        $region79: #{forward.1} parent=67 // pred_region
          %468 = dma.done [#allocation9], 48
        $region80: #{forward.1} parent=67 // pred_fallthru
          _
        // Predicated region
        $region81: #{forward.1} parent=67 // pred_check
          %p469 = pneg %p154
        $region82: #{forward.1} parent=67 // pred_check_branch
          %471 = sbr.rel (%p469) target = $region84
        $region83: #{forward.1} parent=67 // pred_region
          %472 = dma.done [#allocation12], 64
        $region84: #{forward.1} parent=67 // pred_fallthru
          _
        // Predicated region
        $region85: #{forward.1} parent=67 // pred_check
          %p473 = pneg %p175
        $region86: #{forward.1} parent=67 // pred_check_branch
          %475 = sbr.rel (%p473) target = $region88
        $region87: #{forward.1} parent=67 // pred_region
          %476 = dma.done [#allocation12], 3072
        $region88: #{forward.1} parent=67 // pred_fallthru
          _
        // Predicated region
        $region89: #{forward.1} parent=67 // pred_check
          %p477 = pneg %p196
        $region90: #{forward.1} parent=67 // pred_check_branch
          %479 = sbr.rel (%p477) target = $region92
        $region91: #{forward.1} parent=67 // pred_region
          %480 = dma.done [#allocation15], 1536
        $region92: #{forward.1} parent=67 // pred_fallthru
          _
        // Predicated region
        $region93: #{forward.1} parent=67 // pred_check
          %p481 = pneg %p217
        $region94: #{forward.1} parent=67 // pred_check_branch
          %483 = sbr.rel (%p481) target = $region96
        $region95: #{forward.1} parent=67 // pred_region
          %484 = dma.done [#allocation15], 768
        $region96: #{forward.1} parent=67 // pred_fallthru
          _
        // Predicated region
        $region97: #{forward.1} parent=67 // pred_check
          %p485 = pneg %p259
        $region98: #{forward.1} parent=67 // pred_check_branch
          %487 = sbr.rel (%p485) target = $region100
        $region99: #{forward.1} parent=67 // pred_region
          %488 = dma.done [#allocation18], 32
        $region100: #{forward.1} parent=67 // pred_fallthru
          _
        // Predicated region
        $region101: #{forward.1} parent=67 // pred_check
          %p489 = pneg %p280
        $region102: #{forward.1} parent=67 // pred_check_branch
          %491 = sbr.rel (%p489) target = $region104
        $region103: #{forward.1} parent=67 // pred_region
          %492 = dma.done [#allocation18], 16
        $region104: #{forward.1} parent=67 // pred_fallthru
          _
        %p493 = scmp.lt.s32.totalorder %s28, 1
        %s494 = scalar_select %p493, %s28, 1
        %s495 = smul.addr %s494, 2
        %s496 = smul.addr %s495, 8
        %s497 = scalar_lea.vmem %s0, %s496
        %p498 = pneg %p49
        %p499 = pneg %p46
        %p500 = pneg %p70
        %p501 = pneg %p67
        %p502 = pneg %p91
        %p503 = pneg %p88
        %p504 = pneg %p112
        %p505 = pneg %p109
        %p506 = pneg %p133
        %p507 = pneg %p130
        %p508 = pneg %p154
        %p509 = pneg %p151
        %p510 = pneg %p175
        %p511 = pneg %p172
        %p512 = pneg %p196
        %p513 = pneg %p193
        %p514 = pneg %p217
        %p515 = pneg %p214
        %p516 = pneg %p238
        %p517 = pneg %p235
        %p518 = pneg %p259
        %p519 = pneg %p256
        %p520 = pneg %p280
        %p521 = pneg %p277
        %p522 = pneg %p306
        %p523 = pneg %p303
        %p524 = scmp.lt.s32.totalorder %s28, 1
        %s525 = scalar_select %p524, %s28, 1
        %s526 = smul.addr %s525, 2
        %s527 = scalar_lea.vmem %s12, %s526
        %p528 = scmp.lt.s32.totalorder %s28, 1
        %s529 = scalar_select %p528, %s28, 1
        %s530 = smul.addr %s529, 2
        %s531 = smul.addr %s530, 8
        %s532 = scalar_lea.vmem %s0, %s531
        %p533 = scmp.lt.s32.totalorder %s28, 1
        %s534 = scalar_select %p533, %s28, 1
        %s535 = smul.addr %s534, 2
        %s536 = scalar_lea.vmem %s12, %s535
        %vm538 = vcmask 523264
        %539 = vst.msk [vmem:[#allocation2] sm:$0xff] %vm538, 0.0
        %540 = vst.msk [vmem:[#allocation2 + $0x8] sm:$0xff] %vm538, 0.0
        %541 = vst.msk [vmem:[#allocation2 + $0x10] sm:$0xff] %vm538, 0.0
        %vm542 = vcmask 516096
        %543 = vst.msk [vmem:[#allocation2 + $0x18] sm:$0x1] %vm542, 0.0
        %544 = vst.msk [vmem:[#allocation3] sm:$0xff] %vm538, 0.0
        %545 = vst.msk [vmem:[#allocation3 + $0x8] sm:$0xff] %vm538, 0.0
        %546 = vst.msk [vmem:[#allocation3 + $0x10] sm:$0x1] %vm542, 0.0
        %547 = vst.msk [vmem:[#allocation4] sm:$0xff] %vm538, 0.0
        %vm548 = vcmask 520192
        %549 = vst.msk [vmem:[#allocation4 + $0x8] sm:$0x1f] %vm548, 0.0
        %550 = vst.msk [vmem:[#allocation5] sm:$0xff] %vm538, 0.0
        %vm551 = vcmask 518144
        %552 = vst.msk [vmem:[#allocation5 + $0x8] sm:$0x7] %vm551, 0.0
        %v553 = vld [vmem:[%s532] sm:$0xff]
        %v554 = vld [vmem:[%s532 + $0x8] sm:$0xff]
        %555 = vst.msk [vmem:[#allocation2 + $0x8] sm:$0xff] %vm538, %v553
        %556 = vst.msk [vmem:[#allocation2 + $0x10] sm:$0xff] %vm538, %v554
        %v557 = vld [vmem:[#allocation2 + $0x7] sm:$0xff]
        %v558 = vld [vmem:[#allocation2 + $0xf] sm:$0xff]
        %v559 = vpack.c.bf16 %v558, %v557
        %v560 = vld [vmem:[#allocation6] sm:$0xf]
        %v561 = vld [vmem:[#allocation6 + $0x4] sm:$0xf]
        %v562 = vld [vmem:[#allocation6 + $0x8] sm:$0xf]
        %v563 = vld [vmem:[#allocation6 + $0xc] sm:$0xf]
        %v564 = vld [vmem:[#allocation6 + $0x10] sm:$0xf]
        %v565 = vld [vmem:[#allocation6 + $0x14] sm:$0xf]
        %v566 = vld [vmem:[#allocation6 + $0x18] sm:$0xf]
        %v567 = vld [vmem:[#allocation6 + $0x1c] sm:$0xf]
        %v568 = vld [vmem:[#allocation2 + $0x8] sm:$0xff]
        %v569 = vld [vmem:[#allocation2 + $0x10] sm:$0xff]
        %v570 = vpack.c.bf16 %v569, %v568
        %s571 = scalar_lea.vmem [#allocation6], 32
        %v572 = vld [vmem:[%s571] sm:$0xf]
        %v573 = vld [vmem:[%s571 + $0x4] sm:$0xf]
        %v574 = vld [vmem:[%s571 + $0x8] sm:$0xf]
        %v575 = vld [vmem:[%s571 + $0xc] sm:$0xf]
        %v576 = vld [vmem:[%s571 + $0x10] sm:$0xf]
        %v577 = vld [vmem:[%s571 + $0x14] sm:$0xf]
        %v578 = vld [vmem:[%s571 + $0x18] sm:$0xf]
        %v579 = vld [vmem:[%s571 + $0x1c] sm:$0xf]
        %v588 = vunpack.c.l.b16 %v572
        %v589 = vunpack.c.l.b16 %v573
        %v590 = vunpack.c.l.b16 %v574
        %v591 = vunpack.c.l.b16 %v575
        %v592 = vunpack.c.l.b16 %v576
        %v593 = vunpack.c.l.b16 %v577
        %v594 = vunpack.c.l.b16 %v578
        %v595 = vunpack.c.l.b16 %v579
        %v596 = vpack.c.b16 %v589, %v588
        %v597 = vpack.c.b16 %v591, %v590
        %v598 = vpack.c.b16 %v593, %v592
        %v599 = vpack.c.b16 %v595, %v594
        %v605 = vsel %vm538, %v570, 0
        %607 = vmatprep.subr.bf16.mxu0 0
        %608 = vmatpush1.bf16.msra.mxu0 %v596
        %609 = vmatprep.subr.bf16.mxu0 0
        %610 = vmatpush1.bf16.msra.mxu0 %v597
        %611 = vmatprep.subr.bf16.mxu0 0
        %612 = vmatpush1.bf16.msra.mxu0 %v598
        %613 = vmatprep.subr.bf16.mxu0 0
        %614 = vmatpush1.bf16.msra.mxu0 %v599
        %615 = vmatprep.subr.bf16.mxu0 0
        %616 = vmatpush1.bf16.msra.mxu0 0
        %617 = vmatprep.subr.bf16.mxu0 0
        %618 = vmatpush1.bf16.msra.mxu0 0
        %619 = vmatprep.subr.bf16.mxu0 0
        %620 = vmatpush1.bf16.msra.mxu0 0
        %621 = vmatprep.subr.bf16.mxu0 0
        %622 = vmatpush1.bf16.msra.mxu0 0
        %623 = vmatprep.subr.bf16.mxu0 0
        %624 = vmatpush1.bf16.msra.mxu0 0
        %625 = vmatprep.subr.bf16.mxu0 0
        %626 = vmatpush1.bf16.msra.mxu0 0
        %627 = vmatprep.subr.bf16.mxu0 0
        %628 = vmatpush1.bf16.msra.mxu0 0
        %629 = vmatprep.subr.bf16.mxu0 0
        %630 = vmatpush1.bf16.msra.mxu0 0
        %631 = vmatprep.subr.bf16.mxu0 0
        %632 = vmatpush1.bf16.msra.mxu0 0
        %633 = vmatprep.subr.bf16.mxu0 0
        %634 = vmatpush1.bf16.msra.mxu0 0
        %635 = vmatprep.subr.bf16.mxu0 0
        %636 = vmatpush1.bf16.msra.mxu0 0
        %637 = vmatprep.subr.bf16.mxu0 0
        %638 = vmatpush1.bf16.msra.mxu0 0
        %639 = vmatprep.mubr.bf16.mxu0 0
        %640 = vmatmul.mubr.bf16.gmra.mrb[0].mxu0 %v605
        %v641 = vpop.f32.mrb[0].mxu0
        %v642 = vadd.f32 0.0, %v641
        %v643 = vpop.f32.mrb[0].mxu0
        %v644 = vpop.f32.mrb[0].mxu0
        %v645 = vadd.f32 0.0, %v644
        %v646 = vpop.f32.mrb[0].mxu0
        %647 = vdwg.mxu0
        %v648 = vld [vmem:[#allocation2 + $0x9] sm:$0xff]
        %v649 = vld [vmem:[#allocation2 + $0x11] sm:$0xff]
        %v650 = vpack.c.bf16 %v649, %v648
        %s651 = scalar_lea.vmem [#allocation6], 64
        %v652 = vld [vmem:[%s651] sm:$0xf]
        %v653 = vld [vmem:[%s651 + $0x4] sm:$0xf]
        %v654 = vld [vmem:[%s651 + $0x8] sm:$0xf]
        %v655 = vld [vmem:[%s651 + $0xc] sm:$0xf]
        %v656 = vld [vmem:[%s651 + $0x10] sm:$0xf]
        %v657 = vld [vmem:[%s651 + $0x14] sm:$0xf]
        %v658 = vld [vmem:[%s651 + $0x18] sm:$0xf]
        %v659 = vld [vmem:[%s651 + $0x1c] sm:$0xf]
        %v668 = vunpack.c.l.b16 %v652
        %v669 = vunpack.c.l.b16 %v653
        %v670 = vunpack.c.l.b16 %v654
        %v671 = vunpack.c.l.b16 %v655
        %v672 = vunpack.c.l.b16 %v656
        %v673 = vunpack.c.l.b16 %v657
        %v674 = vunpack.c.l.b16 %v658
        %v675 = vunpack.c.l.b16 %v659
        %v676 = vpack.c.b16 %v669, %v668
        %v677 = vpack.c.b16 %v671, %v670
        %v678 = vpack.c.b16 %v673, %v672
        %v679 = vpack.c.b16 %v675, %v674
        %v685 = vsel %vm538, %v650, 0
        %687 = vmatprep.subr.bf16.mxu0 0
        %688 = vmatpush1.bf16.msra.mxu0 %v676
        %689 = vmatprep.subr.bf16.mxu0 0
        %690 = vmatpush1.bf16.msra.mxu0 %v677
        %691 = vmatprep.subr.bf16.mxu0 0
        %692 = vmatpush1.bf16.msra.mxu0 %v678
        %693 = vmatprep.subr.bf16.mxu0 0
        %694 = vmatpush1.bf16.msra.mxu0 %v679
        %695 = vmatprep.subr.bf16.mxu0 0
        %696 = vmatpush1.bf16.msra.mxu0 0
        %697 = vmatprep.subr.bf16.mxu0 0
        %698 = vmatpush1.bf16.msra.mxu0 0
        %699 = vmatprep.subr.bf16.mxu0 0
        %700 = vmatpush1.bf16.msra.mxu0 0
        %701 = vmatprep.subr.bf16.mxu0 0
        %702 = vmatpush1.bf16.msra.mxu0 0
        %703 = vmatprep.subr.bf16.mxu0 0
        %704 = vmatpush1.bf16.msra.mxu0 0
        %705 = vmatprep.subr.bf16.mxu0 0
        %706 = vmatpush1.bf16.msra.mxu0 0
        %707 = vmatprep.subr.bf16.mxu0 0
        %708 = vmatpush1.bf16.msra.mxu0 0
        %709 = vmatprep.subr.bf16.mxu0 0
        %710 = vmatpush1.bf16.msra.mxu0 0
        %711 = vmatprep.subr.bf16.mxu0 0
        %712 = vmatpush1.bf16.msra.mxu0 0
        %713 = vmatprep.subr.bf16.mxu0 0
        %714 = vmatpush1.bf16.msra.mxu0 0
        %715 = vmatprep.subr.bf16.mxu0 0
        %716 = vmatpush1.bf16.msra.mxu0 0
        %717 = vmatprep.subr.bf16.mxu0 0
        %718 = vmatpush1.bf16.msra.mxu0 0
        %719 = vmatprep.mubr.bf16.mxu0 0
        %720 = vmatmul.mubr.bf16.gmra.mrb[0].mxu0 %v685
        %v721 = vpop.f32.mrb[0].mxu0
        %v722 = vadd.f32 0.0, %v721
        %v723 = vpop.f32.mrb[0].mxu0
        %v724 = vpop.f32.mrb[0].mxu0
        %v725 = vadd.f32 0.0, %v724
        %v726 = vpop.f32.mrb[0].mxu0
        %727 = vdwg.mxu0
        %v736 = vunpack.c.l.b16 %v560
        %v737 = vunpack.c.l.b16 %v561
        %v738 = vunpack.c.l.b16 %v562
        %v739 = vunpack.c.l.b16 %v563
        %v740 = vunpack.c.l.b16 %v564
        %v741 = vunpack.c.l.b16 %v565
        %v742 = vunpack.c.l.b16 %v566
        %v743 = vunpack.c.l.b16 %v567
        %v744 = vpack.c.b16 %v737, %v736
        %v745 = vpack.c.b16 %v739, %v738
        %v746 = vpack.c.b16 %v741, %v740
        %v747 = vpack.c.b16 %v743, %v742
        %v753 = vsel %vm538, %v559, 0
        %755 = vmatprep.subr.bf16.mxu0 0
        %756 = vmatpush1.bf16.msra.mxu0 %v744
        %757 = vmatprep.subr.bf16.mxu0 0
        %758 = vmatpush1.bf16.msra.mxu0 %v745
        %759 = vmatprep.subr.bf16.mxu0 0
        %760 = vmatpush1.bf16.msra.mxu0 %v746
        %761 = vmatprep.subr.bf16.mxu0 0
        %762 = vmatpush1.bf16.msra.mxu0 %v747
        %763 = vmatprep.subr.bf16.mxu0 0
        %764 = vmatpush1.bf16.msra.mxu0 0
        %765 = vmatprep.subr.bf16.mxu0 0
        %766 = vmatpush1.bf16.msra.mxu0 0
        %767 = vmatprep.subr.bf16.mxu0 0
        %768 = vmatpush1.bf16.msra.mxu0 0
        %769 = vmatprep.subr.bf16.mxu0 0
        %770 = vmatpush1.bf16.msra.mxu0 0
        %771 = vmatprep.subr.bf16.mxu0 0
        %772 = vmatpush1.bf16.msra.mxu0 0
        %773 = vmatprep.subr.bf16.mxu0 0
        %774 = vmatpush1.bf16.msra.mxu0 0
        %775 = vmatprep.subr.bf16.mxu0 0
        %776 = vmatpush1.bf16.msra.mxu0 0
        %777 = vmatprep.subr.bf16.mxu0 0
        %778 = vmatpush1.bf16.msra.mxu0 0
        %779 = vmatprep.subr.bf16.mxu0 0
        %780 = vmatpush1.bf16.msra.mxu0 0
        %781 = vmatprep.subr.bf16.mxu0 0
        %782 = vmatpush1.bf16.msra.mxu0 0
        %783 = vmatprep.subr.bf16.mxu0 0
        %784 = vmatpush1.bf16.msra.mxu0 0
        %785 = vmatprep.subr.bf16.mxu0 0
        %786 = vmatpush1.bf16.msra.mxu0 0
        %787 = vmatprep.mubr.bf16.mxu0 0
        %788 = vmatmul.mubr.bf16.gmra.mrb[0].mxu0 %v753
        %v789 = vpop.f32.mrb[0].mxu0
        %v790 = vadd.f32 %v642, %v789
        %v791 = vpop.f32.mrb[0].mxu0
        %v792 = vpop.f32.mrb[0].mxu0
        %v793 = vadd.f32 %v645, %v792
        %v794 = vpop.f32.mrb[0].mxu0
        %795 = vdwg.mxu0
        %v796 = vadd.f32 %v790, %v722
        %v797 = vadd.f32 %v793, %v725
        %v798 = vld [vmem:[#allocation8] sm:$0x1]
        %v800 = vlaneseq
        %v801 = vshrl.u32 %v800, 7
        %v802 = vsub.s32 0, %v801
        %v803 = vrot.slane %v798, %v802
        %v805 = vadd.f32 %v796, %v803
        %v806 = vadd.f32 %v797, %v803
        %vm807 = vcmp.gt.f32.partialorder %v805, 0.0
        %vm808 = vcmp.gt.f32.partialorder %v806, 0.0
        %v809 = vmin.f32 %v805, 0.0
        %v810 = vmin.f32 %v806, 0.0
        %v811 = vmul.f32 %v809, 1.442695
        %v812 = vpow.pop %v811
        %v813 = vmul.f32 %v810, 1.442695
        %v814 = vpow.pop %v813
        %v815 = vsub.f32 %v812, 1.0
        %v816 = vsub.f32 %v814, 1.0
        %v817 = vsel %vm807, %v805, %v815
        %v818 = vsel %vm808, %v806, %v816
        %819 = vst.msk [vmem:[#allocation2 + $0x8] sm:$0xff] %vm538, %v817
        %820 = vst.msk [vmem:[#allocation2 + $0x10] sm:$0xff] %vm538, %v818
        %v821 = vld [vmem:[#allocation2 + $0x7] sm:$0xff]
        %v822 = vld [vmem:[#allocation2 + $0xf] sm:$0xff]
        %v823 = vpack.c.bf16 %v822, %v821
        %s824 = scalar_lea.vmem [#allocation6], 96
        %v825 = vld [vmem:[%s824] sm:$0xf]
        %v826 = vld [vmem:[%s824 + $0x4] sm:$0xf]
        %v827 = vld [vmem:[%s824 + $0x8] sm:$0xf]
        %v828 = vld [vmem:[%s824 + $0xc] sm:$0xf]
        %v829 = vld [vmem:[%s824 + $0x10] sm:$0xf]
        %v830 = vld [vmem:[%s824 + $0x14] sm:$0xf]
        %v831 = vld [vmem:[%s824 + $0x18] sm:$0xf]
        %v832 = vld [vmem:[%s824 + $0x1c] sm:$0xf]
        %v833 = vld [vmem:[#allocation2 + $0x8] sm:$0xff]
        %v834 = vld [vmem:[#allocation2 + $0x10] sm:$0xff]
        %v835 = vpack.c.bf16 %v834, %v833
        %s836 = scalar_lea.vmem [#allocation6], 128
        %v837 = vld [vmem:[%s836] sm:$0xf]
        %v838 = vld [vmem:[%s836 + $0x4] sm:$0xf]
        %v839 = vld [vmem:[%s836 + $0x8] sm:$0xf]
        %v840 = vld [vmem:[%s836 + $0xc] sm:$0xf]
        %v841 = vld [vmem:[%s836 + $0x10] sm:$0xf]
        %v842 = vld [vmem:[%s836 + $0x14] sm:$0xf]
        %v843 = vld [vmem:[%s836 + $0x18] sm:$0xf]
        %v844 = vld [vmem:[%s836 + $0x1c] sm:$0xf]
        %v853 = vunpack.c.l.b16 %v837
        %v854 = vunpack.c.l.b16 %v838
        %v855 = vunpack.c.l.b16 %v839
        %v856 = vunpack.c.l.b16 %v840
        %v857 = vunpack.c.l.b16 %v841
        %v858 = vunpack.c.l.b16 %v842
        %v859 = vunpack.c.l.b16 %v843
        %v860 = vunpack.c.l.b16 %v844
        %v861 = vpack.c.b16 %v854, %v853
        %v862 = vpack.c.b16 %v856, %v855
        %v863 = vpack.c.b16 %v858, %v857
        %v864 = vpack.c.b16 %v860, %v859
        %v870 = vsel %vm538, %v835, 0
        %872 = vmatprep.subr.bf16.mxu0 0
        %873 = vmatpush1.bf16.msra.mxu0 %v861
        %874 = vmatprep.subr.bf16.mxu0 0
        %875 = vmatpush1.bf16.msra.mxu0 %v862
        %876 = vmatprep.subr.bf16.mxu0 0
        %877 = vmatpush1.bf16.msra.mxu0 %v863
        %878 = vmatprep.subr.bf16.mxu0 0
        %879 = vmatpush1.bf16.msra.mxu0 %v864
        %880 = vmatprep.subr.bf16.mxu0 0
        %881 = vmatpush1.bf16.msra.mxu0 0
        %882 = vmatprep.subr.bf16.mxu0 0
        %883 = vmatpush1.bf16.msra.mxu0 0
        %884 = vmatprep.subr.bf16.mxu0 0
        %885 = vmatpush1.bf16.msra.mxu0 0
        %886 = vmatprep.subr.bf16.mxu0 0
        %887 = vmatpush1.bf16.msra.mxu0 0
        %888 = vmatprep.subr.bf16.mxu0 0
        %889 = vmatpush1.bf16.msra.mxu0 0
        %890 = vmatprep.subr.bf16.mxu0 0
        %891 = vmatpush1.bf16.msra.mxu0 0
        %892 = vmatprep.subr.bf16.mxu0 0
        %893 = vmatpush1.bf16.msra.mxu0 0
        %894 = vmatprep.subr.bf16.mxu0 0
        %895 = vmatpush1.bf16.msra.mxu0 0
        %896 = vmatprep.subr.bf16.mxu0 0
        %897 = vmatpush1.bf16.msra.mxu0 0
        %898 = vmatprep.subr.bf16.mxu0 0
        %899 = vmatpush1.bf16.msra.mxu0 0
        %900 = vmatprep.subr.bf16.mxu0 0
        %901 = vmatpush1.bf16.msra.mxu0 0
        %902 = vmatprep.subr.bf16.mxu0 0
        %903 = vmatpush1.bf16.msra.mxu0 0
        %904 = vmatprep.mubr.bf16.mxu0 0
        %905 = vmatmul.mubr.bf16.gmra.mrb[0].mxu0 %v870
        %v906 = vpop.f32.mrb[0].mxu0
        %v907 = vadd.f32 0.0, %v906
        %v908 = vpop.f32.mrb[0].mxu0
        %v909 = vpop.f32.mrb[0].mxu0
        %v910 = vadd.f32 0.0, %v909
        %v911 = vpop.f32.mrb[0].mxu0
        %912 = vdwg.mxu0
        %v913 = vld [vmem:[#allocation2 + $0x9] sm:$0xff]
        %v914 = vld [vmem:[#allocation2 + $0x11] sm:$0xff]
        %v915 = vpack.c.bf16 %v914, %v913
        %s916 = scalar_lea.vmem [#allocation6], 160
        %v917 = vld [vmem:[%s916] sm:$0xf]
        %v918 = vld [vmem:[%s916 + $0x4] sm:$0xf]
        %v919 = vld [vmem:[%s916 + $0x8] sm:$0xf]
        %v920 = vld [vmem:[%s916 + $0xc] sm:$0xf]
        %v921 = vld [vmem:[%s916 + $0x10] sm:$0xf]
        %v922 = vld [vmem:[%s916 + $0x14] sm:$0xf]
        %v923 = vld [vmem:[%s916 + $0x18] sm:$0xf]
        %v924 = vld [vmem:[%s916 + $0x1c] sm:$0xf]
        %v933 = vunpack.c.l.b16 %v917
        %v934 = vunpack.c.l.b16 %v918
        %v935 = vunpack.c.l.b16 %v919
        %v936 = vunpack.c.l.b16 %v920
        %v937 = vunpack.c.l.b16 %v921
        %v938 = vunpack.c.l.b16 %v922
        %v939 = vunpack.c.l.b16 %v923
        %v940 = vunpack.c.l.b16 %v924
        %v941 = vpack.c.b16 %v934, %v933
        %v942 = vpack.c.b16 %v936, %v935
        %v943 = vpack.c.b16 %v938, %v937
        %v944 = vpack.c.b16 %v940, %v939
        %v950 = vsel %vm538, %v915, 0
        %952 = vmatprep.subr.bf16.mxu0 0
        %953 = vmatpush1.bf16.msra.mxu0 %v941
        %954 = vmatprep.subr.bf16.mxu0 0
        %955 = vmatpush1.bf16.msra.mxu0 %v942
        %956 = vmatprep.subr.bf16.mxu0 0
        %957 = vmatpush1.bf16.msra.mxu0 %v943
        %958 = vmatprep.subr.bf16.mxu0 0
        %959 = vmatpush1.bf16.msra.mxu0 %v944
        %960 = vmatprep.subr.bf16.mxu0 0
        %961 = vmatpush1.bf16.msra.mxu0 0
        %962 = vmatprep.subr.bf16.mxu0 0
        %963 = vmatpush1.bf16.msra.mxu0 0
        %964 = vmatprep.subr.bf16.mxu0 0
        %965 = vmatpush1.bf16.msra.mxu0 0
        %966 = vmatprep.subr.bf16.mxu0 0
        %967 = vmatpush1.bf16.msra.mxu0 0
        %968 = vmatprep.subr.bf16.mxu0 0
        %969 = vmatpush1.bf16.msra.mxu0 0
        %970 = vmatprep.subr.bf16.mxu0 0
        %971 = vmatpush1.bf16.msra.mxu0 0
        %972 = vmatprep.subr.bf16.mxu0 0
        %973 = vmatpush1.bf16.msra.mxu0 0
        %974 = vmatprep.subr.bf16.mxu0 0
        %975 = vmatpush1.bf16.msra.mxu0 0
        %976 = vmatprep.subr.bf16.mxu0 0
        %977 = vmatpush1.bf16.msra.mxu0 0
        %978 = vmatprep.subr.bf16.mxu0 0
        %979 = vmatpush1.bf16.msra.mxu0 0
        %980 = vmatprep.subr.bf16.mxu0 0
        %981 = vmatpush1.bf16.msra.mxu0 0
        %982 = vmatprep.subr.bf16.mxu0 0
        %983 = vmatpush1.bf16.msra.mxu0 0
        %984 = vmatprep.mubr.bf16.mxu0 0
        %985 = vmatmul.mubr.bf16.gmra.mrb[0].mxu0 %v950
        %v986 = vpop.f32.mrb[0].mxu0
        %v987 = vadd.f32 0.0, %v986
        %v988 = vpop.f32.mrb[0].mxu0
        %v989 = vpop.f32.mrb[0].mxu0
        %v990 = vadd.f32 0.0, %v989
        %v991 = vpop.f32.mrb[0].mxu0
        %992 = vdwg.mxu0
        %v1001 = vunpack.c.l.b16 %v825
        %v1002 = vunpack.c.l.b16 %v826
        %v1003 = vunpack.c.l.b16 %v827
        %v1004 = vunpack.c.l.b16 %v828
        %v1005 = vunpack.c.l.b16 %v829
        %v1006 = vunpack.c.l.b16 %v830
        %v1007 = vunpack.c.l.b16 %v831
        %v1008 = vunpack.c.l.b16 %v832
        %v1009 = vpack.c.b16 %v1002, %v1001
        %v1010 = vpack.c.b16 %v1004, %v1003
        %v1011 = vpack.c.b16 %v1006, %v1005
        %v1012 = vpack.c.b16 %v1008, %v1007
        %v1018 = vsel %vm538, %v823, 0
        %1020 = vmatprep.subr.bf16.mxu0 0
        %1021 = vmatpush1.bf16.msra.mxu0 %v1009
        %1022 = vmatprep.subr.bf16.mxu0 0
        %1023 = vmatpush1.bf16.msra.mxu0 %v1010
        %1024 = vmatprep.subr.bf16.mxu0 0
        %1025 = vmatpush1.bf16.msra.mxu0 %v1011
        %1026 = vmatprep.subr.bf16.mxu0 0
        %1027 = vmatpush1.bf16.msra.mxu0 %v1012
        %1028 = vmatprep.subr.bf16.mxu0 0
        %1029 = vmatpush1.bf16.msra.mxu0 0
        %1030 = vmatprep.subr.bf16.mxu0 0
        %1031 = vmatpush1.bf16.msra.mxu0 0
        %1032 = vmatprep.subr.bf16.mxu0 0
        %1033 = vmatpush1.bf16.msra.mxu0 0
        %1034 = vmatprep.subr.bf16.mxu0 0
        %1035 = vmatpush1.bf16.msra.mxu0 0
        %1036 = vmatprep.subr.bf16.mxu0 0
        %1037 = vmatpush1.bf16.msra.mxu0 0
        %1038 = vmatprep.subr.bf16.mxu0 0
        %1039 = vmatpush1.bf16.msra.mxu0 0
        %1040 = vmatprep.subr.bf16.mxu0 0
        %1041 = vmatpush1.bf16.msra.mxu0 0
        %1042 = vmatprep.subr.bf16.mxu0 0
        %1043 = vmatpush1.bf16.msra.mxu0 0
        %1044 = vmatprep.subr.bf16.mxu0 0
        %1045 = vmatpush1.bf16.msra.mxu0 0
        %1046 = vmatprep.subr.bf16.mxu0 0
        %1047 = vmatpush1.bf16.msra.mxu0 0
        %1048 = vmatprep.subr.bf16.mxu0 0
        %1049 = vmatpush1.bf16.msra.mxu0 0
        %1050 = vmatprep.subr.bf16.mxu0 0
        %1051 = vmatpush1.bf16.msra.mxu0 0
        %1052 = vmatprep.mubr.bf16.mxu0 0
        %1053 = vmatmul.mubr.bf16.gmra.mrb[0].mxu0 %v1018
        %v1054 = vpop.f32.mrb[0].mxu0
        %v1055 = vadd.f32 %v907, %v1054
        %v1056 = vpop.f32.mrb[0].mxu0
        %v1057 = vpop.f32.mrb[0].mxu0
        %v1058 = vadd.f32 %v910, %v1057
        %v1059 = vpop.f32.mrb[0].mxu0
        %1060 = vdwg.mxu0
        %v1061 = vadd.f32 %v1055, %v987
        %v1062 = vadd.f32 %v1058, %v990
        %vm1063 = vcmp.gt.f32.partialorder %v1061, 0.0
        %vm1064 = vcmp.gt.f32.partialorder %v1062, 0.0
        %v1065 = vmin.f32 %v1061, 0.0
        %v1066 = vmin.f32 %v1062, 0.0
        %v1067 = vmul.f32 %v1065, 1.442695
        %v1068 = vpow.pop %v1067
        %v1069 = vmul.f32 %v1066, 1.442695
        %v1070 = vpow.pop %v1069
        %v1071 = vsub.f32 %v1068, 1.0
        %v1072 = vsub.f32 %v1070, 1.0
        %v1073 = vsel %vm1063, %v1061, %v1071
        %v1074 = vsel %vm1064, %v1062, %v1072
        %1075 = vst.msk [vmem:[#allocation2 + $0x8] sm:$0xff] %vm538, %v1073
        %1076 = vst.msk [vmem:[#allocation2 + $0x10] sm:$0xff] %vm538, %v1074
        %v1077 = vld [vmem:[#allocation2 + $0x7] sm:$0xff]
        %v1078 = vld [vmem:[#allocation2 + $0xf] sm:$0xff]
        %v1079 = vpack.c.bf16 %v1078, %v1077
        %v1080 = vld [vmem:[%s3] sm:$0xf]
        %v1081 = vld [vmem:[%s3 + $0x4] sm:$0xf]
        %v1082 = vld [vmem:[%s3 + $0x8] sm:$0xf]
        %v1083 = vld [vmem:[%s3 + $0xc] sm:$0xf]
        %v1084 = vld [vmem:[%s3 + $0x10] sm:$0xf]
        %v1085 = vld [vmem:[%s3 + $0x14] sm:$0xf]
        %v1086 = vld [vmem:[%s3 + $0x18] sm:$0xf]
        %v1087 = vld [vmem:[%s3 + $0x1c] sm:$0xf]
        %v1088 = vld [vmem:[#allocation2 + $0x8] sm:$0xff]
        %v1089 = vld [vmem:[#allocation2 + $0x10] sm:$0xff]
        %v1090 = vpack.c.bf16 %v1089, %v1088
        %s1091 = scalar_lea.vmem %s3, 32
        %v1092 = vld [vmem:[%s1091] sm:$0xf]
        %v1093 = vld [vmem:[%s1091 + $0x4] sm:$0xf]
        %v1094 = vld [vmem:[%s1091 + $0x8] sm:$0xf]
        %v1095 = vld [vmem:[%s1091 + $0xc] sm:$0xf]
        %v1096 = vld [vmem:[%s1091 + $0x10] sm:$0xf]
        %v1097 = vld [vmem:[%s1091 + $0x14] sm:$0xf]
        %v1098 = vld [vmem:[%s1091 + $0x18] sm:$0xf]
        %v1099 = vld [vmem:[%s1091 + $0x1c] sm:$0xf]
        %v1108 = vunpack.c.l.b16 %v1092
        %v1109 = vunpack.c.l.b16 %v1093
        %v1110 = vunpack.c.l.b16 %v1094
        %v1111 = vunpack.c.l.b16 %v1095
        %v1112 = vunpack.c.l.b16 %v1096
        %v1113 = vunpack.c.l.b16 %v1097
        %v1114 = vunpack.c.l.b16 %v1098
        %v1115 = vunpack.c.l.b16 %v1099
        %v1116 = vpack.c.b16 %v1109, %v1108
        %v1117 = vpack.c.b16 %v1111, %v1110
        %v1118 = vpack.c.b16 %v1113, %v1112
        %v1119 = vpack.c.b16 %v1115, %v1114
        %v1125 = vsel %vm538, %v1090, 0
        %1127 = vmatprep.subr.bf16.mxu0 0
        %1128 = vmatpush1.bf16.msra.mxu0 %v1116
        %1129 = vmatprep.subr.bf16.mxu0 0
        %1130 = vmatpush1.bf16.msra.mxu0 %v1117
        %1131 = vmatprep.subr.bf16.mxu0 0
        %1132 = vmatpush1.bf16.msra.mxu0 %v1118
        %1133 = vmatprep.subr.bf16.mxu0 0
        %1134 = vmatpush1.bf16.msra.mxu0 %v1119
        %1135 = vmatprep.subr.bf16.mxu0 0
        %1136 = vmatpush1.bf16.msra.mxu0 0
        %1137 = vmatprep.subr.bf16.mxu0 0
        %1138 = vmatpush1.bf16.msra.mxu0 0
        %1139 = vmatprep.subr.bf16.mxu0 0
        %1140 = vmatpush1.bf16.msra.mxu0 0
        %1141 = vmatprep.subr.bf16.mxu0 0
        %1142 = vmatpush1.bf16.msra.mxu0 0
        %1143 = vmatprep.subr.bf16.mxu0 0
        %1144 = vmatpush1.bf16.msra.mxu0 0
        %1145 = vmatprep.subr.bf16.mxu0 0
        %1146 = vmatpush1.bf16.msra.mxu0 0
        %1147 = vmatprep.subr.bf16.mxu0 0
        %1148 = vmatpush1.bf16.msra.mxu0 0
        %1149 = vmatprep.subr.bf16.mxu0 0
        %1150 = vmatpush1.bf16.msra.mxu0 0
        %1151 = vmatprep.subr.bf16.mxu0 0
        %1152 = vmatpush1.bf16.msra.mxu0 0
        %1153 = vmatprep.subr.bf16.mxu0 0
        %1154 = vmatpush1.bf16.msra.mxu0 0
        %1155 = vmatprep.subr.bf16.mxu0 0
        %1156 = vmatpush1.bf16.msra.mxu0 0
        %1157 = vmatprep.subr.bf16.mxu0 0
        %1158 = vmatpush1.bf16.msra.mxu0 0
        %1159 = vmatprep.mubr.bf16.mxu0 0
        %1160 = vmatmul.mubr.bf16.gmra.mrb[0].mxu0 %v1125
        %v1161 = vpop.f32.mrb[0].mxu0
        %v1162 = vadd.f32 0.0, %v1161
        %v1163 = vpop.f32.mrb[0].mxu0
        %v1164 = vpop.f32.mrb[0].mxu0
        %v1165 = vadd.f32 0.0, %v1164
        %v1166 = vpop.f32.mrb[0].mxu0
        %1167 = vdwg.mxu0
        %v1168 = vld [vmem:[#allocation2 + $0x9] sm:$0xff]
        %v1169 = vld [vmem:[#allocation2 + $0x11] sm:$0xff]
        %v1170 = vpack.c.bf16 %v1169, %v1168
        %s1171 = scalar_lea.vmem %s3, 64
        %v1172 = vld [vmem:[%s1171] sm:$0xf]
        %v1173 = vld [vmem:[%s1171 + $0x4] sm:$0xf]
        %v1174 = vld [vmem:[%s1171 + $0x8] sm:$0xf]
        %v1175 = vld [vmem:[%s1171 + $0xc] sm:$0xf]
        %v1176 = vld [vmem:[%s1171 + $0x10] sm:$0xf]
        %v1177 = vld [vmem:[%s1171 + $0x14] sm:$0xf]
        %v1178 = vld [vmem:[%s1171 + $0x18] sm:$0xf]
        %v1179 = vld [vmem:[%s1171 + $0x1c] sm:$0xf]
        %v1188 = vunpack.c.l.b16 %v1172
        %v1189 = vunpack.c.l.b16 %v1173
        %v1190 = vunpack.c.l.b16 %v1174
        %v1191 = vunpack.c.l.b16 %v1175
        %v1192 = vunpack.c.l.b16 %v1176
        %v1193 = vunpack.c.l.b16 %v1177
        %v1194 = vunpack.c.l.b16 %v1178
        %v1195 = vunpack.c.l.b16 %v1179
        %v1196 = vpack.c.b16 %v1189, %v1188
        %v1197 = vpack.c.b16 %v1191, %v1190
        %v1198 = vpack.c.b16 %v1193, %v1192
        %v1199 = vpack.c.b16 %v1195, %v1194
        %v1205 = vsel %vm538, %v1170, 0
        %1207 = vmatprep.subr.bf16.mxu0 0
        %1208 = vmatpush1.bf16.msra.mxu0 %v1196
        %1209 = vmatprep.subr.bf16.mxu0 0
        %1210 = vmatpush1.bf16.msra.mxu0 %v1197
        %1211 = vmatprep.subr.bf16.mxu0 0
        %1212 = vmatpush1.bf16.msra.mxu0 %v1198
        %1213 = vmatprep.subr.bf16.mxu0 0
        %1214 = vmatpush1.bf16.msra.mxu0 %v1199
        %1215 = vmatprep.subr.bf16.mxu0 0
        %1216 = vmatpush1.bf16.msra.mxu0 0
        %1217 = vmatprep.subr.bf16.mxu0 0
        %1218 = vmatpush1.bf16.msra.mxu0 0
        %1219 = vmatprep.subr.bf16.mxu0 0
        %1220 = vmatpush1.bf16.msra.mxu0 0
        %1221 = vmatprep.subr.bf16.mxu0 0
        %1222 = vmatpush1.bf16.msra.mxu0 0
        %1223 = vmatprep.subr.bf16.mxu0 0
        %1224 = vmatpush1.bf16.msra.mxu0 0
        %1225 = vmatprep.subr.bf16.mxu0 0
        %1226 = vmatpush1.bf16.msra.mxu0 0
        %1227 = vmatprep.subr.bf16.mxu0 0
        %1228 = vmatpush1.bf16.msra.mxu0 0
        %1229 = vmatprep.subr.bf16.mxu0 0
        %1230 = vmatpush1.bf16.msra.mxu0 0
        %1231 = vmatprep.subr.bf16.mxu0 0
        %1232 = vmatpush1.bf16.msra.mxu0 0
        %1233 = vmatprep.subr.bf16.mxu0 0
        %1234 = vmatpush1.bf16.msra.mxu0 0
        %1235 = vmatprep.subr.bf16.mxu0 0
        %1236 = vmatpush1.bf16.msra.mxu0 0
        %1237 = vmatprep.subr.bf16.mxu0 0
        %1238 = vmatpush1.bf16.msra.mxu0 0
        %1239 = vmatprep.mubr.bf16.mxu0 0
        %1240 = vmatmul.mubr.bf16.gmra.mrb[0].mxu0 %v1205
        %v1241 = vpop.f32.mrb[0].mxu0
        %v1242 = vadd.f32 0.0, %v1241
        %v1243 = vpop.f32.mrb[0].mxu0
        %v1244 = vpop.f32.mrb[0].mxu0
        %v1245 = vadd.f32 0.0, %v1244
        %v1246 = vpop.f32.mrb[0].mxu0
        %1247 = vdwg.mxu0
        %v1256 = vunpack.c.l.b16 %v1080
        %v1257 = vunpack.c.l.b16 %v1081
        %v1258 = vunpack.c.l.b16 %v1082
        %v1259 = vunpack.c.l.b16 %v1083
        %v1260 = vunpack.c.l.b16 %v1084
        %v1261 = vunpack.c.l.b16 %v1085
        %v1262 = vunpack.c.l.b16 %v1086
        %v1263 = vunpack.c.l.b16 %v1087
        %v1264 = vpack.c.b16 %v1257, %v1256
        %v1265 = vpack.c.b16 %v1259, %v1258
        %v1266 = vpack.c.b16 %v1261, %v1260
        %v1267 = vpack.c.b16 %v1263, %v1262
        %v1273 = vsel %vm538, %v1079, 0
        %1275 = vmatprep.subr.bf16.mxu0 0
        %1276 = vmatpush1.bf16.msra.mxu0 %v1264
        %1277 = vmatprep.subr.bf16.mxu0 0
        %1278 = vmatpush1.bf16.msra.mxu0 %v1265
        %1279 = vmatprep.subr.bf16.mxu0 0
        %1280 = vmatpush1.bf16.msra.mxu0 %v1266
        %1281 = vmatprep.subr.bf16.mxu0 0
        %1282 = vmatpush1.bf16.msra.mxu0 %v1267
        %1283 = vmatprep.subr.bf16.mxu0 0
        %1284 = vmatpush1.bf16.msra.mxu0 0
        %1285 = vmatprep.subr.bf16.mxu0 0
        %1286 = vmatpush1.bf16.msra.mxu0 0
        %1287 = vmatprep.subr.bf16.mxu0 0
        %1288 = vmatpush1.bf16.msra.mxu0 0
        %1289 = vmatprep.subr.bf16.mxu0 0
        %1290 = vmatpush1.bf16.msra.mxu0 0
        %1291 = vmatprep.subr.bf16.mxu0 0
        %1292 = vmatpush1.bf16.msra.mxu0 0
        %1293 = vmatprep.subr.bf16.mxu0 0
        %1294 = vmatpush1.bf16.msra.mxu0 0
        %1295 = vmatprep.subr.bf16.mxu0 0
        %1296 = vmatpush1.bf16.msra.mxu0 0
        %1297 = vmatprep.subr.bf16.mxu0 0
        %1298 = vmatpush1.bf16.msra.mxu0 0
        %1299 = vmatprep.subr.bf16.mxu0 0
        %1300 = vmatpush1.bf16.msra.mxu0 0
        %1301 = vmatprep.subr.bf16.mxu0 0
        %1302 = vmatpush1.bf16.msra.mxu0 0
        %1303 = vmatprep.subr.bf16.mxu0 0
        %1304 = vmatpush1.bf16.msra.mxu0 0
        %1305 = vmatprep.subr.bf16.mxu0 0
        %1306 = vmatpush1.bf16.msra.mxu0 0
        %1307 = vmatprep.mubr.bf16.mxu0 0
        %1308 = vmatmul.mubr.bf16.gmra.mrb[0].mxu0 %v1273
        %v1309 = vpop.f32.mrb[0].mxu0
        %v1310 = vadd.f32 %v1162, %v1309
        %v1311 = vpop.f32.mrb[0].mxu0
        %v1312 = vpop.f32.mrb[0].mxu0
        %v1313 = vadd.f32 %v1165, %v1312
        %v1314 = vpop.f32.mrb[0].mxu0
        %1315 = vdwg.mxu0
        %v1316 = vadd.f32 %v1310, %v1242
        %v1317 = vadd.f32 %v1313, %v1245
        %v1318 = vld [vmem:[#allocation10] sm:$0x1]
        %v1320 = vlaneseq
        %v1321 = vshrl.u32 %v1320, 7
        %v1322 = vsub.s32 0, %v1321
        %v1323 = vrot.slane %v1318, %v1322
        %v1325 = vadd.f32 %v1316, %v1323
        %v1326 = vadd.f32 %v1317, %v1323
        %v1327 = vld [vmem:[#allocation11] sm:$0xf]
        %v1328 = vpack.c.bf16 %v1326, %v1325
        %vm1329 = vcmask 130048
        %v1331 = vsel %vm1329, %v1327, 0
        %1333 = vmatprep.subr.bf16.mxu0 0
        %1334 = vmatpush1.bf16.msra.mxu0 %v1328
        %1335 = vmatprep.subr.bf16.mxu0 0
        %1336 = vmatpush1.bf16.msra.mxu0 0
        %1337 = vmatprep.subr.bf16.mxu0 0
        %1338 = vmatpush1.bf16.msra.mxu0 0
        %1339 = vmatprep.subr.bf16.mxu0 0
        %1340 = vmatpush1.bf16.msra.mxu0 0
        %1341 = vmatprep.subr.bf16.mxu0 0
        %1342 = vmatpush1.bf16.msra.mxu0 0
        %1343 = vmatprep.subr.bf16.mxu0 0
        %1344 = vmatpush1.bf16.msra.mxu0 0
        %1345 = vmatprep.subr.bf16.mxu0 0
        %1346 = vmatpush1.bf16.msra.mxu0 0
        %1347 = vmatprep.subr.bf16.mxu0 0
        %1348 = vmatpush1.bf16.msra.mxu0 0
        %1349 = vmatprep.subr.bf16.mxu0 0
        %1350 = vmatpush1.bf16.msra.mxu0 0
        %1351 = vmatprep.subr.bf16.mxu0 0
        %1352 = vmatpush1.bf16.msra.mxu0 0
        %1353 = vmatprep.subr.bf16.mxu0 0
        %1354 = vmatpush1.bf16.msra.mxu0 0
        %1355 = vmatprep.subr.bf16.mxu0 0
        %1356 = vmatpush1.bf16.msra.mxu0 0
        %1357 = vmatprep.subr.bf16.mxu0 0
        %1358 = vmatpush1.bf16.msra.mxu0 0
        %1359 = vmatprep.subr.bf16.mxu0 0
        %1360 = vmatpush1.bf16.msra.mxu0 0
        %1361 = vmatprep.subr.bf16.mxu0 0
        %1362 = vmatpush1.bf16.msra.mxu0 0
        %1363 = vmatprep.subr.bf16.mxu0 0
        %1364 = vmatpush1.bf16.msra.mxu0 0
        %1365 = vmatprep.mubr.bf16.mxu0 0
        %1366 = vmatmul.mubr.bf16.gmra.mrb[0].mxu0 %v1331
        %v1367 = vpop.f32.mrb[0].mxu0
        %v1368 = vadd.f32 0.0, %v1367
        %v1369 = vpop.f32.mrb[0].mxu0
        %v1370 = vpop.f32.mrb[0].mxu0
        %v1371 = vpop.f32.mrb[0].mxu0
        %1372 = vdwg.mxu0
        %v1373 = vpack.c.bf16 %v1368, %v1368
        %v1374 = vld [vmem:[#allocation13] sm:$0xf]
        %v1375 = vld [vmem:[#allocation13 + $0x4] sm:$0xf]
        %v1376 = vld [vmem:[#allocation13 + $0x8] sm:$0xf]
        %v1377 = vld [vmem:[#allocation13 + $0xc] sm:$0xf]
        %v1378 = vld [vmem:[#allocation13 + $0x10] sm:$0xf]
        %v1379 = vld [vmem:[#allocation13 + $0x14] sm:$0xf]
        %v1380 = vld [vmem:[#allocation13 + $0x18] sm:$0xf]
        %v1381 = vld [vmem:[#allocation13 + $0x1c] sm:$0xf]
        %v1382 = vld [vmem:[#allocation13 + $0x20] sm:$0xf]
        %v1383 = vld [vmem:[#allocation13 + $0x24] sm:$0xf]
        %v1384 = vld [vmem:[#allocation13 + $0x28] sm:$0xf]
        %v1385 = vld [vmem:[#allocation13 + $0x2c] sm:$0xf]
        %v1386 = vld [vmem:[#allocation13 + $0x30] sm:$0xf]
        %v1387 = vld [vmem:[#allocation13 + $0x34] sm:$0xf]
        %v1388 = vld [vmem:[#allocation13 + $0x38] sm:$0xf]
        %v1389 = vld [vmem:[#allocation13 + $0x3c] sm:$0xf]
        %v1390 = vpack.c.bf16 %v806, %v805
        %1391 = vmatprep.subr.bf16.mxu0 0
        %1392 = vmatpush1.bf16.msra.mxu0 %v1390
        %1393 = vmatprep.subr.bf16.mxu0 0
        %1394 = vmatpush1.bf16.msra.mxu0 0
        %1395 = vmatprep.subr.bf16.mxu0 0
        %1396 = vmatpush1.bf16.msra.mxu0 0
        %1397 = vmatprep.subr.bf16.mxu0 0
        %1398 = vmatpush1.bf16.msra.mxu0 0
        %1399 = vmatprep.subr.bf16.mxu0 0
        %1400 = vmatpush1.bf16.msra.mxu0 0
        %1401 = vmatprep.subr.bf16.mxu0 0
        %1402 = vmatpush1.bf16.msra.mxu0 0
        %1403 = vmatprep.subr.bf16.mxu0 0
        %1404 = vmatpush1.bf16.msra.mxu0 0
        %1405 = vmatprep.subr.bf16.mxu0 0
        %1406 = vmatpush1.bf16.msra.mxu0 0
        %1407 = vmatprep.subr.bf16.mxu0 0
        %1408 = vmatpush1.bf16.msra.mxu0 0
        %1409 = vmatprep.subr.bf16.mxu0 0
        %1410 = vmatpush1.bf16.msra.mxu0 0
        %1411 = vmatprep.subr.bf16.mxu0 0
        %1412 = vmatpush1.bf16.msra.mxu0 0
        %1413 = vmatprep.subr.bf16.mxu0 0
        %1414 = vmatpush1.bf16.msra.mxu0 0
        %1415 = vmatprep.subr.bf16.mxu0 0
        %1416 = vmatpush1.bf16.msra.mxu0 0
        %1417 = vmatprep.subr.bf16.mxu0 0
        %1418 = vmatpush1.bf16.msra.mxu0 0
        %1419 = vmatprep.subr.bf16.mxu0 0
        %1420 = vmatpush1.bf16.msra.mxu0 0
        %1421 = vmatprep.subr.bf16.mxu0 0
        %1422 = vmatpush1.bf16.msra.mxu0 0
        %1423 = vmatprep.mubr.bf16.mxu0 0
        %1424 = vmatmul.mubr.bf16.gmra.mrb[0].mxu0 %v1331
        %v1425 = vpop.f32.mrb[0].mxu0
        %v1426 = vadd.f32 0.0, %v1425
        %v1427 = vpop.f32.mrb[0].mxu0
        %v1428 = vpop.f32.mrb[0].mxu0
        %v1429 = vpop.f32.mrb[0].mxu0
        %1430 = vdwg.mxu0
        %v1431 = vpack.c.bf16 %v1426, %v1426
        %v1432 = vld [vmem:[#allocation14] sm:$0xf]
        %v1433 = vld [vmem:[#allocation14 + $0x4] sm:$0xf]
        %v1434 = vld [vmem:[#allocation14 + $0x8] sm:$0xf]
        %v1435 = vld [vmem:[#allocation14 + $0xc] sm:$0xf]
        %v1436 = vld [vmem:[#allocation14 + $0x10] sm:$0xf]
        %v1437 = vld [vmem:[#allocation14 + $0x14] sm:$0xf]
        %v1438 = vld [vmem:[#allocation14 + $0x18] sm:$0xf]
        %v1439 = vld [vmem:[#allocation14 + $0x1c] sm:$0xf]
        %v1448 = vunpack.c.l.b16 %v1432
        %v1449 = vunpack.c.l.b16 %v1433
        %v1450 = vunpack.c.l.b16 %v1434
        %v1451 = vunpack.c.l.b16 %v1435
        %v1452 = vunpack.c.l.b16 %v1436
        %v1453 = vunpack.c.l.b16 %v1437
        %v1454 = vunpack.c.l.b16 %v1438
        %v1455 = vunpack.c.l.b16 %v1439
        %v1456 = vpack.c.b16 %v1449, %v1448
        %v1457 = vpack.c.b16 %v1451, %v1450
        %v1458 = vpack.c.b16 %v1453, %v1452
        %v1459 = vpack.c.b16 %v1455, %v1454
        %v1465 = vsel %vm538, %v1431, 0
        %1467 = vmatprep.subr.bf16.mxu0 0
        %1468 = vmatpush1.bf16.msra.mxu0 %v1456
        %1469 = vmatprep.subr.bf16.mxu0 0
        %1470 = vmatpush1.bf16.msra.mxu0 %v1457
        %1471 = vmatprep.subr.bf16.mxu0 0
        %1472 = vmatpush1.bf16.msra.mxu0 %v1458
        %1473 = vmatprep.subr.bf16.mxu0 0
        %1474 = vmatpush1.bf16.msra.mxu0 %v1459
        %1475 = vmatprep.subr.bf16.mxu0 0
        %1476 = vmatpush1.bf16.msra.mxu0 0
        %1477 = vmatprep.subr.bf16.mxu0 0
        %1478 = vmatpush1.bf16.msra.mxu0 0
        %1479 = vmatprep.subr.bf16.mxu0 0
        %1480 = vmatpush1.bf16.msra.mxu0 0
        %1481 = vmatprep.subr.bf16.mxu0 0
        %1482 = vmatpush1.bf16.msra.mxu0 0
        %1483 = vmatprep.subr.bf16.mxu0 0
        %1484 = vmatpush1.bf16.msra.mxu0 0
        %1485 = vmatprep.subr.bf16.mxu0 0
        %1486 = vmatpush1.bf16.msra.mxu0 0
        %1487 = vmatprep.subr.bf16.mxu0 0
        %1488 = vmatpush1.bf16.msra.mxu0 0
        %1489 = vmatprep.subr.bf16.mxu0 0
        %1490 = vmatpush1.bf16.msra.mxu0 0
        %1491 = vmatprep.subr.bf16.mxu0 0
        %1492 = vmatpush1.bf16.msra.mxu0 0
        %1493 = vmatprep.subr.bf16.mxu0 0
        %1494 = vmatpush1.bf16.msra.mxu0 0
        %1495 = vmatprep.subr.bf16.mxu0 0
        %1496 = vmatpush1.bf16.msra.mxu0 0
        %1497 = vmatprep.subr.bf16.mxu0 0
        %1498 = vmatpush1.bf16.msra.mxu0 0
        %1499 = vmatprep.mubr.bf16.mxu0 0
        %1500 = vmatmul.mubr.bf16.gmra.mrb[0].mxu0 %v1465
        %v1501 = vpop.f32.mrb[0].mxu0
        %v1502 = vadd.f32 0.0, %v1501
        %v1503 = vpop.f32.mrb[0].mxu0
        %v1504 = vpop.f32.mrb[0].mxu0
        %v1505 = vpop.f32.mrb[0].mxu0
        %1506 = vdwg.mxu0
        %v1507 = vpack.c.bf16 %v1502, %v1502
        %v1508 = vld [vmem:[#allocation16] sm:$0xf]
        %v1509 = vld [vmem:[#allocation16 + $0x4] sm:$0xf]
        %v1510 = vld [vmem:[#allocation16 + $0x8] sm:$0xf]
        %v1511 = vld [vmem:[#allocation16 + $0xc] sm:$0xf]
        %s1512 = scalar_lea.vmem [#allocation8], 1
        %v1513 = vld [vmem:[%s1512] sm:$0x1]
        %v1515 = vlaneseq
        %v1516 = vshrl.u32 %v1515, 7
        %v1517 = vsub.s32 0, %v1516
        %v1518 = vrot.slane %v1513, %v1517
        %v1524 = vunpack.c.l.b16 %v1508
        %v1525 = vunpack.c.l.b16 %v1509
        %v1526 = vunpack.c.l.b16 %v1510
        %v1527 = vunpack.c.l.b16 %v1511
        %v1528 = vpack.c.b16 %v1525, %v1524
        %v1529 = vpack.c.b16 %v1527, %v1526
        %vm1532 = vcmask 261120
        %v1534 = vsel %vm1532, %v1507, 0
        %1536 = vmatprep.subr.bf16.mxu0 0
        %1537 = vmatpush1.bf16.msra.mxu0 %v1528
        %1538 = vmatprep.subr.bf16.mxu0 0
        %1539 = vmatpush1.bf16.msra.mxu0 %v1529
        %1540 = vmatprep.subr.bf16.mxu0 0
        %1541 = vmatpush1.bf16.msra.mxu0 0
        %1542 = vmatprep.subr.bf16.mxu0 0
        %1543 = vmatpush1.bf16.msra.mxu0 0
        %1544 = vmatprep.subr.bf16.mxu0 0
        %1545 = vmatpush1.bf16.msra.mxu0 0
        %1546 = vmatprep.subr.bf16.mxu0 0
        %1547 = vmatpush1.bf16.msra.mxu0 0
        %1548 = vmatprep.subr.bf16.mxu0 0
        %1549 = vmatpush1.bf16.msra.mxu0 0
        %1550 = vmatprep.subr.bf16.mxu0 0
        %1551 = vmatpush1.bf16.msra.mxu0 0
        %1552 = vmatprep.subr.bf16.mxu0 0
        %1553 = vmatpush1.bf16.msra.mxu0 0
        %1554 = vmatprep.subr.bf16.mxu0 0
        %1555 = vmatpush1.bf16.msra.mxu0 0
        %1556 = vmatprep.subr.bf16.mxu0 0
        %1557 = vmatpush1.bf16.msra.mxu0 0
        %1558 = vmatprep.subr.bf16.mxu0 0
        %1559 = vmatpush1.bf16.msra.mxu0 0
        %1560 = vmatprep.subr.bf16.mxu0 0
        %1561 = vmatpush1.bf16.msra.mxu0 0
        %1562 = vmatprep.subr.bf16.mxu0 0
        %1563 = vmatpush1.bf16.msra.mxu0 0
        %1564 = vmatprep.subr.bf16.mxu0 0
        %1565 = vmatpush1.bf16.msra.mxu0 0
        %1566 = vmatprep.subr.bf16.mxu0 0
        %1567 = vmatpush1.bf16.msra.mxu0 0
        %1568 = vmatprep.mubr.bf16.mxu0 0
        %1569 = vmatmul.mubr.bf16.gmra.mrb[0].mxu0 %v1534
        %v1570 = vpop.f32.mrb[0].mxu0
        %v1571 = vadd.f32 %v1518, %v1570
        %v1572 = vpop.f32.mrb[0].mxu0
        %v1573 = vpop.f32.mrb[0].mxu0
        %v1574 = vpop.f32.mrb[0].mxu0
        %1575 = vdwg.mxu0
        %v1592 = vunpack.c.l.b16 %v1374
        %v1593 = vunpack.c.l.b16 %v1375
        %v1594 = vunpack.c.l.b16 %v1376
        %v1595 = vunpack.c.l.b16 %v1377
        %v1596 = vunpack.c.l.b16 %v1378
        %v1597 = vunpack.c.l.b16 %v1379
        %v1598 = vunpack.c.l.b16 %v1380
        %v1599 = vunpack.c.l.b16 %v1381
        %v1600 = vunpack.c.l.b16 %v1382
        %v1601 = vunpack.c.l.b16 %v1383
        %v1602 = vunpack.c.l.b16 %v1384
        %v1603 = vunpack.c.l.b16 %v1385
        %v1604 = vunpack.c.l.b16 %v1386
        %v1605 = vunpack.c.l.b16 %v1387
        %v1606 = vunpack.c.l.b16 %v1388
        %v1607 = vunpack.c.l.b16 %v1389
        %v1608 = vpack.c.b16 %v1593, %v1592
        %v1609 = vpack.c.b16 %v1595, %v1594
        %v1610 = vpack.c.b16 %v1597, %v1596
        %v1611 = vpack.c.b16 %v1599, %v1598
        %v1612 = vpack.c.b16 %v1601, %v1600
        %v1613 = vpack.c.b16 %v1603, %v1602
        %v1614 = vpack.c.b16 %v1605, %v1604
        %v1615 = vpack.c.b16 %v1607, %v1606
        %1624 = vmatprep.subr.bf16.mxu0 0
        %1625 = vmatpush1.bf16.msra.mxu0 %v1608
        %1626 = vmatprep.subr.bf16.mxu0 0
        %1627 = vmatpush1.bf16.msra.mxu0 %v1609
        %1628 = vmatprep.subr.bf16.mxu0 0
        %1629 = vmatpush1.bf16.msra.mxu0 %v1610
        %1630 = vmatprep.subr.bf16.mxu0 0
        %1631 = vmatpush1.bf16.msra.mxu0 %v1611
        %1632 = vmatprep.subr.bf16.mxu0 0
        %1633 = vmatpush1.bf16.msra.mxu0 %v1612
        %1634 = vmatprep.subr.bf16.mxu0 0
        %1635 = vmatpush1.bf16.msra.mxu0 %v1613
        %1636 = vmatprep.subr.bf16.mxu0 0
        %1637 = vmatpush1.bf16.msra.mxu0 %v1614
        %1638 = vmatprep.subr.bf16.mxu0 0
        %1639 = vmatpush1.bf16.msra.mxu0 %v1615
        %1640 = vmatprep.subr.bf16.mxu0 0
        %1641 = vmatpush1.bf16.msra.mxu0 0
        %1642 = vmatprep.subr.bf16.mxu0 0
        %1643 = vmatpush1.bf16.msra.mxu0 0
        %1644 = vmatprep.subr.bf16.mxu0 0
        %1645 = vmatpush1.bf16.msra.mxu0 0
        %1646 = vmatprep.subr.bf16.mxu0 0
        %1647 = vmatpush1.bf16.msra.mxu0 0
        %1648 = vmatprep.subr.bf16.mxu0 0
        %1649 = vmatpush1.bf16.msra.mxu0 0
        %1650 = vmatprep.subr.bf16.mxu0 0
        %1651 = vmatpush1.bf16.msra.mxu0 0
        %1652 = vmatprep.subr.bf16.mxu0 0
        %1653 = vmatpush1.bf16.msra.mxu0 0
        %1654 = vmatprep.subr.bf16.mxu0 0
        %1655 = vmatpush1.bf16.msra.mxu0 0
        %1656 = vmatprep.mubr.bf16.mxu0 0
        %1657 = vmatmul.mubr.bf16.gmra.mrb[0].mxu0 %v1373
        %v1658 = vpop.f32.mrb[0].mxu0
        %v1659 = vadd.f32 %v1571, %v1658
        %v1660 = vpop.f32.mrb[0].mxu0
        %v1661 = vpop.f32.mrb[0].mxu0
        %v1662 = vpop.f32.mrb[0].mxu0
        %1663 = vdwg.mxu0
        %vm1664 = vcmp.gt.f32.partialorder %v1659, 0.0
        %v1665 = vmin.f32 %v1659, 0.0
        %v1666 = vmul.f32 %v1665, 1.442695
        %v1667 = vpow.pop %v1666
        %v1668 = vsub.f32 %v1667, 1.0
        %v1669 = vsel %vm1664, %v1659, %v1668
        %1670 = vst.msk [vmem:[#allocation3 + $0x8] sm:$0xff] %vm538, %v1669
        %v1671 = vld [vmem:[#allocation3 + $0x7] sm:$0xff]
        %v1672 = vpack.c.bf16 %v1671, %v1671
        %s1673 = scalar_lea.vmem [#allocation6], 192
        %v1674 = vld [vmem:[%s1673] sm:$0xf]
        %v1675 = vld [vmem:[%s1673 + $0x4] sm:$0xf]
        %v1676 = vld [vmem:[%s1673 + $0x8] sm:$0xf]
        %v1677 = vld [vmem:[%s1673 + $0xc] sm:$0xf]
        %v1678 = vld [vmem:[%s1673 + $0x10] sm:$0xf]
        %v1679 = vld [vmem:[%s1673 + $0x14] sm:$0xf]
        %v1680 = vld [vmem:[%s1673 + $0x18] sm:$0xf]
        %v1681 = vld [vmem:[%s1673 + $0x1c] sm:$0xf]
        %v1682 = vld [vmem:[#allocation3 + $0x8] sm:$0xff]
        %v1683 = vpack.c.bf16 %v1682, %v1682
        %s1684 = scalar_lea.vmem [#allocation6], 224
        %v1685 = vld [vmem:[%s1684] sm:$0xf]
        %v1686 = vld [vmem:[%s1684 + $0x4] sm:$0xf]
        %v1687 = vld [vmem:[%s1684 + $0x8] sm:$0xf]
        %v1688 = vld [vmem:[%s1684 + $0xc] sm:$0xf]
        %v1689 = vld [vmem:[%s1684 + $0x10] sm:$0xf]
        %v1690 = vld [vmem:[%s1684 + $0x14] sm:$0xf]
        %v1691 = vld [vmem:[%s1684 + $0x18] sm:$0xf]
        %v1692 = vld [vmem:[%s1684 + $0x1c] sm:$0xf]
        %v1701 = vunpack.c.l.b16 %v1685
        %v1702 = vunpack.c.l.b16 %v1686
        %v1703 = vunpack.c.l.b16 %v1687
        %v1704 = vunpack.c.l.b16 %v1688
        %v1705 = vunpack.c.l.b16 %v1689
        %v1706 = vunpack.c.l.b16 %v1690
        %v1707 = vunpack.c.l.b16 %v1691
        %v1708 = vunpack.c.l.b16 %v1692
        %v1709 = vpack.c.b16 %v1702, %v1701
        %v1710 = vpack.c.b16 %v1704, %v1703
        %v1711 = vpack.c.b16 %v1706, %v1705
        %v1712 = vpack.c.b16 %v1708, %v1707
        %v1718 = vsel %vm538, %v1683, 0
        %1720 = vmatprep.subr.bf16.mxu0 0
        %1721 = vmatpush1.bf16.msra.mxu0 %v1709
        %1722 = vmatprep.subr.bf16.mxu0 0
        %1723 = vmatpush1.bf16.msra.mxu0 %v1710
        %1724 = vmatprep.subr.bf16.mxu0 0
        %1725 = vmatpush1.bf16.msra.mxu0 %v1711
        %1726 = vmatprep.subr.bf16.mxu0 0
        %1727 = vmatpush1.bf16.msra.mxu0 %v1712
        %1728 = vmatprep.subr.bf16.mxu0 0
        %1729 = vmatpush1.bf16.msra.mxu0 0
        %1730 = vmatprep.subr.bf16.mxu0 0
        %1731 = vmatpush1.bf16.msra.mxu0 0
        %1732 = vmatprep.subr.bf16.mxu0 0
        %1733 = vmatpush1.bf16.msra.mxu0 0
        %1734 = vmatprep.subr.bf16.mxu0 0
        %1735 = vmatpush1.bf16.msra.mxu0 0
        %1736 = vmatprep.subr.bf16.mxu0 0
        %1737 = vmatpush1.bf16.msra.mxu0 0
        %1738 = vmatprep.subr.bf16.mxu0 0
        %1739 = vmatpush1.bf16.msra.mxu0 0
        %1740 = vmatprep.subr.bf16.mxu0 0
        %1741 = vmatpush1.bf16.msra.mxu0 0
        %1742 = vmatprep.subr.bf16.mxu0 0
        %1743 = vmatpush1.bf16.msra.mxu0 0
        %1744 = vmatprep.subr.bf16.mxu0 0
        %1745 = vmatpush1.bf16.msra.mxu0 0
        %1746 = vmatprep.subr.bf16.mxu0 0
        %1747 = vmatpush1.bf16.msra.mxu0 0
        %1748 = vmatprep.subr.bf16.mxu0 0
        %1749 = vmatpush1.bf16.msra.mxu0 0
        %1750 = vmatprep.subr.bf16.mxu0 0
        %1751 = vmatpush1.bf16.msra.mxu0 0
        %1752 = vmatprep.mubr.bf16.mxu0 0
        %1753 = vmatmul.mubr.bf16.gmra.mrb[0].mxu0 %v1718
        %v1754 = vpop.f32.mrb[0].mxu0
        %v1755 = vadd.f32 0.0, %v1754
        %v1756 = vpop.f32.mrb[0].mxu0
        %v1757 = vpop.f32.mrb[0].mxu0
        %v1758 = vpop.f32.mrb[0].mxu0
        %1759 = vdwg.mxu0
        %v1760 = vld [vmem:[#allocation3 + $0x9] sm:$0xff]
        %v1761 = vpack.c.bf16 %v1760, %v1760
        %s1762 = scalar_lea.vmem [#allocation6], 256
        %v1763 = vld [vmem:[%s1762] sm:$0xf]
        %v1764 = vld [vmem:[%s1762 + $0x4] sm:$0xf]
        %v1765 = vld [vmem:[%s1762 + $0x8] sm:$0xf]
        %v1766 = vld [vmem:[%s1762 + $0xc] sm:$0xf]
        %v1767 = vld [vmem:[%s1762 + $0x10] sm:$0xf]
        %v1768 = vld [vmem:[%s1762 + $0x14] sm:$0xf]
        %v1769 = vld [vmem:[%s1762 + $0x18] sm:$0xf]
        %v1770 = vld [vmem:[%s1762 + $0x1c] sm:$0xf]
        %v1779 = vunpack.c.l.b16 %v1763
        %v1780 = vunpack.c.l.b16 %v1764
        %v1781 = vunpack.c.l.b16 %v1765
        %v1782 = vunpack.c.l.b16 %v1766
        %v1783 = vunpack.c.l.b16 %v1767
        %v1784 = vunpack.c.l.b16 %v1768
        %v1785 = vunpack.c.l.b16 %v1769
        %v1786 = vunpack.c.l.b16 %v1770
        %v1787 = vpack.c.b16 %v1780, %v1779
        %v1788 = vpack.c.b16 %v1782, %v1781
        %v1789 = vpack.c.b16 %v1784, %v1783
        %v1790 = vpack.c.b16 %v1786, %v1785
        %v1796 = vsel %vm538, %v1761, 0
        %1798 = vmatprep.subr.bf16.mxu0 0
        %1799 = vmatpush1.bf16.msra.mxu0 %v1787
        %1800 = vmatprep.subr.bf16.mxu0 0
        %1801 = vmatpush1.bf16.msra.mxu0 %v1788
        %1802 = vmatprep.subr.bf16.mxu0 0
        %1803 = vmatpush1.bf16.msra.mxu0 %v1789
        %1804 = vmatprep.subr.bf16.mxu0 0
        %1805 = vmatpush1.bf16.msra.mxu0 %v1790
        %1806 = vmatprep.subr.bf16.mxu0 0
        %1807 = vmatpush1.bf16.msra.mxu0 0
        %1808 = vmatprep.subr.bf16.mxu0 0
        %1809 = vmatpush1.bf16.msra.mxu0 0
        %1810 = vmatprep.subr.bf16.mxu0 0
        %1811 = vmatpush1.bf16.msra.mxu0 0
        %1812 = vmatprep.subr.bf16.mxu0 0
        %1813 = vmatpush1.bf16.msra.mxu0 0
        %1814 = vmatprep.subr.bf16.mxu0 0
        %1815 = vmatpush1.bf16.msra.mxu0 0
        %1816 = vmatprep.subr.bf16.mxu0 0
        %1817 = vmatpush1.bf16.msra.mxu0 0
        %1818 = vmatprep.subr.bf16.mxu0 0
        %1819 = vmatpush1.bf16.msra.mxu0 0
        %1820 = vmatprep.subr.bf16.mxu0 0
        %1821 = vmatpush1.bf16.msra.mxu0 0
        %1822 = vmatprep.subr.bf16.mxu0 0
        %1823 = vmatpush1.bf16.msra.mxu0 0
        %1824 = vmatprep.subr.bf16.mxu0 0
        %1825 = vmatpush1.bf16.msra.mxu0 0
        %1826 = vmatprep.subr.bf16.mxu0 0
        %1827 = vmatpush1.bf16.msra.mxu0 0
        %1828 = vmatprep.subr.bf16.mxu0 0
        %1829 = vmatpush1.bf16.msra.mxu0 0
        %1830 = vmatprep.mubr.bf16.mxu0 0
        %1831 = vmatmul.mubr.bf16.gmra.mrb[0].mxu0 %v1796
        %v1832 = vpop.f32.mrb[0].mxu0
        %v1833 = vadd.f32 0.0, %v1832
        %v1834 = vpop.f32.mrb[0].mxu0
        %v1835 = vpop.f32.mrb[0].mxu0
        %v1836 = vpop.f32.mrb[0].mxu0
        %1837 = vdwg.mxu0
        %v1846 = vunpack.c.l.b16 %v1674
        %v1847 = vunpack.c.l.b16 %v1675
        %v1848 = vunpack.c.l.b16 %v1676
        %v1849 = vunpack.c.l.b16 %v1677
        %v1850 = vunpack.c.l.b16 %v1678
        %v1851 = vunpack.c.l.b16 %v1679
        %v1852 = vunpack.c.l.b16 %v1680
        %v1853 = vunpack.c.l.b16 %v1681
        %v1854 = vpack.c.b16 %v1847, %v1846
        %v1855 = vpack.c.b16 %v1849, %v1848
        %v1856 = vpack.c.b16 %v1851, %v1850
        %v1857 = vpack.c.b16 %v1853, %v1852
        %v1863 = vsel %vm538, %v1672, 0
        %1865 = vmatprep.subr.bf16.mxu0 0
        %1866 = vmatpush1.bf16.msra.mxu0 %v1854
        %1867 = vmatprep.subr.bf16.mxu0 0
        %1868 = vmatpush1.bf16.msra.mxu0 %v1855
        %1869 = vmatprep.subr.bf16.mxu0 0
        %1870 = vmatpush1.bf16.msra.mxu0 %v1856
        %1871 = vmatprep.subr.bf16.mxu0 0
        %1872 = vmatpush1.bf16.msra.mxu0 %v1857
        %1873 = vmatprep.subr.bf16.mxu0 0
        %1874 = vmatpush1.bf16.msra.mxu0 0
        %1875 = vmatprep.subr.bf16.mxu0 0
        %1876 = vmatpush1.bf16.msra.mxu0 0
        %1877 = vmatprep.subr.bf16.mxu0 0
        %1878 = vmatpush1.bf16.msra.mxu0 0
        %1879 = vmatprep.subr.bf16.mxu0 0
        %1880 = vmatpush1.bf16.msra.mxu0 0
        %1881 = vmatprep.subr.bf16.mxu0 0
        %1882 = vmatpush1.bf16.msra.mxu0 0
        %1883 = vmatprep.subr.bf16.mxu0 0
        %1884 = vmatpush1.bf16.msra.mxu0 0
        %1885 = vmatprep.subr.bf16.mxu0 0
        %1886 = vmatpush1.bf16.msra.mxu0 0
        %1887 = vmatprep.subr.bf16.mxu0 0
        %1888 = vmatpush1.bf16.msra.mxu0 0
        %1889 = vmatprep.subr.bf16.mxu0 0
        %1890 = vmatpush1.bf16.msra.mxu0 0
        %1891 = vmatprep.subr.bf16.mxu0 0
        %1892 = vmatpush1.bf16.msra.mxu0 0
        %1893 = vmatprep.subr.bf16.mxu0 0
        %1894 = vmatpush1.bf16.msra.mxu0 0
        %1895 = vmatprep.subr.bf16.mxu0 0
        %1896 = vmatpush1.bf16.msra.mxu0 0
        %1897 = vmatprep.mubr.bf16.mxu0 0
        %1898 = vmatmul.mubr.bf16.gmra.mrb[0].mxu0 %v1863
        %v1899 = vpop.f32.mrb[0].mxu0
        %v1900 = vadd.f32 %v1755, %v1899
        %v1901 = vpop.f32.mrb[0].mxu0
        %v1902 = vpop.f32.mrb[0].mxu0
        %v1903 = vpop.f32.mrb[0].mxu0
        %1904 = vdwg.mxu0
        %v1905 = vadd.f32 %v1900, %v1833
        %vm1906 = vcmp.gt.f32.partialorder %v1905, 0.0
        %v1907 = vmin.f32 %v1905, 0.0
        %v1908 = vmul.f32 %v1907, 1.442695
        %v1909 = vpow.pop %v1908
        %v1910 = vsub.f32 %v1909, 1.0
        %v1911 = vsel %vm1906, %v1905, %v1910
        %1912 = vst.msk [vmem:[#allocation3 + $0x8] sm:$0xff] %vm538, %v1911
        %v1913 = vld [vmem:[#allocation3 + $0x7] sm:$0xff]
        %v1914 = vpack.c.bf16 %v1913, %v1913
        %s1915 = scalar_lea.vmem [#allocation6], 288
        %v1916 = vld [vmem:[%s1915] sm:$0xf]
        %v1917 = vld [vmem:[%s1915 + $0x4] sm:$0xf]
        %v1918 = vld [vmem:[%s1915 + $0x8] sm:$0xf]
        %v1919 = vld [vmem:[%s1915 + $0xc] sm:$0xf]
        %v1920 = vld [vmem:[%s1915 + $0x10] sm:$0xf]
        %v1921 = vld [vmem:[%s1915 + $0x14] sm:$0xf]
        %v1922 = vld [vmem:[%s1915 + $0x18] sm:$0xf]
        %v1923 = vld [vmem:[%s1915 + $0x1c] sm:$0xf]
        %v1924 = vld [vmem:[#allocation3 + $0x8] sm:$0xff]
        %v1925 = vpack.c.bf16 %v1924, %v1924
        %s1926 = scalar_lea.vmem [#allocation6], 320
        %v1927 = vld [vmem:[%s1926] sm:$0xf]
        %v1928 = vld [vmem:[%s1926 + $0x4] sm:$0xf]
        %v1929 = vld [vmem:[%s1926 + $0x8] sm:$0xf]
        %v1930 = vld [vmem:[%s1926 + $0xc] sm:$0xf]
        %v1931 = vld [vmem:[%s1926 + $0x10] sm:$0xf]
        %v1932 = vld [vmem:[%s1926 + $0x14] sm:$0xf]
        %v1933 = vld [vmem:[%s1926 + $0x18] sm:$0xf]
        %v1934 = vld [vmem:[%s1926 + $0x1c] sm:$0xf]
        %v1943 = vunpack.c.l.b16 %v1927
        %v1944 = vunpack.c.l.b16 %v1928
        %v1945 = vunpack.c.l.b16 %v1929
        %v1946 = vunpack.c.l.b16 %v1930
        %v1947 = vunpack.c.l.b16 %v1931
        %v1948 = vunpack.c.l.b16 %v1932
        %v1949 = vunpack.c.l.b16 %v1933
        %v1950 = vunpack.c.l.b16 %v1934
        %v1951 = vpack.c.b16 %v1944, %v1943
        %v1952 = vpack.c.b16 %v1946, %v1945
        %v1953 = vpack.c.b16 %v1948, %v1947
        %v1954 = vpack.c.b16 %v1950, %v1949
        %v1960 = vsel %vm538, %v1925, 0
        %1962 = vmatprep.subr.bf16.mxu0 0
        %1963 = vmatpush1.bf16.msra.mxu0 %v1951
        %1964 = vmatprep.subr.bf16.mxu0 0
        %1965 = vmatpush1.bf16.msra.mxu0 %v1952
        %1966 = vmatprep.subr.bf16.mxu0 0
        %1967 = vmatpush1.bf16.msra.mxu0 %v1953
        %1968 = vmatprep.subr.bf16.mxu0 0
        %1969 = vmatpush1.bf16.msra.mxu0 %v1954
        %1970 = vmatprep.subr.bf16.mxu0 0
        %1971 = vmatpush1.bf16.msra.mxu0 0
        %1972 = vmatprep.subr.bf16.mxu0 0
        %1973 = vmatpush1.bf16.msra.mxu0 0
        %1974 = vmatprep.subr.bf16.mxu0 0
        %1975 = vmatpush1.bf16.msra.mxu0 0
        %1976 = vmatprep.subr.bf16.mxu0 0
        %1977 = vmatpush1.bf16.msra.mxu0 0
        %1978 = vmatprep.subr.bf16.mxu0 0
        %1979 = vmatpush1.bf16.msra.mxu0 0
        %1980 = vmatprep.subr.bf16.mxu0 0
        %1981 = vmatpush1.bf16.msra.mxu0 0
        %1982 = vmatprep.subr.bf16.mxu0 0
        %1983 = vmatpush1.bf16.msra.mxu0 0
        %1984 = vmatprep.subr.bf16.mxu0 0
        %1985 = vmatpush1.bf16.msra.mxu0 0
        %1986 = vmatprep.subr.bf16.mxu0 0
        %1987 = vmatpush1.bf16.msra.mxu0 0
        %1988 = vmatprep.subr.bf16.mxu0 0
        %1989 = vmatpush1.bf16.msra.mxu0 0
        %1990 = vmatprep.subr.bf16.mxu0 0
        %1991 = vmatpush1.bf16.msra.mxu0 0
        %1992 = vmatprep.subr.bf16.mxu0 0
        %1993 = vmatpush1.bf16.msra.mxu0 0
        %1994 = vmatprep.mubr.bf16.mxu0 0
        %1995 = vmatmul.mubr.bf16.gmra.mrb[0].mxu0 %v1960
        %v1996 = vpop.f32.mrb[0].mxu0
        %v1997 = vadd.f32 0.0, %v1996
        %v1998 = vpop.f32.mrb[0].mxu0
        %v1999 = vpop.f32.mrb[0].mxu0
        %v2000 = vpop.f32.mrb[0].mxu0
        %2001 = vdwg.mxu0
        %v2002 = vld [vmem:[#allocation3 + $0x9] sm:$0xff]
        %v2003 = vpack.c.bf16 %v2002, %v2002
        %s2004 = scalar_lea.vmem [#allocation6], 352
        %v2005 = vld [vmem:[%s2004] sm:$0xf]
        %v2006 = vld [vmem:[%s2004 + $0x4] sm:$0xf]
        %v2007 = vld [vmem:[%s2004 + $0x8] sm:$0xf]
        %v2008 = vld [vmem:[%s2004 + $0xc] sm:$0xf]
        %v2009 = vld [vmem:[%s2004 + $0x10] sm:$0xf]
        %v2010 = vld [vmem:[%s2004 + $0x14] sm:$0xf]
        %v2011 = vld [vmem:[%s2004 + $0x18] sm:$0xf]
        %v2012 = vld [vmem:[%s2004 + $0x1c] sm:$0xf]
        %v2021 = vunpack.c.l.b16 %v2005
        %v2022 = vunpack.c.l.b16 %v2006
        %v2023 = vunpack.c.l.b16 %v2007
        %v2024 = vunpack.c.l.b16 %v2008
        %v2025 = vunpack.c.l.b16 %v2009
        %v2026 = vunpack.c.l.b16 %v2010
        %v2027 = vunpack.c.l.b16 %v2011
        %v2028 = vunpack.c.l.b16 %v2012
        %v2029 = vpack.c.b16 %v2022, %v2021
        %v2030 = vpack.c.b16 %v2024, %v2023
        %v2031 = vpack.c.b16 %v2026, %v2025
        %v2032 = vpack.c.b16 %v2028, %v2027
        %v2038 = vsel %vm538, %v2003, 0
        %2040 = vmatprep.subr.bf16.mxu0 0
        %2041 = vmatpush1.bf16.msra.mxu0 %v2029
        %2042 = vmatprep.subr.bf16.mxu0 0
        %2043 = vmatpush1.bf16.msra.mxu0 %v2030
        %2044 = vmatprep.subr.bf16.mxu0 0
        %2045 = vmatpush1.bf16.msra.mxu0 %v2031
        %2046 = vmatprep.subr.bf16.mxu0 0
        %2047 = vmatpush1.bf16.msra.mxu0 %v2032
        %2048 = vmatprep.subr.bf16.mxu0 0
        %2049 = vmatpush1.bf16.msra.mxu0 0
        %2050 = vmatprep.subr.bf16.mxu0 0
        %2051 = vmatpush1.bf16.msra.mxu0 0
        %2052 = vmatprep.subr.bf16.mxu0 0
        %2053 = vmatpush1.bf16.msra.mxu0 0
        %2054 = vmatprep.subr.bf16.mxu0 0
        %2055 = vmatpush1.bf16.msra.mxu0 0
        %2056 = vmatprep.subr.bf16.mxu0 0
        %2057 = vmatpush1.bf16.msra.mxu0 0
        %2058 = vmatprep.subr.bf16.mxu0 0
        %2059 = vmatpush1.bf16.msra.mxu0 0
        %2060 = vmatprep.subr.bf16.mxu0 0
        %2061 = vmatpush1.bf16.msra.mxu0 0
        %2062 = vmatprep.subr.bf16.mxu0 0
        %2063 = vmatpush1.bf16.msra.mxu0 0
        %2064 = vmatprep.subr.bf16.mxu0 0
        %2065 = vmatpush1.bf16.msra.mxu0 0
        %2066 = vmatprep.subr.bf16.mxu0 0
        %2067 = vmatpush1.bf16.msra.mxu0 0
        %2068 = vmatprep.subr.bf16.mxu0 0
        %2069 = vmatpush1.bf16.msra.mxu0 0
        %2070 = vmatprep.subr.bf16.mxu0 0
        %2071 = vmatpush1.bf16.msra.mxu0 0
        %2072 = vmatprep.mubr.bf16.mxu0 0
        %2073 = vmatmul.mubr.bf16.gmra.mrb[0].mxu0 %v2038
        %v2074 = vpop.f32.mrb[0].mxu0
        %v2075 = vadd.f32 0.0, %v2074
        %v2076 = vpop.f32.mrb[0].mxu0
        %v2077 = vpop.f32.mrb[0].mxu0
        %v2078 = vpop.f32.mrb[0].mxu0
        %2079 = vdwg.mxu0
        %v2088 = vunpack.c.l.b16 %v1916
        %v2089 = vunpack.c.l.b16 %v1917
        %v2090 = vunpack.c.l.b16 %v1918
        %v2091 = vunpack.c.l.b16 %v1919
        %v2092 = vunpack.c.l.b16 %v1920
        %v2093 = vunpack.c.l.b16 %v1921
        %v2094 = vunpack.c.l.b16 %v1922
        %v2095 = vunpack.c.l.b16 %v1923
        %v2096 = vpack.c.b16 %v2089, %v2088
        %v2097 = vpack.c.b16 %v2091, %v2090
        %v2098 = vpack.c.b16 %v2093, %v2092
        %v2099 = vpack.c.b16 %v2095, %v2094
        %v2105 = vsel %vm538, %v1914, 0
        %2107 = vmatprep.subr.bf16.mxu0 0
        %2108 = vmatpush1.bf16.msra.mxu0 %v2096
        %2109 = vmatprep.subr.bf16.mxu0 0
        %2110 = vmatpush1.bf16.msra.mxu0 %v2097
        %2111 = vmatprep.subr.bf16.mxu0 0
        %2112 = vmatpush1.bf16.msra.mxu0 %v2098
        %2113 = vmatprep.subr.bf16.mxu0 0
        %2114 = vmatpush1.bf16.msra.mxu0 %v2099
        %2115 = vmatprep.subr.bf16.mxu0 0
        %2116 = vmatpush1.bf16.msra.mxu0 0
        %2117 = vmatprep.subr.bf16.mxu0 0
        %2118 = vmatpush1.bf16.msra.mxu0 0
        %2119 = vmatprep.subr.bf16.mxu0 0
        %2120 = vmatpush1.bf16.msra.mxu0 0
        %2121 = vmatprep.subr.bf16.mxu0 0
        %2122 = vmatpush1.bf16.msra.mxu0 0
        %2123 = vmatprep.subr.bf16.mxu0 0
        %2124 = vmatpush1.bf16.msra.mxu0 0
        %2125 = vmatprep.subr.bf16.mxu0 0
        %2126 = vmatpush1.bf16.msra.mxu0 0
        %2127 = vmatprep.subr.bf16.mxu0 0
        %2128 = vmatpush1.bf16.msra.mxu0 0
        %2129 = vmatprep.subr.bf16.mxu0 0
        %2130 = vmatpush1.bf16.msra.mxu0 0
        %2131 = vmatprep.subr.bf16.mxu0 0
        %2132 = vmatpush1.bf16.msra.mxu0 0
        %2133 = vmatprep.subr.bf16.mxu0 0
        %2134 = vmatpush1.bf16.msra.mxu0 0
        %2135 = vmatprep.subr.bf16.mxu0 0
        %2136 = vmatpush1.bf16.msra.mxu0 0
        %2137 = vmatprep.subr.bf16.mxu0 0
        %2138 = vmatpush1.bf16.msra.mxu0 0
        %2139 = vmatprep.mubr.bf16.mxu0 0
        %2140 = vmatmul.mubr.bf16.gmra.mrb[0].mxu0 %v2105
        %v2141 = vpop.f32.mrb[0].mxu0
        %v2142 = vadd.f32 %v1997, %v2141
        %v2143 = vpop.f32.mrb[0].mxu0
        %v2144 = vpop.f32.mrb[0].mxu0
        %v2145 = vpop.f32.mrb[0].mxu0
        %2146 = vdwg.mxu0
        %v2147 = vadd.f32 %v2142, %v2075
        %s2148 = scalar_lea.vmem [#allocation8], 2
        %v2149 = vld [vmem:[%s2148] sm:$0x1]
        %v2151 = vlaneseq
        %v2152 = vshrl.u32 %v2151, 7
        %v2153 = vsub.s32 0, %v2152
        %v2154 = vrot.slane %v2149, %v2153
        %v2156 = vadd.f32 %v2147, %v2154
        %v2157 = vpack.c.bf16 %v1659, %v1659
        %v2158 = vld [vmem:[%s9] sm:$0xf]
        %v2159 = vld [vmem:[%s9 + $0x4] sm:$0xf]
        %v2160 = vld [vmem:[%s9 + $0x8] sm:$0xf]
        %v2161 = vld [vmem:[%s9 + $0xc] sm:$0xf]
        %v2162 = vld [vmem:[%s9 + $0x10] sm:$0xf]
        %v2163 = vld [vmem:[%s9 + $0x14] sm:$0xf]
        %v2164 = vld [vmem:[%s9 + $0x18] sm:$0xf]
        %v2165 = vld [vmem:[%s9 + $0x1c] sm:$0xf]
        %s2166 = scalar_lea.vmem [#allocation8], 3
        %v2167 = vld [vmem:[%s2166] sm:$0x1]
        %v2169 = vlaneseq
        %v2170 = vshrl.u32 %v2169, 7
        %v2171 = vsub.s32 0, %v2170
        %v2172 = vrot.slane %v2167, %v2171
        %v2182 = vunpack.c.l.b16 %v2158
        %v2183 = vunpack.c.l.b16 %v2159
        %v2184 = vunpack.c.l.b16 %v2160
        %v2185 = vunpack.c.l.b16 %v2161
        %v2186 = vunpack.c.l.b16 %v2162
        %v2187 = vunpack.c.l.b16 %v2163
        %v2188 = vunpack.c.l.b16 %v2164
        %v2189 = vunpack.c.l.b16 %v2165
        %v2190 = vpack.c.b16 %v2183, %v2182
        %v2191 = vpack.c.b16 %v2185, %v2184
        %v2192 = vpack.c.b16 %v2187, %v2186
        %v2193 = vpack.c.b16 %v2189, %v2188
        %v2199 = vsel %vm538, %v2157, 0
        %2201 = vmatprep.subr.bf16.mxu0 0
        %2202 = vmatpush1.bf16.msra.mxu0 %v2190
        %2203 = vmatprep.subr.bf16.mxu0 0
        %2204 = vmatpush1.bf16.msra.mxu0 %v2191
        %2205 = vmatprep.subr.bf16.mxu0 0
        %2206 = vmatpush1.bf16.msra.mxu0 %v2192
        %2207 = vmatprep.subr.bf16.mxu0 0
        %2208 = vmatpush1.bf16.msra.mxu0 %v2193
        %2209 = vmatprep.subr.bf16.mxu0 0
        %2210 = vmatpush1.bf16.msra.mxu0 0
        %2211 = vmatprep.subr.bf16.mxu0 0
        %2212 = vmatpush1.bf16.msra.mxu0 0
        %2213 = vmatprep.subr.bf16.mxu0 0
        %2214 = vmatpush1.bf16.msra.mxu0 0
        %2215 = vmatprep.subr.bf16.mxu0 0
        %2216 = vmatpush1.bf16.msra.mxu0 0
        %2217 = vmatprep.subr.bf16.mxu0 0
        %2218 = vmatpush1.bf16.msra.mxu0 0
        %2219 = vmatprep.subr.bf16.mxu0 0
        %2220 = vmatpush1.bf16.msra.mxu0 0
        %2221 = vmatprep.subr.bf16.mxu0 0
        %2222 = vmatpush1.bf16.msra.mxu0 0
        %2223 = vmatprep.subr.bf16.mxu0 0
        %2224 = vmatpush1.bf16.msra.mxu0 0
        %2225 = vmatprep.subr.bf16.mxu0 0
        %2226 = vmatpush1.bf16.msra.mxu0 0
        %2227 = vmatprep.subr.bf16.mxu0 0
        %2228 = vmatpush1.bf16.msra.mxu0 0
        %2229 = vmatprep.subr.bf16.mxu0 0
        %2230 = vmatpush1.bf16.msra.mxu0 0
        %2231 = vmatprep.subr.bf16.mxu0 0
        %2232 = vmatpush1.bf16.msra.mxu0 0
        %2233 = vmatprep.mubr.bf16.mxu0 0
        %2234 = vmatmul.mubr.bf16.gmra.mrb[0].mxu0 %v2199
        %v2235 = vpop.f32.mrb[0].mxu0
        %v2236 = vadd.f32 %v2172, %v2235
        %v2237 = vpop.f32.mrb[0].mxu0
        %v2238 = vpop.f32.mrb[0].mxu0
        %v2239 = vpop.f32.mrb[0].mxu0
        %2240 = vdwg.mxu0
        %v2241 = vadd.f32 %v2156, %v2236
        %vm2242 = vcmp.gt.f32.partialorder %v2241, 0.0
        %v2243 = vmin.f32 %v2241, 0.0
        %v2244 = vmul.f32 %v2243, 1.442695
        %v2245 = vpow.pop %v2244
        %v2246 = vsub.f32 %v2245, 1.0
        %v2247 = vsel %vm2242, %v2241, %v2246
        %2248 = vst.msk [vmem:[#allocation3 + $0x8] sm:$0xff] %vm538, %v2247
        %v2249 = vld [vmem:[#allocation3 + $0x7] sm:$0xff]
        %v2250 = vpack.c.bf16 %v2249, %v2249
        %s2251 = scalar_lea.vmem [#allocation6], 384
        %v2252 = vld [vmem:[%s2251] sm:$0xf]
        %v2253 = vld [vmem:[%s2251 + $0x4] sm:$0xf]
        %v2254 = vld [vmem:[%s2251 + $0x8] sm:$0xf]
        %v2255 = vld [vmem:[%s2251 + $0xc] sm:$0xf]
        %v2256 = vld [vmem:[%s2251 + $0x10] sm:$0xf]
        %v2257 = vld [vmem:[%s2251 + $0x14] sm:$0xf]
        %v2258 = vld [vmem:[%s2251 + $0x18] sm:$0xf]
        %v2259 = vld [vmem:[%s2251 + $0x1c] sm:$0xf]
        %v2260 = vld [vmem:[#allocation3 + $0x8] sm:$0xff]
        %v2261 = vpack.c.bf16 %v2260, %v2260
        %s2262 = scalar_lea.vmem [#allocation6], 416
        %v2263 = vld [vmem:[%s2262] sm:$0xf]
        %v2264 = vld [vmem:[%s2262 + $0x4] sm:$0xf]
        %v2265 = vld [vmem:[%s2262 + $0x8] sm:$0xf]
        %v2266 = vld [vmem:[%s2262 + $0xc] sm:$0xf]
        %v2267 = vld [vmem:[%s2262 + $0x10] sm:$0xf]
        %v2268 = vld [vmem:[%s2262 + $0x14] sm:$0xf]
        %v2269 = vld [vmem:[%s2262 + $0x18] sm:$0xf]
        %v2270 = vld [vmem:[%s2262 + $0x1c] sm:$0xf]
        %v2279 = vunpack.c.l.b16 %v2263
        %v2280 = vunpack.c.l.b16 %v2264
        %v2281 = vunpack.c.l.b16 %v2265
        %v2282 = vunpack.c.l.b16 %v2266
        %v2283 = vunpack.c.l.b16 %v2267
        %v2284 = vunpack.c.l.b16 %v2268
        %v2285 = vunpack.c.l.b16 %v2269
        %v2286 = vunpack.c.l.b16 %v2270
        %v2287 = vpack.c.b16 %v2280, %v2279
        %v2288 = vpack.c.b16 %v2282, %v2281
        %v2289 = vpack.c.b16 %v2284, %v2283
        %v2290 = vpack.c.b16 %v2286, %v2285
        %v2296 = vsel %vm538, %v2261, 0
        %2298 = vmatprep.subr.bf16.mxu0 0
        %2299 = vmatpush1.bf16.msra.mxu0 %v2287
        %2300 = vmatprep.subr.bf16.mxu0 0
        %2301 = vmatpush1.bf16.msra.mxu0 %v2288
        %2302 = vmatprep.subr.bf16.mxu0 0
        %2303 = vmatpush1.bf16.msra.mxu0 %v2289
        %2304 = vmatprep.subr.bf16.mxu0 0
        %2305 = vmatpush1.bf16.msra.mxu0 %v2290
        %2306 = vmatprep.subr.bf16.mxu0 0
        %2307 = vmatpush1.bf16.msra.mxu0 0
        %2308 = vmatprep.subr.bf16.mxu0 0
        %2309 = vmatpush1.bf16.msra.mxu0 0
        %2310 = vmatprep.subr.bf16.mxu0 0
        %2311 = vmatpush1.bf16.msra.mxu0 0
        %2312 = vmatprep.subr.bf16.mxu0 0
        %2313 = vmatpush1.bf16.msra.mxu0 0
        %2314 = vmatprep.subr.bf16.mxu0 0
        %2315 = vmatpush1.bf16.msra.mxu0 0
        %2316 = vmatprep.subr.bf16.mxu0 0
        %2317 = vmatpush1.bf16.msra.mxu0 0
        %2318 = vmatprep.subr.bf16.mxu0 0
        %2319 = vmatpush1.bf16.msra.mxu0 0
        %2320 = vmatprep.subr.bf16.mxu0 0
        %2321 = vmatpush1.bf16.msra.mxu0 0
        %2322 = vmatprep.subr.bf16.mxu0 0
        %2323 = vmatpush1.bf16.msra.mxu0 0
        %2324 = vmatprep.subr.bf16.mxu0 0
        %2325 = vmatpush1.bf16.msra.mxu0 0
        %2326 = vmatprep.subr.bf16.mxu0 0
        %2327 = vmatpush1.bf16.msra.mxu0 0
        %2328 = vmatprep.subr.bf16.mxu0 0
        %2329 = vmatpush1.bf16.msra.mxu0 0
        %2330 = vmatprep.mubr.bf16.mxu0 0
        %2331 = vmatmul.mubr.bf16.gmra.mrb[0].mxu0 %v2296
        %v2332 = vpop.f32.mrb[0].mxu0
        %v2333 = vadd.f32 0.0, %v2332
        %v2334 = vpop.f32.mrb[0].mxu0
        %v2335 = vpop.f32.mrb[0].mxu0
        %v2336 = vpop.f32.mrb[0].mxu0
        %2337 = vdwg.mxu0
        %v2338 = vld [vmem:[#allocation3 + $0x9] sm:$0xff]
        %v2339 = vpack.c.bf16 %v2338, %v2338
        %s2340 = scalar_lea.vmem [#allocation6], 448
        %v2341 = vld [vmem:[%s2340] sm:$0xf]
        %v2342 = vld [vmem:[%s2340 + $0x4] sm:$0xf]
        %v2343 = vld [vmem:[%s2340 + $0x8] sm:$0xf]
        %v2344 = vld [vmem:[%s2340 + $0xc] sm:$0xf]
        %v2345 = vld [vmem:[%s2340 + $0x10] sm:$0xf]
        %v2346 = vld [vmem:[%s2340 + $0x14] sm:$0xf]
        %v2347 = vld [vmem:[%s2340 + $0x18] sm:$0xf]
        %v2348 = vld [vmem:[%s2340 + $0x1c] sm:$0xf]
        %v2357 = vunpack.c.l.b16 %v2341
        %v2358 = vunpack.c.l.b16 %v2342
        %v2359 = vunpack.c.l.b16 %v2343
        %v2360 = vunpack.c.l.b16 %v2344
        %v2361 = vunpack.c.l.b16 %v2345
        %v2362 = vunpack.c.l.b16 %v2346
        %v2363 = vunpack.c.l.b16 %v2347
        %v2364 = vunpack.c.l.b16 %v2348
        %v2365 = vpack.c.b16 %v2358, %v2357
        %v2366 = vpack.c.b16 %v2360, %v2359
        %v2367 = vpack.c.b16 %v2362, %v2361
        %v2368 = vpack.c.b16 %v2364, %v2363
        %v2374 = vsel %vm538, %v2339, 0
        %2376 = vmatprep.subr.bf16.mxu0 0
        %2377 = vmatpush1.bf16.msra.mxu0 %v2365
        %2378 = vmatprep.subr.bf16.mxu0 0
        %2379 = vmatpush1.bf16.msra.mxu0 %v2366
        %2380 = vmatprep.subr.bf16.mxu0 0
        %2381 = vmatpush1.bf16.msra.mxu0 %v2367
        %2382 = vmatprep.subr.bf16.mxu0 0
        %2383 = vmatpush1.bf16.msra.mxu0 %v2368
        %2384 = vmatprep.subr.bf16.mxu0 0
        %2385 = vmatpush1.bf16.msra.mxu0 0
        %2386 = vmatprep.subr.bf16.mxu0 0
        %2387 = vmatpush1.bf16.msra.mxu0 0
        %2388 = vmatprep.subr.bf16.mxu0 0
        %2389 = vmatpush1.bf16.msra.mxu0 0
        %2390 = vmatprep.subr.bf16.mxu0 0
        %2391 = vmatpush1.bf16.msra.mxu0 0
        %2392 = vmatprep.subr.bf16.mxu0 0
        %2393 = vmatpush1.bf16.msra.mxu0 0
        %2394 = vmatprep.subr.bf16.mxu0 0
        %2395 = vmatpush1.bf16.msra.mxu0 0
        %2396 = vmatprep.subr.bf16.mxu0 0
        %2397 = vmatpush1.bf16.msra.mxu0 0
        %2398 = vmatprep.subr.bf16.mxu0 0
        %2399 = vmatpush1.bf16.msra.mxu0 0
        %2400 = vmatprep.subr.bf16.mxu0 0
        %2401 = vmatpush1.bf16.msra.mxu0 0
        %2402 = vmatprep.subr.bf16.mxu0 0
        %2403 = vmatpush1.bf16.msra.mxu0 0
        %2404 = vmatprep.subr.bf16.mxu0 0
        %2405 = vmatpush1.bf16.msra.mxu0 0
        %2406 = vmatprep.subr.bf16.mxu0 0
        %2407 = vmatpush1.bf16.msra.mxu0 0
        %2408 = vmatprep.mubr.bf16.mxu0 0
        %2409 = vmatmul.mubr.bf16.gmra.mrb[0].mxu0 %v2374
        %v2410 = vpop.f32.mrb[0].mxu0
        %v2411 = vadd.f32 0.0, %v2410
        %v2412 = vpop.f32.mrb[0].mxu0
        %v2413 = vpop.f32.mrb[0].mxu0
        %v2414 = vpop.f32.mrb[0].mxu0
        %2415 = vdwg.mxu0
        %v2424 = vunpack.c.l.b16 %v2252
        %v2425 = vunpack.c.l.b16 %v2253
        %v2426 = vunpack.c.l.b16 %v2254
        %v2427 = vunpack.c.l.b16 %v2255
        %v2428 = vunpack.c.l.b16 %v2256
        %v2429 = vunpack.c.l.b16 %v2257
        %v2430 = vunpack.c.l.b16 %v2258
        %v2431 = vunpack.c.l.b16 %v2259
        %v2432 = vpack.c.b16 %v2425, %v2424
        %v2433 = vpack.c.b16 %v2427, %v2426
        %v2434 = vpack.c.b16 %v2429, %v2428
        %v2435 = vpack.c.b16 %v2431, %v2430
        %v2441 = vsel %vm538, %v2250, 0
        %2443 = vmatprep.subr.bf16.mxu0 0
        %2444 = vmatpush1.bf16.msra.mxu0 %v2432
        %2445 = vmatprep.subr.bf16.mxu0 0
        %2446 = vmatpush1.bf16.msra.mxu0 %v2433
        %2447 = vmatprep.subr.bf16.mxu0 0
        %2448 = vmatpush1.bf16.msra.mxu0 %v2434
        %2449 = vmatprep.subr.bf16.mxu0 0
        %2450 = vmatpush1.bf16.msra.mxu0 %v2435
        %2451 = vmatprep.subr.bf16.mxu0 0
        %2452 = vmatpush1.bf16.msra.mxu0 0
        %2453 = vmatprep.subr.bf16.mxu0 0
        %2454 = vmatpush1.bf16.msra.mxu0 0
        %2455 = vmatprep.subr.bf16.mxu0 0
        %2456 = vmatpush1.bf16.msra.mxu0 0
        %2457 = vmatprep.subr.bf16.mxu0 0
        %2458 = vmatpush1.bf16.msra.mxu0 0
        %2459 = vmatprep.subr.bf16.mxu0 0
        %2460 = vmatpush1.bf16.msra.mxu0 0
        %2461 = vmatprep.subr.bf16.mxu0 0
        %2462 = vmatpush1.bf16.msra.mxu0 0
        %2463 = vmatprep.subr.bf16.mxu0 0
        %2464 = vmatpush1.bf16.msra.mxu0 0
        %2465 = vmatprep.subr.bf16.mxu0 0
        %2466 = vmatpush1.bf16.msra.mxu0 0
        %2467 = vmatprep.subr.bf16.mxu0 0
        %2468 = vmatpush1.bf16.msra.mxu0 0
        %2469 = vmatprep.subr.bf16.mxu0 0
        %2470 = vmatpush1.bf16.msra.mxu0 0
        %2471 = vmatprep.subr.bf16.mxu0 0
        %2472 = vmatpush1.bf16.msra.mxu0 0
        %2473 = vmatprep.subr.bf16.mxu0 0
        %2474 = vmatpush1.bf16.msra.mxu0 0
        %2475 = vmatprep.mubr.bf16.mxu0 0
        %2476 = vmatmul.mubr.bf16.gmra.mrb[0].mxu0 %v2441
        %v2477 = vpop.f32.mrb[0].mxu0
        %v2478 = vadd.f32 %v2333, %v2477
        %v2479 = vpop.f32.mrb[0].mxu0
        %v2480 = vpop.f32.mrb[0].mxu0
        %v2481 = vpop.f32.mrb[0].mxu0
        %2482 = vdwg.mxu0
        %v2483 = vadd.f32 %v2478, %v2411
        %vm2484 = vcmp.gt.f32.partialorder %v2483, 0.0
        %v2485 = vmin.f32 %v2483, 0.0
        %v2486 = vmul.f32 %v2485, 1.442695
        %v2487 = vpow.pop %v2486
        %v2488 = vsub.f32 %v2487, 1.0
        %v2489 = vsel %vm2484, %v2483, %v2488
        %2490 = vst.msk [vmem:[#allocation3 + $0x8] sm:$0xff] %vm538, %v2489
        %v2491 = vld [vmem:[#allocation3 + $0x7] sm:$0xff]
        %v2492 = vpack.c.bf16 %v2491, %v2491
        %s2493 = scalar_lea.vmem [#allocation6], 480
        %v2494 = vld [vmem:[%s2493] sm:$0xf]
        %v2495 = vld [vmem:[%s2493 + $0x4] sm:$0xf]
        %v2496 = vld [vmem:[%s2493 + $0x8] sm:$0xf]
        %v2497 = vld [vmem:[%s2493 + $0xc] sm:$0xf]
        %v2498 = vld [vmem:[%s2493 + $0x10] sm:$0xf]
        %v2499 = vld [vmem:[%s2493 + $0x14] sm:$0xf]
        %v2500 = vld [vmem:[%s2493 + $0x18] sm:$0xf]
        %v2501 = vld [vmem:[%s2493 + $0x1c] sm:$0xf]
        %v2502 = vld [vmem:[#allocation3 + $0x8] sm:$0xff]
        %v2503 = vpack.c.bf16 %v2502, %v2502
        %s2504 = scalar_lea.vmem [#allocation6], 512
        %v2505 = vld [vmem:[%s2504] sm:$0xf]
        %v2506 = vld [vmem:[%s2504 + $0x4] sm:$0xf]
        %v2507 = vld [vmem:[%s2504 + $0x8] sm:$0xf]
        %v2508 = vld [vmem:[%s2504 + $0xc] sm:$0xf]
        %v2509 = vld [vmem:[%s2504 + $0x10] sm:$0xf]
        %v2510 = vld [vmem:[%s2504 + $0x14] sm:$0xf]
        %v2511 = vld [vmem:[%s2504 + $0x18] sm:$0xf]
        %v2512 = vld [vmem:[%s2504 + $0x1c] sm:$0xf]
        %v2521 = vunpack.c.l.b16 %v2505
        %v2522 = vunpack.c.l.b16 %v2506
        %v2523 = vunpack.c.l.b16 %v2507
        %v2524 = vunpack.c.l.b16 %v2508
        %v2525 = vunpack.c.l.b16 %v2509
        %v2526 = vunpack.c.l.b16 %v2510
        %v2527 = vunpack.c.l.b16 %v2511
        %v2528 = vunpack.c.l.b16 %v2512
        %v2529 = vpack.c.b16 %v2522, %v2521
        %v2530 = vpack.c.b16 %v2524, %v2523
        %v2531 = vpack.c.b16 %v2526, %v2525
        %v2532 = vpack.c.b16 %v2528, %v2527
        %v2538 = vsel %vm538, %v2503, 0
        %2540 = vmatprep.subr.bf16.mxu0 0
        %2541 = vmatpush1.bf16.msra.mxu0 %v2529
        %2542 = vmatprep.subr.bf16.mxu0 0
        %2543 = vmatpush1.bf16.msra.mxu0 %v2530
        %2544 = vmatprep.subr.bf16.mxu0 0
        %2545 = vmatpush1.bf16.msra.mxu0 %v2531
        %2546 = vmatprep.subr.bf16.mxu0 0
        %2547 = vmatpush1.bf16.msra.mxu0 %v2532
        %2548 = vmatprep.subr.bf16.mxu0 0
        %2549 = vmatpush1.bf16.msra.mxu0 0
        %2550 = vmatprep.subr.bf16.mxu0 0
        %2551 = vmatpush1.bf16.msra.mxu0 0
        %2552 = vmatprep.subr.bf16.mxu0 0
        %2553 = vmatpush1.bf16.msra.mxu0 0
        %2554 = vmatprep.subr.bf16.mxu0 0
        %2555 = vmatpush1.bf16.msra.mxu0 0
        %2556 = vmatprep.subr.bf16.mxu0 0
        %2557 = vmatpush1.bf16.msra.mxu0 0
        %2558 = vmatprep.subr.bf16.mxu0 0
        %2559 = vmatpush1.bf16.msra.mxu0 0
        %2560 = vmatprep.subr.bf16.mxu0 0
        %2561 = vmatpush1.bf16.msra.mxu0 0
        %2562 = vmatprep.subr.bf16.mxu0 0
        %2563 = vmatpush1.bf16.msra.mxu0 0
        %2564 = vmatprep.subr.bf16.mxu0 0
        %2565 = vmatpush1.bf16.msra.mxu0 0
        %2566 = vmatprep.subr.bf16.mxu0 0
        %2567 = vmatpush1.bf16.msra.mxu0 0
        %2568 = vmatprep.subr.bf16.mxu0 0
        %2569 = vmatpush1.bf16.msra.mxu0 0
        %2570 = vmatprep.subr.bf16.mxu0 0
        %2571 = vmatpush1.bf16.msra.mxu0 0
        %2572 = vmatprep.mubr.bf16.mxu0 0
        %2573 = vmatmul.mubr.bf16.gmra.mrb[0].mxu0 %v2538
        %v2574 = vpop.f32.mrb[0].mxu0
        %v2575 = vadd.f32 0.0, %v2574
        %v2576 = vpop.f32.mrb[0].mxu0
        %v2577 = vpop.f32.mrb[0].mxu0
        %v2578 = vpop.f32.mrb[0].mxu0
        %2579 = vdwg.mxu0
        %v2580 = vld [vmem:[#allocation3 + $0x9] sm:$0xff]
        %v2581 = vpack.c.bf16 %v2580, %v2580
        %s2582 = scalar_lea.vmem [#allocation6], 544
        %v2583 = vld [vmem:[%s2582] sm:$0xf]
        %v2584 = vld [vmem:[%s2582 + $0x4] sm:$0xf]
        %v2585 = vld [vmem:[%s2582 + $0x8] sm:$0xf]
        %v2586 = vld [vmem:[%s2582 + $0xc] sm:$0xf]
        %v2587 = vld [vmem:[%s2582 + $0x10] sm:$0xf]
        %v2588 = vld [vmem:[%s2582 + $0x14] sm:$0xf]
        %v2589 = vld [vmem:[%s2582 + $0x18] sm:$0xf]
        %v2590 = vld [vmem:[%s2582 + $0x1c] sm:$0xf]
        %v2599 = vunpack.c.l.b16 %v2583
        %v2600 = vunpack.c.l.b16 %v2584
        %v2601 = vunpack.c.l.b16 %v2585
        %v2602 = vunpack.c.l.b16 %v2586
        %v2603 = vunpack.c.l.b16 %v2587
        %v2604 = vunpack.c.l.b16 %v2588
        %v2605 = vunpack.c.l.b16 %v2589
        %v2606 = vunpack.c.l.b16 %v2590
        %v2607 = vpack.c.b16 %v2600, %v2599
        %v2608 = vpack.c.b16 %v2602, %v2601
        %v2609 = vpack.c.b16 %v2604, %v2603
        %v2610 = vpack.c.b16 %v2606, %v2605
        %v2616 = vsel %vm538, %v2581, 0
        %2618 = vmatprep.subr.bf16.mxu0 0
        %2619 = vmatpush1.bf16.msra.mxu0 %v2607
        %2620 = vmatprep.subr.bf16.mxu0 0
        %2621 = vmatpush1.bf16.msra.mxu0 %v2608
        %2622 = vmatprep.subr.bf16.mxu0 0
        %2623 = vmatpush1.bf16.msra.mxu0 %v2609
        %2624 = vmatprep.subr.bf16.mxu0 0
        %2625 = vmatpush1.bf16.msra.mxu0 %v2610
        %2626 = vmatprep.subr.bf16.mxu0 0
        %2627 = vmatpush1.bf16.msra.mxu0 0
        %2628 = vmatprep.subr.bf16.mxu0 0
        %2629 = vmatpush1.bf16.msra.mxu0 0
        %2630 = vmatprep.subr.bf16.mxu0 0
        %2631 = vmatpush1.bf16.msra.mxu0 0
        %2632 = vmatprep.subr.bf16.mxu0 0
        %2633 = vmatpush1.bf16.msra.mxu0 0
        %2634 = vmatprep.subr.bf16.mxu0 0
        %2635 = vmatpush1.bf16.msra.mxu0 0
        %2636 = vmatprep.subr.bf16.mxu0 0
        %2637 = vmatpush1.bf16.msra.mxu0 0
        %2638 = vmatprep.subr.bf16.mxu0 0
        %2639 = vmatpush1.bf16.msra.mxu0 0
        %2640 = vmatprep.subr.bf16.mxu0 0
        %2641 = vmatpush1.bf16.msra.mxu0 0
        %2642 = vmatprep.subr.bf16.mxu0 0
        %2643 = vmatpush1.bf16.msra.mxu0 0
        %2644 = vmatprep.subr.bf16.mxu0 0
        %2645 = vmatpush1.bf16.msra.mxu0 0
        %2646 = vmatprep.subr.bf16.mxu0 0
        %2647 = vmatpush1.bf16.msra.mxu0 0
        %2648 = vmatprep.subr.bf16.mxu0 0
        %2649 = vmatpush1.bf16.msra.mxu0 0
        %2650 = vmatprep.mubr.bf16.mxu0 0
        %2651 = vmatmul.mubr.bf16.gmra.mrb[0].mxu0 %v2616
        %v2652 = vpop.f32.mrb[0].mxu0
        %v2653 = vadd.f32 0.0, %v2652
        %v2654 = vpop.f32.mrb[0].mxu0
        %v2655 = vpop.f32.mrb[0].mxu0
        %v2656 = vpop.f32.mrb[0].mxu0
        %2657 = vdwg.mxu0
        %v2666 = vunpack.c.l.b16 %v2494
        %v2667 = vunpack.c.l.b16 %v2495
        %v2668 = vunpack.c.l.b16 %v2496
        %v2669 = vunpack.c.l.b16 %v2497
        %v2670 = vunpack.c.l.b16 %v2498
        %v2671 = vunpack.c.l.b16 %v2499
        %v2672 = vunpack.c.l.b16 %v2500
        %v2673 = vunpack.c.l.b16 %v2501
        %v2674 = vpack.c.b16 %v2667, %v2666
        %v2675 = vpack.c.b16 %v2669, %v2668
        %v2676 = vpack.c.b16 %v2671, %v2670
        %v2677 = vpack.c.b16 %v2673, %v2672
        %v2683 = vsel %vm538, %v2492, 0
        %2685 = vmatprep.subr.bf16.mxu0 0
        %2686 = vmatpush1.bf16.msra.mxu0 %v2674
        %2687 = vmatprep.subr.bf16.mxu0 0
        %2688 = vmatpush1.bf16.msra.mxu0 %v2675
        %2689 = vmatprep.subr.bf16.mxu0 0
        %2690 = vmatpush1.bf16.msra.mxu0 %v2676
        %2691 = vmatprep.subr.bf16.mxu0 0
        %2692 = vmatpush1.bf16.msra.mxu0 %v2677
        %2693 = vmatprep.subr.bf16.mxu0 0
        %2694 = vmatpush1.bf16.msra.mxu0 0
        %2695 = vmatprep.subr.bf16.mxu0 0
        %2696 = vmatpush1.bf16.msra.mxu0 0
        %2697 = vmatprep.subr.bf16.mxu0 0
        %2698 = vmatpush1.bf16.msra.mxu0 0
        %2699 = vmatprep.subr.bf16.mxu0 0
        %2700 = vmatpush1.bf16.msra.mxu0 0
        %2701 = vmatprep.subr.bf16.mxu0 0
        %2702 = vmatpush1.bf16.msra.mxu0 0
        %2703 = vmatprep.subr.bf16.mxu0 0
        %2704 = vmatpush1.bf16.msra.mxu0 0
        %2705 = vmatprep.subr.bf16.mxu0 0
        %2706 = vmatpush1.bf16.msra.mxu0 0
        %2707 = vmatprep.subr.bf16.mxu0 0
        %2708 = vmatpush1.bf16.msra.mxu0 0
        %2709 = vmatprep.subr.bf16.mxu0 0
        %2710 = vmatpush1.bf16.msra.mxu0 0
        %2711 = vmatprep.subr.bf16.mxu0 0
        %2712 = vmatpush1.bf16.msra.mxu0 0
        %2713 = vmatprep.subr.bf16.mxu0 0
        %2714 = vmatpush1.bf16.msra.mxu0 0
        %2715 = vmatprep.subr.bf16.mxu0 0
        %2716 = vmatpush1.bf16.msra.mxu0 0
        %2717 = vmatprep.mubr.bf16.mxu0 0
        %2718 = vmatmul.mubr.bf16.gmra.mrb[0].mxu0 %v2683
        %v2719 = vpop.f32.mrb[0].mxu0
        %v2720 = vadd.f32 %v2575, %v2719
        %v2721 = vpop.f32.mrb[0].mxu0
        %v2722 = vpop.f32.mrb[0].mxu0
        %v2723 = vpop.f32.mrb[0].mxu0
        %2724 = vdwg.mxu0
        %v2725 = vadd.f32 %v2720, %v2653
        %s2726 = scalar_lea.vmem [#allocation8], 4
        %v2727 = vld [vmem:[%s2726] sm:$0x1]
        %v2729 = vlaneseq
        %v2730 = vshrl.u32 %v2729, 7
        %v2731 = vsub.s32 0, %v2730
        %v2732 = vrot.slane %v2727, %v2731
        %v2734 = vadd.f32 %v2725, %v2732
        %v2735 = vpack.c.bf16 %v2241, %v2241
        %s2736 = scalar_lea.vmem %s9, 32
        %v2737 = vld [vmem:[%s2736] sm:$0xf]
        %v2738 = vld [vmem:[%s2736 + $0x4] sm:$0xf]
        %v2739 = vld [vmem:[%s2736 + $0x8] sm:$0xf]
        %v2740 = vld [vmem:[%s2736 + $0xc] sm:$0xf]
        %v2741 = vld [vmem:[%s2736 + $0x10] sm:$0xf]
        %v2742 = vld [vmem:[%s2736 + $0x14] sm:$0xf]
        %v2743 = vld [vmem:[%s2736 + $0x18] sm:$0xf]
        %v2744 = vld [vmem:[%s2736 + $0x1c] sm:$0xf]
        %s2745 = scalar_lea.vmem [#allocation8], 5
        %v2746 = vld [vmem:[%s2745] sm:$0x1]
        %v2748 = vlaneseq
        %v2749 = vshrl.u32 %v2748, 7
        %v2750 = vsub.s32 0, %v2749
        %v2751 = vrot.slane %v2746, %v2750
        %v2761 = vunpack.c.l.b16 %v2737
        %v2762 = vunpack.c.l.b16 %v2738
        %v2763 = vunpack.c.l.b16 %v2739
        %v2764 = vunpack.c.l.b16 %v2740
        %v2765 = vunpack.c.l.b16 %v2741
        %v2766 = vunpack.c.l.b16 %v2742
        %v2767 = vunpack.c.l.b16 %v2743
        %v2768 = vunpack.c.l.b16 %v2744
        %v2769 = vpack.c.b16 %v2762, %v2761
        %v2770 = vpack.c.b16 %v2764, %v2763
        %v2771 = vpack.c.b16 %v2766, %v2765
        %v2772 = vpack.c.b16 %v2768, %v2767
        %v2778 = vsel %vm538, %v2735, 0
        %2780 = vmatprep.subr.bf16.mxu0 0
        %2781 = vmatpush1.bf16.msra.mxu0 %v2769
        %2782 = vmatprep.subr.bf16.mxu0 0
        %2783 = vmatpush1.bf16.msra.mxu0 %v2770
        %2784 = vmatprep.subr.bf16.mxu0 0
        %2785 = vmatpush1.bf16.msra.mxu0 %v2771
        %2786 = vmatprep.subr.bf16.mxu0 0
        %2787 = vmatpush1.bf16.msra.mxu0 %v2772
        %2788 = vmatprep.subr.bf16.mxu0 0
        %2789 = vmatpush1.bf16.msra.mxu0 0
        %2790 = vmatprep.subr.bf16.mxu0 0
        %2791 = vmatpush1.bf16.msra.mxu0 0
        %2792 = vmatprep.subr.bf16.mxu0 0
        %2793 = vmatpush1.bf16.msra.mxu0 0
        %2794 = vmatprep.subr.bf16.mxu0 0
        %2795 = vmatpush1.bf16.msra.mxu0 0
        %2796 = vmatprep.subr.bf16.mxu0 0
        %2797 = vmatpush1.bf16.msra.mxu0 0
        %2798 = vmatprep.subr.bf16.mxu0 0
        %2799 = vmatpush1.bf16.msra.mxu0 0
        %2800 = vmatprep.subr.bf16.mxu0 0
        %2801 = vmatpush1.bf16.msra.mxu0 0
        %2802 = vmatprep.subr.bf16.mxu0 0
        %2803 = vmatpush1.bf16.msra.mxu0 0
        %2804 = vmatprep.subr.bf16.mxu0 0
        %2805 = vmatpush1.bf16.msra.mxu0 0
        %2806 = vmatprep.subr.bf16.mxu0 0
        %2807 = vmatpush1.bf16.msra.mxu0 0
        %2808 = vmatprep.subr.bf16.mxu0 0
        %2809 = vmatpush1.bf16.msra.mxu0 0
        %2810 = vmatprep.subr.bf16.mxu0 0
        %2811 = vmatpush1.bf16.msra.mxu0 0
        %2812 = vmatprep.mubr.bf16.mxu0 0
        %2813 = vmatmul.mubr.bf16.gmra.mrb[0].mxu0 %v2778
        %v2814 = vpop.f32.mrb[0].mxu0
        %v2815 = vadd.f32 %v2751, %v2814
        %v2816 = vpop.f32.mrb[0].mxu0
        %v2817 = vpop.f32.mrb[0].mxu0
        %v2818 = vpop.f32.mrb[0].mxu0
        %2819 = vdwg.mxu0
        %v2820 = vadd.f32 %v2734, %v2815
        %vm2821 = vcmp.gt.f32.partialorder %v2820, 0.0
        %v2822 = vmin.f32 %v2820, 0.0
        %v2823 = vmul.f32 %v2822, 1.442695
        %v2824 = vpow.pop %v2823
        %v2825 = vsub.f32 %v2824, 1.0
        %v2826 = vsel %vm2821, %v2820, %v2825
        %2827 = vst.msk [vmem:[#allocation3 + $0x8] sm:$0xff] %vm538, %v2826
        %v2828 = vld [vmem:[#allocation3 + $0x7] sm:$0xff]
        %v2829 = vpack.c.bf16 %v2828, %v2828
        %s2830 = scalar_lea.vmem [#allocation6], 576
        %v2831 = vld [vmem:[%s2830] sm:$0xf]
        %v2832 = vld [vmem:[%s2830 + $0x4] sm:$0xf]
        %v2833 = vld [vmem:[%s2830 + $0x8] sm:$0xf]
        %v2834 = vld [vmem:[%s2830 + $0xc] sm:$0xf]
        %v2835 = vld [vmem:[%s2830 + $0x10] sm:$0xf]
        %v2836 = vld [vmem:[%s2830 + $0x14] sm:$0xf]
        %v2837 = vld [vmem:[%s2830 + $0x18] sm:$0xf]
        %v2838 = vld [vmem:[%s2830 + $0x1c] sm:$0xf]
        %v2839 = vld [vmem:[#allocation3 + $0x8] sm:$0xff]
        %v2840 = vpack.c.bf16 %v2839, %v2839
        %s2841 = scalar_lea.vmem [#allocation6], 608
        %v2842 = vld [vmem:[%s2841] sm:$0xf]
        %v2843 = vld [vmem:[%s2841 + $0x4] sm:$0xf]
        %v2844 = vld [vmem:[%s2841 + $0x8] sm:$0xf]
        %v2845 = vld [vmem:[%s2841 + $0xc] sm:$0xf]
        %v2846 = vld [vmem:[%s2841 + $0x10] sm:$0xf]
        %v2847 = vld [vmem:[%s2841 + $0x14] sm:$0xf]
        %v2848 = vld [vmem:[%s2841 + $0x18] sm:$0xf]
        %v2849 = vld [vmem:[%s2841 + $0x1c] sm:$0xf]
        %v2858 = vunpack.c.l.b16 %v2842
        %v2859 = vunpack.c.l.b16 %v2843
        %v2860 = vunpack.c.l.b16 %v2844
        %v2861 = vunpack.c.l.b16 %v2845
        %v2862 = vunpack.c.l.b16 %v2846
        %v2863 = vunpack.c.l.b16 %v2847
        %v2864 = vunpack.c.l.b16 %v2848
        %v2865 = vunpack.c.l.b16 %v2849
        %v2866 = vpack.c.b16 %v2859, %v2858
        %v2867 = vpack.c.b16 %v2861, %v2860
        %v2868 = vpack.c.b16 %v2863, %v2862
        %v2869 = vpack.c.b16 %v2865, %v2864
        %v2875 = vsel %vm538, %v2840, 0
        %2877 = vmatprep.subr.bf16.mxu0 0
        %2878 = vmatpush1.bf16.msra.mxu0 %v2866
        %2879 = vmatprep.subr.bf16.mxu0 0
        %2880 = vmatpush1.bf16.msra.mxu0 %v2867
        %2881 = vmatprep.subr.bf16.mxu0 0
        %2882 = vmatpush1.bf16.msra.mxu0 %v2868
        %2883 = vmatprep.subr.bf16.mxu0 0
        %2884 = vmatpush1.bf16.msra.mxu0 %v2869
        %2885 = vmatprep.subr.bf16.mxu0 0
        %2886 = vmatpush1.bf16.msra.mxu0 0
        %2887 = vmatprep.subr.bf16.mxu0 0
        %2888 = vmatpush1.bf16.msra.mxu0 0
        %2889 = vmatprep.subr.bf16.mxu0 0
        %2890 = vmatpush1.bf16.msra.mxu0 0
        %2891 = vmatprep.subr.bf16.mxu0 0
        %2892 = vmatpush1.bf16.msra.mxu0 0
        %2893 = vmatprep.subr.bf16.mxu0 0
        %2894 = vmatpush1.bf16.msra.mxu0 0
        %2895 = vmatprep.subr.bf16.mxu0 0
        %2896 = vmatpush1.bf16.msra.mxu0 0
        %2897 = vmatprep.subr.bf16.mxu0 0
        %2898 = vmatpush1.bf16.msra.mxu0 0
        %2899 = vmatprep.subr.bf16.mxu0 0
        %2900 = vmatpush1.bf16.msra.mxu0 0
        %2901 = vmatprep.subr.bf16.mxu0 0
        %2902 = vmatpush1.bf16.msra.mxu0 0
        %2903 = vmatprep.subr.bf16.mxu0 0
        %2904 = vmatpush1.bf16.msra.mxu0 0
        %2905 = vmatprep.subr.bf16.mxu0 0
        %2906 = vmatpush1.bf16.msra.mxu0 0
        %2907 = vmatprep.subr.bf16.mxu0 0
        %2908 = vmatpush1.bf16.msra.mxu0 0
        %2909 = vmatprep.mubr.bf16.mxu0 0
        %2910 = vmatmul.mubr.bf16.gmra.mrb[0].mxu0 %v2875
        %v2911 = vpop.f32.mrb[0].mxu0
        %v2912 = vadd.f32 0.0, %v2911
        %v2913 = vpop.f32.mrb[0].mxu0
        %v2914 = vpop.f32.mrb[0].mxu0
        %v2915 = vpop.f32.mrb[0].mxu0
        %2916 = vdwg.mxu0
        %v2917 = vld [vmem:[#allocation3 + $0x9] sm:$0xff]
        %v2918 = vpack.c.bf16 %v2917, %v2917
        %s2919 = scalar_lea.vmem [#allocation6], 640
        %v2920 = vld [vmem:[%s2919] sm:$0xf]
        %v2921 = vld [vmem:[%s2919 + $0x4] sm:$0xf]
        %v2922 = vld [vmem:[%s2919 + $0x8] sm:$0xf]
        %v2923 = vld [vmem:[%s2919 + $0xc] sm:$0xf]
        %v2924 = vld [vmem:[%s2919 + $0x10] sm:$0xf]
        %v2925 = vld [vmem:[%s2919 + $0x14] sm:$0xf]
        %v2926 = vld [vmem:[%s2919 + $0x18] sm:$0xf]
        %v2927 = vld [vmem:[%s2919 + $0x1c] sm:$0xf]
        %v2936 = vunpack.c.l.b16 %v2920
        %v2937 = vunpack.c.l.b16 %v2921
        %v2938 = vunpack.c.l.b16 %v2922
        %v2939 = vunpack.c.l.b16 %v2923
        %v2940 = vunpack.c.l.b16 %v2924
        %v2941 = vunpack.c.l.b16 %v2925
        %v2942 = vunpack.c.l.b16 %v2926
        %v2943 = vunpack.c.l.b16 %v2927
        %v2944 = vpack.c.b16 %v2937, %v2936
        %v2945 = vpack.c.b16 %v2939, %v2938
        %v2946 = vpack.c.b16 %v2941, %v2940
        %v2947 = vpack.c.b16 %v2943, %v2942
        %v2953 = vsel %vm538, %v2918, 0
        %2955 = vmatprep.subr.bf16.mxu0 0
        %2956 = vmatpush1.bf16.msra.mxu0 %v2944
        %2957 = vmatprep.subr.bf16.mxu0 0
        %2958 = vmatpush1.bf16.msra.mxu0 %v2945
        %2959 = vmatprep.subr.bf16.mxu0 0
        %2960 = vmatpush1.bf16.msra.mxu0 %v2946
        %2961 = vmatprep.subr.bf16.mxu0 0
        %2962 = vmatpush1.bf16.msra.mxu0 %v2947
        %2963 = vmatprep.subr.bf16.mxu0 0
        %2964 = vmatpush1.bf16.msra.mxu0 0
        %2965 = vmatprep.subr.bf16.mxu0 0
        %2966 = vmatpush1.bf16.msra.mxu0 0
        %2967 = vmatprep.subr.bf16.mxu0 0
        %2968 = vmatpush1.bf16.msra.mxu0 0
        %2969 = vmatprep.subr.bf16.mxu0 0
        %2970 = vmatpush1.bf16.msra.mxu0 0
        %2971 = vmatprep.subr.bf16.mxu0 0
        %2972 = vmatpush1.bf16.msra.mxu0 0
        %2973 = vmatprep.subr.bf16.mxu0 0
        %2974 = vmatpush1.bf16.msra.mxu0 0
        %2975 = vmatprep.subr.bf16.mxu0 0
        %2976 = vmatpush1.bf16.msra.mxu0 0
        %2977 = vmatprep.subr.bf16.mxu0 0
        %2978 = vmatpush1.bf16.msra.mxu0 0
        %2979 = vmatprep.subr.bf16.mxu0 0
        %2980 = vmatpush1.bf16.msra.mxu0 0
        %2981 = vmatprep.subr.bf16.mxu0 0
        %2982 = vmatpush1.bf16.msra.mxu0 0
        %2983 = vmatprep.subr.bf16.mxu0 0
        %2984 = vmatpush1.bf16.msra.mxu0 0
        %2985 = vmatprep.subr.bf16.mxu0 0
        %2986 = vmatpush1.bf16.msra.mxu0 0
        %2987 = vmatprep.mubr.bf16.mxu0 0
        %2988 = vmatmul.mubr.bf16.gmra.mrb[0].mxu0 %v2953
        %v2989 = vpop.f32.mrb[0].mxu0
        %v2990 = vadd.f32 0.0, %v2989
        %v2991 = vpop.f32.mrb[0].mxu0
        %v2992 = vpop.f32.mrb[0].mxu0
        %v2993 = vpop.f32.mrb[0].mxu0
        %2994 = vdwg.mxu0
        %v3003 = vunpack.c.l.b16 %v2831
        %v3004 = vunpack.c.l.b16 %v2832
        %v3005 = vunpack.c.l.b16 %v2833
        %v3006 = vunpack.c.l.b16 %v2834
        %v3007 = vunpack.c.l.b16 %v2835
        %v3008 = vunpack.c.l.b16 %v2836
        %v3009 = vunpack.c.l.b16 %v2837
        %v3010 = vunpack.c.l.b16 %v2838
        %v3011 = vpack.c.b16 %v3004, %v3003
        %v3012 = vpack.c.b16 %v3006, %v3005
        %v3013 = vpack.c.b16 %v3008, %v3007
        %v3014 = vpack.c.b16 %v3010, %v3009
        %v3020 = vsel %vm538, %v2829, 0
        %3022 = vmatprep.subr.bf16.mxu0 0
        %3023 = vmatpush1.bf16.msra.mxu0 %v3011
        %3024 = vmatprep.subr.bf16.mxu0 0
        %3025 = vmatpush1.bf16.msra.mxu0 %v3012
        %3026 = vmatprep.subr.bf16.mxu0 0
        %3027 = vmatpush1.bf16.msra.mxu0 %v3013
        %3028 = vmatprep.subr.bf16.mxu0 0
        %3029 = vmatpush1.bf16.msra.mxu0 %v3014
        %3030 = vmatprep.subr.bf16.mxu0 0
        %3031 = vmatpush1.bf16.msra.mxu0 0
        %3032 = vmatprep.subr.bf16.mxu0 0
        %3033 = vmatpush1.bf16.msra.mxu0 0
        %3034 = vmatprep.subr.bf16.mxu0 0
        %3035 = vmatpush1.bf16.msra.mxu0 0
        %3036 = vmatprep.subr.bf16.mxu0 0
        %3037 = vmatpush1.bf16.msra.mxu0 0
        %3038 = vmatprep.subr.bf16.mxu0 0
        %3039 = vmatpush1.bf16.msra.mxu0 0
        %3040 = vmatprep.subr.bf16.mxu0 0
        %3041 = vmatpush1.bf16.msra.mxu0 0
        %3042 = vmatprep.subr.bf16.mxu0 0
        %3043 = vmatpush1.bf16.msra.mxu0 0
        %3044 = vmatprep.subr.bf16.mxu0 0
        %3045 = vmatpush1.bf16.msra.mxu0 0
        %3046 = vmatprep.subr.bf16.mxu0 0
        %3047 = vmatpush1.bf16.msra.mxu0 0
        %3048 = vmatprep.subr.bf16.mxu0 0
        %3049 = vmatpush1.bf16.msra.mxu0 0
        %3050 = vmatprep.subr.bf16.mxu0 0
        %3051 = vmatpush1.bf16.msra.mxu0 0
        %3052 = vmatprep.subr.bf16.mxu0 0
        %3053 = vmatpush1.bf16.msra.mxu0 0
        %3054 = vmatprep.mubr.bf16.mxu0 0
        %3055 = vmatmul.mubr.bf16.gmra.mrb[0].mxu0 %v3020
        %v3056 = vpop.f32.mrb[0].mxu0
        %v3057 = vadd.f32 %v2912, %v3056
        %v3058 = vpop.f32.mrb[0].mxu0
        %v3059 = vpop.f32.mrb[0].mxu0
        %v3060 = vpop.f32.mrb[0].mxu0
        %3061 = vdwg.mxu0
        %v3062 = vadd.f32 %v3057, %v2990
        %vm3063 = vcmp.gt.f32.partialorder %v3062, 0.0
        %v3064 = vmin.f32 %v3062, 0.0
        %v3065 = vmul.f32 %v3064, 1.442695
        %v3066 = vpow.pop %v3065
        %v3067 = vsub.f32 %v3066, 1.0
        %v3068 = vsel %vm3063, %v3062, %v3067
        %3069 = vst.msk [vmem:[#allocation3 + $0x8] sm:$0xff] %vm538, %v3068
        %v3070 = vld [vmem:[#allocation3 + $0x7] sm:$0xff]
        %v3071 = vpack.c.bf16 %v3070, %v3070
        %s3072 = scalar_lea.vmem %s3, 96
        %v3073 = vld [vmem:[%s3072] sm:$0xf]
        %v3074 = vld [vmem:[%s3072 + $0x4] sm:$0xf]
        %v3075 = vld [vmem:[%s3072 + $0x8] sm:$0xf]
        %v3076 = vld [vmem:[%s3072 + $0xc] sm:$0xf]
        %v3077 = vld [vmem:[%s3072 + $0x10] sm:$0xf]
        %v3078 = vld [vmem:[%s3072 + $0x14] sm:$0xf]
        %v3079 = vld [vmem:[%s3072 + $0x18] sm:$0xf]
        %v3080 = vld [vmem:[%s3072 + $0x1c] sm:$0xf]
        %v3081 = vld [vmem:[#allocation3 + $0x8] sm:$0xff]
        %v3082 = vpack.c.bf16 %v3081, %v3081
        %s3083 = scalar_lea.vmem %s3, 128
        %v3084 = vld [vmem:[%s3083] sm:$0xf]
        %v3085 = vld [vmem:[%s3083 + $0x4] sm:$0xf]
        %v3086 = vld [vmem:[%s3083 + $0x8] sm:$0xf]
        %v3087 = vld [vmem:[%s3083 + $0xc] sm:$0xf]
        %v3088 = vld [vmem:[%s3083 + $0x10] sm:$0xf]
        %v3089 = vld [vmem:[%s3083 + $0x14] sm:$0xf]
        %v3090 = vld [vmem:[%s3083 + $0x18] sm:$0xf]
        %v3091 = vld [vmem:[%s3083 + $0x1c] sm:$0xf]
        %v3100 = vunpack.c.l.b16 %v3084
        %v3101 = vunpack.c.l.b16 %v3085
        %v3102 = vunpack.c.l.b16 %v3086
        %v3103 = vunpack.c.l.b16 %v3087
        %v3104 = vunpack.c.l.b16 %v3088
        %v3105 = vunpack.c.l.b16 %v3089
        %v3106 = vunpack.c.l.b16 %v3090
        %v3107 = vunpack.c.l.b16 %v3091
        %v3108 = vpack.c.b16 %v3101, %v3100
        %v3109 = vpack.c.b16 %v3103, %v3102
        %v3110 = vpack.c.b16 %v3105, %v3104
        %v3111 = vpack.c.b16 %v3107, %v3106
        %v3117 = vsel %vm538, %v3082, 0
        %3119 = vmatprep.subr.bf16.mxu0 0
        %3120 = vmatpush1.bf16.msra.mxu0 %v3108
        %3121 = vmatprep.subr.bf16.mxu0 0
        %3122 = vmatpush1.bf16.msra.mxu0 %v3109
        %3123 = vmatprep.subr.bf16.mxu0 0
        %3124 = vmatpush1.bf16.msra.mxu0 %v3110
        %3125 = vmatprep.subr.bf16.mxu0 0
        %3126 = vmatpush1.bf16.msra.mxu0 %v3111
        %3127 = vmatprep.subr.bf16.mxu0 0
        %3128 = vmatpush1.bf16.msra.mxu0 0
        %3129 = vmatprep.subr.bf16.mxu0 0
        %3130 = vmatpush1.bf16.msra.mxu0 0
        %3131 = vmatprep.subr.bf16.mxu0 0
        %3132 = vmatpush1.bf16.msra.mxu0 0
        %3133 = vmatprep.subr.bf16.mxu0 0
        %3134 = vmatpush1.bf16.msra.mxu0 0
        %3135 = vmatprep.subr.bf16.mxu0 0
        %3136 = vmatpush1.bf16.msra.mxu0 0
        %3137 = vmatprep.subr.bf16.mxu0 0
        %3138 = vmatpush1.bf16.msra.mxu0 0
        %3139 = vmatprep.subr.bf16.mxu0 0
        %3140 = vmatpush1.bf16.msra.mxu0 0
        %3141 = vmatprep.subr.bf16.mxu0 0
        %3142 = vmatpush1.bf16.msra.mxu0 0
        %3143 = vmatprep.subr.bf16.mxu0 0
        %3144 = vmatpush1.bf16.msra.mxu0 0
        %3145 = vmatprep.subr.bf16.mxu0 0
        %3146 = vmatpush1.bf16.msra.mxu0 0
        %3147 = vmatprep.subr.bf16.mxu0 0
        %3148 = vmatpush1.bf16.msra.mxu0 0
        %3149 = vmatprep.subr.bf16.mxu0 0
        %3150 = vmatpush1.bf16.msra.mxu0 0
        %3151 = vmatprep.mubr.bf16.mxu0 0
        %3152 = vmatmul.mubr.bf16.gmra.mrb[0].mxu0 %v3117
        %v3153 = vpop.f32.mrb[0].mxu0
        %v3154 = vadd.f32 0.0, %v3153
        %v3155 = vpop.f32.mrb[0].mxu0
        %v3156 = vpop.f32.mrb[0].mxu0
        %v3157 = vpop.f32.mrb[0].mxu0
        %3158 = vdwg.mxu0
        %v3159 = vld [vmem:[#allocation3 + $0x9] sm:$0xff]
        %v3160 = vpack.c.bf16 %v3159, %v3159
        %s3161 = scalar_lea.vmem %s3, 160
        %v3162 = vld [vmem:[%s3161] sm:$0xf]
        %v3163 = vld [vmem:[%s3161 + $0x4] sm:$0xf]
        %v3164 = vld [vmem:[%s3161 + $0x8] sm:$0xf]
        %v3165 = vld [vmem:[%s3161 + $0xc] sm:$0xf]
        %v3166 = vld [vmem:[%s3161 + $0x10] sm:$0xf]
        %v3167 = vld [vmem:[%s3161 + $0x14] sm:$0xf]
        %v3168 = vld [vmem:[%s3161 + $0x18] sm:$0xf]
        %v3169 = vld [vmem:[%s3161 + $0x1c] sm:$0xf]
        %v3178 = vunpack.c.l.b16 %v3162
        %v3179 = vunpack.c.l.b16 %v3163
        %v3180 = vunpack.c.l.b16 %v3164
        %v3181 = vunpack.c.l.b16 %v3165
        %v3182 = vunpack.c.l.b16 %v3166
        %v3183 = vunpack.c.l.b16 %v3167
        %v3184 = vunpack.c.l.b16 %v3168
        %v3185 = vunpack.c.l.b16 %v3169
        %v3186 = vpack.c.b16 %v3179, %v3178
        %v3187 = vpack.c.b16 %v3181, %v3180
        %v3188 = vpack.c.b16 %v3183, %v3182
        %v3189 = vpack.c.b16 %v3185, %v3184
        %v3195 = vsel %vm538, %v3160, 0
        %3197 = vmatprep.subr.bf16.mxu0 0
        %3198 = vmatpush1.bf16.msra.mxu0 %v3186
        %3199 = vmatprep.subr.bf16.mxu0 0
        %3200 = vmatpush1.bf16.msra.mxu0 %v3187
        %3201 = vmatprep.subr.bf16.mxu0 0
        %3202 = vmatpush1.bf16.msra.mxu0 %v3188
        %3203 = vmatprep.subr.bf16.mxu0 0
        %3204 = vmatpush1.bf16.msra.mxu0 %v3189
        %3205 = vmatprep.subr.bf16.mxu0 0
        %3206 = vmatpush1.bf16.msra.mxu0 0
        %3207 = vmatprep.subr.bf16.mxu0 0
        %3208 = vmatpush1.bf16.msra.mxu0 0
        %3209 = vmatprep.subr.bf16.mxu0 0
        %3210 = vmatpush1.bf16.msra.mxu0 0
        %3211 = vmatprep.subr.bf16.mxu0 0
        %3212 = vmatpush1.bf16.msra.mxu0 0
        %3213 = vmatprep.subr.bf16.mxu0 0
        %3214 = vmatpush1.bf16.msra.mxu0 0
        %3215 = vmatprep.subr.bf16.mxu0 0
        %3216 = vmatpush1.bf16.msra.mxu0 0
        %3217 = vmatprep.subr.bf16.mxu0 0
        %3218 = vmatpush1.bf16.msra.mxu0 0
        %3219 = vmatprep.subr.bf16.mxu0 0
        %3220 = vmatpush1.bf16.msra.mxu0 0
        %3221 = vmatprep.subr.bf16.mxu0 0
        %3222 = vmatpush1.bf16.msra.mxu0 0
        %3223 = vmatprep.subr.bf16.mxu0 0
        %3224 = vmatpush1.bf16.msra.mxu0 0
        %3225 = vmatprep.subr.bf16.mxu0 0
        %3226 = vmatpush1.bf16.msra.mxu0 0
        %3227 = vmatprep.subr.bf16.mxu0 0
        %3228 = vmatpush1.bf16.msra.mxu0 0
        %3229 = vmatprep.mubr.bf16.mxu0 0
        %3230 = vmatmul.mubr.bf16.gmra.mrb[0].mxu0 %v3195
        %v3231 = vpop.f32.mrb[0].mxu0
        %v3232 = vadd.f32 0.0, %v3231
        %v3233 = vpop.f32.mrb[0].mxu0
        %v3234 = vpop.f32.mrb[0].mxu0
        %v3235 = vpop.f32.mrb[0].mxu0
        %3236 = vdwg.mxu0
        %v3245 = vunpack.c.l.b16 %v3073
        %v3246 = vunpack.c.l.b16 %v3074
        %v3247 = vunpack.c.l.b16 %v3075
        %v3248 = vunpack.c.l.b16 %v3076
        %v3249 = vunpack.c.l.b16 %v3077
        %v3250 = vunpack.c.l.b16 %v3078
        %v3251 = vunpack.c.l.b16 %v3079
        %v3252 = vunpack.c.l.b16 %v3080
        %v3253 = vpack.c.b16 %v3246, %v3245
        %v3254 = vpack.c.b16 %v3248, %v3247
        %v3255 = vpack.c.b16 %v3250, %v3249
        %v3256 = vpack.c.b16 %v3252, %v3251
        %v3262 = vsel %vm538, %v3071, 0
        %3264 = vmatprep.subr.bf16.mxu0 0
        %3265 = vmatpush1.bf16.msra.mxu0 %v3253
        %3266 = vmatprep.subr.bf16.mxu0 0
        %3267 = vmatpush1.bf16.msra.mxu0 %v3254
        %3268 = vmatprep.subr.bf16.mxu0 0
        %3269 = vmatpush1.bf16.msra.mxu0 %v3255
        %3270 = vmatprep.subr.bf16.mxu0 0
        %3271 = vmatpush1.bf16.msra.mxu0 %v3256
        %3272 = vmatprep.subr.bf16.mxu0 0
        %3273 = vmatpush1.bf16.msra.mxu0 0
        %3274 = vmatprep.subr.bf16.mxu0 0
        %3275 = vmatpush1.bf16.msra.mxu0 0
        %3276 = vmatprep.subr.bf16.mxu0 0
        %3277 = vmatpush1.bf16.msra.mxu0 0
        %3278 = vmatprep.subr.bf16.mxu0 0
        %3279 = vmatpush1.bf16.msra.mxu0 0
        %3280 = vmatprep.subr.bf16.mxu0 0
        %3281 = vmatpush1.bf16.msra.mxu0 0
        %3282 = vmatprep.subr.bf16.mxu0 0
        %3283 = vmatpush1.bf16.msra.mxu0 0
        %3284 = vmatprep.subr.bf16.mxu0 0
        %3285 = vmatpush1.bf16.msra.mxu0 0
        %3286 = vmatprep.subr.bf16.mxu0 0
        %3287 = vmatpush1.bf16.msra.mxu0 0
        %3288 = vmatprep.subr.bf16.mxu0 0
        %3289 = vmatpush1.bf16.msra.mxu0 0
        %3290 = vmatprep.subr.bf16.mxu0 0
        %3291 = vmatpush1.bf16.msra.mxu0 0
        %3292 = vmatprep.subr.bf16.mxu0 0
        %3293 = vmatpush1.bf16.msra.mxu0 0
        %3294 = vmatprep.subr.bf16.mxu0 0
        %3295 = vmatpush1.bf16.msra.mxu0 0
        %3296 = vmatprep.mubr.bf16.mxu0 0
        %3297 = vmatmul.mubr.bf16.gmra.mrb[0].mxu0 %v3262
        %v3298 = vpop.f32.mrb[0].mxu0
        %v3299 = vadd.f32 %v3154, %v3298
        %v3300 = vpop.f32.mrb[0].mxu0
        %v3301 = vpop.f32.mrb[0].mxu0
        %v3302 = vpop.f32.mrb[0].mxu0
        %3303 = vdwg.mxu0
        %v3304 = vadd.f32 %v3299, %v3232
        %s3305 = scalar_lea.vmem [#allocation10], 1
        %v3306 = vld [vmem:[%s3305] sm:$0x1]
        %v3308 = vlaneseq
        %v3309 = vshrl.u32 %v3308, 7
        %v3310 = vsub.s32 0, %v3309
        %v3311 = vrot.slane %v3306, %v3310
        %v3313 = vadd.f32 %v3304, %v3311
        %v3314 = vld [vmem:[#allocation17] sm:$0x3]
        %v3315 = vpack.c.bf16 %v3313, %v3313
        %vm3316 = vcmask 64512
        %v3318 = vsel %vm3316, %v3314, 0
        %vm3320 = vcmask 1043456
        %v3322 = vsel %vm3320, %v3315, 0
        %3324 = vmatprep.subr.bf16.mxu0 0
        %3325 = vmatpush1.bf16.msra.mxu0 %v3322
        %3326 = vmatprep.subr.bf16.mxu0 0
        %3327 = vmatpush1.bf16.msra.mxu0 0
        %3328 = vmatprep.subr.bf16.mxu0 0
        %3329 = vmatpush1.bf16.msra.mxu0 0
        %3330 = vmatprep.subr.bf16.mxu0 0
        %3331 = vmatpush1.bf16.msra.mxu0 0
        %3332 = vmatprep.subr.bf16.mxu0 0
        %3333 = vmatpush1.bf16.msra.mxu0 0
        %3334 = vmatprep.subr.bf16.mxu0 0
        %3335 = vmatpush1.bf16.msra.mxu0 0
        %3336 = vmatprep.subr.bf16.mxu0 0
        %3337 = vmatpush1.bf16.msra.mxu0 0
        %3338 = vmatprep.subr.bf16.mxu0 0
        %3339 = vmatpush1.bf16.msra.mxu0 0
        %3340 = vmatprep.subr.bf16.mxu0 0
        %3341 = vmatpush1.bf16.msra.mxu0 0
        %3342 = vmatprep.subr.bf16.mxu0 0
        %3343 = vmatpush1.bf16.msra.mxu0 0
        %3344 = vmatprep.subr.bf16.mxu0 0
        %3345 = vmatpush1.bf16.msra.mxu0 0
        %3346 = vmatprep.subr.bf16.mxu0 0
        %3347 = vmatpush1.bf16.msra.mxu0 0
        %3348 = vmatprep.subr.bf16.mxu0 0
        %3349 = vmatpush1.bf16.msra.mxu0 0
        %3350 = vmatprep.subr.bf16.mxu0 0
        %3351 = vmatpush1.bf16.msra.mxu0 0
        %3352 = vmatprep.subr.bf16.mxu0 0
        %3353 = vmatpush1.bf16.msra.mxu0 0
        %3354 = vmatprep.subr.bf16.mxu0 0
        %3355 = vmatpush1.bf16.msra.mxu0 0
        %3356 = vmatprep.mubr.bf16.mxu0 0
        %3357 = vmatmul.mubr.bf16.gmra.mrb[0].mxu0 %v3318
        %v3358 = vpop.f32.mrb[0].mxu0
        %v3359 = vadd.f32 0.0, %v3358
        %v3360 = vpop.f32.mrb[0].mxu0
        %v3361 = vpop.f32.mrb[0].mxu0
        %v3362 = vpop.f32.mrb[0].mxu0
        %3363 = vdwg.mxu0
        %v3364 = vpack.c.bf16 %v3359, %v3359
        %s3365 = scalar_lea.vmem [#allocation13], 64
        %v3366 = vld [vmem:[%s3365] sm:$0xf]
        %v3367 = vld [vmem:[%s3365 + $0x4] sm:$0xf]
        %v3368 = vld [vmem:[%s3365 + $0x8] sm:$0xf]
        %v3369 = vld [vmem:[%s3365 + $0xc] sm:$0xf]
        %v3370 = vld [vmem:[%s3365 + $0x10] sm:$0xf]
        %v3371 = vld [vmem:[%s3365 + $0x14] sm:$0xf]
        %v3372 = vld [vmem:[%s3365 + $0x18] sm:$0xf]
        %v3373 = vld [vmem:[%s3365 + $0x1c] sm:$0xf]
        %v3374 = vld [vmem:[%s3365 + $0x20] sm:$0xf]
        %v3375 = vld [vmem:[%s3365 + $0x24] sm:$0xf]
        %v3376 = vld [vmem:[%s3365 + $0x28] sm:$0xf]
        %v3377 = vld [vmem:[%s3365 + $0x2c] sm:$0xf]
        %v3378 = vld [vmem:[%s3365 + $0x30] sm:$0xf]
        %v3379 = vld [vmem:[%s3365 + $0x34] sm:$0xf]
        %v3380 = vld [vmem:[%s3365 + $0x38] sm:$0xf]
        %v3381 = vld [vmem:[%s3365 + $0x3c] sm:$0xf]
        %v3382 = vpack.c.bf16 %v2820, %v2820
        %v3384 = vsel %vm3320, %v3382, 0
        %3386 = vmatprep.subr.bf16.mxu0 0
        %3387 = vmatpush1.bf16.msra.mxu0 %v3384
        %3388 = vmatprep.subr.bf16.mxu0 0
        %3389 = vmatpush1.bf16.msra.mxu0 0
        %3390 = vmatprep.subr.bf16.mxu0 0
        %3391 = vmatpush1.bf16.msra.mxu0 0
        %3392 = vmatprep.subr.bf16.mxu0 0
        %3393 = vmatpush1.bf16.msra.mxu0 0
        %3394 = vmatprep.subr.bf16.mxu0 0
        %3395 = vmatpush1.bf16.msra.mxu0 0
        %3396 = vmatprep.subr.bf16.mxu0 0
        %3397 = vmatpush1.bf16.msra.mxu0 0
        %3398 = vmatprep.subr.bf16.mxu0 0
        %3399 = vmatpush1.bf16.msra.mxu0 0
        %3400 = vmatprep.subr.bf16.mxu0 0
        %3401 = vmatpush1.bf16.msra.mxu0 0
        %3402 = vmatprep.subr.bf16.mxu0 0
        %3403 = vmatpush1.bf16.msra.mxu0 0
        %3404 = vmatprep.subr.bf16.mxu0 0
        %3405 = vmatpush1.bf16.msra.mxu0 0
        %3406 = vmatprep.subr.bf16.mxu0 0
        %3407 = vmatpush1.bf16.msra.mxu0 0
        %3408 = vmatprep.subr.bf16.mxu0 0
        %3409 = vmatpush1.bf16.msra.mxu0 0
        %3410 = vmatprep.subr.bf16.mxu0 0
        %3411 = vmatpush1.bf16.msra.mxu0 0
        %3412 = vmatprep.subr.bf16.mxu0 0
        %3413 = vmatpush1.bf16.msra.mxu0 0
        %3414 = vmatprep.subr.bf16.mxu0 0
        %3415 = vmatpush1.bf16.msra.mxu0 0
        %3416 = vmatprep.subr.bf16.mxu0 0
        %3417 = vmatpush1.bf16.msra.mxu0 0
        %3418 = vmatprep.mubr.bf16.mxu0 0
        %3419 = vmatmul.mubr.bf16.gmra.mrb[0].mxu0 %v3318
        %v3420 = vpop.f32.mrb[0].mxu0
        %v3421 = vadd.f32 0.0, %v3420
        %v3422 = vpop.f32.mrb[0].mxu0
        %v3423 = vpop.f32.mrb[0].mxu0
        %v3424 = vpop.f32.mrb[0].mxu0
        %3425 = vdwg.mxu0
        %v3426 = vpack.c.bf16 %v3421, %v3421
        %s3427 = scalar_lea.vmem [#allocation14], 32
        %v3428 = vld [vmem:[%s3427] sm:$0xf]
        %v3429 = vld [vmem:[%s3427 + $0x4] sm:$0xf]
        %v3430 = vld [vmem:[%s3427 + $0x8] sm:$0xf]
        %v3431 = vld [vmem:[%s3427 + $0xc] sm:$0xf]
        %v3432 = vld [vmem:[%s3427 + $0x10] sm:$0xf]
        %v3433 = vld [vmem:[%s3427 + $0x14] sm:$0xf]
        %v3434 = vld [vmem:[%s3427 + $0x18] sm:$0xf]
        %v3435 = vld [vmem:[%s3427 + $0x1c] sm:$0xf]
        %v3444 = vunpack.c.l.b16 %v3428
        %v3445 = vunpack.c.l.b16 %v3429
        %v3446 = vunpack.c.l.b16 %v3430
        %v3447 = vunpack.c.l.b16 %v3431
        %v3448 = vunpack.c.l.b16 %v3432
        %v3449 = vunpack.c.l.b16 %v3433
        %v3450 = vunpack.c.l.b16 %v3434
        %v3451 = vunpack.c.l.b16 %v3435
        %v3452 = vpack.c.b16 %v3445, %v3444
        %v3453 = vpack.c.b16 %v3447, %v3446
        %v3454 = vpack.c.b16 %v3449, %v3448
        %v3455 = vpack.c.b16 %v3451, %v3450
        %v3461 = vsel %vm538, %v3426, 0
        %3463 = vmatprep.subr.bf16.mxu0 0
        %3464 = vmatpush1.bf16.msra.mxu0 %v3452
        %3465 = vmatprep.subr.bf16.mxu0 0
        %3466 = vmatpush1.bf16.msra.mxu0 %v3453
        %3467 = vmatprep.subr.bf16.mxu0 0
        %3468 = vmatpush1.bf16.msra.mxu0 %v3454
        %3469 = vmatprep.subr.bf16.mxu0 0
        %3470 = vmatpush1.bf16.msra.mxu0 %v3455
        %3471 = vmatprep.subr.bf16.mxu0 0
        %3472 = vmatpush1.bf16.msra.mxu0 0
        %3473 = vmatprep.subr.bf16.mxu0 0
        %3474 = vmatpush1.bf16.msra.mxu0 0
        %3475 = vmatprep.subr.bf16.mxu0 0
        %3476 = vmatpush1.bf16.msra.mxu0 0
        %3477 = vmatprep.subr.bf16.mxu0 0
        %3478 = vmatpush1.bf16.msra.mxu0 0
        %3479 = vmatprep.subr.bf16.mxu0 0
        %3480 = vmatpush1.bf16.msra.mxu0 0
        %3481 = vmatprep.subr.bf16.mxu0 0
        %3482 = vmatpush1.bf16.msra.mxu0 0
        %3483 = vmatprep.subr.bf16.mxu0 0
        %3484 = vmatpush1.bf16.msra.mxu0 0
        %3485 = vmatprep.subr.bf16.mxu0 0
        %3486 = vmatpush1.bf16.msra.mxu0 0
        %3487 = vmatprep.subr.bf16.mxu0 0
        %3488 = vmatpush1.bf16.msra.mxu0 0
        %3489 = vmatprep.subr.bf16.mxu0 0
        %3490 = vmatpush1.bf16.msra.mxu0 0
        %3491 = vmatprep.subr.bf16.mxu0 0
        %3492 = vmatpush1.bf16.msra.mxu0 0
        %3493 = vmatprep.subr.bf16.mxu0 0
        %3494 = vmatpush1.bf16.msra.mxu0 0
        %3495 = vmatprep.mubr.bf16.mxu0 0
        %3496 = vmatmul.mubr.bf16.gmra.mrb[0].mxu0 %v3461
        %v3497 = vpop.f32.mrb[0].mxu0
        %v3498 = vadd.f32 0.0, %v3497
        %v3499 = vpop.f32.mrb[0].mxu0
        %v3500 = vpop.f32.mrb[0].mxu0
        %v3501 = vpop.f32.mrb[0].mxu0
        %3502 = vdwg.mxu0
        %v3503 = vpack.c.bf16 %v3498, %v3498
        %s3504 = scalar_lea.vmem [#allocation16], 16
        %v3505 = vld [vmem:[%s3504] sm:$0xf]
        %v3506 = vld [vmem:[%s3504 + $0x4] sm:$0xf]
        %v3507 = vld [vmem:[%s3504 + $0x8] sm:$0xf]
        %v3508 = vld [vmem:[%s3504 + $0xc] sm:$0xf]
        %s3509 = scalar_lea.vmem [#allocation8], 6
        %v3510 = vld [vmem:[%s3509] sm:$0x1]
        %v3512 = vlaneseq
        %v3513 = vshrl.u32 %v3512, 7
        %v3514 = vsub.s32 0, %v3513
        %v3515 = vrot.slane %v3510, %v3514
        %v3521 = vunpack.c.l.b16 %v3505
        %v3522 = vunpack.c.l.b16 %v3506
        %v3523 = vunpack.c.l.b16 %v3507
        %v3524 = vunpack.c.l.b16 %v3508
        %v3525 = vpack.c.b16 %v3522, %v3521
        %v3526 = vpack.c.b16 %v3524, %v3523
        %v3530 = vsel %vm1532, %v3503, 0
        %3532 = vmatprep.subr.bf16.mxu0 0
        %3533 = vmatpush1.bf16.msra.mxu0 %v3525
        %3534 = vmatprep.subr.bf16.mxu0 0
        %3535 = vmatpush1.bf16.msra.mxu0 %v3526
        %3536 = vmatprep.subr.bf16.mxu0 0
        %3537 = vmatpush1.bf16.msra.mxu0 0
        %3538 = vmatprep.subr.bf16.mxu0 0
        %3539 = vmatpush1.bf16.msra.mxu0 0
        %3540 = vmatprep.subr.bf16.mxu0 0
        %3541 = vmatpush1.bf16.msra.mxu0 0
        %3542 = vmatprep.subr.bf16.mxu0 0
        %3543 = vmatpush1.bf16.msra.mxu0 0
        %3544 = vmatprep.subr.bf16.mxu0 0
        %3545 = vmatpush1.bf16.msra.mxu0 0
        %3546 = vmatprep.subr.bf16.mxu0 0
        %3547 = vmatpush1.bf16.msra.mxu0 0
        %3548 = vmatprep.subr.bf16.mxu0 0
        %3549 = vmatpush1.bf16.msra.mxu0 0
        %3550 = vmatprep.subr.bf16.mxu0 0
        %3551 = vmatpush1.bf16.msra.mxu0 0
        %3552 = vmatprep.subr.bf16.mxu0 0
        %3553 = vmatpush1.bf16.msra.mxu0 0
        %3554 = vmatprep.subr.bf16.mxu0 0
        %3555 = vmatpush1.bf16.msra.mxu0 0
        %3556 = vmatprep.subr.bf16.mxu0 0
        %3557 = vmatpush1.bf16.msra.mxu0 0
        %3558 = vmatprep.subr.bf16.mxu0 0
        %3559 = vmatpush1.bf16.msra.mxu0 0
        %3560 = vmatprep.subr.bf16.mxu0 0
        %3561 = vmatpush1.bf16.msra.mxu0 0
        %3562 = vmatprep.subr.bf16.mxu0 0
        %3563 = vmatpush1.bf16.msra.mxu0 0
        %3564 = vmatprep.mubr.bf16.mxu0 0
        %3565 = vmatmul.mubr.bf16.gmra.mrb[0].mxu0 %v3530
        %v3566 = vpop.f32.mrb[0].mxu0
        %v3567 = vadd.f32 %v3515, %v3566
        %v3568 = vpop.f32.mrb[0].mxu0
        %v3569 = vpop.f32.mrb[0].mxu0
        %v3570 = vpop.f32.mrb[0].mxu0
        %3571 = vdwg.mxu0
        %v3588 = vunpack.c.l.b16 %v3366
        %v3589 = vunpack.c.l.b16 %v3367
        %v3590 = vunpack.c.l.b16 %v3368
        %v3591 = vunpack.c.l.b16 %v3369
        %v3592 = vunpack.c.l.b16 %v3370
        %v3593 = vunpack.c.l.b16 %v3371
        %v3594 = vunpack.c.l.b16 %v3372
        %v3595 = vunpack.c.l.b16 %v3373
        %v3596 = vunpack.c.l.b16 %v3374
        %v3597 = vunpack.c.l.b16 %v3375
        %v3598 = vunpack.c.l.b16 %v3376
        %v3599 = vunpack.c.l.b16 %v3377
        %v3600 = vunpack.c.l.b16 %v3378
        %v3601 = vunpack.c.l.b16 %v3379
        %v3602 = vunpack.c.l.b16 %v3380
        %v3603 = vunpack.c.l.b16 %v3381
        %v3604 = vpack.c.b16 %v3589, %v3588
        %v3605 = vpack.c.b16 %v3591, %v3590
        %v3606 = vpack.c.b16 %v3593, %v3592
        %v3607 = vpack.c.b16 %v3595, %v3594
        %v3608 = vpack.c.b16 %v3597, %v3596
        %v3609 = vpack.c.b16 %v3599, %v3598
        %v3610 = vpack.c.b16 %v3601, %v3600
        %v3611 = vpack.c.b16 %v3603, %v3602
        %3620 = vmatprep.subr.bf16.mxu0 0
        %3621 = vmatpush1.bf16.msra.mxu0 %v3604
        %3622 = vmatprep.subr.bf16.mxu0 0
        %3623 = vmatpush1.bf16.msra.mxu0 %v3605
        %3624 = vmatprep.subr.bf16.mxu0 0
        %3625 = vmatpush1.bf16.msra.mxu0 %v3606
        %3626 = vmatprep.subr.bf16.mxu0 0
        %3627 = vmatpush1.bf16.msra.mxu0 %v3607
        %3628 = vmatprep.subr.bf16.mxu0 0
        %3629 = vmatpush1.bf16.msra.mxu0 %v3608
        %3630 = vmatprep.subr.bf16.mxu0 0
        %3631 = vmatpush1.bf16.msra.mxu0 %v3609
        %3632 = vmatprep.subr.bf16.mxu0 0
        %3633 = vmatpush1.bf16.msra.mxu0 %v3610
        %3634 = vmatprep.subr.bf16.mxu0 0
        %3635 = vmatpush1.bf16.msra.mxu0 %v3611
        %3636 = vmatprep.subr.bf16.mxu0 0
        %3637 = vmatpush1.bf16.msra.mxu0 0
        %3638 = vmatprep.subr.bf16.mxu0 0
        %3639 = vmatpush1.bf16.msra.mxu0 0
        %3640 = vmatprep.subr.bf16.mxu0 0
        %3641 = vmatpush1.bf16.msra.mxu0 0
        %3642 = vmatprep.subr.bf16.mxu0 0
        %3643 = vmatpush1.bf16.msra.mxu0 0
        %3644 = vmatprep.subr.bf16.mxu0 0
        %3645 = vmatpush1.bf16.msra.mxu0 0
        %3646 = vmatprep.subr.bf16.mxu0 0
        %3647 = vmatpush1.bf16.msra.mxu0 0
        %3648 = vmatprep.subr.bf16.mxu0 0
        %3649 = vmatpush1.bf16.msra.mxu0 0
        %3650 = vmatprep.subr.bf16.mxu0 0
        %3651 = vmatpush1.bf16.msra.mxu0 0
        %3652 = vmatprep.mubr.bf16.mxu0 0
        %3653 = vmatmul.mubr.bf16.gmra.mrb[0].mxu0 %v3364
        %v3654 = vpop.f32.mrb[0].mxu0
        %v3655 = vadd.f32 %v3567, %v3654
        %v3656 = vpop.f32.mrb[0].mxu0
        %v3657 = vpop.f32.mrb[0].mxu0
        %v3658 = vpop.f32.mrb[0].mxu0
        %3659 = vdwg.mxu0
        %vm3660 = vcmp.gt.f32.partialorder %v3655, 0.0
        %v3661 = vmin.f32 %v3655, 0.0
        %v3662 = vmul.f32 %v3661, 1.442695
        %v3663 = vpow.pop %v3662
        %v3664 = vsub.f32 %v3663, 1.0
        %v3665 = vsel %vm3660, %v3655, %v3664
        %vm3666 = vcmask 519168
        %3667 = vst.msk [vmem:[#allocation4 + $0x8] sm:$0xf] %vm3666, %v3665
        %v3668 = vld [vmem:[#allocation4 + $0x7] sm:$0xf]
        %v3669 = vpack.c.bf16 %v3668, %v3668
        %s3670 = scalar_lea.vmem [#allocation6], 672
        %v3671 = vld [vmem:[%s3670] sm:$0xf]
        %v3672 = vld [vmem:[%s3670 + $0x4] sm:$0xf]
        %v3673 = vld [vmem:[%s3670 + $0x8] sm:$0xf]
        %v3674 = vld [vmem:[%s3670 + $0xc] sm:$0xf]
        %v3675 = vld [vmem:[%s3670 + $0x10] sm:$0xf]
        %v3676 = vld [vmem:[%s3670 + $0x14] sm:$0xf]
        %v3677 = vld [vmem:[%s3670 + $0x18] sm:$0xf]
        %v3678 = vld [vmem:[%s3670 + $0x1c] sm:$0xf]
        %v3679 = vld [vmem:[#allocation4 + $0x8] sm:$0xf]
        %v3680 = vpack.c.bf16 %v3679, %v3679
        %s3681 = scalar_lea.vmem [#allocation6], 704
        %v3682 = vld [vmem:[%s3681] sm:$0xf]
        %v3683 = vld [vmem:[%s3681 + $0x4] sm:$0xf]
        %v3684 = vld [vmem:[%s3681 + $0x8] sm:$0xf]
        %v3685 = vld [vmem:[%s3681 + $0xc] sm:$0xf]
        %v3686 = vld [vmem:[%s3681 + $0x10] sm:$0xf]
        %v3687 = vld [vmem:[%s3681 + $0x14] sm:$0xf]
        %v3688 = vld [vmem:[%s3681 + $0x18] sm:$0xf]
        %v3689 = vld [vmem:[%s3681 + $0x1c] sm:$0xf]
        %v3698 = vunpack.c.l.b16 %v3682
        %v3699 = vunpack.c.l.b16 %v3683
        %v3700 = vunpack.c.l.b16 %v3684
        %v3701 = vunpack.c.l.b16 %v3685
        %v3702 = vunpack.c.l.b16 %v3686
        %v3703 = vunpack.c.l.b16 %v3687
        %v3704 = vunpack.c.l.b16 %v3688
        %v3705 = vunpack.c.l.b16 %v3689
        %v3706 = vpack.c.b16 %v3699, %v3698
        %v3707 = vpack.c.b16 %v3701, %v3700
        %v3708 = vpack.c.b16 %v3703, %v3702
        %v3709 = vpack.c.b16 %v3705, %v3704
        %v3715 = vsel %vm538, %v3680, 0
        %3717 = vmatprep.subr.bf16.mxu0 0
        %3718 = vmatpush1.bf16.msra.mxu0 %v3706
        %3719 = vmatprep.subr.bf16.mxu0 0
        %3720 = vmatpush1.bf16.msra.mxu0 %v3707
        %3721 = vmatprep.subr.bf16.mxu0 0
        %3722 = vmatpush1.bf16.msra.mxu0 %v3708
        %3723 = vmatprep.subr.bf16.mxu0 0
        %3724 = vmatpush1.bf16.msra.mxu0 %v3709
        %3725 = vmatprep.subr.bf16.mxu0 0
        %3726 = vmatpush1.bf16.msra.mxu0 0
        %3727 = vmatprep.subr.bf16.mxu0 0
        %3728 = vmatpush1.bf16.msra.mxu0 0
        %3729 = vmatprep.subr.bf16.mxu0 0
        %3730 = vmatpush1.bf16.msra.mxu0 0
        %3731 = vmatprep.subr.bf16.mxu0 0
        %3732 = vmatpush1.bf16.msra.mxu0 0
        %3733 = vmatprep.subr.bf16.mxu0 0
        %3734 = vmatpush1.bf16.msra.mxu0 0
        %3735 = vmatprep.subr.bf16.mxu0 0
        %3736 = vmatpush1.bf16.msra.mxu0 0
        %3737 = vmatprep.subr.bf16.mxu0 0
        %3738 = vmatpush1.bf16.msra.mxu0 0
        %3739 = vmatprep.subr.bf16.mxu0 0
        %3740 = vmatpush1.bf16.msra.mxu0 0
        %3741 = vmatprep.subr.bf16.mxu0 0
        %3742 = vmatpush1.bf16.msra.mxu0 0
        %3743 = vmatprep.subr.bf16.mxu0 0
        %3744 = vmatpush1.bf16.msra.mxu0 0
        %3745 = vmatprep.subr.bf16.mxu0 0
        %3746 = vmatpush1.bf16.msra.mxu0 0
        %3747 = vmatprep.subr.bf16.mxu0 0
        %3748 = vmatpush1.bf16.msra.mxu0 0
        %3749 = vmatprep.mubr.bf16.mxu0 0
        %3750 = vmatmul.mubr.bf16.gmra.mrb[0].mxu0 %v3715
        %v3751 = vpop.f32.mrb[0].mxu0
        %v3752 = vadd.f32 0.0, %v3751
        %v3753 = vpop.f32.mrb[0].mxu0
        %v3754 = vpop.f32.mrb[0].mxu0
        %v3755 = vpop.f32.mrb[0].mxu0
        %3756 = vdwg.mxu0
        %v3757 = vld [vmem:[#allocation4 + $0x9] sm:$0xf]
        %v3758 = vpack.c.bf16 %v3757, %v3757
        %s3759 = scalar_lea.vmem [#allocation6], 736
        %v3760 = vld [vmem:[%s3759] sm:$0xf]
        %v3761 = vld [vmem:[%s3759 + $0x4] sm:$0xf]
        %v3762 = vld [vmem:[%s3759 + $0x8] sm:$0xf]
        %v3763 = vld [vmem:[%s3759 + $0xc] sm:$0xf]
        %v3764 = vld [vmem:[%s3759 + $0x10] sm:$0xf]
        %v3765 = vld [vmem:[%s3759 + $0x14] sm:$0xf]
        %v3766 = vld [vmem:[%s3759 + $0x18] sm:$0xf]
        %v3767 = vld [vmem:[%s3759 + $0x1c] sm:$0xf]
        %v3776 = vunpack.c.l.b16 %v3760
        %v3777 = vunpack.c.l.b16 %v3761
        %v3778 = vunpack.c.l.b16 %v3762
        %v3779 = vunpack.c.l.b16 %v3763
        %v3780 = vunpack.c.l.b16 %v3764
        %v3781 = vunpack.c.l.b16 %v3765
        %v3782 = vunpack.c.l.b16 %v3766
        %v3783 = vunpack.c.l.b16 %v3767
        %v3784 = vpack.c.b16 %v3777, %v3776
        %v3785 = vpack.c.b16 %v3779, %v3778
        %v3786 = vpack.c.b16 %v3781, %v3780
        %v3787 = vpack.c.b16 %v3783, %v3782
        %v3793 = vsel %vm538, %v3758, 0
        %3795 = vmatprep.subr.bf16.mxu0 0
        %3796 = vmatpush1.bf16.msra.mxu0 %v3784
        %3797 = vmatprep.subr.bf16.mxu0 0
        %3798 = vmatpush1.bf16.msra.mxu0 %v3785
        %3799 = vmatprep.subr.bf16.mxu0 0
        %3800 = vmatpush1.bf16.msra.mxu0 %v3786
        %3801 = vmatprep.subr.bf16.mxu0 0
        %3802 = vmatpush1.bf16.msra.mxu0 %v3787
        %3803 = vmatprep.subr.bf16.mxu0 0
        %3804 = vmatpush1.bf16.msra.mxu0 0
        %3805 = vmatprep.subr.bf16.mxu0 0
        %3806 = vmatpush1.bf16.msra.mxu0 0
        %3807 = vmatprep.subr.bf16.mxu0 0
        %3808 = vmatpush1.bf16.msra.mxu0 0
        %3809 = vmatprep.subr.bf16.mxu0 0
        %3810 = vmatpush1.bf16.msra.mxu0 0
        %3811 = vmatprep.subr.bf16.mxu0 0
        %3812 = vmatpush1.bf16.msra.mxu0 0
        %3813 = vmatprep.subr.bf16.mxu0 0
        %3814 = vmatpush1.bf16.msra.mxu0 0
        %3815 = vmatprep.subr.bf16.mxu0 0
        %3816 = vmatpush1.bf16.msra.mxu0 0
        %3817 = vmatprep.subr.bf16.mxu0 0
        %3818 = vmatpush1.bf16.msra.mxu0 0
        %3819 = vmatprep.subr.bf16.mxu0 0
        %3820 = vmatpush1.bf16.msra.mxu0 0
        %3821 = vmatprep.subr.bf16.mxu0 0
        %3822 = vmatpush1.bf16.msra.mxu0 0
        %3823 = vmatprep.subr.bf16.mxu0 0
        %3824 = vmatpush1.bf16.msra.mxu0 0
        %3825 = vmatprep.subr.bf16.mxu0 0
        %3826 = vmatpush1.bf16.msra.mxu0 0
        %3827 = vmatprep.mubr.bf16.mxu0 0
        %3828 = vmatmul.mubr.bf16.gmra.mrb[0].mxu0 %v3793
        %v3829 = vpop.f32.mrb[0].mxu0
        %v3830 = vadd.f32 0.0, %v3829
        %v3831 = vpop.f32.mrb[0].mxu0
        %v3832 = vpop.f32.mrb[0].mxu0
        %v3833 = vpop.f32.mrb[0].mxu0
        %3834 = vdwg.mxu0
        %v3843 = vunpack.c.l.b16 %v3671
        %v3844 = vunpack.c.l.b16 %v3672
        %v3845 = vunpack.c.l.b16 %v3673
        %v3846 = vunpack.c.l.b16 %v3674
        %v3847 = vunpack.c.l.b16 %v3675
        %v3848 = vunpack.c.l.b16 %v3676
        %v3849 = vunpack.c.l.b16 %v3677
        %v3850 = vunpack.c.l.b16 %v3678
        %v3851 = vpack.c.b16 %v3844, %v3843
        %v3852 = vpack.c.b16 %v3846, %v3845
        %v3853 = vpack.c.b16 %v3848, %v3847
        %v3854 = vpack.c.b16 %v3850, %v3849
        %v3860 = vsel %vm538, %v3669, 0
        %3862 = vmatprep.subr.bf16.mxu0 0
        %3863 = vmatpush1.bf16.msra.mxu0 %v3851
        %3864 = vmatprep.subr.bf16.mxu0 0
        %3865 = vmatpush1.bf16.msra.mxu0 %v3852
        %3866 = vmatprep.subr.bf16.mxu0 0
        %3867 = vmatpush1.bf16.msra.mxu0 %v3853
        %3868 = vmatprep.subr.bf16.mxu0 0
        %3869 = vmatpush1.bf16.msra.mxu0 %v3854
        %3870 = vmatprep.subr.bf16.mxu0 0
        %3871 = vmatpush1.bf16.msra.mxu0 0
        %3872 = vmatprep.subr.bf16.mxu0 0
        %3873 = vmatpush1.bf16.msra.mxu0 0
        %3874 = vmatprep.subr.bf16.mxu0 0
        %3875 = vmatpush1.bf16.msra.mxu0 0
        %3876 = vmatprep.subr.bf16.mxu0 0
        %3877 = vmatpush1.bf16.msra.mxu0 0
        %3878 = vmatprep.subr.bf16.mxu0 0
        %3879 = vmatpush1.bf16.msra.mxu0 0
        %3880 = vmatprep.subr.bf16.mxu0 0
        %3881 = vmatpush1.bf16.msra.mxu0 0
        %3882 = vmatprep.subr.bf16.mxu0 0
        %3883 = vmatpush1.bf16.msra.mxu0 0
        %3884 = vmatprep.subr.bf16.mxu0 0
        %3885 = vmatpush1.bf16.msra.mxu0 0
        %3886 = vmatprep.subr.bf16.mxu0 0
        %3887 = vmatpush1.bf16.msra.mxu0 0
        %3888 = vmatprep.subr.bf16.mxu0 0
        %3889 = vmatpush1.bf16.msra.mxu0 0
        %3890 = vmatprep.subr.bf16.mxu0 0
        %3891 = vmatpush1.bf16.msra.mxu0 0
        %3892 = vmatprep.subr.bf16.mxu0 0
        %3893 = vmatpush1.bf16.msra.mxu0 0
        %3894 = vmatprep.mubr.bf16.mxu0 0
        %3895 = vmatmul.mubr.bf16.gmra.mrb[0].mxu0 %v3860
        %v3896 = vpop.f32.mrb[0].mxu0
        %v3897 = vadd.f32 %v3752, %v3896
        %v3898 = vpop.f32.mrb[0].mxu0
        %v3899 = vpop.f32.mrb[0].mxu0
        %v3900 = vpop.f32.mrb[0].mxu0
        %3901 = vdwg.mxu0
        %v3902 = vadd.f32 %v3897, %v3830
        %vm3903 = vcmp.gt.f32.partialorder %v3902, 0.0
        %v3904 = vmin.f32 %v3902, 0.0
        %v3905 = vmul.f32 %v3904, 1.442695
        %v3906 = vpow.pop %v3905
        %v3907 = vsub.f32 %v3906, 1.0
        %v3908 = vsel %vm3903, %v3902, %v3907
        %3909 = vst.msk [vmem:[#allocation4 + $0x8] sm:$0xf] %vm3666, %v3908
        %v3910 = vld [vmem:[#allocation4 + $0x7] sm:$0xf]
        %v3911 = vpack.c.bf16 %v3910, %v3910
        %s3912 = scalar_lea.vmem [#allocation6], 768
        %v3913 = vld [vmem:[%s3912] sm:$0xf]
        %v3914 = vld [vmem:[%s3912 + $0x4] sm:$0xf]
        %v3915 = vld [vmem:[%s3912 + $0x8] sm:$0xf]
        %v3916 = vld [vmem:[%s3912 + $0xc] sm:$0xf]
        %v3917 = vld [vmem:[%s3912 + $0x10] sm:$0xf]
        %v3918 = vld [vmem:[%s3912 + $0x14] sm:$0xf]
        %v3919 = vld [vmem:[%s3912 + $0x18] sm:$0xf]
        %v3920 = vld [vmem:[%s3912 + $0x1c] sm:$0xf]
        %v3921 = vld [vmem:[#allocation4 + $0x8] sm:$0xf]
        %v3922 = vpack.c.bf16 %v3921, %v3921
        %s3923 = scalar_lea.vmem [#allocation6], 800
        %v3924 = vld [vmem:[%s3923] sm:$0xf]
        %v3925 = vld [vmem:[%s3923 + $0x4] sm:$0xf]
        %v3926 = vld [vmem:[%s3923 + $0x8] sm:$0xf]
        %v3927 = vld [vmem:[%s3923 + $0xc] sm:$0xf]
        %v3928 = vld [vmem:[%s3923 + $0x10] sm:$0xf]
        %v3929 = vld [vmem:[%s3923 + $0x14] sm:$0xf]
        %v3930 = vld [vmem:[%s3923 + $0x18] sm:$0xf]
        %v3931 = vld [vmem:[%s3923 + $0x1c] sm:$0xf]
        %v3940 = vunpack.c.l.b16 %v3924
        %v3941 = vunpack.c.l.b16 %v3925
        %v3942 = vunpack.c.l.b16 %v3926
        %v3943 = vunpack.c.l.b16 %v3927
        %v3944 = vunpack.c.l.b16 %v3928
        %v3945 = vunpack.c.l.b16 %v3929
        %v3946 = vunpack.c.l.b16 %v3930
        %v3947 = vunpack.c.l.b16 %v3931
        %v3948 = vpack.c.b16 %v3941, %v3940
        %v3949 = vpack.c.b16 %v3943, %v3942
        %v3950 = vpack.c.b16 %v3945, %v3944
        %v3951 = vpack.c.b16 %v3947, %v3946
        %v3957 = vsel %vm538, %v3922, 0
        %3959 = vmatprep.subr.bf16.mxu0 0
        %3960 = vmatpush1.bf16.msra.mxu0 %v3948
        %3961 = vmatprep.subr.bf16.mxu0 0
        %3962 = vmatpush1.bf16.msra.mxu0 %v3949
        %3963 = vmatprep.subr.bf16.mxu0 0
        %3964 = vmatpush1.bf16.msra.mxu0 %v3950
        %3965 = vmatprep.subr.bf16.mxu0 0
        %3966 = vmatpush1.bf16.msra.mxu0 %v3951
        %3967 = vmatprep.subr.bf16.mxu0 0
        %3968 = vmatpush1.bf16.msra.mxu0 0
        %3969 = vmatprep.subr.bf16.mxu0 0
        %3970 = vmatpush1.bf16.msra.mxu0 0
        %3971 = vmatprep.subr.bf16.mxu0 0
        %3972 = vmatpush1.bf16.msra.mxu0 0
        %3973 = vmatprep.subr.bf16.mxu0 0
        %3974 = vmatpush1.bf16.msra.mxu0 0
        %3975 = vmatprep.subr.bf16.mxu0 0
        %3976 = vmatpush1.bf16.msra.mxu0 0
        %3977 = vmatprep.subr.bf16.mxu0 0
        %3978 = vmatpush1.bf16.msra.mxu0 0
        %3979 = vmatprep.subr.bf16.mxu0 0
        %3980 = vmatpush1.bf16.msra.mxu0 0
        %3981 = vmatprep.subr.bf16.mxu0 0
        %3982 = vmatpush1.bf16.msra.mxu0 0
        %3983 = vmatprep.subr.bf16.mxu0 0
        %3984 = vmatpush1.bf16.msra.mxu0 0
        %3985 = vmatprep.subr.bf16.mxu0 0
        %3986 = vmatpush1.bf16.msra.mxu0 0
        %3987 = vmatprep.subr.bf16.mxu0 0
        %3988 = vmatpush1.bf16.msra.mxu0 0
        %3989 = vmatprep.subr.bf16.mxu0 0
        %3990 = vmatpush1.bf16.msra.mxu0 0
        %3991 = vmatprep.mubr.bf16.mxu0 0
        %3992 = vmatmul.mubr.bf16.gmra.mrb[0].mxu0 %v3957
        %v3993 = vpop.f32.mrb[0].mxu0
        %v3994 = vadd.f32 0.0, %v3993
        %v3995 = vpop.f32.mrb[0].mxu0
        %v3996 = vpop.f32.mrb[0].mxu0
        %v3997 = vpop.f32.mrb[0].mxu0
        %3998 = vdwg.mxu0
        %v3999 = vld [vmem:[#allocation4 + $0x9] sm:$0xf]
        %v4000 = vpack.c.bf16 %v3999, %v3999
        %s4001 = scalar_lea.vmem [#allocation6], 832
        %v4002 = vld [vmem:[%s4001] sm:$0xf]
        %v4003 = vld [vmem:[%s4001 + $0x4] sm:$0xf]
        %v4004 = vld [vmem:[%s4001 + $0x8] sm:$0xf]
        %v4005 = vld [vmem:[%s4001 + $0xc] sm:$0xf]
        %v4006 = vld [vmem:[%s4001 + $0x10] sm:$0xf]
        %v4007 = vld [vmem:[%s4001 + $0x14] sm:$0xf]
        %v4008 = vld [vmem:[%s4001 + $0x18] sm:$0xf]
        %v4009 = vld [vmem:[%s4001 + $0x1c] sm:$0xf]
        %v4018 = vunpack.c.l.b16 %v4002
        %v4019 = vunpack.c.l.b16 %v4003
        %v4020 = vunpack.c.l.b16 %v4004
        %v4021 = vunpack.c.l.b16 %v4005
        %v4022 = vunpack.c.l.b16 %v4006
        %v4023 = vunpack.c.l.b16 %v4007
        %v4024 = vunpack.c.l.b16 %v4008
        %v4025 = vunpack.c.l.b16 %v4009
        %v4026 = vpack.c.b16 %v4019, %v4018
        %v4027 = vpack.c.b16 %v4021, %v4020
        %v4028 = vpack.c.b16 %v4023, %v4022
        %v4029 = vpack.c.b16 %v4025, %v4024
        %v4035 = vsel %vm538, %v4000, 0
        %4037 = vmatprep.subr.bf16.mxu0 0
        %4038 = vmatpush1.bf16.msra.mxu0 %v4026
        %4039 = vmatprep.subr.bf16.mxu0 0
        %4040 = vmatpush1.bf16.msra.mxu0 %v4027
        %4041 = vmatprep.subr.bf16.mxu0 0
        %4042 = vmatpush1.bf16.msra.mxu0 %v4028
        %4043 = vmatprep.subr.bf16.mxu0 0
        %4044 = vmatpush1.bf16.msra.mxu0 %v4029
        %4045 = vmatprep.subr.bf16.mxu0 0
        %4046 = vmatpush1.bf16.msra.mxu0 0
        %4047 = vmatprep.subr.bf16.mxu0 0
        %4048 = vmatpush1.bf16.msra.mxu0 0
        %4049 = vmatprep.subr.bf16.mxu0 0
        %4050 = vmatpush1.bf16.msra.mxu0 0
        %4051 = vmatprep.subr.bf16.mxu0 0
        %4052 = vmatpush1.bf16.msra.mxu0 0
        %4053 = vmatprep.subr.bf16.mxu0 0
        %4054 = vmatpush1.bf16.msra.mxu0 0
        %4055 = vmatprep.subr.bf16.mxu0 0
        %4056 = vmatpush1.bf16.msra.mxu0 0
        %4057 = vmatprep.subr.bf16.mxu0 0
        %4058 = vmatpush1.bf16.msra.mxu0 0
        %4059 = vmatprep.subr.bf16.mxu0 0
        %4060 = vmatpush1.bf16.msra.mxu0 0
        %4061 = vmatprep.subr.bf16.mxu0 0
        %4062 = vmatpush1.bf16.msra.mxu0 0
        %4063 = vmatprep.subr.bf16.mxu0 0
        %4064 = vmatpush1.bf16.msra.mxu0 0
        %4065 = vmatprep.subr.bf16.mxu0 0
        %4066 = vmatpush1.bf16.msra.mxu0 0
        %4067 = vmatprep.subr.bf16.mxu0 0
        %4068 = vmatpush1.bf16.msra.mxu0 0
        %4069 = vmatprep.mubr.bf16.mxu0 0
        %4070 = vmatmul.mubr.bf16.gmra.mrb[0].mxu0 %v4035
        %v4071 = vpop.f32.mrb[0].mxu0
        %v4072 = vadd.f32 0.0, %v4071
        %v4073 = vpop.f32.mrb[0].mxu0
        %v4074 = vpop.f32.mrb[0].mxu0
        %v4075 = vpop.f32.mrb[0].mxu0
        %4076 = vdwg.mxu0
        %v4085 = vunpack.c.l.b16 %v3913
        %v4086 = vunpack.c.l.b16 %v3914
        %v4087 = vunpack.c.l.b16 %v3915
        %v4088 = vunpack.c.l.b16 %v3916
        %v4089 = vunpack.c.l.b16 %v3917
        %v4090 = vunpack.c.l.b16 %v3918
        %v4091 = vunpack.c.l.b16 %v3919
        %v4092 = vunpack.c.l.b16 %v3920
        %v4093 = vpack.c.b16 %v4086, %v4085
        %v4094 = vpack.c.b16 %v4088, %v4087
        %v4095 = vpack.c.b16 %v4090, %v4089
        %v4096 = vpack.c.b16 %v4092, %v4091
        %v4102 = vsel %vm538, %v3911, 0
        %4104 = vmatprep.subr.bf16.mxu0 0
        %4105 = vmatpush1.bf16.msra.mxu0 %v4093
        %4106 = vmatprep.subr.bf16.mxu0 0
        %4107 = vmatpush1.bf16.msra.mxu0 %v4094
        %4108 = vmatprep.subr.bf16.mxu0 0
        %4109 = vmatpush1.bf16.msra.mxu0 %v4095
        %4110 = vmatprep.subr.bf16.mxu0 0
        %4111 = vmatpush1.bf16.msra.mxu0 %v4096
        %4112 = vmatprep.subr.bf16.mxu0 0
        %4113 = vmatpush1.bf16.msra.mxu0 0
        %4114 = vmatprep.subr.bf16.mxu0 0
        %4115 = vmatpush1.bf16.msra.mxu0 0
        %4116 = vmatprep.subr.bf16.mxu0 0
        %4117 = vmatpush1.bf16.msra.mxu0 0
        %4118 = vmatprep.subr.bf16.mxu0 0
        %4119 = vmatpush1.bf16.msra.mxu0 0
        %4120 = vmatprep.subr.bf16.mxu0 0
        %4121 = vmatpush1.bf16.msra.mxu0 0
        %4122 = vmatprep.subr.bf16.mxu0 0
        %4123 = vmatpush1.bf16.msra.mxu0 0
        %4124 = vmatprep.subr.bf16.mxu0 0
        %4125 = vmatpush1.bf16.msra.mxu0 0
        %4126 = vmatprep.subr.bf16.mxu0 0
        %4127 = vmatpush1.bf16.msra.mxu0 0
        %4128 = vmatprep.subr.bf16.mxu0 0
        %4129 = vmatpush1.bf16.msra.mxu0 0
        %4130 = vmatprep.subr.bf16.mxu0 0
        %4131 = vmatpush1.bf16.msra.mxu0 0
        %4132 = vmatprep.subr.bf16.mxu0 0
        %4133 = vmatpush1.bf16.msra.mxu0 0
        %4134 = vmatprep.subr.bf16.mxu0 0
        %4135 = vmatpush1.bf16.msra.mxu0 0
        %4136 = vmatprep.mubr.bf16.mxu0 0
        %4137 = vmatmul.mubr.bf16.gmra.mrb[0].mxu0 %v4102
        %v4138 = vpop.f32.mrb[0].mxu0
        %v4139 = vadd.f32 %v3994, %v4138
        %v4140 = vpop.f32.mrb[0].mxu0
        %v4141 = vpop.f32.mrb[0].mxu0
        %v4142 = vpop.f32.mrb[0].mxu0
        %4143 = vdwg.mxu0
        %v4144 = vadd.f32 %v4139, %v4072
        %s4145 = scalar_lea.vmem [#allocation8], 7
        %v4146 = vld [vmem:[%s4145] sm:$0x1]
        %v4148 = vlaneseq
        %v4149 = vshrl.u32 %v4148, 7
        %v4150 = vsub.s32 0, %v4149
        %v4151 = vrot.slane %v4146, %v4150
        %v4153 = vadd.f32 %v4144, %v4151
        %v4154 = vpack.c.bf16 %v3655, %v3655
        %s4155 = scalar_lea.vmem %s9, 64
        %v4156 = vld [vmem:[%s4155] sm:$0xf]
        %v4157 = vld [vmem:[%s4155 + $0x4] sm:$0xf]
        %v4158 = vld [vmem:[%s4155 + $0x8] sm:$0xf]
        %v4159 = vld [vmem:[%s4155 + $0xc] sm:$0xf]
        %v4160 = vld [vmem:[%s4155 + $0x10] sm:$0xf]
        %v4161 = vld [vmem:[%s4155 + $0x14] sm:$0xf]
        %v4162 = vld [vmem:[%s4155 + $0x18] sm:$0xf]
        %v4163 = vld [vmem:[%s4155 + $0x1c] sm:$0xf]
        %s4164 = scalar_lea.vmem [#allocation8], 8
        %v4165 = vld [vmem:[%s4164] sm:$0x1]
        %v4167 = vlaneseq
        %v4168 = vshrl.u32 %v4167, 7
        %v4169 = vsub.s32 0, %v4168
        %v4170 = vrot.slane %v4165, %v4169
        %v4180 = vunpack.c.l.b16 %v4156
        %v4181 = vunpack.c.l.b16 %v4157
        %v4182 = vunpack.c.l.b16 %v4158
        %v4183 = vunpack.c.l.b16 %v4159
        %v4184 = vunpack.c.l.b16 %v4160
        %v4185 = vunpack.c.l.b16 %v4161
        %v4186 = vunpack.c.l.b16 %v4162
        %v4187 = vunpack.c.l.b16 %v4163
        %v4188 = vpack.c.b16 %v4181, %v4180
        %v4189 = vpack.c.b16 %v4183, %v4182
        %v4190 = vpack.c.b16 %v4185, %v4184
        %v4191 = vpack.c.b16 %v4187, %v4186
        %v4197 = vsel %vm538, %v4154, 0
        %4199 = vmatprep.subr.bf16.mxu0 0
        %4200 = vmatpush1.bf16.msra.mxu0 %v4188
        %4201 = vmatprep.subr.bf16.mxu0 0
        %4202 = vmatpush1.bf16.msra.mxu0 %v4189
        %4203 = vmatprep.subr.bf16.mxu0 0
        %4204 = vmatpush1.bf16.msra.mxu0 %v4190
        %4205 = vmatprep.subr.bf16.mxu0 0
        %4206 = vmatpush1.bf16.msra.mxu0 %v4191
        %4207 = vmatprep.subr.bf16.mxu0 0
        %4208 = vmatpush1.bf16.msra.mxu0 0
        %4209 = vmatprep.subr.bf16.mxu0 0
        %4210 = vmatpush1.bf16.msra.mxu0 0
        %4211 = vmatprep.subr.bf16.mxu0 0
        %4212 = vmatpush1.bf16.msra.mxu0 0
        %4213 = vmatprep.subr.bf16.mxu0 0
        %4214 = vmatpush1.bf16.msra.mxu0 0
        %4215 = vmatprep.subr.bf16.mxu0 0
        %4216 = vmatpush1.bf16.msra.mxu0 0
        %4217 = vmatprep.subr.bf16.mxu0 0
        %4218 = vmatpush1.bf16.msra.mxu0 0
        %4219 = vmatprep.subr.bf16.mxu0 0
        %4220 = vmatpush1.bf16.msra.mxu0 0
        %4221 = vmatprep.subr.bf16.mxu0 0
        %4222 = vmatpush1.bf16.msra.mxu0 0
        %4223 = vmatprep.subr.bf16.mxu0 0
        %4224 = vmatpush1.bf16.msra.mxu0 0
        %4225 = vmatprep.subr.bf16.mxu0 0
        %4226 = vmatpush1.bf16.msra.mxu0 0
        %4227 = vmatprep.subr.bf16.mxu0 0
        %4228 = vmatpush1.bf16.msra.mxu0 0
        %4229 = vmatprep.subr.bf16.mxu0 0
        %4230 = vmatpush1.bf16.msra.mxu0 0
        %4231 = vmatprep.mubr.bf16.mxu0 0
        %4232 = vmatmul.mubr.bf16.gmra.mrb[0].mxu0 %v4197
        %v4233 = vpop.f32.mrb[0].mxu0
        %v4234 = vadd.f32 %v4170, %v4233
        %v4235 = vpop.f32.mrb[0].mxu0
        %v4236 = vpop.f32.mrb[0].mxu0
        %v4237 = vpop.f32.mrb[0].mxu0
        %4238 = vdwg.mxu0
        %v4239 = vadd.f32 %v4153, %v4234
        %vm4240 = vcmp.gt.f32.partialorder %v4239, 0.0
        %v4241 = vmin.f32 %v4239, 0.0
        %v4242 = vmul.f32 %v4241, 1.442695
        %v4243 = vpow.pop %v4242
        %v4244 = vsub.f32 %v4243, 1.0
        %v4245 = vsel %vm4240, %v4239, %v4244
        %4246 = vst.msk [vmem:[#allocation4 + $0x8] sm:$0xf] %vm3666, %v4245
        %v4247 = vld [vmem:[#allocation4 + $0x7] sm:$0xf]
        %v4248 = vpack.c.bf16 %v4247, %v4247
        %s4249 = scalar_lea.vmem [#allocation6], 864
        %v4250 = vld [vmem:[%s4249] sm:$0xf]
        %v4251 = vld [vmem:[%s4249 + $0x4] sm:$0xf]
        %v4252 = vld [vmem:[%s4249 + $0x8] sm:$0xf]
        %v4253 = vld [vmem:[%s4249 + $0xc] sm:$0xf]
        %v4254 = vld [vmem:[%s4249 + $0x10] sm:$0xf]
        %v4255 = vld [vmem:[%s4249 + $0x14] sm:$0xf]
        %v4256 = vld [vmem:[%s4249 + $0x18] sm:$0xf]
        %v4257 = vld [vmem:[%s4249 + $0x1c] sm:$0xf]
        %v4258 = vld [vmem:[#allocation4 + $0x8] sm:$0xf]
        %v4259 = vpack.c.bf16 %v4258, %v4258
        %s4260 = scalar_lea.vmem [#allocation6], 896
        %v4261 = vld [vmem:[%s4260] sm:$0xf]
        %v4262 = vld [vmem:[%s4260 + $0x4] sm:$0xf]
        %v4263 = vld [vmem:[%s4260 + $0x8] sm:$0xf]
        %v4264 = vld [vmem:[%s4260 + $0xc] sm:$0xf]
        %v4265 = vld [vmem:[%s4260 + $0x10] sm:$0xf]
        %v4266 = vld [vmem:[%s4260 + $0x14] sm:$0xf]
        %v4267 = vld [vmem:[%s4260 + $0x18] sm:$0xf]
        %v4268 = vld [vmem:[%s4260 + $0x1c] sm:$0xf]
        %v4277 = vunpack.c.l.b16 %v4261
        %v4278 = vunpack.c.l.b16 %v4262
        %v4279 = vunpack.c.l.b16 %v4263
        %v4280 = vunpack.c.l.b16 %v4264
        %v4281 = vunpack.c.l.b16 %v4265
        %v4282 = vunpack.c.l.b16 %v4266
        %v4283 = vunpack.c.l.b16 %v4267
        %v4284 = vunpack.c.l.b16 %v4268
        %v4285 = vpack.c.b16 %v4278, %v4277
        %v4286 = vpack.c.b16 %v4280, %v4279
        %v4287 = vpack.c.b16 %v4282, %v4281
        %v4288 = vpack.c.b16 %v4284, %v4283
        %v4294 = vsel %vm538, %v4259, 0
        %4296 = vmatprep.subr.bf16.mxu0 0
        %4297 = vmatpush1.bf16.msra.mxu0 %v4285
        %4298 = vmatprep.subr.bf16.mxu0 0
        %4299 = vmatpush1.bf16.msra.mxu0 %v4286
        %4300 = vmatprep.subr.bf16.mxu0 0
        %4301 = vmatpush1.bf16.msra.mxu0 %v4287
        %4302 = vmatprep.subr.bf16.mxu0 0
        %4303 = vmatpush1.bf16.msra.mxu0 %v4288
        %4304 = vmatprep.subr.bf16.mxu0 0
        %4305 = vmatpush1.bf16.msra.mxu0 0
        %4306 = vmatprep.subr.bf16.mxu0 0
        %4307 = vmatpush1.bf16.msra.mxu0 0
        %4308 = vmatprep.subr.bf16.mxu0 0
        %4309 = vmatpush1.bf16.msra.mxu0 0
        %4310 = vmatprep.subr.bf16.mxu0 0
        %4311 = vmatpush1.bf16.msra.mxu0 0
        %4312 = vmatprep.subr.bf16.mxu0 0
        %4313 = vmatpush1.bf16.msra.mxu0 0
        %4314 = vmatprep.subr.bf16.mxu0 0
        %4315 = vmatpush1.bf16.msra.mxu0 0
        %4316 = vmatprep.subr.bf16.mxu0 0
        %4317 = vmatpush1.bf16.msra.mxu0 0
        %4318 = vmatprep.subr.bf16.mxu0 0
        %4319 = vmatpush1.bf16.msra.mxu0 0
        %4320 = vmatprep.subr.bf16.mxu0 0
        %4321 = vmatpush1.bf16.msra.mxu0 0
        %4322 = vmatprep.subr.bf16.mxu0 0
        %4323 = vmatpush1.bf16.msra.mxu0 0
        %4324 = vmatprep.subr.bf16.mxu0 0
        %4325 = vmatpush1.bf16.msra.mxu0 0
        %4326 = vmatprep.subr.bf16.mxu0 0
        %4327 = vmatpush1.bf16.msra.mxu0 0
        %4328 = vmatprep.mubr.bf16.mxu0 0
        %4329 = vmatmul.mubr.bf16.gmra.mrb[0].mxu0 %v4294
        %v4330 = vpop.f32.mrb[0].mxu0
        %v4331 = vadd.f32 0.0, %v4330
        %v4332 = vpop.f32.mrb[0].mxu0
        %v4333 = vpop.f32.mrb[0].mxu0
        %v4334 = vpop.f32.mrb[0].mxu0
        %4335 = vdwg.mxu0
        %v4336 = vld [vmem:[#allocation4 + $0x9] sm:$0xf]
        %v4337 = vpack.c.bf16 %v4336, %v4336
        %s4338 = scalar_lea.vmem [#allocation6], 928
        %v4339 = vld [vmem:[%s4338] sm:$0xf]
        %v4340 = vld [vmem:[%s4338 + $0x4] sm:$0xf]
        %v4341 = vld [vmem:[%s4338 + $0x8] sm:$0xf]
        %v4342 = vld [vmem:[%s4338 + $0xc] sm:$0xf]
        %v4343 = vld [vmem:[%s4338 + $0x10] sm:$0xf]
        %v4344 = vld [vmem:[%s4338 + $0x14] sm:$0xf]
        %v4345 = vld [vmem:[%s4338 + $0x18] sm:$0xf]
        %v4346 = vld [vmem:[%s4338 + $0x1c] sm:$0xf]
        %v4355 = vunpack.c.l.b16 %v4339
        %v4356 = vunpack.c.l.b16 %v4340
        %v4357 = vunpack.c.l.b16 %v4341
        %v4358 = vunpack.c.l.b16 %v4342
        %v4359 = vunpack.c.l.b16 %v4343
        %v4360 = vunpack.c.l.b16 %v4344
        %v4361 = vunpack.c.l.b16 %v4345
        %v4362 = vunpack.c.l.b16 %v4346
        %v4363 = vpack.c.b16 %v4356, %v4355
        %v4364 = vpack.c.b16 %v4358, %v4357
        %v4365 = vpack.c.b16 %v4360, %v4359
        %v4366 = vpack.c.b16 %v4362, %v4361
        %v4372 = vsel %vm538, %v4337, 0
        %4374 = vmatprep.subr.bf16.mxu0 0
        %4375 = vmatpush1.bf16.msra.mxu0 %v4363
        %4376 = vmatprep.subr.bf16.mxu0 0
        %4377 = vmatpush1.bf16.msra.mxu0 %v4364
        %4378 = vmatprep.subr.bf16.mxu0 0
        %4379 = vmatpush1.bf16.msra.mxu0 %v4365
        %4380 = vmatprep.subr.bf16.mxu0 0
        %4381 = vmatpush1.bf16.msra.mxu0 %v4366
        %4382 = vmatprep.subr.bf16.mxu0 0
        %4383 = vmatpush1.bf16.msra.mxu0 0
        %4384 = vmatprep.subr.bf16.mxu0 0
        %4385 = vmatpush1.bf16.msra.mxu0 0
        %4386 = vmatprep.subr.bf16.mxu0 0
        %4387 = vmatpush1.bf16.msra.mxu0 0
        %4388 = vmatprep.subr.bf16.mxu0 0
        %4389 = vmatpush1.bf16.msra.mxu0 0
        %4390 = vmatprep.subr.bf16.mxu0 0
        %4391 = vmatpush1.bf16.msra.mxu0 0
        %4392 = vmatprep.subr.bf16.mxu0 0
        %4393 = vmatpush1.bf16.msra.mxu0 0
        %4394 = vmatprep.subr.bf16.mxu0 0
        %4395 = vmatpush1.bf16.msra.mxu0 0
        %4396 = vmatprep.subr.bf16.mxu0 0
        %4397 = vmatpush1.bf16.msra.mxu0 0
        %4398 = vmatprep.subr.bf16.mxu0 0
        %4399 = vmatpush1.bf16.msra.mxu0 0
        %4400 = vmatprep.subr.bf16.mxu0 0
        %4401 = vmatpush1.bf16.msra.mxu0 0
        %4402 = vmatprep.subr.bf16.mxu0 0
        %4403 = vmatpush1.bf16.msra.mxu0 0
        %4404 = vmatprep.subr.bf16.mxu0 0
        %4405 = vmatpush1.bf16.msra.mxu0 0
        %4406 = vmatprep.mubr.bf16.mxu0 0
        %4407 = vmatmul.mubr.bf16.gmra.mrb[0].mxu0 %v4372
        %v4408 = vpop.f32.mrb[0].mxu0
        %v4409 = vadd.f32 0.0, %v4408
        %v4410 = vpop.f32.mrb[0].mxu0
        %v4411 = vpop.f32.mrb[0].mxu0
        %v4412 = vpop.f32.mrb[0].mxu0
        %4413 = vdwg.mxu0
        %v4422 = vunpack.c.l.b16 %v4250
        %v4423 = vunpack.c.l.b16 %v4251
        %v4424 = vunpack.c.l.b16 %v4252
        %v4425 = vunpack.c.l.b16 %v4253
        %v4426 = vunpack.c.l.b16 %v4254
        %v4427 = vunpack.c.l.b16 %v4255
        %v4428 = vunpack.c.l.b16 %v4256
        %v4429 = vunpack.c.l.b16 %v4257
        %v4430 = vpack.c.b16 %v4423, %v4422
        %v4431 = vpack.c.b16 %v4425, %v4424
        %v4432 = vpack.c.b16 %v4427, %v4426
        %v4433 = vpack.c.b16 %v4429, %v4428
        %v4439 = vsel %vm538, %v4248, 0
        %4441 = vmatprep.subr.bf16.mxu0 0
        %4442 = vmatpush1.bf16.msra.mxu0 %v4430
        %4443 = vmatprep.subr.bf16.mxu0 0
        %4444 = vmatpush1.bf16.msra.mxu0 %v4431
        %4445 = vmatprep.subr.bf16.mxu0 0
        %4446 = vmatpush1.bf16.msra.mxu0 %v4432
        %4447 = vmatprep.subr.bf16.mxu0 0
        %4448 = vmatpush1.bf16.msra.mxu0 %v4433
        %4449 = vmatprep.subr.bf16.mxu0 0
        %4450 = vmatpush1.bf16.msra.mxu0 0
        %4451 = vmatprep.subr.bf16.mxu0 0
        %4452 = vmatpush1.bf16.msra.mxu0 0
        %4453 = vmatprep.subr.bf16.mxu0 0
        %4454 = vmatpush1.bf16.msra.mxu0 0
        %4455 = vmatprep.subr.bf16.mxu0 0
        %4456 = vmatpush1.bf16.msra.mxu0 0
        %4457 = vmatprep.subr.bf16.mxu0 0
        %4458 = vmatpush1.bf16.msra.mxu0 0
        %4459 = vmatprep.subr.bf16.mxu0 0
        %4460 = vmatpush1.bf16.msra.mxu0 0
        %4461 = vmatprep.subr.bf16.mxu0 0
        %4462 = vmatpush1.bf16.msra.mxu0 0
        %4463 = vmatprep.subr.bf16.mxu0 0
        %4464 = vmatpush1.bf16.msra.mxu0 0
        %4465 = vmatprep.subr.bf16.mxu0 0
        %4466 = vmatpush1.bf16.msra.mxu0 0
        %4467 = vmatprep.subr.bf16.mxu0 0
        %4468 = vmatpush1.bf16.msra.mxu0 0
        %4469 = vmatprep.subr.bf16.mxu0 0
        %4470 = vmatpush1.bf16.msra.mxu0 0
        %4471 = vmatprep.subr.bf16.mxu0 0
        %4472 = vmatpush1.bf16.msra.mxu0 0
        %4473 = vmatprep.mubr.bf16.mxu0 0
        %4474 = vmatmul.mubr.bf16.gmra.mrb[0].mxu0 %v4439
        %v4475 = vpop.f32.mrb[0].mxu0
        %v4476 = vadd.f32 %v4331, %v4475
        %v4477 = vpop.f32.mrb[0].mxu0
        %v4478 = vpop.f32.mrb[0].mxu0
        %v4479 = vpop.f32.mrb[0].mxu0
        %4480 = vdwg.mxu0
        %v4481 = vadd.f32 %v4476, %v4409
        %vm4482 = vcmp.gt.f32.partialorder %v4481, 0.0
        %v4483 = vmin.f32 %v4481, 0.0
        %v4484 = vmul.f32 %v4483, 1.442695
        %v4485 = vpow.pop %v4484
        %v4486 = vsub.f32 %v4485, 1.0
        %v4487 = vsel %vm4482, %v4481, %v4486
        %4488 = vst.msk [vmem:[#allocation4 + $0x8] sm:$0xf] %vm3666, %v4487
        %v4489 = vld [vmem:[#allocation4 + $0x7] sm:$0xf]
        %v4490 = vpack.c.bf16 %v4489, %v4489
        %s4491 = scalar_lea.vmem [#allocation6], 960
        %v4492 = vld [vmem:[%s4491] sm:$0xf]
        %v4493 = vld [vmem:[%s4491 + $0x4] sm:$0xf]
        %v4494 = vld [vmem:[%s4491 + $0x8] sm:$0xf]
        %v4495 = vld [vmem:[%s4491 + $0xc] sm:$0xf]
        %v4496 = vld [vmem:[%s4491 + $0x10] sm:$0xf]
        %v4497 = vld [vmem:[%s4491 + $0x14] sm:$0xf]
        %v4498 = vld [vmem:[%s4491 + $0x18] sm:$0xf]
        %v4499 = vld [vmem:[%s4491 + $0x1c] sm:$0xf]
        %v4500 = vld [vmem:[#allocation4 + $0x8] sm:$0xf]
        %v4501 = vpack.c.bf16 %v4500, %v4500
        %s4502 = scalar_lea.vmem [#allocation6], 992
        %v4503 = vld [vmem:[%s4502] sm:$0xf]
        %v4504 = vld [vmem:[%s4502 + $0x4] sm:$0xf]
        %v4505 = vld [vmem:[%s4502 + $0x8] sm:$0xf]
        %v4506 = vld [vmem:[%s4502 + $0xc] sm:$0xf]
        %v4507 = vld [vmem:[%s4502 + $0x10] sm:$0xf]
        %v4508 = vld [vmem:[%s4502 + $0x14] sm:$0xf]
        %v4509 = vld [vmem:[%s4502 + $0x18] sm:$0xf]
        %v4510 = vld [vmem:[%s4502 + $0x1c] sm:$0xf]
        %v4519 = vunpack.c.l.b16 %v4503
        %v4520 = vunpack.c.l.b16 %v4504
        %v4521 = vunpack.c.l.b16 %v4505
        %v4522 = vunpack.c.l.b16 %v4506
        %v4523 = vunpack.c.l.b16 %v4507
        %v4524 = vunpack.c.l.b16 %v4508
        %v4525 = vunpack.c.l.b16 %v4509
        %v4526 = vunpack.c.l.b16 %v4510
        %v4527 = vpack.c.b16 %v4520, %v4519
        %v4528 = vpack.c.b16 %v4522, %v4521
        %v4529 = vpack.c.b16 %v4524, %v4523
        %v4530 = vpack.c.b16 %v4526, %v4525
        %v4536 = vsel %vm538, %v4501, 0
        %4538 = vmatprep.subr.bf16.mxu0 0
        %4539 = vmatpush1.bf16.msra.mxu0 %v4527
        %4540 = vmatprep.subr.bf16.mxu0 0
        %4541 = vmatpush1.bf16.msra.mxu0 %v4528
        %4542 = vmatprep.subr.bf16.mxu0 0
        %4543 = vmatpush1.bf16.msra.mxu0 %v4529
        %4544 = vmatprep.subr.bf16.mxu0 0
        %4545 = vmatpush1.bf16.msra.mxu0 %v4530
        %4546 = vmatprep.subr.bf16.mxu0 0
        %4547 = vmatpush1.bf16.msra.mxu0 0
        %4548 = vmatprep.subr.bf16.mxu0 0
        %4549 = vmatpush1.bf16.msra.mxu0 0
        %4550 = vmatprep.subr.bf16.mxu0 0
        %4551 = vmatpush1.bf16.msra.mxu0 0
        %4552 = vmatprep.subr.bf16.mxu0 0
        %4553 = vmatpush1.bf16.msra.mxu0 0
        %4554 = vmatprep.subr.bf16.mxu0 0
        %4555 = vmatpush1.bf16.msra.mxu0 0
        %4556 = vmatprep.subr.bf16.mxu0 0
        %4557 = vmatpush1.bf16.msra.mxu0 0
        %4558 = vmatprep.subr.bf16.mxu0 0
        %4559 = vmatpush1.bf16.msra.mxu0 0
        %4560 = vmatprep.subr.bf16.mxu0 0
        %4561 = vmatpush1.bf16.msra.mxu0 0
        %4562 = vmatprep.subr.bf16.mxu0 0
        %4563 = vmatpush1.bf16.msra.mxu0 0
        %4564 = vmatprep.subr.bf16.mxu0 0
        %4565 = vmatpush1.bf16.msra.mxu0 0
        %4566 = vmatprep.subr.bf16.mxu0 0
        %4567 = vmatpush1.bf16.msra.mxu0 0
        %4568 = vmatprep.subr.bf16.mxu0 0
        %4569 = vmatpush1.bf16.msra.mxu0 0
        %4570 = vmatprep.mubr.bf16.mxu0 0
        %4571 = vmatmul.mubr.bf16.gmra.mrb[0].mxu0 %v4536
        %v4572 = vpop.f32.mrb[0].mxu0
        %v4573 = vadd.f32 0.0, %v4572
        %v4574 = vpop.f32.mrb[0].mxu0
        %v4575 = vpop.f32.mrb[0].mxu0
        %v4576 = vpop.f32.mrb[0].mxu0
        %4577 = vdwg.mxu0
        %v4578 = vld [vmem:[#allocation4 + $0x9] sm:$0xf]
        %v4579 = vpack.c.bf16 %v4578, %v4578
        %s4580 = scalar_lea.vmem [#allocation6], 1024
        %v4581 = vld [vmem:[%s4580] sm:$0xf]
        %v4582 = vld [vmem:[%s4580 + $0x4] sm:$0xf]
        %v4583 = vld [vmem:[%s4580 + $0x8] sm:$0xf]
        %v4584 = vld [vmem:[%s4580 + $0xc] sm:$0xf]
        %v4585 = vld [vmem:[%s4580 + $0x10] sm:$0xf]
        %v4586 = vld [vmem:[%s4580 + $0x14] sm:$0xf]
        %v4587 = vld [vmem:[%s4580 + $0x18] sm:$0xf]
        %v4588 = vld [vmem:[%s4580 + $0x1c] sm:$0xf]
        %v4597 = vunpack.c.l.b16 %v4581
        %v4598 = vunpack.c.l.b16 %v4582
        %v4599 = vunpack.c.l.b16 %v4583
        %v4600 = vunpack.c.l.b16 %v4584
        %v4601 = vunpack.c.l.b16 %v4585
        %v4602 = vunpack.c.l.b16 %v4586
        %v4603 = vunpack.c.l.b16 %v4587
        %v4604 = vunpack.c.l.b16 %v4588
        %v4605 = vpack.c.b16 %v4598, %v4597
        %v4606 = vpack.c.b16 %v4600, %v4599
        %v4607 = vpack.c.b16 %v4602, %v4601
        %v4608 = vpack.c.b16 %v4604, %v4603
        %v4614 = vsel %vm538, %v4579, 0
        %4616 = vmatprep.subr.bf16.mxu0 0
        %4617 = vmatpush1.bf16.msra.mxu0 %v4605
        %4618 = vmatprep.subr.bf16.mxu0 0
        %4619 = vmatpush1.bf16.msra.mxu0 %v4606
        %4620 = vmatprep.subr.bf16.mxu0 0
        %4621 = vmatpush1.bf16.msra.mxu0 %v4607
        %4622 = vmatprep.subr.bf16.mxu0 0
        %4623 = vmatpush1.bf16.msra.mxu0 %v4608
        %4624 = vmatprep.subr.bf16.mxu0 0
        %4625 = vmatpush1.bf16.msra.mxu0 0
        %4626 = vmatprep.subr.bf16.mxu0 0
        %4627 = vmatpush1.bf16.msra.mxu0 0
        %4628 = vmatprep.subr.bf16.mxu0 0
        %4629 = vmatpush1.bf16.msra.mxu0 0
        %4630 = vmatprep.subr.bf16.mxu0 0
        %4631 = vmatpush1.bf16.msra.mxu0 0
        %4632 = vmatprep.subr.bf16.mxu0 0
        %4633 = vmatpush1.bf16.msra.mxu0 0
        %4634 = vmatprep.subr.bf16.mxu0 0
        %4635 = vmatpush1.bf16.msra.mxu0 0
        %4636 = vmatprep.subr.bf16.mxu0 0
        %4637 = vmatpush1.bf16.msra.mxu0 0
        %4638 = vmatprep.subr.bf16.mxu0 0
        %4639 = vmatpush1.bf16.msra.mxu0 0
        %4640 = vmatprep.subr.bf16.mxu0 0
        %4641 = vmatpush1.bf16.msra.mxu0 0
        %4642 = vmatprep.subr.bf16.mxu0 0
        %4643 = vmatpush1.bf16.msra.mxu0 0
        %4644 = vmatprep.subr.bf16.mxu0 0
        %4645 = vmatpush1.bf16.msra.mxu0 0
        %4646 = vmatprep.subr.bf16.mxu0 0
        %4647 = vmatpush1.bf16.msra.mxu0 0
        %4648 = vmatprep.mubr.bf16.mxu0 0
        %4649 = vmatmul.mubr.bf16.gmra.mrb[0].mxu0 %v4614
        %v4650 = vpop.f32.mrb[0].mxu0
        %v4651 = vadd.f32 0.0, %v4650
        %v4652 = vpop.f32.mrb[0].mxu0
        %v4653 = vpop.f32.mrb[0].mxu0
        %v4654 = vpop.f32.mrb[0].mxu0
        %4655 = vdwg.mxu0
        %v4664 = vunpack.c.l.b16 %v4492
        %v4665 = vunpack.c.l.b16 %v4493
        %v4666 = vunpack.c.l.b16 %v4494
        %v4667 = vunpack.c.l.b16 %v4495
        %v4668 = vunpack.c.l.b16 %v4496
        %v4669 = vunpack.c.l.b16 %v4497
        %v4670 = vunpack.c.l.b16 %v4498
        %v4671 = vunpack.c.l.b16 %v4499
        %v4672 = vpack.c.b16 %v4665, %v4664
        %v4673 = vpack.c.b16 %v4667, %v4666
        %v4674 = vpack.c.b16 %v4669, %v4668
        %v4675 = vpack.c.b16 %v4671, %v4670
        %v4681 = vsel %vm538, %v4490, 0
        %4683 = vmatprep.subr.bf16.mxu0 0
        %4684 = vmatpush1.bf16.msra.mxu0 %v4672
        %4685 = vmatprep.subr.bf16.mxu0 0
        %4686 = vmatpush1.bf16.msra.mxu0 %v4673
        %4687 = vmatprep.subr.bf16.mxu0 0
        %4688 = vmatpush1.bf16.msra.mxu0 %v4674
        %4689 = vmatprep.subr.bf16.mxu0 0
        %4690 = vmatpush1.bf16.msra.mxu0 %v4675
        %4691 = vmatprep.subr.bf16.mxu0 0
        %4692 = vmatpush1.bf16.msra.mxu0 0
        %4693 = vmatprep.subr.bf16.mxu0 0
        %4694 = vmatpush1.bf16.msra.mxu0 0
        %4695 = vmatprep.subr.bf16.mxu0 0
        %4696 = vmatpush1.bf16.msra.mxu0 0
        %4697 = vmatprep.subr.bf16.mxu0 0
        %4698 = vmatpush1.bf16.msra.mxu0 0
        %4699 = vmatprep.subr.bf16.mxu0 0
        %4700 = vmatpush1.bf16.msra.mxu0 0
        %4701 = vmatprep.subr.bf16.mxu0 0
        %4702 = vmatpush1.bf16.msra.mxu0 0
        %4703 = vmatprep.subr.bf16.mxu0 0
        %4704 = vmatpush1.bf16.msra.mxu0 0
        %4705 = vmatprep.subr.bf16.mxu0 0
        %4706 = vmatpush1.bf16.msra.mxu0 0
        %4707 = vmatprep.subr.bf16.mxu0 0
        %4708 = vmatpush1.bf16.msra.mxu0 0
        %4709 = vmatprep.subr.bf16.mxu0 0
        %4710 = vmatpush1.bf16.msra.mxu0 0
        %4711 = vmatprep.subr.bf16.mxu0 0
        %4712 = vmatpush1.bf16.msra.mxu0 0
        %4713 = vmatprep.subr.bf16.mxu0 0
        %4714 = vmatpush1.bf16.msra.mxu0 0
        %4715 = vmatprep.mubr.bf16.mxu0 0
        %4716 = vmatmul.mubr.bf16.gmra.mrb[0].mxu0 %v4681
        %v4717 = vpop.f32.mrb[0].mxu0
        %v4718 = vadd.f32 %v4573, %v4717
        %v4719 = vpop.f32.mrb[0].mxu0
        %v4720 = vpop.f32.mrb[0].mxu0
        %v4721 = vpop.f32.mrb[0].mxu0
        %4722 = vdwg.mxu0
        %v4723 = vadd.f32 %v4718, %v4651
        %s4724 = scalar_lea.vmem [#allocation8], 9
        %v4725 = vld [vmem:[%s4724] sm:$0x1]
        %v4727 = vlaneseq
        %v4728 = vshrl.u32 %v4727, 7
        %v4729 = vsub.s32 0, %v4728
        %v4730 = vrot.slane %v4725, %v4729
        %v4732 = vadd.f32 %v4723, %v4730
        %v4733 = vpack.c.bf16 %v4239, %v4239
        %s4734 = scalar_lea.vmem %s9, 96
        %v4735 = vld [vmem:[%s4734] sm:$0xf]
        %v4736 = vld [vmem:[%s4734 + $0x4] sm:$0xf]
        %v4737 = vld [vmem:[%s4734 + $0x8] sm:$0xf]
        %v4738 = vld [vmem:[%s4734 + $0xc] sm:$0xf]
        %v4739 = vld [vmem:[%s4734 + $0x10] sm:$0xf]
        %v4740 = vld [vmem:[%s4734 + $0x14] sm:$0xf]
        %v4741 = vld [vmem:[%s4734 + $0x18] sm:$0xf]
        %v4742 = vld [vmem:[%s4734 + $0x1c] sm:$0xf]
        %s4743 = scalar_lea.vmem [#allocation8], 10
        %v4744 = vld [vmem:[%s4743] sm:$0x1]
        %v4746 = vlaneseq
        %v4747 = vshrl.u32 %v4746, 7
        %v4748 = vsub.s32 0, %v4747
        %v4749 = vrot.slane %v4744, %v4748
        %v4759 = vunpack.c.l.b16 %v4735
        %v4760 = vunpack.c.l.b16 %v4736
        %v4761 = vunpack.c.l.b16 %v4737
        %v4762 = vunpack.c.l.b16 %v4738
        %v4763 = vunpack.c.l.b16 %v4739
        %v4764 = vunpack.c.l.b16 %v4740
        %v4765 = vunpack.c.l.b16 %v4741
        %v4766 = vunpack.c.l.b16 %v4742
        %v4767 = vpack.c.b16 %v4760, %v4759
        %v4768 = vpack.c.b16 %v4762, %v4761
        %v4769 = vpack.c.b16 %v4764, %v4763
        %v4770 = vpack.c.b16 %v4766, %v4765
        %v4776 = vsel %vm538, %v4733, 0
        %4778 = vmatprep.subr.bf16.mxu0 0
        %4779 = vmatpush1.bf16.msra.mxu0 %v4767
        %4780 = vmatprep.subr.bf16.mxu0 0
        %4781 = vmatpush1.bf16.msra.mxu0 %v4768
        %4782 = vmatprep.subr.bf16.mxu0 0
        %4783 = vmatpush1.bf16.msra.mxu0 %v4769
        %4784 = vmatprep.subr.bf16.mxu0 0
        %4785 = vmatpush1.bf16.msra.mxu0 %v4770
        %4786 = vmatprep.subr.bf16.mxu0 0
        %4787 = vmatpush1.bf16.msra.mxu0 0
        %4788 = vmatprep.subr.bf16.mxu0 0
        %4789 = vmatpush1.bf16.msra.mxu0 0
        %4790 = vmatprep.subr.bf16.mxu0 0
        %4791 = vmatpush1.bf16.msra.mxu0 0
        %4792 = vmatprep.subr.bf16.mxu0 0
        %4793 = vmatpush1.bf16.msra.mxu0 0
        %4794 = vmatprep.subr.bf16.mxu0 0
        %4795 = vmatpush1.bf16.msra.mxu0 0
        %4796 = vmatprep.subr.bf16.mxu0 0
        %4797 = vmatpush1.bf16.msra.mxu0 0
        %4798 = vmatprep.subr.bf16.mxu0 0
        %4799 = vmatpush1.bf16.msra.mxu0 0
        %4800 = vmatprep.subr.bf16.mxu0 0
        %4801 = vmatpush1.bf16.msra.mxu0 0
        %4802 = vmatprep.subr.bf16.mxu0 0
        %4803 = vmatpush1.bf16.msra.mxu0 0
        %4804 = vmatprep.subr.bf16.mxu0 0
        %4805 = vmatpush1.bf16.msra.mxu0 0
        %4806 = vmatprep.subr.bf16.mxu0 0
        %4807 = vmatpush1.bf16.msra.mxu0 0
        %4808 = vmatprep.subr.bf16.mxu0 0
        %4809 = vmatpush1.bf16.msra.mxu0 0
        %4810 = vmatprep.mubr.bf16.mxu0 0
        %4811 = vmatmul.mubr.bf16.gmra.mrb[0].mxu0 %v4776
        %v4812 = vpop.f32.mrb[0].mxu0
        %v4813 = vadd.f32 %v4749, %v4812
        %v4814 = vpop.f32.mrb[0].mxu0
        %v4815 = vpop.f32.mrb[0].mxu0
        %v4816 = vpop.f32.mrb[0].mxu0
        %4817 = vdwg.mxu0
        %v4818 = vadd.f32 %v4732, %v4813
        %vm4819 = vcmp.gt.f32.partialorder %v4818, 0.0
        %v4820 = vmin.f32 %v4818, 0.0
        %v4821 = vmul.f32 %v4820, 1.442695
        %v4822 = vpow.pop %v4821
        %v4823 = vsub.f32 %v4822, 1.0
        %v4824 = vsel %vm4819, %v4818, %v4823
        %4825 = vst.msk [vmem:[#allocation4 + $0x8] sm:$0xf] %vm3666, %v4824
        %v4826 = vld [vmem:[#allocation4 + $0x7] sm:$0xf]
        %v4827 = vpack.c.bf16 %v4826, %v4826
        %s4828 = scalar_lea.vmem [#allocation6], 1056
        %v4829 = vld [vmem:[%s4828] sm:$0xf]
        %v4830 = vld [vmem:[%s4828 + $0x4] sm:$0xf]
        %v4831 = vld [vmem:[%s4828 + $0x8] sm:$0xf]
        %v4832 = vld [vmem:[%s4828 + $0xc] sm:$0xf]
        %v4833 = vld [vmem:[%s4828 + $0x10] sm:$0xf]
        %v4834 = vld [vmem:[%s4828 + $0x14] sm:$0xf]
        %v4835 = vld [vmem:[%s4828 + $0x18] sm:$0xf]
        %v4836 = vld [vmem:[%s4828 + $0x1c] sm:$0xf]
        %v4837 = vld [vmem:[#allocation4 + $0x8] sm:$0xf]
        %v4838 = vpack.c.bf16 %v4837, %v4837
        %s4839 = scalar_lea.vmem [#allocation6], 1088
        %v4840 = vld [vmem:[%s4839] sm:$0xf]
        %v4841 = vld [vmem:[%s4839 + $0x4] sm:$0xf]
        %v4842 = vld [vmem:[%s4839 + $0x8] sm:$0xf]
        %v4843 = vld [vmem:[%s4839 + $0xc] sm:$0xf]
        %v4844 = vld [vmem:[%s4839 + $0x10] sm:$0xf]
        %v4845 = vld [vmem:[%s4839 + $0x14] sm:$0xf]
        %v4846 = vld [vmem:[%s4839 + $0x18] sm:$0xf]
        %v4847 = vld [vmem:[%s4839 + $0x1c] sm:$0xf]
        %v4856 = vunpack.c.l.b16 %v4840
        %v4857 = vunpack.c.l.b16 %v4841
        %v4858 = vunpack.c.l.b16 %v4842
        %v4859 = vunpack.c.l.b16 %v4843
        %v4860 = vunpack.c.l.b16 %v4844
        %v4861 = vunpack.c.l.b16 %v4845
        %v4862 = vunpack.c.l.b16 %v4846
        %v4863 = vunpack.c.l.b16 %v4847
        %v4864 = vpack.c.b16 %v4857, %v4856
        %v4865 = vpack.c.b16 %v4859, %v4858
        %v4866 = vpack.c.b16 %v4861, %v4860
        %v4867 = vpack.c.b16 %v4863, %v4862
        %v4873 = vsel %vm538, %v4838, 0
        %4875 = vmatprep.subr.bf16.mxu0 0
        %4876 = vmatpush1.bf16.msra.mxu0 %v4864
        %4877 = vmatprep.subr.bf16.mxu0 0
        %4878 = vmatpush1.bf16.msra.mxu0 %v4865
        %4879 = vmatprep.subr.bf16.mxu0 0
        %4880 = vmatpush1.bf16.msra.mxu0 %v4866
        %4881 = vmatprep.subr.bf16.mxu0 0
        %4882 = vmatpush1.bf16.msra.mxu0 %v4867
        %4883 = vmatprep.subr.bf16.mxu0 0
        %4884 = vmatpush1.bf16.msra.mxu0 0
        %4885 = vmatprep.subr.bf16.mxu0 0
        %4886 = vmatpush1.bf16.msra.mxu0 0
        %4887 = vmatprep.subr.bf16.mxu0 0
        %4888 = vmatpush1.bf16.msra.mxu0 0
        %4889 = vmatprep.subr.bf16.mxu0 0
        %4890 = vmatpush1.bf16.msra.mxu0 0
        %4891 = vmatprep.subr.bf16.mxu0 0
        %4892 = vmatpush1.bf16.msra.mxu0 0
        %4893 = vmatprep.subr.bf16.mxu0 0
        %4894 = vmatpush1.bf16.msra.mxu0 0
        %4895 = vmatprep.subr.bf16.mxu0 0
        %4896 = vmatpush1.bf16.msra.mxu0 0
        %4897 = vmatprep.subr.bf16.mxu0 0
        %4898 = vmatpush1.bf16.msra.mxu0 0
        %4899 = vmatprep.subr.bf16.mxu0 0
        %4900 = vmatpush1.bf16.msra.mxu0 0
        %4901 = vmatprep.subr.bf16.mxu0 0
        %4902 = vmatpush1.bf16.msra.mxu0 0
        %4903 = vmatprep.subr.bf16.mxu0 0
        %4904 = vmatpush1.bf16.msra.mxu0 0
        %4905 = vmatprep.subr.bf16.mxu0 0
        %4906 = vmatpush1.bf16.msra.mxu0 0
        %4907 = vmatprep.mubr.bf16.mxu0 0
        %4908 = vmatmul.mubr.bf16.gmra.mrb[0].mxu0 %v4873
        %v4909 = vpop.f32.mrb[0].mxu0
        %v4910 = vadd.f32 0.0, %v4909
        %v4911 = vpop.f32.mrb[0].mxu0
        %v4912 = vpop.f32.mrb[0].mxu0
        %v4913 = vpop.f32.mrb[0].mxu0
        %4914 = vdwg.mxu0
        %v4915 = vld [vmem:[#allocation4 + $0x9] sm:$0xf]
        %v4916 = vpack.c.bf16 %v4915, %v4915
        %s4917 = scalar_lea.vmem [#allocation6], 1120
        %v4918 = vld [vmem:[%s4917] sm:$0xf]
        %v4919 = vld [vmem:[%s4917 + $0x4] sm:$0xf]
        %v4920 = vld [vmem:[%s4917 + $0x8] sm:$0xf]
        %v4921 = vld [vmem:[%s4917 + $0xc] sm:$0xf]
        %v4922 = vld [vmem:[%s4917 + $0x10] sm:$0xf]
        %v4923 = vld [vmem:[%s4917 + $0x14] sm:$0xf]
        %v4924 = vld [vmem:[%s4917 + $0x18] sm:$0xf]
        %v4925 = vld [vmem:[%s4917 + $0x1c] sm:$0xf]
        %v4934 = vunpack.c.l.b16 %v4918
        %v4935 = vunpack.c.l.b16 %v4919
        %v4936 = vunpack.c.l.b16 %v4920
        %v4937 = vunpack.c.l.b16 %v4921
        %v4938 = vunpack.c.l.b16 %v4922
        %v4939 = vunpack.c.l.b16 %v4923
        %v4940 = vunpack.c.l.b16 %v4924
        %v4941 = vunpack.c.l.b16 %v4925
        %v4942 = vpack.c.b16 %v4935, %v4934
        %v4943 = vpack.c.b16 %v4937, %v4936
        %v4944 = vpack.c.b16 %v4939, %v4938
        %v4945 = vpack.c.b16 %v4941, %v4940
        %v4951 = vsel %vm538, %v4916, 0
        %4953 = vmatprep.subr.bf16.mxu0 0
        %4954 = vmatpush1.bf16.msra.mxu0 %v4942
        %4955 = vmatprep.subr.bf16.mxu0 0
        %4956 = vmatpush1.bf16.msra.mxu0 %v4943
        %4957 = vmatprep.subr.bf16.mxu0 0
        %4958 = vmatpush1.bf16.msra.mxu0 %v4944
        %4959 = vmatprep.subr.bf16.mxu0 0
        %4960 = vmatpush1.bf16.msra.mxu0 %v4945
        %4961 = vmatprep.subr.bf16.mxu0 0
        %4962 = vmatpush1.bf16.msra.mxu0 0
        %4963 = vmatprep.subr.bf16.mxu0 0
        %4964 = vmatpush1.bf16.msra.mxu0 0
        %4965 = vmatprep.subr.bf16.mxu0 0
        %4966 = vmatpush1.bf16.msra.mxu0 0
        %4967 = vmatprep.subr.bf16.mxu0 0
        %4968 = vmatpush1.bf16.msra.mxu0 0
        %4969 = vmatprep.subr.bf16.mxu0 0
        %4970 = vmatpush1.bf16.msra.mxu0 0
        %4971 = vmatprep.subr.bf16.mxu0 0
        %4972 = vmatpush1.bf16.msra.mxu0 0
        %4973 = vmatprep.subr.bf16.mxu0 0
        %4974 = vmatpush1.bf16.msra.mxu0 0
        %4975 = vmatprep.subr.bf16.mxu0 0
        %4976 = vmatpush1.bf16.msra.mxu0 0
        %4977 = vmatprep.subr.bf16.mxu0 0
        %4978 = vmatpush1.bf16.msra.mxu0 0
        %4979 = vmatprep.subr.bf16.mxu0 0
        %4980 = vmatpush1.bf16.msra.mxu0 0
        %4981 = vmatprep.subr.bf16.mxu0 0
        %4982 = vmatpush1.bf16.msra.mxu0 0
        %4983 = vmatprep.subr.bf16.mxu0 0
        %4984 = vmatpush1.bf16.msra.mxu0 0
        %4985 = vmatprep.mubr.bf16.mxu0 0
        %4986 = vmatmul.mubr.bf16.gmra.mrb[0].mxu0 %v4951
        %v4987 = vpop.f32.mrb[0].mxu0
        %v4988 = vadd.f32 0.0, %v4987
        %v4989 = vpop.f32.mrb[0].mxu0
        %v4990 = vpop.f32.mrb[0].mxu0
        %v4991 = vpop.f32.mrb[0].mxu0
        %4992 = vdwg.mxu0
        %v5001 = vunpack.c.l.b16 %v4829
        %v5002 = vunpack.c.l.b16 %v4830
        %v5003 = vunpack.c.l.b16 %v4831
        %v5004 = vunpack.c.l.b16 %v4832
        %v5005 = vunpack.c.l.b16 %v4833
        %v5006 = vunpack.c.l.b16 %v4834
        %v5007 = vunpack.c.l.b16 %v4835
        %v5008 = vunpack.c.l.b16 %v4836
        %v5009 = vpack.c.b16 %v5002, %v5001
        %v5010 = vpack.c.b16 %v5004, %v5003
        %v5011 = vpack.c.b16 %v5006, %v5005
        %v5012 = vpack.c.b16 %v5008, %v5007
        %v5018 = vsel %vm538, %v4827, 0
        %5020 = vmatprep.subr.bf16.mxu0 0
        %5021 = vmatpush1.bf16.msra.mxu0 %v5009
        %5022 = vmatprep.subr.bf16.mxu0 0
        %5023 = vmatpush1.bf16.msra.mxu0 %v5010
        %5024 = vmatprep.subr.bf16.mxu0 0
        %5025 = vmatpush1.bf16.msra.mxu0 %v5011
        %5026 = vmatprep.subr.bf16.mxu0 0
        %5027 = vmatpush1.bf16.msra.mxu0 %v5012
        %5028 = vmatprep.subr.bf16.mxu0 0
        %5029 = vmatpush1.bf16.msra.mxu0 0
        %5030 = vmatprep.subr.bf16.mxu0 0
        %5031 = vmatpush1.bf16.msra.mxu0 0
        %5032 = vmatprep.subr.bf16.mxu0 0
        %5033 = vmatpush1.bf16.msra.mxu0 0
        %5034 = vmatprep.subr.bf16.mxu0 0
        %5035 = vmatpush1.bf16.msra.mxu0 0
        %5036 = vmatprep.subr.bf16.mxu0 0
        %5037 = vmatpush1.bf16.msra.mxu0 0
        %5038 = vmatprep.subr.bf16.mxu0 0
        %5039 = vmatpush1.bf16.msra.mxu0 0
        %5040 = vmatprep.subr.bf16.mxu0 0
        %5041 = vmatpush1.bf16.msra.mxu0 0
        %5042 = vmatprep.subr.bf16.mxu0 0
        %5043 = vmatpush1.bf16.msra.mxu0 0
        %5044 = vmatprep.subr.bf16.mxu0 0
        %5045 = vmatpush1.bf16.msra.mxu0 0
        %5046 = vmatprep.subr.bf16.mxu0 0
        %5047 = vmatpush1.bf16.msra.mxu0 0
        %5048 = vmatprep.subr.bf16.mxu0 0
        %5049 = vmatpush1.bf16.msra.mxu0 0
        %5050 = vmatprep.subr.bf16.mxu0 0
        %5051 = vmatpush1.bf16.msra.mxu0 0
        %5052 = vmatprep.mubr.bf16.mxu0 0
        %5053 = vmatmul.mubr.bf16.gmra.mrb[0].mxu0 %v5018
        %v5054 = vpop.f32.mrb[0].mxu0
        %v5055 = vadd.f32 %v4910, %v5054
        %v5056 = vpop.f32.mrb[0].mxu0
        %v5057 = vpop.f32.mrb[0].mxu0
        %v5058 = vpop.f32.mrb[0].mxu0
        %5059 = vdwg.mxu0
        %v5060 = vadd.f32 %v5055, %v4988
        %vm5061 = vcmp.gt.f32.partialorder %v5060, 0.0
        %v5062 = vmin.f32 %v5060, 0.0
        %v5063 = vmul.f32 %v5062, 1.442695
        %v5064 = vpow.pop %v5063
        %v5065 = vsub.f32 %v5064, 1.0
        %v5066 = vsel %vm5061, %v5060, %v5065
        %5067 = vst.msk [vmem:[#allocation4 + $0x8] sm:$0xf] %vm3666, %v5066
        %v5068 = vld [vmem:[#allocation4 + $0x7] sm:$0xf]
        %v5069 = vpack.c.bf16 %v5068, %v5068
        %s5070 = scalar_lea.vmem %s3, 192
        %v5071 = vld [vmem:[%s5070] sm:$0xf]
        %v5072 = vld [vmem:[%s5070 + $0x4] sm:$0xf]
        %v5073 = vld [vmem:[%s5070 + $0x8] sm:$0xf]
        %v5074 = vld [vmem:[%s5070 + $0xc] sm:$0xf]
        %v5075 = vld [vmem:[%s5070 + $0x10] sm:$0xf]
        %v5076 = vld [vmem:[%s5070 + $0x14] sm:$0xf]
        %v5077 = vld [vmem:[%s5070 + $0x18] sm:$0xf]
        %v5078 = vld [vmem:[%s5070 + $0x1c] sm:$0xf]
        %v5079 = vld [vmem:[#allocation4 + $0x8] sm:$0xf]
        %v5080 = vpack.c.bf16 %v5079, %v5079
        %s5081 = scalar_lea.vmem %s3, 224
        %v5082 = vld [vmem:[%s5081] sm:$0xf]
        %v5083 = vld [vmem:[%s5081 + $0x4] sm:$0xf]
        %v5084 = vld [vmem:[%s5081 + $0x8] sm:$0xf]
        %v5085 = vld [vmem:[%s5081 + $0xc] sm:$0xf]
        %v5086 = vld [vmem:[%s5081 + $0x10] sm:$0xf]
        %v5087 = vld [vmem:[%s5081 + $0x14] sm:$0xf]
        %v5088 = vld [vmem:[%s5081 + $0x18] sm:$0xf]
        %v5089 = vld [vmem:[%s5081 + $0x1c] sm:$0xf]
        %v5098 = vunpack.c.l.b16 %v5082
        %v5099 = vunpack.c.l.b16 %v5083
        %v5100 = vunpack.c.l.b16 %v5084
        %v5101 = vunpack.c.l.b16 %v5085
        %v5102 = vunpack.c.l.b16 %v5086
        %v5103 = vunpack.c.l.b16 %v5087
        %v5104 = vunpack.c.l.b16 %v5088
        %v5105 = vunpack.c.l.b16 %v5089
        %v5106 = vpack.c.b16 %v5099, %v5098
        %v5107 = vpack.c.b16 %v5101, %v5100
        %v5108 = vpack.c.b16 %v5103, %v5102
        %v5109 = vpack.c.b16 %v5105, %v5104
        %v5115 = vsel %vm538, %v5080, 0
        %5117 = vmatprep.subr.bf16.mxu0 0
        %5118 = vmatpush1.bf16.msra.mxu0 %v5106
        %5119 = vmatprep.subr.bf16.mxu0 0
        %5120 = vmatpush1.bf16.msra.mxu0 %v5107
        %5121 = vmatprep.subr.bf16.mxu0 0
        %5122 = vmatpush1.bf16.msra.mxu0 %v5108
        %5123 = vmatprep.subr.bf16.mxu0 0
        %5124 = vmatpush1.bf16.msra.mxu0 %v5109
        %5125 = vmatprep.subr.bf16.mxu0 0
        %5126 = vmatpush1.bf16.msra.mxu0 0
        %5127 = vmatprep.subr.bf16.mxu0 0
        %5128 = vmatpush1.bf16.msra.mxu0 0
        %5129 = vmatprep.subr.bf16.mxu0 0
        %5130 = vmatpush1.bf16.msra.mxu0 0
        %5131 = vmatprep.subr.bf16.mxu0 0
        %5132 = vmatpush1.bf16.msra.mxu0 0
        %5133 = vmatprep.subr.bf16.mxu0 0
        %5134 = vmatpush1.bf16.msra.mxu0 0
        %5135 = vmatprep.subr.bf16.mxu0 0
        %5136 = vmatpush1.bf16.msra.mxu0 0
        %5137 = vmatprep.subr.bf16.mxu0 0
        %5138 = vmatpush1.bf16.msra.mxu0 0
        %5139 = vmatprep.subr.bf16.mxu0 0
        %5140 = vmatpush1.bf16.msra.mxu0 0
        %5141 = vmatprep.subr.bf16.mxu0 0
        %5142 = vmatpush1.bf16.msra.mxu0 0
        %5143 = vmatprep.subr.bf16.mxu0 0
        %5144 = vmatpush1.bf16.msra.mxu0 0
        %5145 = vmatprep.subr.bf16.mxu0 0
        %5146 = vmatpush1.bf16.msra.mxu0 0
        %5147 = vmatprep.subr.bf16.mxu0 0
        %5148 = vmatpush1.bf16.msra.mxu0 0
        %5149 = vmatprep.mubr.bf16.mxu0 0
        %5150 = vmatmul.mubr.bf16.gmra.mrb[0].mxu0 %v5115
        %v5151 = vpop.f32.mrb[0].mxu0
        %v5152 = vadd.f32 0.0, %v5151
        %v5153 = vpop.f32.mrb[0].mxu0
        %v5154 = vpop.f32.mrb[0].mxu0
        %v5155 = vpop.f32.mrb[0].mxu0
        %5156 = vdwg.mxu0
        %v5157 = vld [vmem:[#allocation4 + $0x9] sm:$0xf]
        %v5158 = vpack.c.bf16 %v5157, %v5157
        %s5159 = scalar_lea.vmem %s3, 256
        %v5160 = vld [vmem:[%s5159] sm:$0xf]
        %v5161 = vld [vmem:[%s5159 + $0x4] sm:$0xf]
        %v5162 = vld [vmem:[%s5159 + $0x8] sm:$0xf]
        %v5163 = vld [vmem:[%s5159 + $0xc] sm:$0xf]
        %v5164 = vld [vmem:[%s5159 + $0x10] sm:$0xf]
        %v5165 = vld [vmem:[%s5159 + $0x14] sm:$0xf]
        %v5166 = vld [vmem:[%s5159 + $0x18] sm:$0xf]
        %v5167 = vld [vmem:[%s5159 + $0x1c] sm:$0xf]
        %v5176 = vunpack.c.l.b16 %v5160
        %v5177 = vunpack.c.l.b16 %v5161
        %v5178 = vunpack.c.l.b16 %v5162
        %v5179 = vunpack.c.l.b16 %v5163
        %v5180 = vunpack.c.l.b16 %v5164
        %v5181 = vunpack.c.l.b16 %v5165
        %v5182 = vunpack.c.l.b16 %v5166
        %v5183 = vunpack.c.l.b16 %v5167
        %v5184 = vpack.c.b16 %v5177, %v5176
        %v5185 = vpack.c.b16 %v5179, %v5178
        %v5186 = vpack.c.b16 %v5181, %v5180
        %v5187 = vpack.c.b16 %v5183, %v5182
        %v5193 = vsel %vm538, %v5158, 0
        %5195 = vmatprep.subr.bf16.mxu0 0
        %5196 = vmatpush1.bf16.msra.mxu0 %v5184
        %5197 = vmatprep.subr.bf16.mxu0 0
        %5198 = vmatpush1.bf16.msra.mxu0 %v5185
        %5199 = vmatprep.subr.bf16.mxu0 0
        %5200 = vmatpush1.bf16.msra.mxu0 %v5186
        %5201 = vmatprep.subr.bf16.mxu0 0
        %5202 = vmatpush1.bf16.msra.mxu0 %v5187
        %5203 = vmatprep.subr.bf16.mxu0 0
        %5204 = vmatpush1.bf16.msra.mxu0 0
        %5205 = vmatprep.subr.bf16.mxu0 0
        %5206 = vmatpush1.bf16.msra.mxu0 0
        %5207 = vmatprep.subr.bf16.mxu0 0
        %5208 = vmatpush1.bf16.msra.mxu0 0
        %5209 = vmatprep.subr.bf16.mxu0 0
        %5210 = vmatpush1.bf16.msra.mxu0 0
        %5211 = vmatprep.subr.bf16.mxu0 0
        %5212 = vmatpush1.bf16.msra.mxu0 0
        %5213 = vmatprep.subr.bf16.mxu0 0
        %5214 = vmatpush1.bf16.msra.mxu0 0
        %5215 = vmatprep.subr.bf16.mxu0 0
        %5216 = vmatpush1.bf16.msra.mxu0 0
        %5217 = vmatprep.subr.bf16.mxu0 0
        %5218 = vmatpush1.bf16.msra.mxu0 0
        %5219 = vmatprep.subr.bf16.mxu0 0
        %5220 = vmatpush1.bf16.msra.mxu0 0
        %5221 = vmatprep.subr.bf16.mxu0 0
        %5222 = vmatpush1.bf16.msra.mxu0 0
        %5223 = vmatprep.subr.bf16.mxu0 0
        %5224 = vmatpush1.bf16.msra.mxu0 0
        %5225 = vmatprep.subr.bf16.mxu0 0
        %5226 = vmatpush1.bf16.msra.mxu0 0
        %5227 = vmatprep.mubr.bf16.mxu0 0
        %5228 = vmatmul.mubr.bf16.gmra.mrb[0].mxu0 %v5193
        %v5229 = vpop.f32.mrb[0].mxu0
        %v5230 = vadd.f32 0.0, %v5229
        %v5231 = vpop.f32.mrb[0].mxu0
        %v5232 = vpop.f32.mrb[0].mxu0
        %v5233 = vpop.f32.mrb[0].mxu0
        %5234 = vdwg.mxu0
        %v5243 = vunpack.c.l.b16 %v5071
        %v5244 = vunpack.c.l.b16 %v5072
        %v5245 = vunpack.c.l.b16 %v5073
        %v5246 = vunpack.c.l.b16 %v5074
        %v5247 = vunpack.c.l.b16 %v5075
        %v5248 = vunpack.c.l.b16 %v5076
        %v5249 = vunpack.c.l.b16 %v5077
        %v5250 = vunpack.c.l.b16 %v5078
        %v5251 = vpack.c.b16 %v5244, %v5243
        %v5252 = vpack.c.b16 %v5246, %v5245
        %v5253 = vpack.c.b16 %v5248, %v5247
        %v5254 = vpack.c.b16 %v5250, %v5249
        %v5260 = vsel %vm538, %v5069, 0
        %5262 = vmatprep.subr.bf16.mxu0 0
        %5263 = vmatpush1.bf16.msra.mxu0 %v5251
        %5264 = vmatprep.subr.bf16.mxu0 0
        %5265 = vmatpush1.bf16.msra.mxu0 %v5252
        %5266 = vmatprep.subr.bf16.mxu0 0
        %5267 = vmatpush1.bf16.msra.mxu0 %v5253
        %5268 = vmatprep.subr.bf16.mxu0 0
        %5269 = vmatpush1.bf16.msra.mxu0 %v5254
        %5270 = vmatprep.subr.bf16.mxu0 0
        %5271 = vmatpush1.bf16.msra.mxu0 0
        %5272 = vmatprep.subr.bf16.mxu0 0
        %5273 = vmatpush1.bf16.msra.mxu0 0
        %5274 = vmatprep.subr.bf16.mxu0 0
        %5275 = vmatpush1.bf16.msra.mxu0 0
        %5276 = vmatprep.subr.bf16.mxu0 0
        %5277 = vmatpush1.bf16.msra.mxu0 0
        %5278 = vmatprep.subr.bf16.mxu0 0
        %5279 = vmatpush1.bf16.msra.mxu0 0
        %5280 = vmatprep.subr.bf16.mxu0 0
        %5281 = vmatpush1.bf16.msra.mxu0 0
        %5282 = vmatprep.subr.bf16.mxu0 0
        %5283 = vmatpush1.bf16.msra.mxu0 0
        %5284 = vmatprep.subr.bf16.mxu0 0
        %5285 = vmatpush1.bf16.msra.mxu0 0
        %5286 = vmatprep.subr.bf16.mxu0 0
        %5287 = vmatpush1.bf16.msra.mxu0 0
        %5288 = vmatprep.subr.bf16.mxu0 0
        %5289 = vmatpush1.bf16.msra.mxu0 0
        %5290 = vmatprep.subr.bf16.mxu0 0
        %5291 = vmatpush1.bf16.msra.mxu0 0
        %5292 = vmatprep.subr.bf16.mxu0 0
        %5293 = vmatpush1.bf16.msra.mxu0 0
        %5294 = vmatprep.mubr.bf16.mxu0 0
        %5295 = vmatmul.mubr.bf16.gmra.mrb[0].mxu0 %v5260
        %v5296 = vpop.f32.mrb[0].mxu0
        %v5297 = vadd.f32 %v5152, %v5296
        %v5298 = vpop.f32.mrb[0].mxu0
        %v5299 = vpop.f32.mrb[0].mxu0
        %v5300 = vpop.f32.mrb[0].mxu0
        %5301 = vdwg.mxu0
        %v5302 = vadd.f32 %v5297, %v5230
        %s5303 = scalar_lea.vmem [#allocation10], 2
        %v5304 = vld [vmem:[%s5303] sm:$0x1]
        %v5306 = vlaneseq
        %v5307 = vshrl.u32 %v5306, 7
        %v5308 = vsub.s32 0, %v5307
        %v5309 = vrot.slane %v5304, %v5308
        %v5311 = vadd.f32 %v5302, %v5309
        %v5312 = vld [vmem:[#allocation19] sm:$0x1]
        %v5313 = vpack.c.bf16 %v5311, %v5311
        %vm5314 = vcmask 31744
        %v5316 = vsel %vm5314, %v5312, 0
        %vm5318 = vcmask 1041408
        %v5320 = vsel %vm5318, %v5313, 0
        %5322 = vmatprep.subr.bf16.mxu0 0
        %5323 = vmatpush1.bf16.msra.mxu0 %v5320
        %5324 = vmatprep.subr.bf16.mxu0 0
        %5325 = vmatpush1.bf16.msra.mxu0 0
        %5326 = vmatprep.subr.bf16.mxu0 0
        %5327 = vmatpush1.bf16.msra.mxu0 0
        %5328 = vmatprep.subr.bf16.mxu0 0
        %5329 = vmatpush1.bf16.msra.mxu0 0
        %5330 = vmatprep.subr.bf16.mxu0 0
        %5331 = vmatpush1.bf16.msra.mxu0 0
        %5332 = vmatprep.subr.bf16.mxu0 0
        %5333 = vmatpush1.bf16.msra.mxu0 0
        %5334 = vmatprep.subr.bf16.mxu0 0
        %5335 = vmatpush1.bf16.msra.mxu0 0
        %5336 = vmatprep.subr.bf16.mxu0 0
        %5337 = vmatpush1.bf16.msra.mxu0 0
        %5338 = vmatprep.subr.bf16.mxu0 0
        %5339 = vmatpush1.bf16.msra.mxu0 0
        %5340 = vmatprep.subr.bf16.mxu0 0
        %5341 = vmatpush1.bf16.msra.mxu0 0
        %5342 = vmatprep.subr.bf16.mxu0 0
        %5343 = vmatpush1.bf16.msra.mxu0 0
        %5344 = vmatprep.subr.bf16.mxu0 0
        %5345 = vmatpush1.bf16.msra.mxu0 0
        %5346 = vmatprep.subr.bf16.mxu0 0
        %5347 = vmatpush1.bf16.msra.mxu0 0
        %5348 = vmatprep.subr.bf16.mxu0 0
        %5349 = vmatpush1.bf16.msra.mxu0 0
        %5350 = vmatprep.subr.bf16.mxu0 0
        %5351 = vmatpush1.bf16.msra.mxu0 0
        %5352 = vmatprep.subr.bf16.mxu0 0
        %5353 = vmatpush1.bf16.msra.mxu0 0
        %5354 = vmatprep.mubr.bf16.mxu0 0
        %5355 = vmatmul.mubr.bf16.gmra.mrb[0].mxu0 %v5316
        %v5356 = vpop.f32.mrb[0].mxu0
        %v5357 = vadd.f32 0.0, %v5356
        %v5358 = vpop.f32.mrb[0].mxu0
        %v5359 = vpop.f32.mrb[0].mxu0
        %v5360 = vpop.f32.mrb[0].mxu0
        %5361 = vdwg.mxu0
        %v5362 = vpack.c.bf16 %v5357, %v5357
        %s5363 = scalar_lea.vmem [#allocation13], 128
        %v5364 = vld [vmem:[%s5363] sm:$0xf]
        %v5365 = vld [vmem:[%s5363 + $0x4] sm:$0xf]
        %v5366 = vld [vmem:[%s5363 + $0x8] sm:$0xf]
        %v5367 = vld [vmem:[%s5363 + $0xc] sm:$0xf]
        %v5368 = vld [vmem:[%s5363 + $0x10] sm:$0xf]
        %v5369 = vld [vmem:[%s5363 + $0x14] sm:$0xf]
        %v5370 = vld [vmem:[%s5363 + $0x18] sm:$0xf]
        %v5371 = vld [vmem:[%s5363 + $0x1c] sm:$0xf]
        %v5372 = vld [vmem:[%s5363 + $0x20] sm:$0xf]
        %v5373 = vld [vmem:[%s5363 + $0x24] sm:$0xf]
        %v5374 = vld [vmem:[%s5363 + $0x28] sm:$0xf]
        %v5375 = vld [vmem:[%s5363 + $0x2c] sm:$0xf]
        %v5376 = vld [vmem:[%s5363 + $0x30] sm:$0xf]
        %v5377 = vld [vmem:[%s5363 + $0x34] sm:$0xf]
        %v5378 = vld [vmem:[%s5363 + $0x38] sm:$0xf]
        %v5379 = vld [vmem:[%s5363 + $0x3c] sm:$0xf]
        %v5380 = vpack.c.bf16 %v4818, %v4818
        %v5382 = vsel %vm5318, %v5380, 0
        %5384 = vmatprep.subr.bf16.mxu0 0
        %5385 = vmatpush1.bf16.msra.mxu0 %v5382
        %5386 = vmatprep.subr.bf16.mxu0 0
        %5387 = vmatpush1.bf16.msra.mxu0 0
        %5388 = vmatprep.subr.bf16.mxu0 0
        %5389 = vmatpush1.bf16.msra.mxu0 0
        %5390 = vmatprep.subr.bf16.mxu0 0
        %5391 = vmatpush1.bf16.msra.mxu0 0
        %5392 = vmatprep.subr.bf16.mxu0 0
        %5393 = vmatpush1.bf16.msra.mxu0 0
        %5394 = vmatprep.subr.bf16.mxu0 0
        %5395 = vmatpush1.bf16.msra.mxu0 0
        %5396 = vmatprep.subr.bf16.mxu0 0
        %5397 = vmatpush1.bf16.msra.mxu0 0
        %5398 = vmatprep.subr.bf16.mxu0 0
        %5399 = vmatpush1.bf16.msra.mxu0 0
        %5400 = vmatprep.subr.bf16.mxu0 0
        %5401 = vmatpush1.bf16.msra.mxu0 0
        %5402 = vmatprep.subr.bf16.mxu0 0
        %5403 = vmatpush1.bf16.msra.mxu0 0
        %5404 = vmatprep.subr.bf16.mxu0 0
        %5405 = vmatpush1.bf16.msra.mxu0 0
        %5406 = vmatprep.subr.bf16.mxu0 0
        %5407 = vmatpush1.bf16.msra.mxu0 0
        %5408 = vmatprep.subr.bf16.mxu0 0
        %5409 = vmatpush1.bf16.msra.mxu0 0
        %5410 = vmatprep.subr.bf16.mxu0 0
        %5411 = vmatpush1.bf16.msra.mxu0 0
        %5412 = vmatprep.subr.bf16.mxu0 0
        %5413 = vmatpush1.bf16.msra.mxu0 0
        %5414 = vmatprep.subr.bf16.mxu0 0
        %5415 = vmatpush1.bf16.msra.mxu0 0
        %5416 = vmatprep.mubr.bf16.mxu0 0
        %5417 = vmatmul.mubr.bf16.gmra.mrb[0].mxu0 %v5316
        %v5418 = vpop.f32.mrb[0].mxu0
        %v5419 = vadd.f32 0.0, %v5418
        %v5420 = vpop.f32.mrb[0].mxu0
        %v5421 = vpop.f32.mrb[0].mxu0
        %v5422 = vpop.f32.mrb[0].mxu0
        %5423 = vdwg.mxu0
        %v5424 = vpack.c.bf16 %v5419, %v5419
        %s5425 = scalar_lea.vmem [#allocation14], 64
        %v5426 = vld [vmem:[%s5425] sm:$0xf]
        %v5427 = vld [vmem:[%s5425 + $0x4] sm:$0xf]
        %v5428 = vld [vmem:[%s5425 + $0x8] sm:$0xf]
        %v5429 = vld [vmem:[%s5425 + $0xc] sm:$0xf]
        %v5430 = vld [vmem:[%s5425 + $0x10] sm:$0xf]
        %v5431 = vld [vmem:[%s5425 + $0x14] sm:$0xf]
        %v5432 = vld [vmem:[%s5425 + $0x18] sm:$0xf]
        %v5433 = vld [vmem:[%s5425 + $0x1c] sm:$0xf]
        %v5442 = vunpack.c.l.b16 %v5426
        %v5443 = vunpack.c.l.b16 %v5427
        %v5444 = vunpack.c.l.b16 %v5428
        %v5445 = vunpack.c.l.b16 %v5429
        %v5446 = vunpack.c.l.b16 %v5430
        %v5447 = vunpack.c.l.b16 %v5431
        %v5448 = vunpack.c.l.b16 %v5432
        %v5449 = vunpack.c.l.b16 %v5433
        %v5450 = vpack.c.b16 %v5443, %v5442
        %v5451 = vpack.c.b16 %v5445, %v5444
        %v5452 = vpack.c.b16 %v5447, %v5446
        %v5453 = vpack.c.b16 %v5449, %v5448
        %v5459 = vsel %vm538, %v5424, 0
        %5461 = vmatprep.subr.bf16.mxu0 0
        %5462 = vmatpush1.bf16.msra.mxu0 %v5450
        %5463 = vmatprep.subr.bf16.mxu0 0
        %5464 = vmatpush1.bf16.msra.mxu0 %v5451
        %5465 = vmatprep.subr.bf16.mxu0 0
        %5466 = vmatpush1.bf16.msra.mxu0 %v5452
        %5467 = vmatprep.subr.bf16.mxu0 0
        %5468 = vmatpush1.bf16.msra.mxu0 %v5453
        %5469 = vmatprep.subr.bf16.mxu0 0
        %5470 = vmatpush1.bf16.msra.mxu0 0
        %5471 = vmatprep.subr.bf16.mxu0 0
        %5472 = vmatpush1.bf16.msra.mxu0 0
        %5473 = vmatprep.subr.bf16.mxu0 0
        %5474 = vmatpush1.bf16.msra.mxu0 0
        %5475 = vmatprep.subr.bf16.mxu0 0
        %5476 = vmatpush1.bf16.msra.mxu0 0
        %5477 = vmatprep.subr.bf16.mxu0 0
        %5478 = vmatpush1.bf16.msra.mxu0 0
        %5479 = vmatprep.subr.bf16.mxu0 0
        %5480 = vmatpush1.bf16.msra.mxu0 0
        %5481 = vmatprep.subr.bf16.mxu0 0
        %5482 = vmatpush1.bf16.msra.mxu0 0
        %5483 = vmatprep.subr.bf16.mxu0 0
        %5484 = vmatpush1.bf16.msra.mxu0 0
        %5485 = vmatprep.subr.bf16.mxu0 0
        %5486 = vmatpush1.bf16.msra.mxu0 0
        %5487 = vmatprep.subr.bf16.mxu0 0
        %5488 = vmatpush1.bf16.msra.mxu0 0
        %5489 = vmatprep.subr.bf16.mxu0 0
        %5490 = vmatpush1.bf16.msra.mxu0 0
        %5491 = vmatprep.subr.bf16.mxu0 0
        %5492 = vmatpush1.bf16.msra.mxu0 0
        %5493 = vmatprep.mubr.bf16.mxu0 0
        %5494 = vmatmul.mubr.bf16.gmra.mrb[0].mxu0 %v5459
        %v5495 = vpop.f32.mrb[0].mxu0
        %v5496 = vadd.f32 0.0, %v5495
        %v5497 = vpop.f32.mrb[0].mxu0
        %v5498 = vpop.f32.mrb[0].mxu0
        %v5499 = vpop.f32.mrb[0].mxu0
        %5500 = vdwg.mxu0
        %v5501 = vpack.c.bf16 %v5496, %v5496
        %s5502 = scalar_lea.vmem [#allocation16], 32
        %v5503 = vld [vmem:[%s5502] sm:$0xf]
        %v5504 = vld [vmem:[%s5502 + $0x4] sm:$0xf]
        %v5505 = vld [vmem:[%s5502 + $0x8] sm:$0xf]
        %v5506 = vld [vmem:[%s5502 + $0xc] sm:$0xf]
        %s5507 = scalar_lea.vmem [#allocation8], 11
        %v5508 = vld [vmem:[%s5507] sm:$0x1]
        %v5510 = vlaneseq
        %v5511 = vshrl.u32 %v5510, 7
        %v5512 = vsub.s32 0, %v5511
        %v5513 = vrot.slane %v5508, %v5512
        %v5519 = vunpack.c.l.b16 %v5503
        %v5520 = vunpack.c.l.b16 %v5504
        %v5521 = vunpack.c.l.b16 %v5505
        %v5522 = vunpack.c.l.b16 %v5506
        %v5523 = vpack.c.b16 %v5520, %v5519
        %v5524 = vpack.c.b16 %v5522, %v5521
        %v5528 = vsel %vm1532, %v5501, 0
        %5530 = vmatprep.subr.bf16.mxu0 0
        %5531 = vmatpush1.bf16.msra.mxu0 %v5523
        %5532 = vmatprep.subr.bf16.mxu0 0
        %5533 = vmatpush1.bf16.msra.mxu0 %v5524
        %5534 = vmatprep.subr.bf16.mxu0 0
        %5535 = vmatpush1.bf16.msra.mxu0 0
        %5536 = vmatprep.subr.bf16.mxu0 0
        %5537 = vmatpush1.bf16.msra.mxu0 0
        %5538 = vmatprep.subr.bf16.mxu0 0
        %5539 = vmatpush1.bf16.msra.mxu0 0
        %5540 = vmatprep.subr.bf16.mxu0 0
        %5541 = vmatpush1.bf16.msra.mxu0 0
        %5542 = vmatprep.subr.bf16.mxu0 0
        %5543 = vmatpush1.bf16.msra.mxu0 0
        %5544 = vmatprep.subr.bf16.mxu0 0
        %5545 = vmatpush1.bf16.msra.mxu0 0
        %5546 = vmatprep.subr.bf16.mxu0 0
        %5547 = vmatpush1.bf16.msra.mxu0 0
        %5548 = vmatprep.subr.bf16.mxu0 0
        %5549 = vmatpush1.bf16.msra.mxu0 0
        %5550 = vmatprep.subr.bf16.mxu0 0
        %5551 = vmatpush1.bf16.msra.mxu0 0
        %5552 = vmatprep.subr.bf16.mxu0 0
        %5553 = vmatpush1.bf16.msra.mxu0 0
        %5554 = vmatprep.subr.bf16.mxu0 0
        %5555 = vmatpush1.bf16.msra.mxu0 0
        %5556 = vmatprep.subr.bf16.mxu0 0
        %5557 = vmatpush1.bf16.msra.mxu0 0
        %5558 = vmatprep.subr.bf16.mxu0 0
        %5559 = vmatpush1.bf16.msra.mxu0 0
        %5560 = vmatprep.subr.bf16.mxu0 0
        %5561 = vmatpush1.bf16.msra.mxu0 0
        %5562 = vmatprep.mubr.bf16.mxu0 0
        %5563 = vmatmul.mubr.bf16.gmra.mrb[0].mxu0 %v5528
        %v5564 = vpop.f32.mrb[0].mxu0
        %v5565 = vadd.f32 %v5513, %v5564
        %v5566 = vpop.f32.mrb[0].mxu0
        %v5567 = vpop.f32.mrb[0].mxu0
        %v5568 = vpop.f32.mrb[0].mxu0
        %5569 = vdwg.mxu0
        %v5586 = vunpack.c.l.b16 %v5364
        %v5587 = vunpack.c.l.b16 %v5365
        %v5588 = vunpack.c.l.b16 %v5366
        %v5589 = vunpack.c.l.b16 %v5367
        %v5590 = vunpack.c.l.b16 %v5368
        %v5591 = vunpack.c.l.b16 %v5369
        %v5592 = vunpack.c.l.b16 %v5370
        %v5593 = vunpack.c.l.b16 %v5371
        %v5594 = vunpack.c.l.b16 %v5372
        %v5595 = vunpack.c.l.b16 %v5373
        %v5596 = vunpack.c.l.b16 %v5374
        %v5597 = vunpack.c.l.b16 %v5375
        %v5598 = vunpack.c.l.b16 %v5376
        %v5599 = vunpack.c.l.b16 %v5377
        %v5600 = vunpack.c.l.b16 %v5378
        %v5601 = vunpack.c.l.b16 %v5379
        %v5602 = vpack.c.b16 %v5587, %v5586
        %v5603 = vpack.c.b16 %v5589, %v5588
        %v5604 = vpack.c.b16 %v5591, %v5590
        %v5605 = vpack.c.b16 %v5593, %v5592
        %v5606 = vpack.c.b16 %v5595, %v5594
        %v5607 = vpack.c.b16 %v5597, %v5596
        %v5608 = vpack.c.b16 %v5599, %v5598
        %v5609 = vpack.c.b16 %v5601, %v5600
        %5618 = vmatprep.subr.bf16.mxu0 0
        %5619 = vmatpush1.bf16.msra.mxu0 %v5602
        %5620 = vmatprep.subr.bf16.mxu0 0
        %5621 = vmatpush1.bf16.msra.mxu0 %v5603
        %5622 = vmatprep.subr.bf16.mxu0 0
        %5623 = vmatpush1.bf16.msra.mxu0 %v5604
        %5624 = vmatprep.subr.bf16.mxu0 0
        %5625 = vmatpush1.bf16.msra.mxu0 %v5605
        %5626 = vmatprep.subr.bf16.mxu0 0
        %5627 = vmatpush1.bf16.msra.mxu0 %v5606
        %5628 = vmatprep.subr.bf16.mxu0 0
        %5629 = vmatpush1.bf16.msra.mxu0 %v5607
        %5630 = vmatprep.subr.bf16.mxu0 0
        %5631 = vmatpush1.bf16.msra.mxu0 %v5608
        %5632 = vmatprep.subr.bf16.mxu0 0
        %5633 = vmatpush1.bf16.msra.mxu0 %v5609
        %5634 = vmatprep.subr.bf16.mxu0 0
        %5635 = vmatpush1.bf16.msra.mxu0 0
        %5636 = vmatprep.subr.bf16.mxu0 0
        %5637 = vmatpush1.bf16.msra.mxu0 0
        %5638 = vmatprep.subr.bf16.mxu0 0
        %5639 = vmatpush1.bf16.msra.mxu0 0
        %5640 = vmatprep.subr.bf16.mxu0 0
        %5641 = vmatpush1.bf16.msra.mxu0 0
        %5642 = vmatprep.subr.bf16.mxu0 0
        %5643 = vmatpush1.bf16.msra.mxu0 0
        %5644 = vmatprep.subr.bf16.mxu0 0
        %5645 = vmatpush1.bf16.msra.mxu0 0
        %5646 = vmatprep.subr.bf16.mxu0 0
        %5647 = vmatpush1.bf16.msra.mxu0 0
        %5648 = vmatprep.subr.bf16.mxu0 0
        %5649 = vmatpush1.bf16.msra.mxu0 0
        %5650 = vmatprep.mubr.bf16.mxu0 0
        %5651 = vmatmul.mubr.bf16.gmra.mrb[0].mxu0 %v5362
        %v5652 = vpop.f32.mrb[0].mxu0
        %v5653 = vadd.f32 %v5565, %v5652
        %v5654 = vpop.f32.mrb[0].mxu0
        %v5655 = vpop.f32.mrb[0].mxu0
        %v5656 = vpop.f32.mrb[0].mxu0
        %5657 = vdwg.mxu0
        %vm5658 = vcmp.gt.f32.partialorder %v5653, 0.0
        %v5659 = vmin.f32 %v5653, 0.0
        %v5660 = vmul.f32 %v5659, 1.442695
        %v5661 = vpow.pop %v5660
        %v5662 = vsub.f32 %v5661, 1.0
        %v5663 = vsel %vm5658, %v5653, %v5662
        %vm5664 = vcmask 517120
        %5665 = vst.msk [vmem:[#allocation5 + $0x8] sm:$0x3] %vm5664, %v5663
        %v5666 = vld [vmem:[#allocation5 + $0x7] sm:$0x3]
        %v5667 = vpack.c.bf16 %v5666, %v5666
        %s5668 = scalar_lea.vmem [#allocation6], 1152
        %v5669 = vld [vmem:[%s5668] sm:$0xf]
        %v5670 = vld [vmem:[%s5668 + $0x4] sm:$0xf]
        %v5671 = vld [vmem:[%s5668 + $0x8] sm:$0xf]
        %v5672 = vld [vmem:[%s5668 + $0xc] sm:$0xf]
        %v5673 = vld [vmem:[%s5668 + $0x10] sm:$0xf]
        %v5674 = vld [vmem:[%s5668 + $0x14] sm:$0xf]
        %v5675 = vld [vmem:[%s5668 + $0x18] sm:$0xf]
        %v5676 = vld [vmem:[%s5668 + $0x1c] sm:$0xf]
        %v5677 = vld [vmem:[#allocation5 + $0x8] sm:$0x3]
        %v5678 = vpack.c.bf16 %v5677, %v5677
        %s5679 = scalar_lea.vmem [#allocation6], 1184
        %v5680 = vld [vmem:[%s5679] sm:$0xf]
        %v5681 = vld [vmem:[%s5679 + $0x4] sm:$0xf]
        %v5682 = vld [vmem:[%s5679 + $0x8] sm:$0xf]
        %v5683 = vld [vmem:[%s5679 + $0xc] sm:$0xf]
        %v5684 = vld [vmem:[%s5679 + $0x10] sm:$0xf]
        %v5685 = vld [vmem:[%s5679 + $0x14] sm:$0xf]
        %v5686 = vld [vmem:[%s5679 + $0x18] sm:$0xf]
        %v5687 = vld [vmem:[%s5679 + $0x1c] sm:$0xf]
        %v5696 = vunpack.c.l.b16 %v5680
        %v5697 = vunpack.c.l.b16 %v5681
        %v5698 = vunpack.c.l.b16 %v5682
        %v5699 = vunpack.c.l.b16 %v5683
        %v5700 = vunpack.c.l.b16 %v5684
        %v5701 = vunpack.c.l.b16 %v5685
        %v5702 = vunpack.c.l.b16 %v5686
        %v5703 = vunpack.c.l.b16 %v5687
        %v5704 = vpack.c.b16 %v5697, %v5696
        %v5705 = vpack.c.b16 %v5699, %v5698
        %v5706 = vpack.c.b16 %v5701, %v5700
        %v5707 = vpack.c.b16 %v5703, %v5702
        %v5713 = vsel %vm538, %v5678, 0
        %5715 = vmatprep.subr.bf16.mxu0 0
        %5716 = vmatpush1.bf16.msra.mxu0 %v5704
        %5717 = vmatprep.subr.bf16.mxu0 0
        %5718 = vmatpush1.bf16.msra.mxu0 %v5705
        %5719 = vmatprep.subr.bf16.mxu0 0
        %5720 = vmatpush1.bf16.msra.mxu0 %v5706
        %5721 = vmatprep.subr.bf16.mxu0 0
        %5722 = vmatpush1.bf16.msra.mxu0 %v5707
        %5723 = vmatprep.subr.bf16.mxu0 0
        %5724 = vmatpush1.bf16.msra.mxu0 0
        %5725 = vmatprep.subr.bf16.mxu0 0
        %5726 = vmatpush1.bf16.msra.mxu0 0
        %5727 = vmatprep.subr.bf16.mxu0 0
        %5728 = vmatpush1.bf16.msra.mxu0 0
        %5729 = vmatprep.subr.bf16.mxu0 0
        %5730 = vmatpush1.bf16.msra.mxu0 0
        %5731 = vmatprep.subr.bf16.mxu0 0
        %5732 = vmatpush1.bf16.msra.mxu0 0
        %5733 = vmatprep.subr.bf16.mxu0 0
        %5734 = vmatpush1.bf16.msra.mxu0 0
        %5735 = vmatprep.subr.bf16.mxu0 0
        %5736 = vmatpush1.bf16.msra.mxu0 0
        %5737 = vmatprep.subr.bf16.mxu0 0
        %5738 = vmatpush1.bf16.msra.mxu0 0
        %5739 = vmatprep.subr.bf16.mxu0 0
        %5740 = vmatpush1.bf16.msra.mxu0 0
        %5741 = vmatprep.subr.bf16.mxu0 0
        %5742 = vmatpush1.bf16.msra.mxu0 0
        %5743 = vmatprep.subr.bf16.mxu0 0
        %5744 = vmatpush1.bf16.msra.mxu0 0
        %5745 = vmatprep.subr.bf16.mxu0 0
        %5746 = vmatpush1.bf16.msra.mxu0 0
        %5747 = vmatprep.mubr.bf16.mxu0 0
        %5748 = vmatmul.mubr.bf16.gmra.mrb[0].mxu0 %v5713
        %v5749 = vpop.f32.mrb[0].mxu0
        %v5750 = vadd.f32 0.0, %v5749
        %v5751 = vpop.f32.mrb[0].mxu0
        %v5752 = vpop.f32.mrb[0].mxu0
        %v5753 = vpop.f32.mrb[0].mxu0
        %5754 = vdwg.mxu0
        %v5755 = vld [vmem:[#allocation5 + $0x9] sm:$0x3]
        %v5756 = vpack.c.bf16 %v5755, %v5755
        %s5757 = scalar_lea.vmem [#allocation6], 1216
        %v5758 = vld [vmem:[%s5757] sm:$0xf]
        %v5759 = vld [vmem:[%s5757 + $0x4] sm:$0xf]
        %v5760 = vld [vmem:[%s5757 + $0x8] sm:$0xf]
        %v5761 = vld [vmem:[%s5757 + $0xc] sm:$0xf]
        %v5762 = vld [vmem:[%s5757 + $0x10] sm:$0xf]
        %v5763 = vld [vmem:[%s5757 + $0x14] sm:$0xf]
        %v5764 = vld [vmem:[%s5757 + $0x18] sm:$0xf]
        %v5765 = vld [vmem:[%s5757 + $0x1c] sm:$0xf]
        %v5774 = vunpack.c.l.b16 %v5758
        %v5775 = vunpack.c.l.b16 %v5759
        %v5776 = vunpack.c.l.b16 %v5760
        %v5777 = vunpack.c.l.b16 %v5761
        %v5778 = vunpack.c.l.b16 %v5762
        %v5779 = vunpack.c.l.b16 %v5763
        %v5780 = vunpack.c.l.b16 %v5764
        %v5781 = vunpack.c.l.b16 %v5765
        %v5782 = vpack.c.b16 %v5775, %v5774
        %v5783 = vpack.c.b16 %v5777, %v5776
        %v5784 = vpack.c.b16 %v5779, %v5778
        %v5785 = vpack.c.b16 %v5781, %v5780
        %v5791 = vsel %vm538, %v5756, 0
        %5793 = vmatprep.subr.bf16.mxu0 0
        %5794 = vmatpush1.bf16.msra.mxu0 %v5782
        %5795 = vmatprep.subr.bf16.mxu0 0
        %5796 = vmatpush1.bf16.msra.mxu0 %v5783
        %5797 = vmatprep.subr.bf16.mxu0 0
        %5798 = vmatpush1.bf16.msra.mxu0 %v5784
        %5799 = vmatprep.subr.bf16.mxu0 0
        %5800 = vmatpush1.bf16.msra.mxu0 %v5785
        %5801 = vmatprep.subr.bf16.mxu0 0
        %5802 = vmatpush1.bf16.msra.mxu0 0
        %5803 = vmatprep.subr.bf16.mxu0 0
        %5804 = vmatpush1.bf16.msra.mxu0 0
        %5805 = vmatprep.subr.bf16.mxu0 0
        %5806 = vmatpush1.bf16.msra.mxu0 0
        %5807 = vmatprep.subr.bf16.mxu0 0
        %5808 = vmatpush1.bf16.msra.mxu0 0
        %5809 = vmatprep.subr.bf16.mxu0 0
        %5810 = vmatpush1.bf16.msra.mxu0 0
        %5811 = vmatprep.subr.bf16.mxu0 0
        %5812 = vmatpush1.bf16.msra.mxu0 0
        %5813 = vmatprep.subr.bf16.mxu0 0
        %5814 = vmatpush1.bf16.msra.mxu0 0
        %5815 = vmatprep.subr.bf16.mxu0 0
        %5816 = vmatpush1.bf16.msra.mxu0 0
        %5817 = vmatprep.subr.bf16.mxu0 0
        %5818 = vmatpush1.bf16.msra.mxu0 0
        %5819 = vmatprep.subr.bf16.mxu0 0
        %5820 = vmatpush1.bf16.msra.mxu0 0
        %5821 = vmatprep.subr.bf16.mxu0 0
        %5822 = vmatpush1.bf16.msra.mxu0 0
        %5823 = vmatprep.subr.bf16.mxu0 0
        %5824 = vmatpush1.bf16.msra.mxu0 0
        %5825 = vmatprep.mubr.bf16.mxu0 0
        %5826 = vmatmul.mubr.bf16.gmra.mrb[0].mxu0 %v5791
        %v5827 = vpop.f32.mrb[0].mxu0
        %v5828 = vadd.f32 0.0, %v5827
        %v5829 = vpop.f32.mrb[0].mxu0
        %v5830 = vpop.f32.mrb[0].mxu0
        %v5831 = vpop.f32.mrb[0].mxu0
        %5832 = vdwg.mxu0
        %v5841 = vunpack.c.l.b16 %v5669
        %v5842 = vunpack.c.l.b16 %v5670
        %v5843 = vunpack.c.l.b16 %v5671
        %v5844 = vunpack.c.l.b16 %v5672
        %v5845 = vunpack.c.l.b16 %v5673
        %v5846 = vunpack.c.l.b16 %v5674
        %v5847 = vunpack.c.l.b16 %v5675
        %v5848 = vunpack.c.l.b16 %v5676
        %v5849 = vpack.c.b16 %v5842, %v5841
        %v5850 = vpack.c.b16 %v5844, %v5843
        %v5851 = vpack.c.b16 %v5846, %v5845
        %v5852 = vpack.c.b16 %v5848, %v5847
        %v5858 = vsel %vm538, %v5667, 0
        %5860 = vmatprep.subr.bf16.mxu0 0
        %5861 = vmatpush1.bf16.msra.mxu0 %v5849
        %5862 = vmatprep.subr.bf16.mxu0 0
        %5863 = vmatpush1.bf16.msra.mxu0 %v5850
        %5864 = vmatprep.subr.bf16.mxu0 0
        %5865 = vmatpush1.bf16.msra.mxu0 %v5851
        %5866 = vmatprep.subr.bf16.mxu0 0
        %5867 = vmatpush1.bf16.msra.mxu0 %v5852
        %5868 = vmatprep.subr.bf16.mxu0 0
        %5869 = vmatpush1.bf16.msra.mxu0 0
        %5870 = vmatprep.subr.bf16.mxu0 0
        %5871 = vmatpush1.bf16.msra.mxu0 0
        %5872 = vmatprep.subr.bf16.mxu0 0
        %5873 = vmatpush1.bf16.msra.mxu0 0
        %5874 = vmatprep.subr.bf16.mxu0 0
        %5875 = vmatpush1.bf16.msra.mxu0 0
        %5876 = vmatprep.subr.bf16.mxu0 0
        %5877 = vmatpush1.bf16.msra.mxu0 0
        %5878 = vmatprep.subr.bf16.mxu0 0
        %5879 = vmatpush1.bf16.msra.mxu0 0
        %5880 = vmatprep.subr.bf16.mxu0 0
        %5881 = vmatpush1.bf16.msra.mxu0 0
        %5882 = vmatprep.subr.bf16.mxu0 0
        %5883 = vmatpush1.bf16.msra.mxu0 0
        %5884 = vmatprep.subr.bf16.mxu0 0
        %5885 = vmatpush1.bf16.msra.mxu0 0
        %5886 = vmatprep.subr.bf16.mxu0 0
        %5887 = vmatpush1.bf16.msra.mxu0 0
        %5888 = vmatprep.subr.bf16.mxu0 0
        %5889 = vmatpush1.bf16.msra.mxu0 0
        %5890 = vmatprep.subr.bf16.mxu0 0
        %5891 = vmatpush1.bf16.msra.mxu0 0
        %5892 = vmatprep.mubr.bf16.mxu0 0
        %5893 = vmatmul.mubr.bf16.gmra.mrb[0].mxu0 %v5858
        %v5894 = vpop.f32.mrb[0].mxu0
        %v5895 = vadd.f32 %v5750, %v5894
        %v5896 = vpop.f32.mrb[0].mxu0
        %v5897 = vpop.f32.mrb[0].mxu0
        %v5898 = vpop.f32.mrb[0].mxu0
        %5899 = vdwg.mxu0
        %v5900 = vadd.f32 %v5895, %v5828
        %vm5901 = vcmp.gt.f32.partialorder %v5900, 0.0
        %v5902 = vmin.f32 %v5900, 0.0
        %v5903 = vmul.f32 %v5902, 1.442695
        %v5904 = vpow.pop %v5903
        %v5905 = vsub.f32 %v5904, 1.0
        %v5906 = vsel %vm5901, %v5900, %v5905
        %5907 = vst.msk [vmem:[#allocation5 + $0x8] sm:$0x3] %vm5664, %v5906
        %v5908 = vld [vmem:[#allocation5 + $0x7] sm:$0x3]
        %v5909 = vpack.c.bf16 %v5908, %v5908
        %s5910 = scalar_lea.vmem [#allocation6], 1248
        %v5911 = vld [vmem:[%s5910] sm:$0xf]
        %v5912 = vld [vmem:[%s5910 + $0x4] sm:$0xf]
        %v5913 = vld [vmem:[%s5910 + $0x8] sm:$0xf]
        %v5914 = vld [vmem:[%s5910 + $0xc] sm:$0xf]
        %v5915 = vld [vmem:[%s5910 + $0x10] sm:$0xf]
        %v5916 = vld [vmem:[%s5910 + $0x14] sm:$0xf]
        %v5917 = vld [vmem:[%s5910 + $0x18] sm:$0xf]
        %v5918 = vld [vmem:[%s5910 + $0x1c] sm:$0xf]
        %v5919 = vld [vmem:[#allocation5 + $0x8] sm:$0x3]
        %v5920 = vpack.c.bf16 %v5919, %v5919
        %s5921 = scalar_lea.vmem [#allocation6], 1280
        %v5922 = vld [vmem:[%s5921] sm:$0xf]
        %v5923 = vld [vmem:[%s5921 + $0x4] sm:$0xf]
        %v5924 = vld [vmem:[%s5921 + $0x8] sm:$0xf]
        %v5925 = vld [vmem:[%s5921 + $0xc] sm:$0xf]
        %v5926 = vld [vmem:[%s5921 + $0x10] sm:$0xf]
        %v5927 = vld [vmem:[%s5921 + $0x14] sm:$0xf]
        %v5928 = vld [vmem:[%s5921 + $0x18] sm:$0xf]
        %v5929 = vld [vmem:[%s5921 + $0x1c] sm:$0xf]
        %v5938 = vunpack.c.l.b16 %v5922
        %v5939 = vunpack.c.l.b16 %v5923
        %v5940 = vunpack.c.l.b16 %v5924
        %v5941 = vunpack.c.l.b16 %v5925
        %v5942 = vunpack.c.l.b16 %v5926
        %v5943 = vunpack.c.l.b16 %v5927
        %v5944 = vunpack.c.l.b16 %v5928
        %v5945 = vunpack.c.l.b16 %v5929
        %v5946 = vpack.c.b16 %v5939, %v5938
        %v5947 = vpack.c.b16 %v5941, %v5940
        %v5948 = vpack.c.b16 %v5943, %v5942
        %v5949 = vpack.c.b16 %v5945, %v5944
        %v5955 = vsel %vm538, %v5920, 0
        %5957 = vmatprep.subr.bf16.mxu0 0
        %5958 = vmatpush1.bf16.msra.mxu0 %v5946
        %5959 = vmatprep.subr.bf16.mxu0 0
        %5960 = vmatpush1.bf16.msra.mxu0 %v5947
        %5961 = vmatprep.subr.bf16.mxu0 0
        %5962 = vmatpush1.bf16.msra.mxu0 %v5948
        %5963 = vmatprep.subr.bf16.mxu0 0
        %5964 = vmatpush1.bf16.msra.mxu0 %v5949
        %5965 = vmatprep.subr.bf16.mxu0 0
        %5966 = vmatpush1.bf16.msra.mxu0 0
        %5967 = vmatprep.subr.bf16.mxu0 0
        %5968 = vmatpush1.bf16.msra.mxu0 0
        %5969 = vmatprep.subr.bf16.mxu0 0
        %5970 = vmatpush1.bf16.msra.mxu0 0
        %5971 = vmatprep.subr.bf16.mxu0 0
        %5972 = vmatpush1.bf16.msra.mxu0 0
        %5973 = vmatprep.subr.bf16.mxu0 0
        %5974 = vmatpush1.bf16.msra.mxu0 0
        %5975 = vmatprep.subr.bf16.mxu0 0
        %5976 = vmatpush1.bf16.msra.mxu0 0
        %5977 = vmatprep.subr.bf16.mxu0 0
        %5978 = vmatpush1.bf16.msra.mxu0 0
        %5979 = vmatprep.subr.bf16.mxu0 0
        %5980 = vmatpush1.bf16.msra.mxu0 0
        %5981 = vmatprep.subr.bf16.mxu0 0
        %5982 = vmatpush1.bf16.msra.mxu0 0
        %5983 = vmatprep.subr.bf16.mxu0 0
        %5984 = vmatpush1.bf16.msra.mxu0 0
        %5985 = vmatprep.subr.bf16.mxu0 0
        %5986 = vmatpush1.bf16.msra.mxu0 0
        %5987 = vmatprep.subr.bf16.mxu0 0
        %5988 = vmatpush1.bf16.msra.mxu0 0
        %5989 = vmatprep.mubr.bf16.mxu0 0
        %5990 = vmatmul.mubr.bf16.gmra.mrb[0].mxu0 %v5955
        %v5991 = vpop.f32.mrb[0].mxu0
        %v5992 = vadd.f32 0.0, %v5991
        %v5993 = vpop.f32.mrb[0].mxu0
        %v5994 = vpop.f32.mrb[0].mxu0
        %v5995 = vpop.f32.mrb[0].mxu0
        %5996 = vdwg.mxu0
        %v5997 = vld [vmem:[#allocation5 + $0x9] sm:$0x3]
        %v5998 = vpack.c.bf16 %v5997, %v5997
        %s5999 = scalar_lea.vmem [#allocation6], 1312
        %v6000 = vld [vmem:[%s5999] sm:$0xf]
        %v6001 = vld [vmem:[%s5999 + $0x4] sm:$0xf]
        %v6002 = vld [vmem:[%s5999 + $0x8] sm:$0xf]
        %v6003 = vld [vmem:[%s5999 + $0xc] sm:$0xf]
        %v6004 = vld [vmem:[%s5999 + $0x10] sm:$0xf]
        %v6005 = vld [vmem:[%s5999 + $0x14] sm:$0xf]
        %v6006 = vld [vmem:[%s5999 + $0x18] sm:$0xf]
        %v6007 = vld [vmem:[%s5999 + $0x1c] sm:$0xf]
        %v6016 = vunpack.c.l.b16 %v6000
        %v6017 = vunpack.c.l.b16 %v6001
        %v6018 = vunpack.c.l.b16 %v6002
        %v6019 = vunpack.c.l.b16 %v6003
        %v6020 = vunpack.c.l.b16 %v6004
        %v6021 = vunpack.c.l.b16 %v6005
        %v6022 = vunpack.c.l.b16 %v6006
        %v6023 = vunpack.c.l.b16 %v6007
        %v6024 = vpack.c.b16 %v6017, %v6016
        %v6025 = vpack.c.b16 %v6019, %v6018
        %v6026 = vpack.c.b16 %v6021, %v6020
        %v6027 = vpack.c.b16 %v6023, %v6022
        %v6033 = vsel %vm538, %v5998, 0
        %6035 = vmatprep.subr.bf16.mxu0 0
        %6036 = vmatpush1.bf16.msra.mxu0 %v6024
        %6037 = vmatprep.subr.bf16.mxu0 0
        %6038 = vmatpush1.bf16.msra.mxu0 %v6025
        %6039 = vmatprep.subr.bf16.mxu0 0
        %6040 = vmatpush1.bf16.msra.mxu0 %v6026
        %6041 = vmatprep.subr.bf16.mxu0 0
        %6042 = vmatpush1.bf16.msra.mxu0 %v6027
        %6043 = vmatprep.subr.bf16.mxu0 0
        %6044 = vmatpush1.bf16.msra.mxu0 0
        %6045 = vmatprep.subr.bf16.mxu0 0
        %6046 = vmatpush1.bf16.msra.mxu0 0
        %6047 = vmatprep.subr.bf16.mxu0 0
        %6048 = vmatpush1.bf16.msra.mxu0 0
        %6049 = vmatprep.subr.bf16.mxu0 0
        %6050 = vmatpush1.bf16.msra.mxu0 0
        %6051 = vmatprep.subr.bf16.mxu0 0
        %6052 = vmatpush1.bf16.msra.mxu0 0
        %6053 = vmatprep.subr.bf16.mxu0 0
        %6054 = vmatpush1.bf16.msra.mxu0 0
        %6055 = vmatprep.subr.bf16.mxu0 0
        %6056 = vmatpush1.bf16.msra.mxu0 0
        %6057 = vmatprep.subr.bf16.mxu0 0
        %6058 = vmatpush1.bf16.msra.mxu0 0
        %6059 = vmatprep.subr.bf16.mxu0 0
        %6060 = vmatpush1.bf16.msra.mxu0 0
        %6061 = vmatprep.subr.bf16.mxu0 0
        %6062 = vmatpush1.bf16.msra.mxu0 0
        %6063 = vmatprep.subr.bf16.mxu0 0
        %6064 = vmatpush1.bf16.msra.mxu0 0
        %6065 = vmatprep.subr.bf16.mxu0 0
        %6066 = vmatpush1.bf16.msra.mxu0 0
        %6067 = vmatprep.mubr.bf16.mxu0 0
        %6068 = vmatmul.mubr.bf16.gmra.mrb[0].mxu0 %v6033
        %v6069 = vpop.f32.mrb[0].mxu0
        %v6070 = vadd.f32 0.0, %v6069
        %v6071 = vpop.f32.mrb[0].mxu0
        %v6072 = vpop.f32.mrb[0].mxu0
        %v6073 = vpop.f32.mrb[0].mxu0
        %6074 = vdwg.mxu0
        %v6083 = vunpack.c.l.b16 %v5911
        %v6084 = vunpack.c.l.b16 %v5912
        %v6085 = vunpack.c.l.b16 %v5913
        %v6086 = vunpack.c.l.b16 %v5914
        %v6087 = vunpack.c.l.b16 %v5915
        %v6088 = vunpack.c.l.b16 %v5916
        %v6089 = vunpack.c.l.b16 %v5917
        %v6090 = vunpack.c.l.b16 %v5918
        %v6091 = vpack.c.b16 %v6084, %v6083
        %v6092 = vpack.c.b16 %v6086, %v6085
        %v6093 = vpack.c.b16 %v6088, %v6087
        %v6094 = vpack.c.b16 %v6090, %v6089
        %v6100 = vsel %vm538, %v5909, 0
        %6102 = vmatprep.subr.bf16.mxu0 0
        %6103 = vmatpush1.bf16.msra.mxu0 %v6091
        %6104 = vmatprep.subr.bf16.mxu0 0
        %6105 = vmatpush1.bf16.msra.mxu0 %v6092
        %6106 = vmatprep.subr.bf16.mxu0 0
        %6107 = vmatpush1.bf16.msra.mxu0 %v6093
        %6108 = vmatprep.subr.bf16.mxu0 0
        %6109 = vmatpush1.bf16.msra.mxu0 %v6094
        %6110 = vmatprep.subr.bf16.mxu0 0
        %6111 = vmatpush1.bf16.msra.mxu0 0
        %6112 = vmatprep.subr.bf16.mxu0 0
        %6113 = vmatpush1.bf16.msra.mxu0 0
        %6114 = vmatprep.subr.bf16.mxu0 0
        %6115 = vmatpush1.bf16.msra.mxu0 0
        %6116 = vmatprep.subr.bf16.mxu0 0
        %6117 = vmatpush1.bf16.msra.mxu0 0
        %6118 = vmatprep.subr.bf16.mxu0 0
        %6119 = vmatpush1.bf16.msra.mxu0 0
        %6120 = vmatprep.subr.bf16.mxu0 0
        %6121 = vmatpush1.bf16.msra.mxu0 0
        %6122 = vmatprep.subr.bf16.mxu0 0
        %6123 = vmatpush1.bf16.msra.mxu0 0
        %6124 = vmatprep.subr.bf16.mxu0 0
        %6125 = vmatpush1.bf16.msra.mxu0 0
        %6126 = vmatprep.subr.bf16.mxu0 0
        %6127 = vmatpush1.bf16.msra.mxu0 0
        %6128 = vmatprep.subr.bf16.mxu0 0
        %6129 = vmatpush1.bf16.msra.mxu0 0
        %6130 = vmatprep.subr.bf16.mxu0 0
        %6131 = vmatpush1.bf16.msra.mxu0 0
        %6132 = vmatprep.subr.bf16.mxu0 0
        %6133 = vmatpush1.bf16.msra.mxu0 0
        %6134 = vmatprep.mubr.bf16.mxu0 0
        %6135 = vmatmul.mubr.bf16.gmra.mrb[0].mxu0 %v6100
        %v6136 = vpop.f32.mrb[0].mxu0
        %v6137 = vadd.f32 %v5992, %v6136
        %v6138 = vpop.f32.mrb[0].mxu0
        %v6139 = vpop.f32.mrb[0].mxu0
        %v6140 = vpop.f32.mrb[0].mxu0
        %6141 = vdwg.mxu0
        %v6142 = vadd.f32 %v6137, %v6070
        %s6143 = scalar_lea.vmem [#allocation8], 12
        %v6144 = vld [vmem:[%s6143] sm:$0x1]
        %v6146 = vlaneseq
        %v6147 = vshrl.u32 %v6146, 7
        %v6148 = vsub.s32 0, %v6147
        %v6149 = vrot.slane %v6144, %v6148
        %v6151 = vadd.f32 %v6142, %v6149
        %v6152 = vpack.c.bf16 %v5653, %v5653
        %s6153 = scalar_lea.vmem %s9, 128
        %v6154 = vld [vmem:[%s6153] sm:$0xf]
        %v6155 = vld [vmem:[%s6153 + $0x4] sm:$0xf]
        %v6156 = vld [vmem:[%s6153 + $0x8] sm:$0xf]
        %v6157 = vld [vmem:[%s6153 + $0xc] sm:$0xf]
        %v6158 = vld [vmem:[%s6153 + $0x10] sm:$0xf]
        %v6159 = vld [vmem:[%s6153 + $0x14] sm:$0xf]
        %v6160 = vld [vmem:[%s6153 + $0x18] sm:$0xf]
        %v6161 = vld [vmem:[%s6153 + $0x1c] sm:$0xf]
        %s6162 = scalar_lea.vmem [#allocation8], 13
        %v6163 = vld [vmem:[%s6162] sm:$0x1]
        %v6165 = vlaneseq
        %v6166 = vshrl.u32 %v6165, 7
        %v6167 = vsub.s32 0, %v6166
        %v6168 = vrot.slane %v6163, %v6167
        %v6178 = vunpack.c.l.b16 %v6154
        %v6179 = vunpack.c.l.b16 %v6155
        %v6180 = vunpack.c.l.b16 %v6156
        %v6181 = vunpack.c.l.b16 %v6157
        %v6182 = vunpack.c.l.b16 %v6158
        %v6183 = vunpack.c.l.b16 %v6159
        %v6184 = vunpack.c.l.b16 %v6160
        %v6185 = vunpack.c.l.b16 %v6161
        %v6186 = vpack.c.b16 %v6179, %v6178
        %v6187 = vpack.c.b16 %v6181, %v6180
        %v6188 = vpack.c.b16 %v6183, %v6182
        %v6189 = vpack.c.b16 %v6185, %v6184
        %v6195 = vsel %vm538, %v6152, 0
        %6197 = vmatprep.subr.bf16.mxu0 0
        %6198 = vmatpush1.bf16.msra.mxu0 %v6186
        %6199 = vmatprep.subr.bf16.mxu0 0
        %6200 = vmatpush1.bf16.msra.mxu0 %v6187
        %6201 = vmatprep.subr.bf16.mxu0 0
        %6202 = vmatpush1.bf16.msra.mxu0 %v6188
        %6203 = vmatprep.subr.bf16.mxu0 0
        %6204 = vmatpush1.bf16.msra.mxu0 %v6189
        %6205 = vmatprep.subr.bf16.mxu0 0
        %6206 = vmatpush1.bf16.msra.mxu0 0
        %6207 = vmatprep.subr.bf16.mxu0 0
        %6208 = vmatpush1.bf16.msra.mxu0 0
        %6209 = vmatprep.subr.bf16.mxu0 0
        %6210 = vmatpush1.bf16.msra.mxu0 0
        %6211 = vmatprep.subr.bf16.mxu0 0
        %6212 = vmatpush1.bf16.msra.mxu0 0
        %6213 = vmatprep.subr.bf16.mxu0 0
        %6214 = vmatpush1.bf16.msra.mxu0 0
        %6215 = vmatprep.subr.bf16.mxu0 0
        %6216 = vmatpush1.bf16.msra.mxu0 0
        %6217 = vmatprep.subr.bf16.mxu0 0
        %6218 = vmatpush1.bf16.msra.mxu0 0
        %6219 = vmatprep.subr.bf16.mxu0 0
        %6220 = vmatpush1.bf16.msra.mxu0 0
        %6221 = vmatprep.subr.bf16.mxu0 0
        %6222 = vmatpush1.bf16.msra.mxu0 0
        %6223 = vmatprep.subr.bf16.mxu0 0
        %6224 = vmatpush1.bf16.msra.mxu0 0
        %6225 = vmatprep.subr.bf16.mxu0 0
        %6226 = vmatpush1.bf16.msra.mxu0 0
        %6227 = vmatprep.subr.bf16.mxu0 0
        %6228 = vmatpush1.bf16.msra.mxu0 0
        %6229 = vmatprep.mubr.bf16.mxu0 0
        %6230 = vmatmul.mubr.bf16.gmra.mrb[0].mxu0 %v6195
        %v6231 = vpop.f32.mrb[0].mxu0
        %v6232 = vadd.f32 %v6168, %v6231
        %v6233 = vpop.f32.mrb[0].mxu0
        %v6234 = vpop.f32.mrb[0].mxu0
        %v6235 = vpop.f32.mrb[0].mxu0
        %6236 = vdwg.mxu0
        %v6237 = vadd.f32 %v6151, %v6232
        %vm6238 = vcmp.gt.f32.partialorder %v6237, 0.0
        %v6239 = vmin.f32 %v6237, 0.0
        %v6240 = vmul.f32 %v6239, 1.442695
        %v6241 = vpow.pop %v6240
        %v6242 = vsub.f32 %v6241, 1.0
        %v6243 = vsel %vm6238, %v6237, %v6242
        %6244 = vst.msk [vmem:[#allocation5 + $0x8] sm:$0x3] %vm5664, %v6243
        %v6245 = vld [vmem:[#allocation5 + $0x7] sm:$0x3]
        %v6246 = vpack.c.bf16 %v6245, %v6245
        %s6247 = scalar_lea.vmem [#allocation6], 1344
        %v6248 = vld [vmem:[%s6247] sm:$0xf]
        %v6249 = vld [vmem:[%s6247 + $0x4] sm:$0xf]
        %v6250 = vld [vmem:[%s6247 + $0x8] sm:$0xf]
        %v6251 = vld [vmem:[%s6247 + $0xc] sm:$0xf]
        %v6252 = vld [vmem:[%s6247 + $0x10] sm:$0xf]
        %v6253 = vld [vmem:[%s6247 + $0x14] sm:$0xf]
        %v6254 = vld [vmem:[%s6247 + $0x18] sm:$0xf]
        %v6255 = vld [vmem:[%s6247 + $0x1c] sm:$0xf]
        %v6256 = vld [vmem:[#allocation5 + $0x8] sm:$0x3]
        %v6257 = vpack.c.bf16 %v6256, %v6256
        %s6258 = scalar_lea.vmem [#allocation6], 1376
        %v6259 = vld [vmem:[%s6258] sm:$0xf]
        %v6260 = vld [vmem:[%s6258 + $0x4] sm:$0xf]
        %v6261 = vld [vmem:[%s6258 + $0x8] sm:$0xf]
        %v6262 = vld [vmem:[%s6258 + $0xc] sm:$0xf]
        %v6263 = vld [vmem:[%s6258 + $0x10] sm:$0xf]
        %v6264 = vld [vmem:[%s6258 + $0x14] sm:$0xf]
        %v6265 = vld [vmem:[%s6258 + $0x18] sm:$0xf]
        %v6266 = vld [vmem:[%s6258 + $0x1c] sm:$0xf]
        %v6275 = vunpack.c.l.b16 %v6259
        %v6276 = vunpack.c.l.b16 %v6260
        %v6277 = vunpack.c.l.b16 %v6261
        %v6278 = vunpack.c.l.b16 %v6262
        %v6279 = vunpack.c.l.b16 %v6263
        %v6280 = vunpack.c.l.b16 %v6264
        %v6281 = vunpack.c.l.b16 %v6265
        %v6282 = vunpack.c.l.b16 %v6266
        %v6283 = vpack.c.b16 %v6276, %v6275
        %v6284 = vpack.c.b16 %v6278, %v6277
        %v6285 = vpack.c.b16 %v6280, %v6279
        %v6286 = vpack.c.b16 %v6282, %v6281
        %v6292 = vsel %vm538, %v6257, 0
        %6294 = vmatprep.subr.bf16.mxu0 0
        %6295 = vmatpush1.bf16.msra.mxu0 %v6283
        %6296 = vmatprep.subr.bf16.mxu0 0
        %6297 = vmatpush1.bf16.msra.mxu0 %v6284
        %6298 = vmatprep.subr.bf16.mxu0 0
        %6299 = vmatpush1.bf16.msra.mxu0 %v6285
        %6300 = vmatprep.subr.bf16.mxu0 0
        %6301 = vmatpush1.bf16.msra.mxu0 %v6286
        %6302 = vmatprep.subr.bf16.mxu0 0
        %6303 = vmatpush1.bf16.msra.mxu0 0
        %6304 = vmatprep.subr.bf16.mxu0 0
        %6305 = vmatpush1.bf16.msra.mxu0 0
        %6306 = vmatprep.subr.bf16.mxu0 0
        %6307 = vmatpush1.bf16.msra.mxu0 0
        %6308 = vmatprep.subr.bf16.mxu0 0
        %6309 = vmatpush1.bf16.msra.mxu0 0
        %6310 = vmatprep.subr.bf16.mxu0 0
        %6311 = vmatpush1.bf16.msra.mxu0 0
        %6312 = vmatprep.subr.bf16.mxu0 0
        %6313 = vmatpush1.bf16.msra.mxu0 0
        %6314 = vmatprep.subr.bf16.mxu0 0
        %6315 = vmatpush1.bf16.msra.mxu0 0
        %6316 = vmatprep.subr.bf16.mxu0 0
        %6317 = vmatpush1.bf16.msra.mxu0 0
        %6318 = vmatprep.subr.bf16.mxu0 0
        %6319 = vmatpush1.bf16.msra.mxu0 0
        %6320 = vmatprep.subr.bf16.mxu0 0
        %6321 = vmatpush1.bf16.msra.mxu0 0
        %6322 = vmatprep.subr.bf16.mxu0 0
        %6323 = vmatpush1.bf16.msra.mxu0 0
        %6324 = vmatprep.subr.bf16.mxu0 0
        %6325 = vmatpush1.bf16.msra.mxu0 0
        %6326 = vmatprep.mubr.bf16.mxu0 0
        %6327 = vmatmul.mubr.bf16.gmra.mrb[0].mxu0 %v6292
        %v6328 = vpop.f32.mrb[0].mxu0
        %v6329 = vadd.f32 0.0, %v6328
        %v6330 = vpop.f32.mrb[0].mxu0
        %v6331 = vpop.f32.mrb[0].mxu0
        %v6332 = vpop.f32.mrb[0].mxu0
        %6333 = vdwg.mxu0
        %v6334 = vld [vmem:[#allocation5 + $0x9] sm:$0x3]
        %v6335 = vpack.c.bf16 %v6334, %v6334
        %s6336 = scalar_lea.vmem [#allocation6], 1408
        %v6337 = vld [vmem:[%s6336] sm:$0xf]
        %v6338 = vld [vmem:[%s6336 + $0x4] sm:$0xf]
        %v6339 = vld [vmem:[%s6336 + $0x8] sm:$0xf]
        %v6340 = vld [vmem:[%s6336 + $0xc] sm:$0xf]
        %v6341 = vld [vmem:[%s6336 + $0x10] sm:$0xf]
        %v6342 = vld [vmem:[%s6336 + $0x14] sm:$0xf]
        %v6343 = vld [vmem:[%s6336 + $0x18] sm:$0xf]
        %v6344 = vld [vmem:[%s6336 + $0x1c] sm:$0xf]
        %v6353 = vunpack.c.l.b16 %v6337
        %v6354 = vunpack.c.l.b16 %v6338
        %v6355 = vunpack.c.l.b16 %v6339
        %v6356 = vunpack.c.l.b16 %v6340
        %v6357 = vunpack.c.l.b16 %v6341
        %v6358 = vunpack.c.l.b16 %v6342
        %v6359 = vunpack.c.l.b16 %v6343
        %v6360 = vunpack.c.l.b16 %v6344
        %v6361 = vpack.c.b16 %v6354, %v6353
        %v6362 = vpack.c.b16 %v6356, %v6355
        %v6363 = vpack.c.b16 %v6358, %v6357
        %v6364 = vpack.c.b16 %v6360, %v6359
        %v6370 = vsel %vm538, %v6335, 0
        %6372 = vmatprep.subr.bf16.mxu0 0
        %6373 = vmatpush1.bf16.msra.mxu0 %v6361
        %6374 = vmatprep.subr.bf16.mxu0 0
        %6375 = vmatpush1.bf16.msra.mxu0 %v6362
        %6376 = vmatprep.subr.bf16.mxu0 0
        %6377 = vmatpush1.bf16.msra.mxu0 %v6363
        %6378 = vmatprep.subr.bf16.mxu0 0
        %6379 = vmatpush1.bf16.msra.mxu0 %v6364
        %6380 = vmatprep.subr.bf16.mxu0 0
        %6381 = vmatpush1.bf16.msra.mxu0 0
        %6382 = vmatprep.subr.bf16.mxu0 0
        %6383 = vmatpush1.bf16.msra.mxu0 0
        %6384 = vmatprep.subr.bf16.mxu0 0
        %6385 = vmatpush1.bf16.msra.mxu0 0
        %6386 = vmatprep.subr.bf16.mxu0 0
        %6387 = vmatpush1.bf16.msra.mxu0 0
        %6388 = vmatprep.subr.bf16.mxu0 0
        %6389 = vmatpush1.bf16.msra.mxu0 0
        %6390 = vmatprep.subr.bf16.mxu0 0
        %6391 = vmatpush1.bf16.msra.mxu0 0
        %6392 = vmatprep.subr.bf16.mxu0 0
        %6393 = vmatpush1.bf16.msra.mxu0 0
        %6394 = vmatprep.subr.bf16.mxu0 0
        %6395 = vmatpush1.bf16.msra.mxu0 0
        %6396 = vmatprep.subr.bf16.mxu0 0
        %6397 = vmatpush1.bf16.msra.mxu0 0
        %6398 = vmatprep.subr.bf16.mxu0 0
        %6399 = vmatpush1.bf16.msra.mxu0 0
        %6400 = vmatprep.subr.bf16.mxu0 0
        %6401 = vmatpush1.bf16.msra.mxu0 0
        %6402 = vmatprep.subr.bf16.mxu0 0
        %6403 = vmatpush1.bf16.msra.mxu0 0
        %6404 = vmatprep.mubr.bf16.mxu0 0
        %6405 = vmatmul.mubr.bf16.gmra.mrb[0].mxu0 %v6370
        %v6406 = vpop.f32.mrb[0].mxu0
        %v6407 = vadd.f32 0.0, %v6406
        %v6408 = vpop.f32.mrb[0].mxu0
        %v6409 = vpop.f32.mrb[0].mxu0
        %v6410 = vpop.f32.mrb[0].mxu0
        %6411 = vdwg.mxu0
        %v6420 = vunpack.c.l.b16 %v6248
        %v6421 = vunpack.c.l.b16 %v6249
        %v6422 = vunpack.c.l.b16 %v6250
        %v6423 = vunpack.c.l.b16 %v6251
        %v6424 = vunpack.c.l.b16 %v6252
        %v6425 = vunpack.c.l.b16 %v6253
        %v6426 = vunpack.c.l.b16 %v6254
        %v6427 = vunpack.c.l.b16 %v6255
        %v6428 = vpack.c.b16 %v6421, %v6420
        %v6429 = vpack.c.b16 %v6423, %v6422
        %v6430 = vpack.c.b16 %v6425, %v6424
        %v6431 = vpack.c.b16 %v6427, %v6426
        %v6437 = vsel %vm538, %v6246, 0
        %6439 = vmatprep.subr.bf16.mxu0 0
        %6440 = vmatpush1.bf16.msra.mxu0 %v6428
        %6441 = vmatprep.subr.bf16.mxu0 0
        %6442 = vmatpush1.bf16.msra.mxu0 %v6429
        %6443 = vmatprep.subr.bf16.mxu0 0
        %6444 = vmatpush1.bf16.msra.mxu0 %v6430
        %6445 = vmatprep.subr.bf16.mxu0 0
        %6446 = vmatpush1.bf16.msra.mxu0 %v6431
        %6447 = vmatprep.subr.bf16.mxu0 0
        %6448 = vmatpush1.bf16.msra.mxu0 0
        %6449 = vmatprep.subr.bf16.mxu0 0
        %6450 = vmatpush1.bf16.msra.mxu0 0
        %6451 = vmatprep.subr.bf16.mxu0 0
        %6452 = vmatpush1.bf16.msra.mxu0 0
        %6453 = vmatprep.subr.bf16.mxu0 0
        %6454 = vmatpush1.bf16.msra.mxu0 0
        %6455 = vmatprep.subr.bf16.mxu0 0
        %6456 = vmatpush1.bf16.msra.mxu0 0
        %6457 = vmatprep.subr.bf16.mxu0 0
        %6458 = vmatpush1.bf16.msra.mxu0 0
        %6459 = vmatprep.subr.bf16.mxu0 0
        %6460 = vmatpush1.bf16.msra.mxu0 0
        %6461 = vmatprep.subr.bf16.mxu0 0
        %6462 = vmatpush1.bf16.msra.mxu0 0
        %6463 = vmatprep.subr.bf16.mxu0 0
        %6464 = vmatpush1.bf16.msra.mxu0 0
        %6465 = vmatprep.subr.bf16.mxu0 0
        %6466 = vmatpush1.bf16.msra.mxu0 0
        %6467 = vmatprep.subr.bf16.mxu0 0
        %6468 = vmatpush1.bf16.msra.mxu0 0
        %6469 = vmatprep.subr.bf16.mxu0 0
        %6470 = vmatpush1.bf16.msra.mxu0 0
        %6471 = vmatprep.mubr.bf16.mxu0 0
        %6472 = vmatmul.mubr.bf16.gmra.mrb[0].mxu0 %v6437
        %v6473 = vpop.f32.mrb[0].mxu0
        %v6474 = vadd.f32 %v6329, %v6473
        %v6475 = vpop.f32.mrb[0].mxu0
        %v6476 = vpop.f32.mrb[0].mxu0
        %v6477 = vpop.f32.mrb[0].mxu0
        %6478 = vdwg.mxu0
        %v6479 = vadd.f32 %v6474, %v6407
        %vm6480 = vcmp.gt.f32.partialorder %v6479, 0.0
        %v6481 = vmin.f32 %v6479, 0.0
        %v6482 = vmul.f32 %v6481, 1.442695
        %v6483 = vpow.pop %v6482
        %v6484 = vsub.f32 %v6483, 1.0
        %v6485 = vsel %vm6480, %v6479, %v6484
        %6486 = vst.msk [vmem:[#allocation5 + $0x8] sm:$0x3] %vm5664, %v6485
        %v6487 = vld [vmem:[#allocation5 + $0x7] sm:$0x3]
        %v6488 = vpack.c.bf16 %v6487, %v6487
        %s6489 = scalar_lea.vmem [#allocation6], 1440
        %v6490 = vld [vmem:[%s6489] sm:$0xf]
        %v6491 = vld [vmem:[%s6489 + $0x4] sm:$0xf]
        %v6492 = vld [vmem:[%s6489 + $0x8] sm:$0xf]
        %v6493 = vld [vmem:[%s6489 + $0xc] sm:$0xf]
        %v6494 = vld [vmem:[%s6489 + $0x10] sm:$0xf]
        %v6495 = vld [vmem:[%s6489 + $0x14] sm:$0xf]
        %v6496 = vld [vmem:[%s6489 + $0x18] sm:$0xf]
        %v6497 = vld [vmem:[%s6489 + $0x1c] sm:$0xf]
        %v6498 = vld [vmem:[#allocation5 + $0x8] sm:$0x3]
        %v6499 = vpack.c.bf16 %v6498, %v6498
        %s6500 = scalar_lea.vmem [#allocation6], 1472
        %v6501 = vld [vmem:[%s6500] sm:$0xf]
        %v6502 = vld [vmem:[%s6500 + $0x4] sm:$0xf]
        %v6503 = vld [vmem:[%s6500 + $0x8] sm:$0xf]
        %v6504 = vld [vmem:[%s6500 + $0xc] sm:$0xf]
        %v6505 = vld [vmem:[%s6500 + $0x10] sm:$0xf]
        %v6506 = vld [vmem:[%s6500 + $0x14] sm:$0xf]
        %v6507 = vld [vmem:[%s6500 + $0x18] sm:$0xf]
        %v6508 = vld [vmem:[%s6500 + $0x1c] sm:$0xf]
        %v6517 = vunpack.c.l.b16 %v6501
        %v6518 = vunpack.c.l.b16 %v6502
        %v6519 = vunpack.c.l.b16 %v6503
        %v6520 = vunpack.c.l.b16 %v6504
        %v6521 = vunpack.c.l.b16 %v6505
        %v6522 = vunpack.c.l.b16 %v6506
        %v6523 = vunpack.c.l.b16 %v6507
        %v6524 = vunpack.c.l.b16 %v6508
        %v6525 = vpack.c.b16 %v6518, %v6517
        %v6526 = vpack.c.b16 %v6520, %v6519
        %v6527 = vpack.c.b16 %v6522, %v6521
        %v6528 = vpack.c.b16 %v6524, %v6523
        %v6534 = vsel %vm538, %v6499, 0
        %6536 = vmatprep.subr.bf16.mxu0 0
        %6537 = vmatpush1.bf16.msra.mxu0 %v6525
        %6538 = vmatprep.subr.bf16.mxu0 0
        %6539 = vmatpush1.bf16.msra.mxu0 %v6526
        %6540 = vmatprep.subr.bf16.mxu0 0
        %6541 = vmatpush1.bf16.msra.mxu0 %v6527
        %6542 = vmatprep.subr.bf16.mxu0 0
        %6543 = vmatpush1.bf16.msra.mxu0 %v6528
        %6544 = vmatprep.subr.bf16.mxu0 0
        %6545 = vmatpush1.bf16.msra.mxu0 0
        %6546 = vmatprep.subr.bf16.mxu0 0
        %6547 = vmatpush1.bf16.msra.mxu0 0
        %6548 = vmatprep.subr.bf16.mxu0 0
        %6549 = vmatpush1.bf16.msra.mxu0 0
        %6550 = vmatprep.subr.bf16.mxu0 0
        %6551 = vmatpush1.bf16.msra.mxu0 0
        %6552 = vmatprep.subr.bf16.mxu0 0
        %6553 = vmatpush1.bf16.msra.mxu0 0
        %6554 = vmatprep.subr.bf16.mxu0 0
        %6555 = vmatpush1.bf16.msra.mxu0 0
        %6556 = vmatprep.subr.bf16.mxu0 0
        %6557 = vmatpush1.bf16.msra.mxu0 0
        %6558 = vmatprep.subr.bf16.mxu0 0
        %6559 = vmatpush1.bf16.msra.mxu0 0
        %6560 = vmatprep.subr.bf16.mxu0 0
        %6561 = vmatpush1.bf16.msra.mxu0 0
        %6562 = vmatprep.subr.bf16.mxu0 0
        %6563 = vmatpush1.bf16.msra.mxu0 0
        %6564 = vmatprep.subr.bf16.mxu0 0
        %6565 = vmatpush1.bf16.msra.mxu0 0
        %6566 = vmatprep.subr.bf16.mxu0 0
        %6567 = vmatpush1.bf16.msra.mxu0 0
        %6568 = vmatprep.mubr.bf16.mxu0 0
        %6569 = vmatmul.mubr.bf16.gmra.mrb[0].mxu0 %v6534
        %v6570 = vpop.f32.mrb[0].mxu0
        %v6571 = vadd.f32 0.0, %v6570
        %v6572 = vpop.f32.mrb[0].mxu0
        %v6573 = vpop.f32.mrb[0].mxu0
        %v6574 = vpop.f32.mrb[0].mxu0
        %6575 = vdwg.mxu0
        %v6576 = vld [vmem:[#allocation5 + $0x9] sm:$0x3]
        %v6577 = vpack.c.bf16 %v6576, %v6576
        %s6578 = scalar_lea.vmem [#allocation6], 1504
        %v6579 = vld [vmem:[%s6578] sm:$0xf]
        %v6580 = vld [vmem:[%s6578 + $0x4] sm:$0xf]
        %v6581 = vld [vmem:[%s6578 + $0x8] sm:$0xf]
        %v6582 = vld [vmem:[%s6578 + $0xc] sm:$0xf]
        %v6583 = vld [vmem:[%s6578 + $0x10] sm:$0xf]
        %v6584 = vld [vmem:[%s6578 + $0x14] sm:$0xf]
        %v6585 = vld [vmem:[%s6578 + $0x18] sm:$0xf]
        %v6586 = vld [vmem:[%s6578 + $0x1c] sm:$0xf]
        %v6595 = vunpack.c.l.b16 %v6579
        %v6596 = vunpack.c.l.b16 %v6580
        %v6597 = vunpack.c.l.b16 %v6581
        %v6598 = vunpack.c.l.b16 %v6582
        %v6599 = vunpack.c.l.b16 %v6583
        %v6600 = vunpack.c.l.b16 %v6584
        %v6601 = vunpack.c.l.b16 %v6585
        %v6602 = vunpack.c.l.b16 %v6586
        %v6603 = vpack.c.b16 %v6596, %v6595
        %v6604 = vpack.c.b16 %v6598, %v6597
        %v6605 = vpack.c.b16 %v6600, %v6599
        %v6606 = vpack.c.b16 %v6602, %v6601
        %v6612 = vsel %vm538, %v6577, 0
        %6614 = vmatprep.subr.bf16.mxu0 0
        %6615 = vmatpush1.bf16.msra.mxu0 %v6603
        %6616 = vmatprep.subr.bf16.mxu0 0
        %6617 = vmatpush1.bf16.msra.mxu0 %v6604
        %6618 = vmatprep.subr.bf16.mxu0 0
        %6619 = vmatpush1.bf16.msra.mxu0 %v6605
        %6620 = vmatprep.subr.bf16.mxu0 0
        %6621 = vmatpush1.bf16.msra.mxu0 %v6606
        %6622 = vmatprep.subr.bf16.mxu0 0
        %6623 = vmatpush1.bf16.msra.mxu0 0
        %6624 = vmatprep.subr.bf16.mxu0 0
        %6625 = vmatpush1.bf16.msra.mxu0 0
        %6626 = vmatprep.subr.bf16.mxu0 0
        %6627 = vmatpush1.bf16.msra.mxu0 0
        %6628 = vmatprep.subr.bf16.mxu0 0
        %6629 = vmatpush1.bf16.msra.mxu0 0
        %6630 = vmatprep.subr.bf16.mxu0 0
        %6631 = vmatpush1.bf16.msra.mxu0 0
        %6632 = vmatprep.subr.bf16.mxu0 0
        %6633 = vmatpush1.bf16.msra.mxu0 0
        %6634 = vmatprep.subr.bf16.mxu0 0
        %6635 = vmatpush1.bf16.msra.mxu0 0
        %6636 = vmatprep.subr.bf16.mxu0 0
        %6637 = vmatpush1.bf16.msra.mxu0 0
        %6638 = vmatprep.subr.bf16.mxu0 0
        %6639 = vmatpush1.bf16.msra.mxu0 0
        %6640 = vmatprep.subr.bf16.mxu0 0
        %6641 = vmatpush1.bf16.msra.mxu0 0
        %6642 = vmatprep.subr.bf16.mxu0 0
        %6643 = vmatpush1.bf16.msra.mxu0 0
        %6644 = vmatprep.subr.bf16.mxu0 0
        %6645 = vmatpush1.bf16.msra.mxu0 0
        %6646 = vmatprep.mubr.bf16.mxu0 0
        %6647 = vmatmul.mubr.bf16.gmra.mrb[0].mxu0 %v6612
        %v6648 = vpop.f32.mrb[0].mxu0
        %v6649 = vadd.f32 0.0, %v6648
        %v6650 = vpop.f32.mrb[0].mxu0
        %v6651 = vpop.f32.mrb[0].mxu0
        %v6652 = vpop.f32.mrb[0].mxu0
        %6653 = vdwg.mxu0
        %v6662 = vunpack.c.l.b16 %v6490
        %v6663 = vunpack.c.l.b16 %v6491
        %v6664 = vunpack.c.l.b16 %v6492
        %v6665 = vunpack.c.l.b16 %v6493
        %v6666 = vunpack.c.l.b16 %v6494
        %v6667 = vunpack.c.l.b16 %v6495
        %v6668 = vunpack.c.l.b16 %v6496
        %v6669 = vunpack.c.l.b16 %v6497
        %v6670 = vpack.c.b16 %v6663, %v6662
        %v6671 = vpack.c.b16 %v6665, %v6664
        %v6672 = vpack.c.b16 %v6667, %v6666
        %v6673 = vpack.c.b16 %v6669, %v6668
        %v6679 = vsel %vm538, %v6488, 0
        %6681 = vmatprep.subr.bf16.mxu0 0
        %6682 = vmatpush1.bf16.msra.mxu0 %v6670
        %6683 = vmatprep.subr.bf16.mxu0 0
        %6684 = vmatpush1.bf16.msra.mxu0 %v6671
        %6685 = vmatprep.subr.bf16.mxu0 0
        %6686 = vmatpush1.bf16.msra.mxu0 %v6672
        %6687 = vmatprep.subr.bf16.mxu0 0
        %6688 = vmatpush1.bf16.msra.mxu0 %v6673
        %6689 = vmatprep.subr.bf16.mxu0 0
        %6690 = vmatpush1.bf16.msra.mxu0 0
        %6691 = vmatprep.subr.bf16.mxu0 0
        %6692 = vmatpush1.bf16.msra.mxu0 0
        %6693 = vmatprep.subr.bf16.mxu0 0
        %6694 = vmatpush1.bf16.msra.mxu0 0
        %6695 = vmatprep.subr.bf16.mxu0 0
        %6696 = vmatpush1.bf16.msra.mxu0 0
        %6697 = vmatprep.subr.bf16.mxu0 0
        %6698 = vmatpush1.bf16.msra.mxu0 0
        %6699 = vmatprep.subr.bf16.mxu0 0
        %6700 = vmatpush1.bf16.msra.mxu0 0
        %6701 = vmatprep.subr.bf16.mxu0 0
        %6702 = vmatpush1.bf16.msra.mxu0 0
        %6703 = vmatprep.subr.bf16.mxu0 0
        %6704 = vmatpush1.bf16.msra.mxu0 0
        %6705 = vmatprep.subr.bf16.mxu0 0
        %6706 = vmatpush1.bf16.msra.mxu0 0
        %6707 = vmatprep.subr.bf16.mxu0 0
        %6708 = vmatpush1.bf16.msra.mxu0 0
        %6709 = vmatprep.subr.bf16.mxu0 0
        %6710 = vmatpush1.bf16.msra.mxu0 0
        %6711 = vmatprep.subr.bf16.mxu0 0
        %6712 = vmatpush1.bf16.msra.mxu0 0
        %6713 = vmatprep.mubr.bf16.mxu0 0
        %6714 = vmatmul.mubr.bf16.gmra.mrb[0].mxu0 %v6679
        %v6715 = vpop.f32.mrb[0].mxu0
        %v6716 = vadd.f32 %v6571, %v6715
        %v6717 = vpop.f32.mrb[0].mxu0
        %v6718 = vpop.f32.mrb[0].mxu0
        %v6719 = vpop.f32.mrb[0].mxu0
        %6720 = vdwg.mxu0
        %v6721 = vadd.f32 %v6716, %v6649
        %s6722 = scalar_lea.vmem [#allocation8], 14
        %v6723 = vld [vmem:[%s6722] sm:$0x1]
        %v6725 = vlaneseq
        %v6726 = vshrl.u32 %v6725, 7
        %v6727 = vsub.s32 0, %v6726
        %v6728 = vrot.slane %v6723, %v6727
        %v6730 = vadd.f32 %v6721, %v6728
        %v6731 = vpack.c.bf16 %v6237, %v6237
        %s6732 = scalar_lea.vmem %s9, 160
        %v6733 = vld [vmem:[%s6732] sm:$0xf]
        %v6734 = vld [vmem:[%s6732 + $0x4] sm:$0xf]
        %v6735 = vld [vmem:[%s6732 + $0x8] sm:$0xf]
        %v6736 = vld [vmem:[%s6732 + $0xc] sm:$0xf]
        %v6737 = vld [vmem:[%s6732 + $0x10] sm:$0xf]
        %v6738 = vld [vmem:[%s6732 + $0x14] sm:$0xf]
        %v6739 = vld [vmem:[%s6732 + $0x18] sm:$0xf]
        %v6740 = vld [vmem:[%s6732 + $0x1c] sm:$0xf]
        %s6741 = scalar_lea.vmem [#allocation8], 15
        %v6742 = vld [vmem:[%s6741] sm:$0x1]
        %v6744 = vlaneseq
        %v6745 = vshrl.u32 %v6744, 7
        %v6746 = vsub.s32 0, %v6745
        %v6747 = vrot.slane %v6742, %v6746
        %v6757 = vunpack.c.l.b16 %v6733
        %v6758 = vunpack.c.l.b16 %v6734
        %v6759 = vunpack.c.l.b16 %v6735
        %v6760 = vunpack.c.l.b16 %v6736
        %v6761 = vunpack.c.l.b16 %v6737
        %v6762 = vunpack.c.l.b16 %v6738
        %v6763 = vunpack.c.l.b16 %v6739
        %v6764 = vunpack.c.l.b16 %v6740
        %v6765 = vpack.c.b16 %v6758, %v6757
        %v6766 = vpack.c.b16 %v6760, %v6759
        %v6767 = vpack.c.b16 %v6762, %v6761
        %v6768 = vpack.c.b16 %v6764, %v6763
        %v6774 = vsel %vm538, %v6731, 0
        %6776 = vmatprep.subr.bf16.mxu0 0
        %6777 = vmatpush1.bf16.msra.mxu0 %v6765
        %6778 = vmatprep.subr.bf16.mxu0 0
        %6779 = vmatpush1.bf16.msra.mxu0 %v6766
        %6780 = vmatprep.subr.bf16.mxu0 0
        %6781 = vmatpush1.bf16.msra.mxu0 %v6767
        %6782 = vmatprep.subr.bf16.mxu0 0
        %6783 = vmatpush1.bf16.msra.mxu0 %v6768
        %6784 = vmatprep.subr.bf16.mxu0 0
        %6785 = vmatpush1.bf16.msra.mxu0 0
        %6786 = vmatprep.subr.bf16.mxu0 0
        %6787 = vmatpush1.bf16.msra.mxu0 0
        %6788 = vmatprep.subr.bf16.mxu0 0
        %6789 = vmatpush1.bf16.msra.mxu0 0
        %6790 = vmatprep.subr.bf16.mxu0 0
        %6791 = vmatpush1.bf16.msra.mxu0 0
        %6792 = vmatprep.subr.bf16.mxu0 0
        %6793 = vmatpush1.bf16.msra.mxu0 0
        %6794 = vmatprep.subr.bf16.mxu0 0
        %6795 = vmatpush1.bf16.msra.mxu0 0
        %6796 = vmatprep.subr.bf16.mxu0 0
        %6797 = vmatpush1.bf16.msra.mxu0 0
        %6798 = vmatprep.subr.bf16.mxu0 0
        %6799 = vmatpush1.bf16.msra.mxu0 0
        %6800 = vmatprep.subr.bf16.mxu0 0
        %6801 = vmatpush1.bf16.msra.mxu0 0
        %6802 = vmatprep.subr.bf16.mxu0 0
        %6803 = vmatpush1.bf16.msra.mxu0 0
        %6804 = vmatprep.subr.bf16.mxu0 0
        %6805 = vmatpush1.bf16.msra.mxu0 0
        %6806 = vmatprep.subr.bf16.mxu0 0
        %6807 = vmatpush1.bf16.msra.mxu0 0
        %6808 = vmatprep.mubr.bf16.mxu0 0
        %6809 = vmatmul.mubr.bf16.gmra.mrb[0].mxu0 %v6774
        %v6810 = vpop.f32.mrb[0].mxu0
        %v6811 = vadd.f32 %v6747, %v6810
        %v6812 = vpop.f32.mrb[0].mxu0
        %v6813 = vpop.f32.mrb[0].mxu0
        %v6814 = vpop.f32.mrb[0].mxu0
        %6815 = vdwg.mxu0
        %v6816 = vadd.f32 %v6730, %v6811
        %6817 = vst.msk [vmem:[%s536] sm:$0x3] %vm5664, %v6816
        %p6818 = scmp.lt.s32.totalorder %s28, 1
        %s6819 = scalar_select %p6818, %s28, 1
        %s6820 = smul.addr %s6819, 2
        %s6821 = scalar_lea.vmem %s12, %s6820
        // Predicated region
        $region105: #{forward.1} parent=67 // pred_check
          %p6822 = pneg %p303
        $region106: #{forward.1} parent=67 // pred_check_branch
          %6824 = sbr.rel (%p6822) target = $region108
        $region107: #{forward.1} parent=67 // pred_region
          _
        $region108: #{forward.1} parent=67 // pred_fallthru
          _
      $region68: #{forward.1} parent=5 // pred_fallthru
        _
      %p6825 = scmp.le.s32.totalorder 2, %s23
      // Predicated region
      $region109: #{forward.1} parent=5 // pred_check
        %p6826 = pneg %p6825
      $region110: #{forward.1} parent=5 // pred_check_branch
        %6828 = sbr.rel (%p6826) target = $region112
      $region111: #{forward.1} parent=5 // pred_region
        %s6829 = ssub.s32 %s23, 2
        // Predicated region
        $region113: #{forward.1} parent=111 // pred_check
          %p6830 = pneg %p309
        $region114: #{forward.1} parent=111 // pred_check_branch
          %6832 = sbr.rel (%p6830) target = $region116
        $region115: #{forward.1} parent=111 // pred_region
          %p6833 = scmp.lt.s32.totalorder %s29, 1
          %s6834 = scalar_select %p6833, %s29, 1
          %s6835 = smul.addr %s6834, 2
          %s6836 = scalar_lea.vmem %s12, %s6835
        $region116: #{forward.1} parent=111 // pred_fallthru
          _
      $region112: #{forward.1} parent=5 // pred_fallthru
        _
    $region6: #{forward.1} parent=1 // loop_footer
      %s27 = sadd.s32 1, %s23
    $region7: #{forward.1} parent=1 // loop_footer_branch
      %22 = sbr.rel target = $region3
    $region8: #{forward.1} parent=1 // loop_exit
      _
    %6837 = vsyncpa [#allocation7], 1
    %s6838 = scalar_lea.sflag [#allocation7], 1
    %6839 = vsyncpa %s6838, 1
    %6840 = vsyncpa [#allocation9], 1
    %6841 = vsyncpa [#allocation12], 1
    %6842 = vsyncpa [#allocation15], 1
    %6843 = vsyncpa [#allocation18], 1

</llo_original>
